<compile_context>
chip_gen: v5e
topology: v5e:2x2
jax: 0.10.0
libtpu: 0.0.40
codegen_flags: <defaults>
</compile_context>

<pallas_src>
import numpy as np
import jax
import jax.numpy as jnp
from jax.experimental import pallas as pl
from jax.experimental.pallas import tpu as pltpu

# ----------------------------------------------------------------------------------
# Configuration (mirrors StageTopology.__init__ arguments)
# ----------------------------------------------------------------------------------
NODE_NUM = 6
C_IN, C_OUT = 4, 16
H_IN = W_IN = 16
STRIDE = 1                          # all candidate ops preserve spatial size
REDUCTION_FACTOR = [2, 4]           # -> stages (0,2), (2,4), (4,6)
OP_NAMES = ['skip_connect', 'nor_conv_1x1', 'avg_pool_3x3']
NUM_OPS = len(OP_NAMES)


def _cal_downsample_stages(node_num, reduction_factor):
    rf = [0] + list(reduction_factor) + [node_num]
    return [(rf[i], rf[i + 1]) for i in range(len(rf) - 1)]


STAGES_RANGE = _cal_downsample_stages(NODE_NUM, REDUCTION_FACTOR)
NUM_STAGES = len(STAGES_RANGE)


def _stage_of(index):
    for i, stage in enumerate(STAGES_RANGE):
        if index in range(*stage):
            return i
        if i == len(STAGES_RANGE) - 1 and index >= stage[-1]:
            return i
    return NUM_STAGES - 1


# ----------------------------------------------------------------------------------
# Topology (deterministic stand-in for networkx watts_strogatz_graph)
# TODO(synk): original uses nx.watts_strogatz_graph(N, 4, 0.25) (random rewiring);
#             here we use the deterministic p=0 ring lattice with k=4 neighbours.
# ----------------------------------------------------------------------------------
def _init_topo(n):
    adj = np.zeros((n, n), dtype=np.int32)
    for i in range(n):
        for d in (1, 2):
            adj[i, (i + d) % n] = 1
            adj[i, (i - d) % n] = 1
    return adj


def _check_in_out(adj, n):
    edges = [(i, j) for i in range(n) for j in range(i + 1, n) if adj[i, j]]
    indeg, outdeg = [0] * n, [0] * n
    for i, j in edges:
        outdeg[i] += 1
        indeg[j] += 1
    idx_in = [k for k in range(n) if indeg[k] == 0]
    idx_out = [k for k in range(n) if outdeg[k] == 0]
    return idx_in, idx_out, edges


TOPO = _init_topo(NODE_NUM)
IDX_IN, IDX_OUT, EDGES = _check_in_out(TOPO, NODE_NUM)

# edge_keys cover the complete upper triangle (as in _build_whole_picture),
# sorted by destination node (stable -> ascending source within a destination).
ALL_PAIRS = [(i, j) for i in range(NODE_NUM) for j in range(i + 1, NODE_NUM)]
EDGE_KEYS = sorted([f"{i}->{j}" for i, j in ALL_PAIRS], key=lambda s: int(s.split('->')[1]))
EDGE2INDEX = {k: i for i, k in enumerate(EDGE_KEYS)}

# ----------------------------------------------------------------------------------
# Static execution plan for the fused kernel
# ----------------------------------------------------------------------------------
NODE_STAGE = [_stage_of(n) for n in range(NODE_NUM)]
NODE_RES = [H_IN >> NODE_STAGE[n] for n in range(NODE_NUM)]       # square spatial sizes

# Outgoing edges grouped by source node, preserving the original EDGES order
# (destinations ascending -> destination resolutions descending, so same-resolution
# edges come first and equal-resolution edges are contiguous).
SRC_GROUPS = []
for _i, _j in EDGES:
    _e = EDGE2INDEX[f"{_i}->{_j}"]
    if SRC_GROUPS and SRC_GROUPS[-1][0] == _i:
        SRC_GROUPS[-1][1].append((_j, _e))
    else:
        SRC_GROUPS.append((_i, [(_j, _e)]))

FPN_STAGES = sorted({NODE_STAGE[n] for n in IDX_IN})
POOL_RES = sorted({NODE_RES[i] for i, _ in SRC_GROUPS}, reverse=True)

_down_pairs = set()
for _n in IDX_IN:
    if NODE_RES[_n] != H_IN:
        _down_pairs.add((H_IN, NODE_RES[_n]))
for _i, _outs in SRC_GROUPS:
    for _j, _ in _outs:
        if NODE_RES[_j] != NODE_RES[_i]:
            _down_pairs.add((NODE_RES[_i], NODE_RES[_j]))
if len(IDX_OUT) > 1:
    _rt = NODE_RES[IDX_OUT[-1]]
    for _n in IDX_OUT:
        if NODE_RES[_n] != _rt:
            _down_pairs.add((NODE_RES[_n], _rt))
DOWN_PAIRS = sorted(_down_pairs)

OUT_RES = NODE_RES[IDX_OUT[-1]] if len(IDX_OUT) > 1 else NODE_RES[IDX_OUT[0]]


# ----------------------------------------------------------------------------------
# Host-built constant operators: spatial ops as matmuls on the (H*W, C) row layout.
# ----------------------------------------------------------------------------------
def _pool3x3_matrix(r):
    """(r*r, r*r) operator for 3x3 avg pool, stride 1, pad 1, count_include_pad=False."""
    n = r * r
    m = np.zeros((n, n), np.float32)
    for ph in range(r):
        for pw in range(r):
            qs = [(qh, qw)
                  for qh in range(max(ph - 1, 0), min(ph + 1, r - 1) + 1)
                  for qw in range(max(pw - 1, 0), min(pw + 1, r - 1) + 1)]
            inv = 1.0 / len(qs)
            for qh, qw in qs:
                m[ph * r + pw, qh * r + qw] = inv
    return m


def _downsample_matrix(r_src, r_dst):
    """(r_dst^2, r_src^2) operator == AdaptiveAvgPool2d for integer factors."""
    f = r_src // r_dst
    m = np.zeros((r_dst * r_dst, r_src * r_src), np.float32)
    inv = 1.0 / (f * f)
    for ph in range(r_dst):
        for pw in range(r_dst):
            for dh in range(f):
                for dw in range(f):
                    m[ph * r_dst + pw, (ph * f + dh) * r_src + (pw * f + dw)] = inv
    return m


def _pick_tile_batch(B):
    """Largest divisor of B that keeps the grid length >= 2 (v7x megacore) and TB <= 8."""
    cap = max(1, min(B // 2, 8))
    for tb in range(cap, 0, -1):
        if B % tb == 0:
            return tb
    return 1


# ----------------------------------------------------------------------------------
# Fused Pallas kernel: the whole StageTopology forward in one pallas_call.
# ----------------------------------------------------------------------------------
def build_stage_topology_forward(params):
    C = C_OUT
    HWF = H_IN * W_IN
    HWO = OUT_RES * OUT_RES
    S = len(FPN_STAGES)

    # ---- one-time parameter packing (executed eagerly, outside jit) ----
    alphas = np.asarray(jax.nn.softmax(jnp.asarray(params['op_params'], jnp.float32), axis=-1))
    alphas_flat = jnp.asarray(alphas.reshape(-1), jnp.float32)        # SMEM: a_skip/a_pool

    invariants = []
    # FPN 1x1-conv weights concatenated over the needed stages (conv-first reorder).
    fpnw_cat = np.concatenate([np.asarray(params['fpn_w'][s], np.float32) for s in FPN_STAGES],
                              axis=-1)
    fpnb_cat = np.concatenate([np.asarray(params['fpn_b'][s], np.float32) for s in FPN_STAGES],
                              axis=-1)
    invariants.append(jnp.asarray(fpnw_cat, jnp.bfloat16))            # (C_IN, S*C)
    invariants.append(jnp.asarray(fpnb_cat, jnp.float32))             # (1,   S*C)
    # Per-source concatenated 1x1-conv weights with the conv-alpha folded in.
    for src, outs in SRC_GROUPS:
        w_cat = np.concatenate([alphas[e, 1] * np.asarray(params['edge_w'][e], np.float32)
                                for _, e in outs], axis=-1)
        b_cat = np.concatenate([alphas[e, 1] * np.asarray(params['edge_b'][e], np.float32)
                                for _, e in outs], axis=-1)
        invariants.append(jnp.asarray(w_cat, jnp.bfloat16))           # (C, k*C)
        invariants.append(jnp.asarray(b_cat, jnp.float32))            # (1, k*C)
    # Constant spatial operators, stored bf16 -> single-pass MXU matmuls.
    for r in POOL_RES:
        invariants.append(jnp.asarray(_pool3x3_matrix(r), jnp.bfloat16))       # (r^2, r^2)
    for pr in DOWN_PAIRS:
        invariants.append(jnp.asarray(_downsample_matrix(*pr), jnp.bfloat16))  # (rd^2, rs^2)

    # ---- kernel factory (TB is a trace-time constant; DAG unrolled statically) ----
    def make_kernel(TB):
        def kernel(*refs):
            it = iter(refs)
            x_ref = next(it)                                   # (TB*HWF, C_IN) bf16
            fpnw_ref = next(it)
            fpnb_ref = next(it)
            wcat_ref, bcat_ref = {}, {}
            for src, _ in SRC_GROUPS:
                wcat_ref[src] = next(it)
                bcat_ref[src] = next(it)
            pool_ref = {r: next(it) for r in POOL_RES}
            down_ref = {pr: next(it) for pr in DOWN_PAIRS}
            alpha_ref = next(it)                               # SMEM f32[E*NUM_OPS]
            out_ref = next(it)                                 # (TB*HWO, C) f32
            node_ref = [next(it) for _ in range(NODE_NUM)]     # VMEM scratch accumulators

            written = set()

            def acc(n, v):
                # First contribution is a store (scratch persists across grid steps,
                # so it must be overwritten, not accumulated, each step).
                if n in written:
                    node_ref[n][...] += v
                else:
                    node_ref[n][...] = v
                    written.add(n)

            def fdot(a, b):
                return jnp.dot(a, b, preferred_element_type=jnp.float32)

            def spatial_mm(op_b, x_f32, rin):
                # Left-multiply each batch element by a bf16 constant spatial operator.
                xb = x_f32.astype(jnp.bfloat16)
                parts = [fdot(op_b, xb[b * rin:(b + 1) * rin, :]) for b in range(TB)]
                return parts[0] if TB == 1 else jnp.concatenate(parts, axis=0)

            # ---- synthetic FPN -> input nodes (1x1 conv FIRST, downsample second) ----
            # TODO(synk): build_fpn()/FPN registry is external to this module; stand-in is
            #             (1x1 conv -> adaptive avg-downsample) per stage (they commute).
            x = x_ref[...]
            feat_all = fdot(x, fpnw_ref[...]) + fpnb_ref[...]          # (TB*HWF, S*C)
            for n in IDX_IN:
                si = FPN_STAGES.index(NODE_STAGE[n])
                r = NODE_RES[n]
                feat = feat_all if S == 1 else feat_all[:, si * C:(si + 1) * C]
                if r != H_IN:
                    feat = spatial_mm(down_ref[(H_IN, r)][...], feat, HWF)
                acc(n, feat)

            # ---- DAG edges, grouped by source node (same order as EDGES) ----
            for src, outs in SRC_GROUPS:
                assert src in written, f"node {src} used before being written"
                rs = NODE_RES[src]
                rs2 = rs * rs
                xsrc = node_ref[src][...]                              # (TB*rs2, C) f32
                # avg_pool_3x3 (count_include_pad=False) as one bf16 constant matmul
                pooled = spatial_mm(pool_ref[rs][...], xsrc, rs2)
                # nor_conv_1x1 for ALL outgoing edges at once (a_conv pre-folded).
                # TODO(synk): OPS registry is external; nor_conv_1x1 stand-in is
                #             ReLU -> 1x1 conv (+bias), BatchNorm omitted.
                relu_b = jnp.maximum(xsrc, 0.0).astype(jnp.bfloat16)
                y_all = fdot(relu_b, wcat_ref[src][...]) + bcat_ref[src][...]

                # Group consecutive edges by destination resolution so a shared
                # down-sample runs as ONE matmul per batch element per group.
                groups = []
                for t, (dst, e) in enumerate(outs):
                    rd = NODE_RES[dst]
                    if groups and groups[-1][0] == rd:
                        groups[-1][1].append((t, dst, e))
                    else:
                        groups.append((rd, [(t, dst, e)]))

                for rd, sub in groups:
                    mixed = []
                    for t, dst, e in sub:
                        a_skip = alpha_ref[e * NUM_OPS + 0]
                        a_pool = alpha_ref[e * NUM_OPS + 2]
                        yc = y_all[:, t * C:(t + 1) * C] if len(outs) > 1 else y_all
                        mixed.append(a_skip * xsrc + a_pool * pooled + yc)
                    if rd == rs:
                        for (_, dst, _), mv in zip(sub, mixed):
                            acc(dst, mv)
                    else:
                        slab = mixed[0] if len(mixed) == 1 else jnp.concatenate(mixed, axis=-1)
                        down = spatial_mm(down_ref[(rs, rd)][...], slab, rs2)
                        for q, (_, dst, _) in enumerate(sub):
                            dv = down if len(sub) == 1 else down[:, q * C:(q + 1) * C]
                            acc(dst, dv)

            # ---- outlet ----
            if len(IDX_OUT) == 1:
                out_ref[...] = node_ref[IDX_OUT[0]][...]
            else:
                out = None
                for n in IDX_OUT:
                    v = node_ref[n][...]
                    if NODE_RES[n] != OUT_RES:
                        v = spatial_mm(down_ref[(NODE_RES[n], OUT_RES)][...], v, NODE_RES[n] ** 2)
                    out = v if out is None else out + v
                out_ref[...] = out

        return kernel

    @jax.jit
    def forward(x_nchw):
        B = x_nchw.shape[0]
        TB = _pick_tile_batch(B)           # batch elements per grid step
        G = B // TB                        # grid length (>= 2 whenever possible, for v7x)

        # NCHW -> row-flattened NHWC (rows = b*H*W + h*W + w, lanes = channels), bf16.
        x2d = (jnp.transpose(x_nchw, (0, 2, 3, 1))
               .reshape(B * HWF, C_IN).astype(jnp.bfloat16))

        in_specs = [pl.BlockSpec((TB * HWF, C_IN), lambda b: (b, 0))]              # per-step batch
        in_specs += [pl.BlockSpec(a.shape, lambda b: (0, 0)) for a in invariants]   # grid-invariant
        in_specs += [pl.BlockSpec(memory_space=pltpu.MemorySpace.SMEM)]             # alphas
        out_spec = pl.BlockSpec((TB * HWO, C_OUT), lambda b: (b, 0))
        scratch = [pltpu.VMEM((TB * NODE_RES[n] * NODE_RES[n], C_OUT), jnp.float32)
                   for n in range(NODE_NUM)]

        out2d = pl.pallas_call(
            make_kernel(TB),
            out_shape=jax.ShapeDtypeStruct((B * HWO, C_OUT), jnp.float32),
            grid_spec=pltpu.PrefetchScalarGridSpec(
                num_scalar_prefetch=0,
                grid=(G,),
                in_specs=in_specs,
                out_specs=out_spec,
                scratch_shapes=scratch,
            ),
            compiler_params=pltpu.CompilerParams(
                dimension_semantics=("parallel",),   # independent batch-chunk axis
            ),
        )(x2d, *invariants, alphas_flat)

        out = out2d.reshape(B, OUT_RES, OUT_RES, C_OUT)
        return jnp.transpose(out, (0, 3, 1, 2))                  # back to NCHW

    return forward


# ----------------------------------------------------------------------------------
# Pure-JAX reference (plain NHWC f32 ops) used as a correctness sanity check.
# ----------------------------------------------------------------------------------
def reference_forward(x_nchw, params):
    x = jnp.transpose(x_nchw, (0, 2, 3, 1)).astype(jnp.float32)

    def down(v, r_out):
        b, h, w, c = v.shape
        f = h // r_out
        if f == 1:
            return v
        return v.reshape(b, r_out, f, r_out, f, c).mean(axis=(2, 4))

    def pool3x3(v):
        b, h, w, c = v.shape
        p = jnp.pad(v, ((0, 0), (1, 1), (1, 1), (0, 0)))
        acc = sum(p[:, dh:dh + h, dw:dw + w, :] for dh in range(3) for dw in range(3))
        ch = jnp.minimum(jnp.arange(h) + 1, h - 1) - jnp.maximum(jnp.arange(h) - 1, 0) + 1
        cw = jnp.minimum(jnp.arange(w) + 1, w - 1) - jnp.maximum(jnp.arange(w) - 1, 0) + 1
        cnt = (ch[:, None] * cw[None, :]).astype(jnp.float32)[None, :, :, None]
        return acc / cnt

    nodes = [None] * NODE_NUM
    for n in IDX_IN:
        s = NODE_STAGE[n]
        xs = down(x, NODE_RES[n])
        feat = jnp.einsum('bhwc,cd->bhwd', xs, params['fpn_w'][s]) + params['fpn_b'][s][0]
        nodes[n] = feat if nodes[n] is None else nodes[n] + feat

    alphas = jax.nn.softmax(params['op_params'], axis=-1)
    for i, j in EDGES:
        e = EDGE2INDEX[f"{i}->{j}"]
        src = nodes[i]
        y = (jnp.einsum('bhwc,cd->bhwd', jnp.maximum(src, 0.0), params['edge_w'][e])
             + params['edge_b'][e][0])
        mixed = alphas[e, 0] * src + alphas[e, 1] * y + alphas[e, 2] * pool3x3(src)
        pooled = down(mixed, NODE_RES[j])
        nodes[j] = pooled if nodes[j] is None else nodes[j] + pooled

    if len(IDX_OUT) == 1:
        out = nodes[IDX_OUT[0]]
    else:
        out = sum(down(nodes[n], OUT_RES) for n in IDX_OUT)
    return jnp.transpose(out, (0, 3, 1, 2))


# ----------------------------------------------------------------------------------
# Main
# ----------------------------------------------------------------------------------
if __name__ == "__main__":
    key = jax.random.PRNGKey(0)
    k_x, k_op, k_fpn, k_edge = jax.random.split(key, 4)

    params = {
        # op_params ~ 0.001 * randn(num_edges, num_ops)  (as in the PyTorch module)
        'op_params': 0.001 * jax.random.normal(k_op, (len(EDGE_KEYS), NUM_OPS), jnp.float32),
        # synthetic FPN 1x1-conv weights per stage
        'fpn_w': 0.1 * jax.random.normal(k_fpn, (NUM_STAGES, C_IN, C_OUT), jnp.float32),
        'fpn_b': jnp.zeros((NUM_STAGES, 1, C_OUT), jnp.float32),
        # per-edge nor_conv_1x1 weights (one candidate-op parameter set per possible edge)
        'edge_w': (1.0 / np.sqrt(C_OUT)) *
                  jax.random.normal(k_edge, (len(EDGE_KEYS), C_OUT, C_OUT), jnp.float32),
        'edge_b': jnp.zeros((len(EDGE_KEYS), 1, C_OUT), jnp.float32),
    }

    B = 4                                                     # grid of 2 steps, TB=2 per step
    x = jax.random.normal(k_x, (B, C_IN, H_IN, W_IN), jnp.float32)   # NCHW like PyTorch

    fwd = build_stage_topology_forward(params)
    out = jax.block_until_ready(fwd(x))

    expected = (B, C_OUT, H_IN >> (NUM_STAGES - 1), W_IN >> (NUM_STAGES - 1))
    assert out.shape == expected, (out.shape, expected)
    assert bool(jnp.all(jnp.isfinite(out)))

    # sanity check against a plain-JAX f32 reference (loose tol: all matmuls run bf16 on MXU)
    ref = jax.block_until_ready(reference_forward(x, params))
    err = float(jnp.max(jnp.abs(out - ref)))
    scale = float(jnp.max(jnp.abs(ref))) + 1.0
    assert err <= 5e-2 * scale, (err, scale)

    print("KERNEL_OK")
</pallas_src>

<mosaic_0001>
module attributes {stable_mosaic.version = 11 : i64} {
  func.func @kernel(%arg0: i32, %arg1: memref<512x4xbf16, #tpu.memory_space<vmem>>, %arg2: memref<4x16xbf16, #tpu.memory_space<vmem>>, %arg3: memref<1x16xf32, #tpu.memory_space<vmem>>, %arg4: memref<16x64xbf16, #tpu.memory_space<vmem>>, %arg5: memref<1x64xf32, #tpu.memory_space<vmem>>, %arg6: memref<16x48xbf16, #tpu.memory_space<vmem>>, %arg7: memref<1x48xf32, #tpu.memory_space<vmem>>, %arg8: memref<16x32xbf16, #tpu.memory_space<vmem>>, %arg9: memref<1x32xf32, #tpu.memory_space<vmem>>, %arg10: memref<16x32xbf16, #tpu.memory_space<vmem>>, %arg11: memref<1x32xf32, #tpu.memory_space<vmem>>, %arg12: memref<16x16xbf16, #tpu.memory_space<vmem>>, %arg13: memref<1x16xf32, #tpu.memory_space<vmem>>, %arg14: memref<256x256xbf16, #tpu.memory_space<vmem>>, %arg15: memref<64x64xbf16, #tpu.memory_space<vmem>>, %arg16: memref<16x16xbf16, #tpu.memory_space<vmem>>, %arg17: memref<16x64xbf16, #tpu.memory_space<vmem>>, %arg18: memref<16x256xbf16, #tpu.memory_space<vmem>>, %arg19: memref<64x256xbf16, #tpu.memory_space<vmem>>, %arg20: memref<45xf32, #tpu.memory_space<smem>>, %arg21: memref<32x16xf32, #tpu.memory_space<vmem>>, %arg22: memref<512x16xf32, #tpu.memory_space<vmem>>, %arg23: memref<512x16xf32, #tpu.memory_space<vmem>>, %arg24: memref<128x16xf32, #tpu.memory_space<vmem>>, %arg25: memref<128x16xf32, #tpu.memory_space<vmem>>, %arg26: memref<32x16xf32, #tpu.memory_space<vmem>>, %arg27: memref<32x16xf32, #tpu.memory_space<vmem>>) attributes {dimension_semantics = [#tpu.dimension_semantics<parallel>], iteration_bounds = array<i64: 2>, scalar_prefetch = 0 : i64, scratch_operands = 6 : i64, tpu.core_type = #tpu.core_type<tc>, window_params = [{transform_indices = @transform_0, window_bounds = array<i64: 512, 4>}, {pipeline_mode = #tpu.pipeline_mode<synchronous>, transform_indices = @transform_1, window_bounds = array<i64: 4, 16>}, {pipeline_mode = #tpu.pipeline_mode<synchronous>, transform_indices = @transform_2, window_bounds = array<i64: 1, 16>}, {pipeline_mode = #tpu.pipeline_mode<synchronous>, transform_indices = @transform_3, window_bounds = array<i64: 16, 64>}, {pipeline_mode = #tpu.pipeline_mode<synchronous>, transform_indices = @transform_4, window_bounds = array<i64: 1, 64>}, {pipeline_mode = #tpu.pipeline_mode<synchronous>, transform_indices = @transform_5, window_bounds = array<i64: 16, 48>}, {pipeline_mode = #tpu.pipeline_mode<synchronous>, transform_indices = @transform_6, window_bounds = array<i64: 1, 48>}, {pipeline_mode = #tpu.pipeline_mode<synchronous>, transform_indices = @transform_7, window_bounds = array<i64: 16, 32>}, {pipeline_mode = #tpu.pipeline_mode<synchronous>, transform_indices = @transform_8, window_bounds = array<i64: 1, 32>}, {pipeline_mode = #tpu.pipeline_mode<synchronous>, transform_indices = @transform_9, window_bounds = array<i64: 16, 32>}, {pipeline_mode = #tpu.pipeline_mode<synchronous>, transform_indices = @transform_10, window_bounds = array<i64: 1, 32>}, {pipeline_mode = #tpu.pipeline_mode<synchronous>, transform_indices = @transform_11, window_bounds = array<i64: 16, 16>}, {pipeline_mode = #tpu.pipeline_mode<synchronous>, transform_indices = @transform_12, window_bounds = array<i64: 1, 16>}, {pipeline_mode = #tpu.pipeline_mode<synchronous>, transform_indices = @transform_13, window_bounds = array<i64: 256, 256>}, {pipeline_mode = #tpu.pipeline_mode<synchronous>, transform_indices = @transform_14, window_bounds = array<i64: 64, 64>}, {pipeline_mode = #tpu.pipeline_mode<synchronous>, transform_indices = @transform_15, window_bounds = array<i64: 16, 16>}, {pipeline_mode = #tpu.pipeline_mode<synchronous>, transform_indices = @transform_16, window_bounds = array<i64: 16, 64>}, {pipeline_mode = #tpu.pipeline_mode<synchronous>, transform_indices = @transform_17, window_bounds = array<i64: 16, 256>}, {pipeline_mode = #tpu.pipeline_mode<synchronous>, transform_indices = @transform_18, window_bounds = array<i64: 64, 256>}, {transform_indices = @transform_19, window_bounds = array<i64: 45>}, {transform_indices = @transform_20, window_bounds = array<i64: 32, 16>}]} {
    %c0 = arith.constant 0 : index
    %c0_0 = arith.constant 0 : index
    %0 = vector.load %arg1[%c0, %c0_0] : memref<512x4xbf16, #tpu.memory_space<vmem>>, vector<512x4xbf16>
    %c0_1 = arith.constant 0 : index
    %c0_2 = arith.constant 0 : index
    %1 = vector.load %arg2[%c0_1, %c0_2] : memref<4x16xbf16, #tpu.memory_space<vmem>>, vector<4x16xbf16>
    %cst = arith.constant dense<0.000000e+00> : vector<512x16xf32>
    %2 = tpu.matmul %0, %1, %cst {dimension_numbers = #tpu.dot_dimension_numbers<[1], [0], [0], [1], [0, 0, 1, 1], [], []>} : vector<512x4xbf16>, vector<4x16xbf16>, vector<512x16xf32> -> vector<512x16xf32>
    %c0_3 = arith.constant 0 : index
    %c0_4 = arith.constant 0 : index
    %3 = vector.load %arg3[%c0_3, %c0_4] : memref<1x16xf32, #tpu.memory_space<vmem>>, vector<1x16xf32>
    %4 = vector.broadcast %3 : vector<1x16xf32> to vector<512x16xf32>
    %5 = arith.addf %2, %4 : vector<512x16xf32>
    %c0_5 = arith.constant 0 : index
    %c0_6 = arith.constant 0 : index
    %6 = vector.load %arg22[%c0_5, %c0_6] : memref<512x16xf32, #tpu.memory_space<vmem>>, vector<512x16xf32>
    tpu.vector_store %arg22[%c0_5, %c0_6], %5 {strides = array<i32>} : memref<512x16xf32, #tpu.memory_space<vmem>>, vector<512x16xf32>,
    %c0_7 = arith.constant 0 : index
    %c0_8 = arith.constant 0 : index
    %7 = vector.load %arg22[%c0_7, %c0_8] : memref<512x16xf32, #tpu.memory_space<vmem>>, vector<512x16xf32>
    %c0_9 = arith.constant 0 : index
    %c0_10 = arith.constant 0 : index
    %8 = vector.load %arg14[%c0_9, %c0_10] : memref<256x256xbf16, #tpu.memory_space<vmem>>, vector<256x256xbf16>
    %9 = arith.truncf %7 : vector<512x16xf32> to vector<512x16xbf16>
    %10 = vector.extract_strided_slice %9 {offsets = [0, 0], sizes = [256, 16], strides = [1, 1]} : vector<512x16xbf16> to vector<256x16xbf16>
    %cst_11 = arith.constant dense<0.000000e+00> : vector<256x16xf32>
    %11 = tpu.matmul %8, %10, %cst_11 {dimension_numbers = #tpu.dot_dimension_numbers<[1], [0], [0], [1], [0, 0, 1, 1], [], []>} : vector<256x256xbf16>, vector<256x16xbf16>, vector<256x16xf32> -> vector<256x16xf32>
    %12 = vector.extract_strided_slice %9 {offsets = [256, 0], sizes = [256, 16], strides = [1, 1]} : vector<512x16xbf16> to vector<256x16xbf16>
    %cst_12 = arith.constant dense<0.000000e+00> : vector<256x16xf32>
    %13 = tpu.matmul %8, %12, %cst_12 {dimension_numbers = #tpu.dot_dimension_numbers<[1], [0], [0], [1], [0, 0, 1, 1], [], []>} : vector<256x256xbf16>, vector<256x16xbf16>, vector<256x16xf32> -> vector<256x16xf32>
    %14 = tpu.concatenate %11, %13 in 0 : vector<256x16xf32>, vector<256x16xf32> -> vector<512x16xf32>
    %cst_13 = arith.constant 0.000000e+00 : f32
    %15 = vector.broadcast %cst_13 : f32 to vector<512x16xf32>
    %16 = arith.maximumf %7, %15 : vector<512x16xf32>
    %17 = arith.truncf %16 : vector<512x16xf32> to vector<512x16xbf16>
    %c0_14 = arith.constant 0 : index
    %c0_15 = arith.constant 0 : index
    %18 = vector.load %arg4[%c0_14, %c0_15] : memref<16x64xbf16, #tpu.memory_space<vmem>>, vector<16x64xbf16>
    %cst_16 = arith.constant dense<0.000000e+00> : vector<512x64xf32>
    %19 = tpu.matmul %17, %18, %cst_16 {dimension_numbers = #tpu.dot_dimension_numbers<[1], [0], [0], [1], [0, 0, 1, 1], [], []>} : vector<512x16xbf16>, vector<16x64xbf16>, vector<512x64xf32> -> vector<512x64xf32>
    %c0_17 = arith.constant 0 : index
    %c0_18 = arith.constant 0 : index
    %20 = vector.load %arg5[%c0_17, %c0_18] : memref<1x64xf32, #tpu.memory_space<vmem>>, vector<1x64xf32>
    %21 = vector.broadcast %20 : vector<1x64xf32> to vector<512x64xf32>
    %22 = arith.addf %19, %21 : vector<512x64xf32>
    %c0_19 = arith.constant 0 : index
    %23 = memref.load %arg20[%c0_19] : memref<45xf32, #tpu.memory_space<smem>>
    %c2 = arith.constant 2 : index
    %24 = memref.load %arg20[%c2] : memref<45xf32, #tpu.memory_space<smem>>
    %25 = vector.extract_strided_slice %22 {offsets = [0, 0], sizes = [512, 16], strides = [1, 1]} : vector<512x64xf32> to vector<512x16xf32>
    %26 = vector.broadcast %23 : f32 to vector<512x16xf32>
    %27 = arith.mulf %26, %7 : vector<512x16xf32>
    %28 = vector.broadcast %24 : f32 to vector<512x16xf32>
    %29 = arith.mulf %28, %14 : vector<512x16xf32>
    %30 = arith.addf %27, %29 : vector<512x16xf32>
    %31 = arith.addf %30, %25 : vector<512x16xf32>
    %c0_20 = arith.constant 0 : index
    %c0_21 = arith.constant 0 : index
    %32 = vector.load %arg23[%c0_20, %c0_21] : memref<512x16xf32, #tpu.memory_space<vmem>>, vector<512x16xf32>
    tpu.vector_store %arg23[%c0_20, %c0_21], %31 {strides = array<i32>} : memref<512x16xf32, #tpu.memory_space<vmem>>, vector<512x16xf32>,
    %c3 = arith.constant 3 : index
    %33 = memref.load %arg20[%c3] : memref<45xf32, #tpu.memory_space<smem>>
    %c5 = arith.constant 5 : index
    %34 = memref.load %arg20[%c5] : memref<45xf32, #tpu.memory_space<smem>>
    %35 = vector.extract_strided_slice %22 {offsets = [0, 16], sizes = [512, 16], strides = [1, 1]} : vector<512x64xf32> to vector<512x16xf32>
    %36 = vector.broadcast %33 : f32 to vector<512x16xf32>
    %37 = arith.mulf %36, %7 : vector<512x16xf32>
    %38 = vector.broadcast %34 : f32 to vector<512x16xf32>
    %39 = arith.mulf %38, %14 : vector<512x16xf32>
    %40 = arith.addf %37, %39 : vector<512x16xf32>
    %41 = arith.addf %40, %35 : vector<512x16xf32>
    %c0_22 = arith.constant 0 : index
    %c0_23 = arith.constant 0 : index
    %42 = vector.load %arg19[%c0_22, %c0_23] : memref<64x256xbf16, #tpu.memory_space<vmem>>, vector<64x256xbf16>
    %43 = arith.truncf %41 : vector<512x16xf32> to vector<512x16xbf16>
    %44 = vector.extract_strided_slice %43 {offsets = [0, 0], sizes = [256, 16], strides = [1, 1]} : vector<512x16xbf16> to vector<256x16xbf16>
    %cst_24 = arith.constant dense<0.000000e+00> : vector<64x16xf32>
    %45 = tpu.matmul %42, %44, %cst_24 {dimension_numbers = #tpu.dot_dimension_numbers<[1], [0], [0], [1], [0, 0, 1, 1], [], []>} : vector<64x256xbf16>, vector<256x16xbf16>, vector<64x16xf32> -> vector<64x16xf32>
    %46 = vector.extract_strided_slice %43 {offsets = [256, 0], sizes = [256, 16], strides = [1, 1]} : vector<512x16xbf16> to vector<256x16xbf16>
    %cst_25 = arith.constant dense<0.000000e+00> : vector<64x16xf32>
    %47 = tpu.matmul %42, %46, %cst_25 {dimension_numbers = #tpu.dot_dimension_numbers<[1], [0], [0], [1], [0, 0, 1, 1], [], []>} : vector<64x256xbf16>, vector<256x16xbf16>, vector<64x16xf32> -> vector<64x16xf32>
    %48 = tpu.concatenate %45, %47 in 0 : vector<64x16xf32>, vector<64x16xf32> -> vector<128x16xf32>
    %c0_26 = arith.constant 0 : index
    %c0_27 = arith.constant 0 : index
    %49 = vector.load %arg24[%c0_26, %c0_27] : memref<128x16xf32, #tpu.memory_space<vmem>>, vector<128x16xf32>
    tpu.vector_store %arg24[%c0_26, %c0_27], %48 {strides = array<i32>} : memref<128x16xf32, #tpu.memory_space<vmem>>, vector<128x16xf32>,
    %c18 = arith.constant 18 : index
    %50 = memref.load %arg20[%c18] : memref<45xf32, #tpu.memory_space<smem>>
    %c20 = arith.constant 20 : index
    %51 = memref.load %arg20[%c20] : memref<45xf32, #tpu.memory_space<smem>>
    %52 = vector.extract_strided_slice %22 {offsets = [0, 32], sizes = [512, 16], strides = [1, 1]} : vector<512x64xf32> to vector<512x16xf32>
    %53 = vector.broadcast %50 : f32 to vector<512x16xf32>
    %54 = arith.mulf %53, %7 : vector<512x16xf32>
    %55 = vector.broadcast %51 : f32 to vector<512x16xf32>
    %56 = arith.mulf %55, %14 : vector<512x16xf32>
    %57 = arith.addf %54, %56 : vector<512x16xf32>
    %58 = arith.addf %57, %52 : vector<512x16xf32>
    %c30 = arith.constant 30 : index
    %59 = memref.load %arg20[%c30] : memref<45xf32, #tpu.memory_space<smem>>
    %c32 = arith.constant 32 : index
    %60 = memref.load %arg20[%c32] : memref<45xf32, #tpu.memory_space<smem>>
    %61 = vector.extract_strided_slice %22 {offsets = [0, 48], sizes = [512, 16], strides = [1, 1]} : vector<512x64xf32> to vector<512x16xf32>
    %62 = vector.broadcast %59 : f32 to vector<512x16xf32>
    %63 = arith.mulf %62, %7 : vector<512x16xf32>
    %64 = vector.broadcast %60 : f32 to vector<512x16xf32>
    %65 = arith.mulf %64, %14 : vector<512x16xf32>
    %66 = arith.addf %63, %65 : vector<512x16xf32>
    %67 = arith.addf %66, %61 : vector<512x16xf32>
    %68 = tpu.concatenate %58, %67 in 1 : vector<512x16xf32>, vector<512x16xf32> -> vector<512x32xf32>
    %c0_28 = arith.constant 0 : index
    %c0_29 = arith.constant 0 : index
    %69 = vector.load %arg18[%c0_28, %c0_29] : memref<16x256xbf16, #tpu.memory_space<vmem>>, vector<16x256xbf16>
    %70 = arith.truncf %68 : vector<512x32xf32> to vector<512x32xbf16>
    %71 = vector.extract_strided_slice %70 {offsets = [0, 0], sizes = [256, 32], strides = [1, 1]} : vector<512x32xbf16> to vector<256x32xbf16>
    %cst_30 = arith.constant dense<0.000000e+00> : vector<16x32xf32>
    %72 = tpu.matmul %69, %71, %cst_30 {dimension_numbers = #tpu.dot_dimension_numbers<[1], [0], [0], [1], [0, 0, 1, 1], [], []>} : vector<16x256xbf16>, vector<256x32xbf16>, vector<16x32xf32> -> vector<16x32xf32>
    %73 = vector.extract_strided_slice %70 {offsets = [256, 0], sizes = [256, 32], strides = [1, 1]} : vector<512x32xbf16> to vector<256x32xbf16>
    %cst_31 = arith.constant dense<0.000000e+00> : vector<16x32xf32>
    %74 = tpu.matmul %69, %73, %cst_31 {dimension_numbers = #tpu.dot_dimension_numbers<[1], [0], [0], [1], [0, 0, 1, 1], [], []>} : vector<16x256xbf16>, vector<256x32xbf16>, vector<16x32xf32> -> vector<16x32xf32>
    %75 = tpu.concatenate %72, %74 in 0 : vector<16x32xf32>, vector<16x32xf32> -> vector<32x32xf32>
    %76 = vector.extract_strided_slice %75 {offsets = [0, 0], sizes = [32, 16], strides = [1, 1]} : vector<32x32xf32> to vector<32x16xf32>
    %c0_32 = arith.constant 0 : index
    %c0_33 = arith.constant 0 : index
    %77 = vector.load %arg26[%c0_32, %c0_33] : memref<32x16xf32, #tpu.memory_space<vmem>>, vector<32x16xf32>
    tpu.vector_store %arg26[%c0_32, %c0_33], %76 {strides = array<i32>} : memref<32x16xf32, #tpu.memory_space<vmem>>, vector<32x16xf32>,
    %78 = vector.extract_strided_slice %75 {offsets = [0, 16], sizes = [32, 16], strides = [1, 1]} : vector<32x32xf32> to vector<32x16xf32>
    %c0_34 = arith.constant 0 : index
    %c0_35 = arith.constant 0 : index
    %79 = vector.load %arg27[%c0_34, %c0_35] : memref<32x16xf32, #tpu.memory_space<vmem>>, vector<32x16xf32>
    tpu.vector_store %arg27[%c0_34, %c0_35], %78 {strides = array<i32>} : memref<32x16xf32, #tpu.memory_space<vmem>>, vector<32x16xf32>,
    %c0_36 = arith.constant 0 : index
    %c0_37 = arith.constant 0 : index
    %80 = vector.load %arg23[%c0_36, %c0_37] : memref<512x16xf32, #tpu.memory_space<vmem>>, vector<512x16xf32>
    %c0_38 = arith.constant 0 : index
    %c0_39 = arith.constant 0 : index
    %81 = vector.load %arg14[%c0_38, %c0_39] : memref<256x256xbf16, #tpu.memory_space<vmem>>, vector<256x256xbf16>
    %82 = arith.truncf %80 : vector<512x16xf32> to vector<512x16xbf16>
    %83 = vector.extract_strided_slice %82 {offsets = [0, 0], sizes = [256, 16], strides = [1, 1]} : vector<512x16xbf16> to vector<256x16xbf16>
    %cst_40 = arith.constant dense<0.000000e+00> : vector<256x16xf32>
    %84 = tpu.matmul %81, %83, %cst_40 {dimension_numbers = #tpu.dot_dimension_numbers<[1], [0], [0], [1], [0, 0, 1, 1], [], []>} : vector<256x256xbf16>, vector<256x16xbf16>, vector<256x16xf32> -> vector<256x16xf32>
    %85 = vector.extract_strided_slice %82 {offsets = [256, 0], sizes = [256, 16], strides = [1, 1]} : vector<512x16xbf16> to vector<256x16xbf16>
    %cst_41 = arith.constant dense<0.000000e+00> : vector<256x16xf32>
    %86 = tpu.matmul %81, %85, %cst_41 {dimension_numbers = #tpu.dot_dimension_numbers<[1], [0], [0], [1], [0, 0, 1, 1], [], []>} : vector<256x256xbf16>, vector<256x16xbf16>, vector<256x16xf32> -> vector<256x16xf32>
    %87 = tpu.concatenate %84, %86 in 0 : vector<256x16xf32>, vector<256x16xf32> -> vector<512x16xf32>
    %cst_42 = arith.constant 0.000000e+00 : f32
    %88 = vector.broadcast %cst_42 : f32 to vector<512x16xf32>
    %89 = arith.maximumf %80, %88 : vector<512x16xf32>
    %90 = arith.truncf %89 : vector<512x16xf32> to vector<512x16xbf16>
    %c0_43 = arith.constant 0 : index
    %c0_44 = arith.constant 0 : index
    %91 = vector.load %arg6[%c0_43, %c0_44] : memref<16x48xbf16, #tpu.memory_space<vmem>>, vector<16x48xbf16>
    %cst_45 = arith.constant dense<0.000000e+00> : vector<512x48xf32>
    %92 = tpu.matmul %90, %91, %cst_45 {dimension_numbers = #tpu.dot_dimension_numbers<[1], [0], [0], [1], [0, 0, 1, 1], [], []>} : vector<512x16xbf16>, vector<16x48xbf16>, vector<512x48xf32> -> vector<512x48xf32>
    %c0_46 = arith.constant 0 : index
    %c0_47 = arith.constant 0 : index
    %93 = vector.load %arg7[%c0_46, %c0_47] : memref<1x48xf32, #tpu.memory_space<vmem>>, vector<1x48xf32>
    %94 = vector.broadcast %93 : vector<1x48xf32> to vector<512x48xf32>
    %95 = arith.addf %92, %94 : vector<512x48xf32>
    %c6 = arith.constant 6 : index
    %96 = memref.load %arg20[%c6] : memref<45xf32, #tpu.memory_space<smem>>
    %c8 = arith.constant 8 : index
    %97 = memref.load %arg20[%c8] : memref<45xf32, #tpu.memory_space<smem>>
    %98 = vector.extract_strided_slice %95 {offsets = [0, 0], sizes = [512, 16], strides = [1, 1]} : vector<512x48xf32> to vector<512x16xf32>
    %99 = vector.broadcast %96 : f32 to vector<512x16xf32>
    %100 = arith.mulf %99, %80 : vector<512x16xf32>
    %101 = vector.broadcast %97 : f32 to vector<512x16xf32>
    %102 = arith.mulf %101, %87 : vector<512x16xf32>
    %103 = arith.addf %100, %102 : vector<512x16xf32>
    %104 = arith.addf %103, %98 : vector<512x16xf32>
    %c12 = arith.constant 12 : index
    %105 = memref.load %arg20[%c12] : memref<45xf32, #tpu.memory_space<smem>>
    %c14 = arith.constant 14 : index
    %106 = memref.load %arg20[%c14] : memref<45xf32, #tpu.memory_space<smem>>
    %107 = vector.extract_strided_slice %95 {offsets = [0, 16], sizes = [512, 16], strides = [1, 1]} : vector<512x48xf32> to vector<512x16xf32>
    %108 = vector.broadcast %105 : f32 to vector<512x16xf32>
    %109 = arith.mulf %108, %80 : vector<512x16xf32>
    %110 = vector.broadcast %106 : f32 to vector<512x16xf32>
    %111 = arith.mulf %110, %87 : vector<512x16xf32>
    %112 = arith.addf %109, %111 : vector<512x16xf32>
    %113 = arith.addf %112, %107 : vector<512x16xf32>
    %114 = tpu.concatenate %104, %113 in 1 : vector<512x16xf32>, vector<512x16xf32> -> vector<512x32xf32>
    %c0_48 = arith.constant 0 : index
    %c0_49 = arith.constant 0 : index
    %115 = vector.load %arg19[%c0_48, %c0_49] : memref<64x256xbf16, #tpu.memory_space<vmem>>, vector<64x256xbf16>
    %116 = arith.truncf %114 : vector<512x32xf32> to vector<512x32xbf16>
    %117 = vector.extract_strided_slice %116 {offsets = [0, 0], sizes = [256, 32], strides = [1, 1]} : vector<512x32xbf16> to vector<256x32xbf16>
    %cst_50 = arith.constant dense<0.000000e+00> : vector<64x32xf32>
    %118 = tpu.matmul %115, %117, %cst_50 {dimension_numbers = #tpu.dot_dimension_numbers<[1], [0], [0], [1], [0, 0, 1, 1], [], []>} : vector<64x256xbf16>, vector<256x32xbf16>, vector<64x32xf32> -> vector<64x32xf32>
    %119 = vector.extract_strided_slice %116 {offsets = [256, 0], sizes = [256, 32], strides = [1, 1]} : vector<512x32xbf16> to vector<256x32xbf16>
    %cst_51 = arith.constant dense<0.000000e+00> : vector<64x32xf32>
    %120 = tpu.matmul %115, %119, %cst_51 {dimension_numbers = #tpu.dot_dimension_numbers<[1], [0], [0], [1], [0, 0, 1, 1], [], []>} : vector<64x256xbf16>, vector<256x32xbf16>, vector<64x32xf32> -> vector<64x32xf32>
    %121 = tpu.concatenate %118, %120 in 0 : vector<64x32xf32>, vector<64x32xf32> -> vector<128x32xf32>
    %122 = vector.extract_strided_slice %121 {offsets = [0, 0], sizes = [128, 16], strides = [1, 1]} : vector<128x32xf32> to vector<128x16xf32>
    %c0_52 = arith.constant 0 : index
    %c0_53 = arith.constant 0 : index
    %123 = vector.load %arg24[%c0_52, %c0_53] : memref<128x16xf32, #tpu.memory_space<vmem>>, vector<128x16xf32>
    %124 = arith.addf %123, %122 : vector<128x16xf32>
    %c0_54 = arith.constant 0 : index
    %c0_55 = arith.constant 0 : index
    %125 = vector.load %arg24[%c0_54, %c0_55] : memref<128x16xf32, #tpu.memory_space<vmem>>, vector<128x16xf32>
    tpu.vector_store %arg24[%c0_54, %c0_55], %124 {strides = array<i32>} : memref<128x16xf32, #tpu.memory_space<vmem>>, vector<128x16xf32>,
    %126 = vector.extract_strided_slice %121 {offsets = [0, 16], sizes = [128, 16], strides = [1, 1]} : vector<128x32xf32> to vector<128x16xf32>
    %c0_56 = arith.constant 0 : index
    %c0_57 = arith.constant 0 : index
    %127 = vector.load %arg25[%c0_56, %c0_57] : memref<128x16xf32, #tpu.memory_space<vmem>>, vector<128x16xf32>
    tpu.vector_store %arg25[%c0_56, %c0_57], %126 {strides = array<i32>} : memref<128x16xf32, #tpu.memory_space<vmem>>, vector<128x16xf32>,
    %c33 = arith.constant 33 : index
    %128 = memref.load %arg20[%c33] : memref<45xf32, #tpu.memory_space<smem>>
    %c35 = arith.constant 35 : index
    %129 = memref.load %arg20[%c35] : memref<45xf32, #tpu.memory_space<smem>>
    %130 = vector.extract_strided_slice %95 {offsets = [0, 32], sizes = [512, 16], strides = [1, 1]} : vector<512x48xf32> to vector<512x16xf32>
    %131 = vector.broadcast %128 : f32 to vector<512x16xf32>
    %132 = arith.mulf %131, %80 : vector<512x16xf32>
    %133 = vector.broadcast %129 : f32 to vector<512x16xf32>
    %134 = arith.mulf %133, %87 : vector<512x16xf32>
    %135 = arith.addf %132, %134 : vector<512x16xf32>
    %136 = arith.addf %135, %130 : vector<512x16xf32>
    %c0_58 = arith.constant 0 : index
    %c0_59 = arith.constant 0 : index
    %137 = vector.load %arg18[%c0_58, %c0_59] : memref<16x256xbf16, #tpu.memory_space<vmem>>, vector<16x256xbf16>
    %138 = arith.truncf %136 : vector<512x16xf32> to vector<512x16xbf16>
    %139 = vector.extract_strided_slice %138 {offsets = [0, 0], sizes = [256, 16], strides = [1, 1]} : vector<512x16xbf16> to vector<256x16xbf16>
    %cst_60 = arith.constant dense<0.000000e+00> : vector<16x16xf32>
    %140 = tpu.matmul %137, %139, %cst_60 {dimension_numbers = #tpu.dot_dimension_numbers<[1], [0], [0], [1], [0, 0, 1, 1], [], []>} : vector<16x256xbf16>, vector<256x16xbf16>, vector<16x16xf32> -> vector<16x16xf32>
    %141 = vector.extract_strided_slice %138 {offsets = [256, 0], sizes = [256, 16], strides = [1, 1]} : vector<512x16xbf16> to vector<256x16xbf16>
    %cst_61 = arith.constant dense<0.000000e+00> : vector<16x16xf32>
    %142 = tpu.matmul %137, %141, %cst_61 {dimension_numbers = #tpu.dot_dimension_numbers<[1], [0], [0], [1], [0, 0, 1, 1], [], []>} : vector<16x256xbf16>, vector<256x16xbf16>, vector<16x16xf32> -> vector<16x16xf32>
    %143 = tpu.concatenate %140, %142 in 0 : vector<16x16xf32>, vector<16x16xf32> -> vector<32x16xf32>
    %c0_62 = arith.constant 0 : index
    %c0_63 = arith.constant 0 : index
    %144 = vector.load %arg27[%c0_62, %c0_63] : memref<32x16xf32, #tpu.memory_space<vmem>>, vector<32x16xf32>
    %145 = arith.addf %144, %143 : vector<32x16xf32>
    %c0_64 = arith.constant 0 : index
    %c0_65 = arith.constant 0 : index
    %146 = vector.load %arg27[%c0_64, %c0_65] : memref<32x16xf32, #tpu.memory_space<vmem>>, vector<32x16xf32>
    tpu.vector_store %arg27[%c0_64, %c0_65], %145 {strides = array<i32>} : memref<32x16xf32, #tpu.memory_space<vmem>>, vector<32x16xf32>,
    %c0_66 = arith.constant 0 : index
    %c0_67 = arith.constant 0 : index
    %147 = vector.load %arg24[%c0_66, %c0_67] : memref<128x16xf32, #tpu.memory_space<vmem>>, vector<128x16xf32>
    %c0_68 = arith.constant 0 : index
    %c0_69 = arith.constant 0 : index
    %148 = vector.load %arg15[%c0_68, %c0_69] : memref<64x64xbf16, #tpu.memory_space<vmem>>, vector<64x64xbf16>
    %149 = arith.truncf %147 : vector<128x16xf32> to vector<128x16xbf16>
    %150 = vector.extract_strided_slice %149 {offsets = [0, 0], sizes = [64, 16], strides = [1, 1]} : vector<128x16xbf16> to vector<64x16xbf16>
    %cst_70 = arith.constant dense<0.000000e+00> : vector<64x16xf32>
    %151 = tpu.matmul %148, %150, %cst_70 {dimension_numbers = #tpu.dot_dimension_numbers<[1], [0], [0], [1], [0, 0, 1, 1], [], []>} : vector<64x64xbf16>, vector<64x16xbf16>, vector<64x16xf32> -> vector<64x16xf32>
    %152 = vector.extract_strided_slice %149 {offsets = [64, 0], sizes = [64, 16], strides = [1, 1]} : vector<128x16xbf16> to vector<64x16xbf16>
    %cst_71 = arith.constant dense<0.000000e+00> : vector<64x16xf32>
    %153 = tpu.matmul %148, %152, %cst_71 {dimension_numbers = #tpu.dot_dimension_numbers<[1], [0], [0], [1], [0, 0, 1, 1], [], []>} : vector<64x64xbf16>, vector<64x16xbf16>, vector<64x16xf32> -> vector<64x16xf32>
    %154 = tpu.concatenate %151, %153 in 0 : vector<64x16xf32>, vector<64x16xf32> -> vector<128x16xf32>
    %cst_72 = arith.constant 0.000000e+00 : f32
    %155 = vector.broadcast %cst_72 : f32 to vector<128x16xf32>
    %156 = arith.maximumf %147, %155 : vector<128x16xf32>
    %157 = arith.truncf %156 : vector<128x16xf32> to vector<128x16xbf16>
    %c0_73 = arith.constant 0 : index
    %c0_74 = arith.constant 0 : index
    %158 = vector.load %arg8[%c0_73, %c0_74] : memref<16x32xbf16, #tpu.memory_space<vmem>>, vector<16x32xbf16>
    %cst_75 = arith.constant dense<0.000000e+00> : vector<128x32xf32>
    %159 = tpu.matmul %157, %158, %cst_75 {dimension_numbers = #tpu.dot_dimension_numbers<[1], [0], [0], [1], [0, 0, 1, 1], [], []>} : vector<128x16xbf16>, vector<16x32xbf16>, vector<128x32xf32> -> vector<128x32xf32>
    %c0_76 = arith.constant 0 : index
    %c0_77 = arith.constant 0 : index
    %160 = vector.load %arg9[%c0_76, %c0_77] : memref<1x32xf32, #tpu.memory_space<vmem>>, vector<1x32xf32>
    %161 = vector.broadcast %160 : vector<1x32xf32> to vector<128x32xf32>
    %162 = arith.addf %159, %161 : vector<128x32xf32>
    %c15 = arith.constant 15 : index
    %163 = memref.load %arg20[%c15] : memref<45xf32, #tpu.memory_space<smem>>
    %c17 = arith.constant 17 : index
    %164 = memref.load %arg20[%c17] : memref<45xf32, #tpu.memory_space<smem>>
    %165 = vector.extract_strided_slice %162 {offsets = [0, 0], sizes = [128, 16], strides = [1, 1]} : vector<128x32xf32> to vector<128x16xf32>
    %166 = vector.broadcast %163 : f32 to vector<128x16xf32>
    %167 = arith.mulf %166, %147 : vector<128x16xf32>
    %168 = vector.broadcast %164 : f32 to vector<128x16xf32>
    %169 = arith.mulf %168, %154 : vector<128x16xf32>
    %170 = arith.addf %167, %169 : vector<128x16xf32>
    %171 = arith.addf %170, %165 : vector<128x16xf32>
    %c0_78 = arith.constant 0 : index
    %c0_79 = arith.constant 0 : index
    %172 = vector.load %arg25[%c0_78, %c0_79] : memref<128x16xf32, #tpu.memory_space<vmem>>, vector<128x16xf32>
    %173 = arith.addf %172, %171 : vector<128x16xf32>
    %c0_80 = arith.constant 0 : index
    %c0_81 = arith.constant 0 : index
    %174 = vector.load %arg25[%c0_80, %c0_81] : memref<128x16xf32, #tpu.memory_space<vmem>>, vector<128x16xf32>
    tpu.vector_store %arg25[%c0_80, %c0_81], %173 {strides = array<i32>} : memref<128x16xf32, #tpu.memory_space<vmem>>, vector<128x16xf32>,
    %c24 = arith.constant 24 : index
    %175 = memref.load %arg20[%c24] : memref<45xf32, #tpu.memory_space<smem>>
    %c26 = arith.constant 26 : index
    %176 = memref.load %arg20[%c26] : memref<45xf32, #tpu.memory_space<smem>>
    %177 = vector.extract_strided_slice %162 {offsets = [0, 16], sizes = [128, 16], strides = [1, 1]} : vector<128x32xf32> to vector<128x16xf32>
    %178 = vector.broadcast %175 : f32 to vector<128x16xf32>
    %179 = arith.mulf %178, %147 : vector<128x16xf32>
    %180 = vector.broadcast %176 : f32 to vector<128x16xf32>
    %181 = arith.mulf %180, %154 : vector<128x16xf32>
    %182 = arith.addf %179, %181 : vector<128x16xf32>
    %183 = arith.addf %182, %177 : vector<128x16xf32>
    %c0_82 = arith.constant 0 : index
    %c0_83 = arith.constant 0 : index
    %184 = vector.load %arg17[%c0_82, %c0_83] : memref<16x64xbf16, #tpu.memory_space<vmem>>, vector<16x64xbf16>
    %185 = arith.truncf %183 : vector<128x16xf32> to vector<128x16xbf16>
    %186 = vector.extract_strided_slice %185 {offsets = [0, 0], sizes = [64, 16], strides = [1, 1]} : vector<128x16xbf16> to vector<64x16xbf16>
    %cst_84 = arith.constant dense<0.000000e+00> : vector<16x16xf32>
    %187 = tpu.matmul %184, %186, %cst_84 {dimension_numbers = #tpu.dot_dimension_numbers<[1], [0], [0], [1], [0, 0, 1, 1], [], []>} : vector<16x64xbf16>, vector<64x16xbf16>, vector<16x16xf32> -> vector<16x16xf32>
    %188 = vector.extract_strided_slice %185 {offsets = [64, 0], sizes = [64, 16], strides = [1, 1]} : vector<128x16xbf16> to vector<64x16xbf16>
    %cst_85 = arith.constant dense<0.000000e+00> : vector<16x16xf32>
    %189 = tpu.matmul %184, %188, %cst_85 {dimension_numbers = #tpu.dot_dimension_numbers<[1], [0], [0], [1], [0, 0, 1, 1], [], []>} : vector<16x64xbf16>, vector<64x16xbf16>, vector<16x16xf32> -> vector<16x16xf32>
    %190 = tpu.concatenate %187, %189 in 0 : vector<16x16xf32>, vector<16x16xf32> -> vector<32x16xf32>
    %c0_86 = arith.constant 0 : index
    %c0_87 = arith.constant 0 : index
    %191 = vector.load %arg26[%c0_86, %c0_87] : memref<32x16xf32, #tpu.memory_space<vmem>>, vector<32x16xf32>
    %192 = arith.addf %191, %190 : vector<32x16xf32>
    %c0_88 = arith.constant 0 : index
    %c0_89 = arith.constant 0 : index
    %193 = vector.load %arg26[%c0_88, %c0_89] : memref<32x16xf32, #tpu.memory_space<vmem>>, vector<32x16xf32>
    tpu.vector_store %arg26[%c0_88, %c0_89], %192 {strides = array<i32>} : memref<32x16xf32, #tpu.memory_space<vmem>>, vector<32x16xf32>,
    %c0_90 = arith.constant 0 : index
    %c0_91 = arith.constant 0 : index
    %194 = vector.load %arg25[%c0_90, %c0_91] : memref<128x16xf32, #tpu.memory_space<vmem>>, vector<128x16xf32>
    %c0_92 = arith.constant 0 : index
    %c0_93 = arith.constant 0 : index
    %195 = vector.load %arg15[%c0_92, %c0_93] : memref<64x64xbf16, #tpu.memory_space<vmem>>, vector<64x64xbf16>
    %196 = arith.truncf %194 : vector<128x16xf32> to vector<128x16xbf16>
    %197 = vector.extract_strided_slice %196 {offsets = [0, 0], sizes = [64, 16], strides = [1, 1]} : vector<128x16xbf16> to vector<64x16xbf16>
    %cst_94 = arith.constant dense<0.000000e+00> : vector<64x16xf32>
    %198 = tpu.matmul %195, %197, %cst_94 {dimension_numbers = #tpu.dot_dimension_numbers<[1], [0], [0], [1], [0, 0, 1, 1], [], []>} : vector<64x64xbf16>, vector<64x16xbf16>, vector<64x16xf32> -> vector<64x16xf32>
    %199 = vector.extract_strided_slice %196 {offsets = [64, 0], sizes = [64, 16], strides = [1, 1]} : vector<128x16xbf16> to vector<64x16xbf16>
    %cst_95 = arith.constant dense<0.000000e+00> : vector<64x16xf32>
    %200 = tpu.matmul %195, %199, %cst_95 {dimension_numbers = #tpu.dot_dimension_numbers<[1], [0], [0], [1], [0, 0, 1, 1], [], []>} : vector<64x64xbf16>, vector<64x16xbf16>, vector<64x16xf32> -> vector<64x16xf32>
    %201 = tpu.concatenate %198, %200 in 0 : vector<64x16xf32>, vector<64x16xf32> -> vector<128x16xf32>
    %cst_96 = arith.constant 0.000000e+00 : f32
    %202 = vector.broadcast %cst_96 : f32 to vector<128x16xf32>
    %203 = arith.maximumf %194, %202 : vector<128x16xf32>
    %204 = arith.truncf %203 : vector<128x16xf32> to vector<128x16xbf16>
    %c0_97 = arith.constant 0 : index
    %c0_98 = arith.constant 0 : index
    %205 = vector.load %arg10[%c0_97, %c0_98] : memref<16x32xbf16, #tpu.memory_space<vmem>>, vector<16x32xbf16>
    %cst_99 = arith.constant dense<0.000000e+00> : vector<128x32xf32>
    %206 = tpu.matmul %204, %205, %cst_99 {dimension_numbers = #tpu.dot_dimension_numbers<[1], [0], [0], [1], [0, 0, 1, 1], [], []>} : vector<128x16xbf16>, vector<16x32xbf16>, vector<128x32xf32> -> vector<128x32xf32>
    %c0_100 = arith.constant 0 : index
    %c0_101 = arith.constant 0 : index
    %207 = vector.load %arg11[%c0_100, %c0_101] : memref<1x32xf32, #tpu.memory_space<vmem>>, vector<1x32xf32>
    %208 = vector.broadcast %207 : vector<1x32xf32> to vector<128x32xf32>
    %209 = arith.addf %206, %208 : vector<128x32xf32>
    %c27 = arith.constant 27 : index
    %210 = memref.load %arg20[%c27] : memref<45xf32, #tpu.memory_space<smem>>
    %c29 = arith.constant 29 : index
    %211 = memref.load %arg20[%c29] : memref<45xf32, #tpu.memory_space<smem>>
    %212 = vector.extract_strided_slice %209 {offsets = [0, 0], sizes = [128, 16], strides = [1, 1]} : vector<128x32xf32> to vector<128x16xf32>
    %213 = vector.broadcast %210 : f32 to vector<128x16xf32>
    %214 = arith.mulf %213, %194 : vector<128x16xf32>
    %215 = vector.broadcast %211 : f32 to vector<128x16xf32>
    %216 = arith.mulf %215, %201 : vector<128x16xf32>
    %217 = arith.addf %214, %216 : vector<128x16xf32>
    %218 = arith.addf %217, %212 : vector<128x16xf32>
    %c39 = arith.constant 39 : index
    %219 = memref.load %arg20[%c39] : memref<45xf32, #tpu.memory_space<smem>>
    %c41 = arith.constant 41 : index
    %220 = memref.load %arg20[%c41] : memref<45xf32, #tpu.memory_space<smem>>
    %221 = vector.extract_strided_slice %209 {offsets = [0, 16], sizes = [128, 16], strides = [1, 1]} : vector<128x32xf32> to vector<128x16xf32>
    %222 = vector.broadcast %219 : f32 to vector<128x16xf32>
    %223 = arith.mulf %222, %194 : vector<128x16xf32>
    %224 = vector.broadcast %220 : f32 to vector<128x16xf32>
    %225 = arith.mulf %224, %201 : vector<128x16xf32>
    %226 = arith.addf %223, %225 : vector<128x16xf32>
    %227 = arith.addf %226, %221 : vector<128x16xf32>
    %228 = tpu.concatenate %218, %227 in 1 : vector<128x16xf32>, vector<128x16xf32> -> vector<128x32xf32>
    %c0_102 = arith.constant 0 : index
    %c0_103 = arith.constant 0 : index
    %229 = vector.load %arg17[%c0_102, %c0_103] : memref<16x64xbf16, #tpu.memory_space<vmem>>, vector<16x64xbf16>
    %230 = arith.truncf %228 : vector<128x32xf32> to vector<128x32xbf16>
    %231 = vector.extract_strided_slice %230 {offsets = [0, 0], sizes = [64, 32], strides = [1, 1]} : vector<128x32xbf16> to vector<64x32xbf16>
    %cst_104 = arith.constant dense<0.000000e+00> : vector<16x32xf32>
    %232 = tpu.matmul %229, %231, %cst_104 {dimension_numbers = #tpu.dot_dimension_numbers<[1], [0], [0], [1], [0, 0, 1, 1], [], []>} : vector<16x64xbf16>, vector<64x32xbf16>, vector<16x32xf32> -> vector<16x32xf32>
    %233 = vector.extract_strided_slice %230 {offsets = [64, 0], sizes = [64, 32], strides = [1, 1]} : vector<128x32xbf16> to vector<64x32xbf16>
    %cst_105 = arith.constant dense<0.000000e+00> : vector<16x32xf32>
    %234 = tpu.matmul %229, %233, %cst_105 {dimension_numbers = #tpu.dot_dimension_numbers<[1], [0], [0], [1], [0, 0, 1, 1], [], []>} : vector<16x64xbf16>, vector<64x32xbf16>, vector<16x32xf32> -> vector<16x32xf32>
    %235 = tpu.concatenate %232, %234 in 0 : vector<16x32xf32>, vector<16x32xf32> -> vector<32x32xf32>
    %236 = vector.extract_strided_slice %235 {offsets = [0, 0], sizes = [32, 16], strides = [1, 1]} : vector<32x32xf32> to vector<32x16xf32>
    %c0_106 = arith.constant 0 : index
    %c0_107 = arith.constant 0 : index
    %237 = vector.load %arg26[%c0_106, %c0_107] : memref<32x16xf32, #tpu.memory_space<vmem>>, vector<32x16xf32>
    %238 = arith.addf %237, %236 : vector<32x16xf32>
    %c0_108 = arith.constant 0 : index
    %c0_109 = arith.constant 0 : index
    %239 = vector.load %arg26[%c0_108, %c0_109] : memref<32x16xf32, #tpu.memory_space<vmem>>, vector<32x16xf32>
    tpu.vector_store %arg26[%c0_108, %c0_109], %238 {strides = array<i32>} : memref<32x16xf32, #tpu.memory_space<vmem>>, vector<32x16xf32>,
    %240 = vector.extract_strided_slice %235 {offsets = [0, 16], sizes = [32, 16], strides = [1, 1]} : vector<32x32xf32> to vector<32x16xf32>
    %c0_110 = arith.constant 0 : index
    %c0_111 = arith.constant 0 : index
    %241 = vector.load %arg27[%c0_110, %c0_111] : memref<32x16xf32, #tpu.memory_space<vmem>>, vector<32x16xf32>
    %242 = arith.addf %241, %240 : vector<32x16xf32>
    %c0_112 = arith.constant 0 : index
    %c0_113 = arith.constant 0 : index
    %243 = vector.load %arg27[%c0_112, %c0_113] : memref<32x16xf32, #tpu.memory_space<vmem>>, vector<32x16xf32>
    tpu.vector_store %arg27[%c0_112, %c0_113], %242 {strides = array<i32>} : memref<32x16xf32, #tpu.memory_space<vmem>>, vector<32x16xf32>,
    %c0_114 = arith.constant 0 : index
    %c0_115 = arith.constant 0 : index
    %244 = vector.load %arg26[%c0_114, %c0_115] : memref<32x16xf32, #tpu.memory_space<vmem>>, vector<32x16xf32>
    %c0_116 = arith.constant 0 : index
    %c0_117 = arith.constant 0 : index
    %245 = vector.load %arg16[%c0_116, %c0_117] : memref<16x16xbf16, #tpu.memory_space<vmem>>, vector<16x16xbf16>
    %246 = arith.truncf %244 : vector<32x16xf32> to vector<32x16xbf16>
    %247 = vector.extract_strided_slice %246 {offsets = [0, 0], sizes = [16, 16], strides = [1, 1]} : vector<32x16xbf16> to vector<16x16xbf16>
    %cst_118 = arith.constant dense<0.000000e+00> : vector<16x16xf32>
    %248 = tpu.matmul %245, %247, %cst_118 {dimension_numbers = #tpu.dot_dimension_numbers<[1], [0], [0], [1], [0, 0, 1, 1], [], []>} : vector<16x16xbf16>, vector<16x16xbf16>, vector<16x16xf32> -> vector<16x16xf32>
    %249 = vector.extract_strided_slice %246 {offsets = [16, 0], sizes = [16, 16], strides = [1, 1]} : vector<32x16xbf16> to vector<16x16xbf16>
    %cst_119 = arith.constant dense<0.000000e+00> : vector<16x16xf32>
    %250 = tpu.matmul %245, %249, %cst_119 {dimension_numbers = #tpu.dot_dimension_numbers<[1], [0], [0], [1], [0, 0, 1, 1], [], []>} : vector<16x16xbf16>, vector<16x16xbf16>, vector<16x16xf32> -> vector<16x16xf32>
    %251 = tpu.concatenate %248, %250 in 0 : vector<16x16xf32>, vector<16x16xf32> -> vector<32x16xf32>
    %cst_120 = arith.constant 0.000000e+00 : f32
    %252 = vector.broadcast %cst_120 : f32 to vector<32x16xf32>
    %253 = arith.maximumf %244, %252 : vector<32x16xf32>
    %254 = arith.truncf %253 : vector<32x16xf32> to vector<32x16xbf16>
    %c0_121 = arith.constant 0 : index
    %c0_122 = arith.constant 0 : index
    %255 = vector.load %arg12[%c0_121, %c0_122] : memref<16x16xbf16, #tpu.memory_space<vmem>>, vector<16x16xbf16>
    %cst_123 = arith.constant dense<0.000000e+00> : vector<32x16xf32>
    %256 = tpu.matmul %254, %255, %cst_123 {dimension_numbers = #tpu.dot_dimension_numbers<[1], [0], [0], [1], [0, 0, 1, 1], [], []>} : vector<32x16xbf16>, vector<16x16xbf16>, vector<32x16xf32> -> vector<32x16xf32>
    %c0_124 = arith.constant 0 : index
    %c0_125 = arith.constant 0 : index
    %257 = vector.load %arg13[%c0_124, %c0_125] : memref<1x16xf32, #tpu.memory_space<vmem>>, vector<1x16xf32>
    %258 = vector.broadcast %257 : vector<1x16xf32> to vector<32x16xf32>
    %259 = arith.addf %256, %258 : vector<32x16xf32>
    %c42 = arith.constant 42 : index
    %260 = memref.load %arg20[%c42] : memref<45xf32, #tpu.memory_space<smem>>
    %c44 = arith.constant 44 : index
    %261 = memref.load %arg20[%c44] : memref<45xf32, #tpu.memory_space<smem>>
    %262 = vector.broadcast %260 : f32 to vector<32x16xf32>
    %263 = arith.mulf %262, %244 : vector<32x16xf32>
    %264 = vector.broadcast %261 : f32 to vector<32x16xf32>
    %265 = arith.mulf %264, %251 : vector<32x16xf32>
    %266 = arith.addf %263, %265 : vector<32x16xf32>
    %267 = arith.addf %266, %259 : vector<32x16xf32>
    %c0_126 = arith.constant 0 : index
    %c0_127 = arith.constant 0 : index
    %268 = vector.load %arg27[%c0_126, %c0_127] : memref<32x16xf32, #tpu.memory_space<vmem>>, vector<32x16xf32>
    %269 = arith.addf %268, %267 : vector<32x16xf32>
    %c0_128 = arith.constant 0 : index
    %c0_129 = arith.constant 0 : index
    %270 = vector.load %arg27[%c0_128, %c0_129] : memref<32x16xf32, #tpu.memory_space<vmem>>, vector<32x16xf32>
    tpu.vector_store %arg27[%c0_128, %c0_129], %269 {strides = array<i32>} : memref<32x16xf32, #tpu.memory_space<vmem>>, vector<32x16xf32>,
    %c0_130 = arith.constant 0 : index
    %c0_131 = arith.constant 0 : index
    %271 = vector.load %arg27[%c0_130, %c0_131] : memref<32x16xf32, #tpu.memory_space<vmem>>, vector<32x16xf32>
    %c0_132 = arith.constant 0 : index
    %c0_133 = arith.constant 0 : index
    %272 = vector.load %arg21[%c0_132, %c0_133] : memref<32x16xf32, #tpu.memory_space<vmem>>, vector<32x16xf32>
    tpu.vector_store %arg21[%c0_132, %c0_133], %271 {strides = array<i32>} : memref<32x16xf32, #tpu.memory_space<vmem>>, vector<32x16xf32>,
    return
  }
  func.func @transform_0(%arg0: i32) -> (i32, i32) {
    %c0_i32 = arith.constant 0 : i32
    %c0_i32_0 = arith.constant 0 : i32
    return %arg0, %c0_i32 : i32, i32
  }
  func.func @transform_1(%arg0: i32) -> (i32, i32) {
    %c0_i32 = arith.constant 0 : i32
    %c0_i32_0 = arith.constant 0 : i32
    %c0_i32_1 = arith.constant 0 : i32
    return %c0_i32, %c0_i32_0 : i32, i32
  }
  func.func @transform_2(%arg0: i32) -> (i32, i32) {
    %c0_i32 = arith.constant 0 : i32
    %c0_i32_0 = arith.constant 0 : i32
    %c0_i32_1 = arith.constant 0 : i32
    return %c0_i32, %c0_i32_0 : i32, i32
  }
  func.func @transform_3(%arg0: i32) -> (i32, i32) {
    %c0_i32 = arith.constant 0 : i32
    %c0_i32_0 = arith.constant 0 : i32
    %c0_i32_1 = arith.constant 0 : i32
    return %c0_i32, %c0_i32_0 : i32, i32
  }
  func.func @transform_4(%arg0: i32) -> (i32, i32) {
    %c0_i32 = arith.constant 0 : i32
    %c0_i32_0 = arith.constant 0 : i32
    %c0_i32_1 = arith.constant 0 : i32
    return %c0_i32, %c0_i32_0 : i32, i32
  }
  func.func @transform_5(%arg0: i32) -> (i32, i32) {
    %c0_i32 = arith.constant 0 : i32
    %c0_i32_0 = arith.constant 0 : i32
    %c0_i32_1 = arith.constant 0 : i32
    return %c0_i32, %c0_i32_0 : i32, i32
  }
  func.func @transform_6(%arg0: i32) -> (i32, i32) {
    %c0_i32 = arith.constant 0 : i32
    %c0_i32_0 = arith.constant 0 : i32
    %c0_i32_1 = arith.constant 0 : i32
    return %c0_i32, %c0_i32_0 : i32, i32
  }
  func.func @transform_7(%arg0: i32) -> (i32, i32) {
    %c0_i32 = arith.constant 0 : i32
    %c0_i32_0 = arith.constant 0 : i32
    %c0_i32_1 = arith.constant 0 : i32
    return %c0_i32, %c0_i32_0 : i32, i32
  }
  func.func @transform_8(%arg0: i32) -> (i32, i32) {
    %c0_i32 = arith.constant 0 : i32
    %c0_i32_0 = arith.constant 0 : i32
    %c0_i32_1 = arith.constant 0 : i32
    return %c0_i32, %c0_i32_0 : i32, i32
  }
  func.func @transform_9(%arg0: i32) -> (i32, i32) {
    %c0_i32 = arith.constant 0 : i32
    %c0_i32_0 = arith.constant 0 : i32
    %c0_i32_1 = arith.constant 0 : i32
    return %c0_i32, %c0_i32_0 : i32, i32
  }
  func.func @transform_10(%arg0: i32) -> (i32, i32) {
    %c0_i32 = arith.constant 0 : i32
    %c0_i32_0 = arith.constant 0 : i32
    %c0_i32_1 = arith.constant 0 : i32
    return %c0_i32, %c0_i32_0 : i32, i32
  }
  func.func @transform_11(%arg0: i32) -> (i32, i32) {
    %c0_i32 = arith.constant 0 : i32
    %c0_i32_0 = arith.constant 0 : i32
    %c0_i32_1 = arith.constant 0 : i32
    return %c0_i32, %c0_i32_0 : i32, i32
  }
  func.func @transform_12(%arg0: i32) -> (i32, i32) {
    %c0_i32 = arith.constant 0 : i32
    %c0_i32_0 = arith.constant 0 : i32
    %c0_i32_1 = arith.constant 0 : i32
    return %c0_i32, %c0_i32_0 : i32, i32
  }
  func.func @transform_13(%arg0: i32) -> (i32, i32) {
    %c0_i32 = arith.constant 0 : i32
    %c0_i32_0 = arith.constant 0 : i32
    %c0_i32_1 = arith.constant 0 : i32
    return %c0_i32, %c0_i32_0 : i32, i32
  }
  func.func @transform_14(%arg0: i32) -> (i32, i32) {
    %c0_i32 = arith.constant 0 : i32
    %c0_i32_0 = arith.constant 0 : i32
    %c0_i32_1 = arith.constant 0 : i32
    return %c0_i32, %c0_i32_0 : i32, i32
  }
  func.func @transform_15(%arg0: i32) -> (i32, i32) {
    %c0_i32 = arith.constant 0 : i32
    %c0_i32_0 = arith.constant 0 : i32
    %c0_i32_1 = arith.constant 0 : i32
    return %c0_i32, %c0_i32_0 : i32, i32
  }
  func.func @transform_16(%arg0: i32) -> (i32, i32) {
    %c0_i32 = arith.constant 0 : i32
    %c0_i32_0 = arith.constant 0 : i32
    %c0_i32_1 = arith.constant 0 : i32
    return %c0_i32, %c0_i32_0 : i32, i32
  }
  func.func @transform_17(%arg0: i32) -> (i32, i32) {
    %c0_i32 = arith.constant 0 : i32
    %c0_i32_0 = arith.constant 0 : i32
    %c0_i32_1 = arith.constant 0 : i32
    return %c0_i32, %c0_i32_0 : i32, i32
  }
  func.func @transform_18(%arg0: i32) -> (i32, i32) {
    %c0_i32 = arith.constant 0 : i32
    %c0_i32_0 = arith.constant 0 : i32
    %c0_i32_1 = arith.constant 0 : i32
    return %c0_i32, %c0_i32_0 : i32, i32
  }
  func.func @transform_19(%arg0: i32) -> i32 {
    %c0_i32 = arith.constant 0 : i32
    %c0_i32_0 = arith.constant 0 : i32
    return %c0_i32 : i32
  }
  func.func @transform_20(%arg0: i32) -> (i32, i32) {
    %c0_i32 = arith.constant 0 : i32
    %c0_i32_0 = arith.constant 0 : i32
    return %arg0, %c0_i32 : i32, i32
  }
}

</mosaic_0001>

<llo_original>
// kernel: forward.1
$region0: #{forward.1}
  #allocation0 [shape = 'u32[]', space=smem, size = 0x4, offset = 0x4, fixed_abs, tag = 'smem constant byte address 0x4 - core index']
  #allocation1 [shape = 'u32[72,128]{1,0:T(1,128)}', space=vmem, size = 0x9000, scoped, tag = 'internal scratch']
  #allocation2 [shape = 'f32[512,16]{1,0:T(8,128)}', space=vmem, size = 0x40000, scoped, tag = 'scratch operand']
  #allocation3 [shape = 'f32[512,16]{1,0:T(8,128)}', space=vmem, size = 0x40000, scoped, tag = 'scratch operand']
  #allocation4 [shape = 'f32[128,16]{1,0:T(8,128)}', space=vmem, size = 0x10000, scoped, tag = 'scratch operand']
  #allocation5 [shape = 'f32[128,16]{1,0:T(8,128)}', space=vmem, size = 0x10000, scoped, tag = 'scratch operand']
  #allocation6 [shape = 'f32[32,16]{1,0:T(8,128)}', space=vmem, size = 0x4000, scoped, tag = 'scratch operand']
  #allocation7 [shape = 'f32[32,16]{1,0:T(8,128)}', space=vmem, size = 0x4000, scoped, tag = 'scratch operand']
  %s0 = inlined_call_operand.vmem [shape: bf16[1024,4], index: 0, kind: input, shape index: {}]
  %s1 = inlined_call_operand.vmem [shape: bf16[4,16], index: 1, kind: input, shape index: {}]
  %s2 = inlined_call_operand.vmem [shape: f32[1,16], index: 2, kind: input, shape index: {}, may-alias: {2,12}]
  %s3 = inlined_call_operand.vmem [shape: bf16[16,64], index: 3, kind: input, shape index: {}]
  %s4 = inlined_call_operand.vmem [shape: f32[1,64], index: 4, kind: input, shape index: {}]
  %s5 = inlined_call_operand.vmem [shape: bf16[16,48], index: 5, kind: input, shape index: {}]
  %s6 = inlined_call_operand.vmem [shape: f32[1,48], index: 6, kind: input, shape index: {}]
  %s7 = inlined_call_operand.vmem [shape: bf16[16,32], index: 7, kind: input, shape index: {}]
  %s8 = inlined_call_operand.vmem [shape: f32[1,32], index: 8, kind: input, shape index: {}, may-alias: {8,10}]
  %s9 = inlined_call_operand.vmem [shape: bf16[16,32], index: 9, kind: input, shape index: {}]
  %s10 = inlined_call_operand.vmem [shape: f32[1,32], index: 10, kind: input, shape index: {}, may-alias: {8,10}]
  %s11 = inlined_call_operand.vmem [shape: bf16[16,16], index: 11, kind: input, shape index: {}]
  %s12 = inlined_call_operand.vmem [shape: f32[1,16], index: 12, kind: input, shape index: {}, may-alias: {2,12}]
  %s13 = inlined_call_operand.vmem [shape: bf16[256,256], index: 13, kind: input, shape index: {}]
  %s14 = inlined_call_operand.vmem [shape: bf16[64,64], index: 14, kind: input, shape index: {}]
  %s15 = inlined_call_operand.vmem [shape: bf16[16,16], index: 15, kind: input, shape index: {}]
  %s16 = inlined_call_operand.vmem [shape: bf16[16,64], index: 16, kind: input, shape index: {}]
  %s17 = inlined_call_operand.vmem [shape: bf16[16,256], index: 17, kind: input, shape index: {}]
  %s18 = inlined_call_operand.vmem [shape: bf16[64,256], index: 18, kind: input, shape index: {}]
  %s19 = inlined_call_operand.vmem [shape: f32[45], index: 19, kind: input, shape index: {}]
  %s20 = inlined_call_operand.hbm [shape: f32[64,16], index: 20, kind: output, shape index: {}]
  %s21 = sld [smem:[#allocation0]]
  $region117: #{forward.1} parent=0
    _
  %s23 = ssub.s32 1, %s21
  %s24 = scalar_select 0, %s23, %s21
  $region1: #{forward.1} parent=0
    #allocation8 [shape = 'u8[512]{0}', space=smem, size = 0x200, scoped, tag = 'input window, operand 19, single buffered']
    #allocation9 [shape = 's32[2]{0}', space=sflag, size = 0x8, scoped, tag = 'scoped memory for forward.1']
    #allocation10 [shape = 's32[2]{0}', space=sflag, size = 0x8, scoped, tag = 'scoped memory for forward.1']
    #allocation11 [shape = 'u8[32768]{0}', space=vmem, size = 0x8000, scoped, tag = 'output window, operand 0']
    %25 = vsyncpa [#allocation10], 0
    %26 = vsyncpa [#allocation9], 0
    %s27 = scalar_lea.sflag [#allocation9], 1
    %28 = vsyncpa %s27, 0
    loop: start=0, step=1, limit=4
    $region2: #{forward.1} parent=1 // loop_pre_header
      _
    $region3: #{forward.1} parent=1 // loop_header
      %s30 = sphi 0, %s34
      %p31 = scmp.ge.s32.totalorder %s30, 4
      %s40 = sphi 0, %s42
      %s43 = sphi 0, %s40
      %s44 = sphi 0, %s43
      %s60 = sphi 0, %s44
      %s64 = sphi 0, %s64
      %s66 = sphi 0, %s64
      %s67 = sphi 0, %s66
      %s81 = sphi 0, %s67
      %s85 = sphi 0, %s85
      %s87 = sphi 0, %s85
      %s88 = sphi 0, %s87
      %s102 = sphi 0, %s88
      %s106 = sphi 0, %s106
      %s108 = sphi 0, %s106
      %s109 = sphi 0, %s108
      %s123 = sphi 0, %s109
      %s127 = sphi 0, %s127
      %s129 = sphi 0, %s127
      %s130 = sphi 0, %s129
      %s144 = sphi 0, %s130
      %s148 = sphi 0, %s148
      %s150 = sphi 0, %s148
      %s151 = sphi 0, %s150
      %s165 = sphi 0, %s151
      %s169 = sphi 0, %s169
      %s171 = sphi 0, %s169
      %s172 = sphi 0, %s171
      %s186 = sphi 0, %s172
      %s190 = sphi 0, %s190
      %s192 = sphi 0, %s190
      %s193 = sphi 0, %s192
      %s207 = sphi 0, %s193
      %s211 = sphi 0, %s211
      %s213 = sphi 0, %s211
      %s214 = sphi 0, %s213
      %s228 = sphi 0, %s214
      %s232 = sphi 0, %s232
      %s234 = sphi 0, %s232
      %s235 = sphi 0, %s234
      %s249 = sphi 0, %s235
      %s253 = sphi 0, %s253
      %s255 = sphi 0, %s253
      %s256 = sphi 0, %s255
      %s270 = sphi 0, %s256
      %s274 = sphi 0, %s274
      %s276 = sphi 0, %s274
      %s277 = sphi 0, %s276
      %s291 = sphi 0, %s277
      %s295 = sphi 0, %s295
      %s297 = sphi 0, %s295
      %s298 = sphi 0, %s297
      %s312 = sphi 0, %s298
      %s316 = sphi 0, %s316
      %s318 = sphi 0, %s316
      %s319 = sphi 0, %s318
      %s333 = sphi 0, %s319
      %s337 = sphi 0, %s337
      %s339 = sphi 0, %s337
      %s340 = sphi 0, %s339
      %s354 = sphi 0, %s340
      %s358 = sphi 0, %s358
      %s360 = sphi 0, %s358
      %s361 = sphi 0, %s360
      %s375 = sphi 0, %s361
      %s379 = sphi 0, %s379
      %s381 = sphi 0, %s379
      %s382 = sphi 0, %s381
      %s396 = sphi 0, %s382
      %s400 = sphi 0, %s400
      %s402 = sphi 0, %s400
      %s403 = sphi 0, %s402
      %s417 = sphi 0, %s403
      %s421 = sphi 0, %s421
      %s423 = sphi 0, %s421
      %s424 = sphi 0, %s423
      %s438 = sphi 0, %s424
      %s442 = sphi 0, %s442
      %s444 = sphi 0, %s442
      %s445 = sphi 0, %s444
      %s459 = sphi 0, %s445
      %s465 = sphi 0, %s467
      %s468 = sphi 0, %s465
      %s469 = sphi 0, %s468
      %s485 = sphi 0, %s469
    $region4: #{forward.1} parent=1 // loop_header_branch
      %33 = sbr.rel (%p31) target = $region8
    $region5: #{forward.1} parent=1 // loop_body
      %s35 = ssub.s32 %s30, 1
      %s36 = ssub.s32 %s30, 2
      %s37 = sadd.s32 %s30, 1
      %s38 = ssub.s32 %s30, %s37
      %p39 = scmp.eq.s32.totalorder %s38, 0
      %s41 = sadd.s32 %s40, 1
      %s42 = scalar_select %p39, %s40, %s41
      %p45 = pneg %p39
      %p46 = scmp.eq.s32.totalorder %s30, 1
      %p47 = por %p45, %p46
      %p48 = scmp.ne.s32.totalorder %s40, %s43
      %p49 = scmp.eq.s32.totalorder %s30, 0
      %p50 = por %p48, %p49
      %p51 = scmp.ne.s32.totalorder %s40, %s43
      %p52 = scmp.eq.s32.totalorder %s35, 1
      %p53 = por %p51, %p52
      %p54 = scmp.ne.s32.totalorder %s43, %s44
      %p55 = scmp.eq.s32.totalorder %s35, 0
      %p56 = por %p54, %p55
      %p57 = scmp.ne.s32.totalorder %s43, %s44
      %p58 = scmp.eq.s32.totalorder %s36, 1
      %p59 = por %p57, %p58
      %p61 = scmp.ne.s32.totalorder %s44, %s60
      %p62 = scmp.eq.s32.totalorder %s36, 0
      %p63 = por %p61, %p62
      %s65 = sadd.s32 %s64, 1
      %p68 = scmp.eq.s32.totalorder %s30, 1
      %p69 = scmp.ne.s32.totalorder %s64, %s66
      %p70 = scmp.eq.s32.totalorder %s30, 0
      %p71 = por %p69, %p70
      %p72 = scmp.ne.s32.totalorder %s64, %s66
      %p73 = scmp.eq.s32.totalorder %s35, 1
      %p74 = por %p72, %p73
      %p75 = scmp.ne.s32.totalorder %s66, %s67
      %p76 = scmp.eq.s32.totalorder %s35, 0
      %p77 = por %p75, %p76
      %p78 = scmp.ne.s32.totalorder %s66, %s67
      %p79 = scmp.eq.s32.totalorder %s36, 1
      %p80 = por %p78, %p79
      %p82 = scmp.ne.s32.totalorder %s67, %s81
      %p83 = scmp.eq.s32.totalorder %s36, 0
      %p84 = por %p82, %p83
      %s86 = sadd.s32 %s85, 1
      %p89 = scmp.eq.s32.totalorder %s30, 1
      %p90 = scmp.ne.s32.totalorder %s85, %s87
      %p91 = scmp.eq.s32.totalorder %s30, 0
      %p92 = por %p90, %p91
      %p93 = scmp.ne.s32.totalorder %s85, %s87
      %p94 = scmp.eq.s32.totalorder %s35, 1
      %p95 = por %p93, %p94
      %p96 = scmp.ne.s32.totalorder %s87, %s88
      %p97 = scmp.eq.s32.totalorder %s35, 0
      %p98 = por %p96, %p97
      %p99 = scmp.ne.s32.totalorder %s87, %s88
      %p100 = scmp.eq.s32.totalorder %s36, 1
      %p101 = por %p99, %p100
      %p103 = scmp.ne.s32.totalorder %s88, %s102
      %p104 = scmp.eq.s32.totalorder %s36, 0
      %p105 = por %p103, %p104
      %s107 = sadd.s32 %s106, 1
      %p110 = scmp.eq.s32.totalorder %s30, 1
      %p111 = scmp.ne.s32.totalorder %s106, %s108
      %p112 = scmp.eq.s32.totalorder %s30, 0
      %p113 = por %p111, %p112
      %p114 = scmp.ne.s32.totalorder %s106, %s108
      %p115 = scmp.eq.s32.totalorder %s35, 1
      %p116 = por %p114, %p115
      %p117 = scmp.ne.s32.totalorder %s108, %s109
      %p118 = scmp.eq.s32.totalorder %s35, 0
      %p119 = por %p117, %p118
      %p120 = scmp.ne.s32.totalorder %s108, %s109
      %p121 = scmp.eq.s32.totalorder %s36, 1
      %p122 = por %p120, %p121
      %p124 = scmp.ne.s32.totalorder %s109, %s123
      %p125 = scmp.eq.s32.totalorder %s36, 0
      %p126 = por %p124, %p125
      %s128 = sadd.s32 %s127, 1
      %p131 = scmp.eq.s32.totalorder %s30, 1
      %p132 = scmp.ne.s32.totalorder %s127, %s129
      %p133 = scmp.eq.s32.totalorder %s30, 0
      %p134 = por %p132, %p133
      %p135 = scmp.ne.s32.totalorder %s127, %s129
      %p136 = scmp.eq.s32.totalorder %s35, 1
      %p137 = por %p135, %p136
      %p138 = scmp.ne.s32.totalorder %s129, %s130
      %p139 = scmp.eq.s32.totalorder %s35, 0
      %p140 = por %p138, %p139
      %p141 = scmp.ne.s32.totalorder %s129, %s130
      %p142 = scmp.eq.s32.totalorder %s36, 1
      %p143 = por %p141, %p142
      %p145 = scmp.ne.s32.totalorder %s130, %s144
      %p146 = scmp.eq.s32.totalorder %s36, 0
      %p147 = por %p145, %p146
      %s149 = sadd.s32 %s148, 1
      %p152 = scmp.eq.s32.totalorder %s30, 1
      %p153 = scmp.ne.s32.totalorder %s148, %s150
      %p154 = scmp.eq.s32.totalorder %s30, 0
      %p155 = por %p153, %p154
      %p156 = scmp.ne.s32.totalorder %s148, %s150
      %p157 = scmp.eq.s32.totalorder %s35, 1
      %p158 = por %p156, %p157
      %p159 = scmp.ne.s32.totalorder %s150, %s151
      %p160 = scmp.eq.s32.totalorder %s35, 0
      %p161 = por %p159, %p160
      %p162 = scmp.ne.s32.totalorder %s150, %s151
      %p163 = scmp.eq.s32.totalorder %s36, 1
      %p164 = por %p162, %p163
      %p166 = scmp.ne.s32.totalorder %s151, %s165
      %p167 = scmp.eq.s32.totalorder %s36, 0
      %p168 = por %p166, %p167
      %s170 = sadd.s32 %s169, 1
      %p173 = scmp.eq.s32.totalorder %s30, 1
      %p174 = scmp.ne.s32.totalorder %s169, %s171
      %p175 = scmp.eq.s32.totalorder %s30, 0
      %p176 = por %p174, %p175
      %p177 = scmp.ne.s32.totalorder %s169, %s171
      %p178 = scmp.eq.s32.totalorder %s35, 1
      %p179 = por %p177, %p178
      %p180 = scmp.ne.s32.totalorder %s171, %s172
      %p181 = scmp.eq.s32.totalorder %s35, 0
      %p182 = por %p180, %p181
      %p183 = scmp.ne.s32.totalorder %s171, %s172
      %p184 = scmp.eq.s32.totalorder %s36, 1
      %p185 = por %p183, %p184
      %p187 = scmp.ne.s32.totalorder %s172, %s186
      %p188 = scmp.eq.s32.totalorder %s36, 0
      %p189 = por %p187, %p188
      %s191 = sadd.s32 %s190, 1
      %p194 = scmp.eq.s32.totalorder %s30, 1
      %p195 = scmp.ne.s32.totalorder %s190, %s192
      %p196 = scmp.eq.s32.totalorder %s30, 0
      %p197 = por %p195, %p196
      %p198 = scmp.ne.s32.totalorder %s190, %s192
      %p199 = scmp.eq.s32.totalorder %s35, 1
      %p200 = por %p198, %p199
      %p201 = scmp.ne.s32.totalorder %s192, %s193
      %p202 = scmp.eq.s32.totalorder %s35, 0
      %p203 = por %p201, %p202
      %p204 = scmp.ne.s32.totalorder %s192, %s193
      %p205 = scmp.eq.s32.totalorder %s36, 1
      %p206 = por %p204, %p205
      %p208 = scmp.ne.s32.totalorder %s193, %s207
      %p209 = scmp.eq.s32.totalorder %s36, 0
      %p210 = por %p208, %p209
      %s212 = sadd.s32 %s211, 1
      %p215 = scmp.eq.s32.totalorder %s30, 1
      %p216 = scmp.ne.s32.totalorder %s211, %s213
      %p217 = scmp.eq.s32.totalorder %s30, 0
      %p218 = por %p216, %p217
      %p219 = scmp.ne.s32.totalorder %s211, %s213
      %p220 = scmp.eq.s32.totalorder %s35, 1
      %p221 = por %p219, %p220
      %p222 = scmp.ne.s32.totalorder %s213, %s214
      %p223 = scmp.eq.s32.totalorder %s35, 0
      %p224 = por %p222, %p223
      %p225 = scmp.ne.s32.totalorder %s213, %s214
      %p226 = scmp.eq.s32.totalorder %s36, 1
      %p227 = por %p225, %p226
      %p229 = scmp.ne.s32.totalorder %s214, %s228
      %p230 = scmp.eq.s32.totalorder %s36, 0
      %p231 = por %p229, %p230
      %s233 = sadd.s32 %s232, 1
      %p236 = scmp.eq.s32.totalorder %s30, 1
      %p237 = scmp.ne.s32.totalorder %s232, %s234
      %p238 = scmp.eq.s32.totalorder %s30, 0
      %p239 = por %p237, %p238
      %p240 = scmp.ne.s32.totalorder %s232, %s234
      %p241 = scmp.eq.s32.totalorder %s35, 1
      %p242 = por %p240, %p241
      %p243 = scmp.ne.s32.totalorder %s234, %s235
      %p244 = scmp.eq.s32.totalorder %s35, 0
      %p245 = por %p243, %p244
      %p246 = scmp.ne.s32.totalorder %s234, %s235
      %p247 = scmp.eq.s32.totalorder %s36, 1
      %p248 = por %p246, %p247
      %p250 = scmp.ne.s32.totalorder %s235, %s249
      %p251 = scmp.eq.s32.totalorder %s36, 0
      %p252 = por %p250, %p251
      %s254 = sadd.s32 %s253, 1
      %p257 = scmp.eq.s32.totalorder %s30, 1
      %p258 = scmp.ne.s32.totalorder %s253, %s255
      %p259 = scmp.eq.s32.totalorder %s30, 0
      %p260 = por %p258, %p259
      %p261 = scmp.ne.s32.totalorder %s253, %s255
      %p262 = scmp.eq.s32.totalorder %s35, 1
      %p263 = por %p261, %p262
      %p264 = scmp.ne.s32.totalorder %s255, %s256
      %p265 = scmp.eq.s32.totalorder %s35, 0
      %p266 = por %p264, %p265
      %p267 = scmp.ne.s32.totalorder %s255, %s256
      %p268 = scmp.eq.s32.totalorder %s36, 1
      %p269 = por %p267, %p268
      %p271 = scmp.ne.s32.totalorder %s256, %s270
      %p272 = scmp.eq.s32.totalorder %s36, 0
      %p273 = por %p271, %p272
      %s275 = sadd.s32 %s274, 1
      %p278 = scmp.eq.s32.totalorder %s30, 1
      %p279 = scmp.ne.s32.totalorder %s274, %s276
      %p280 = scmp.eq.s32.totalorder %s30, 0
      %p281 = por %p279, %p280
      %p282 = scmp.ne.s32.totalorder %s274, %s276
      %p283 = scmp.eq.s32.totalorder %s35, 1
      %p284 = por %p282, %p283
      %p285 = scmp.ne.s32.totalorder %s276, %s277
      %p286 = scmp.eq.s32.totalorder %s35, 0
      %p287 = por %p285, %p286
      %p288 = scmp.ne.s32.totalorder %s276, %s277
      %p289 = scmp.eq.s32.totalorder %s36, 1
      %p290 = por %p288, %p289
      %p292 = scmp.ne.s32.totalorder %s277, %s291
      %p293 = scmp.eq.s32.totalorder %s36, 0
      %p294 = por %p292, %p293
      %s296 = sadd.s32 %s295, 1
      %p299 = scmp.eq.s32.totalorder %s30, 1
      %p300 = scmp.ne.s32.totalorder %s295, %s297
      %p301 = scmp.eq.s32.totalorder %s30, 0
      %p302 = por %p300, %p301
      %p303 = scmp.ne.s32.totalorder %s295, %s297
      %p304 = scmp.eq.s32.totalorder %s35, 1
      %p305 = por %p303, %p304
      %p306 = scmp.ne.s32.totalorder %s297, %s298
      %p307 = scmp.eq.s32.totalorder %s35, 0
      %p308 = por %p306, %p307
      %p309 = scmp.ne.s32.totalorder %s297, %s298
      %p310 = scmp.eq.s32.totalorder %s36, 1
      %p311 = por %p309, %p310
      %p313 = scmp.ne.s32.totalorder %s298, %s312
      %p314 = scmp.eq.s32.totalorder %s36, 0
      %p315 = por %p313, %p314
      %s317 = sadd.s32 %s316, 1
      %p320 = scmp.eq.s32.totalorder %s30, 1
      %p321 = scmp.ne.s32.totalorder %s316, %s318
      %p322 = scmp.eq.s32.totalorder %s30, 0
      %p323 = por %p321, %p322
      %p324 = scmp.ne.s32.totalorder %s316, %s318
      %p325 = scmp.eq.s32.totalorder %s35, 1
      %p326 = por %p324, %p325
      %p327 = scmp.ne.s32.totalorder %s318, %s319
      %p328 = scmp.eq.s32.totalorder %s35, 0
      %p329 = por %p327, %p328
      %p330 = scmp.ne.s32.totalorder %s318, %s319
      %p331 = scmp.eq.s32.totalorder %s36, 1
      %p332 = por %p330, %p331
      %p334 = scmp.ne.s32.totalorder %s319, %s333
      %p335 = scmp.eq.s32.totalorder %s36, 0
      %p336 = por %p334, %p335
      %s338 = sadd.s32 %s337, 1
      %p341 = scmp.eq.s32.totalorder %s30, 1
      %p342 = scmp.ne.s32.totalorder %s337, %s339
      %p343 = scmp.eq.s32.totalorder %s30, 0
      %p344 = por %p342, %p343
      %p345 = scmp.ne.s32.totalorder %s337, %s339
      %p346 = scmp.eq.s32.totalorder %s35, 1
      %p347 = por %p345, %p346
      %p348 = scmp.ne.s32.totalorder %s339, %s340
      %p349 = scmp.eq.s32.totalorder %s35, 0
      %p350 = por %p348, %p349
      %p351 = scmp.ne.s32.totalorder %s339, %s340
      %p352 = scmp.eq.s32.totalorder %s36, 1
      %p353 = por %p351, %p352
      %p355 = scmp.ne.s32.totalorder %s340, %s354
      %p356 = scmp.eq.s32.totalorder %s36, 0
      %p357 = por %p355, %p356
      %s359 = sadd.s32 %s358, 1
      %p362 = scmp.eq.s32.totalorder %s30, 1
      %p363 = scmp.ne.s32.totalorder %s358, %s360
      %p364 = scmp.eq.s32.totalorder %s30, 0
      %p365 = por %p363, %p364
      %p366 = scmp.ne.s32.totalorder %s358, %s360
      %p367 = scmp.eq.s32.totalorder %s35, 1
      %p368 = por %p366, %p367
      %p369 = scmp.ne.s32.totalorder %s360, %s361
      %p370 = scmp.eq.s32.totalorder %s35, 0
      %p371 = por %p369, %p370
      %p372 = scmp.ne.s32.totalorder %s360, %s361
      %p373 = scmp.eq.s32.totalorder %s36, 1
      %p374 = por %p372, %p373
      %p376 = scmp.ne.s32.totalorder %s361, %s375
      %p377 = scmp.eq.s32.totalorder %s36, 0
      %p378 = por %p376, %p377
      %s380 = sadd.s32 %s379, 1
      %p383 = scmp.eq.s32.totalorder %s30, 1
      %p384 = scmp.ne.s32.totalorder %s379, %s381
      %p385 = scmp.eq.s32.totalorder %s30, 0
      %p386 = por %p384, %p385
      %p387 = scmp.ne.s32.totalorder %s379, %s381
      %p388 = scmp.eq.s32.totalorder %s35, 1
      %p389 = por %p387, %p388
      %p390 = scmp.ne.s32.totalorder %s381, %s382
      %p391 = scmp.eq.s32.totalorder %s35, 0
      %p392 = por %p390, %p391
      %p393 = scmp.ne.s32.totalorder %s381, %s382
      %p394 = scmp.eq.s32.totalorder %s36, 1
      %p395 = por %p393, %p394
      %p397 = scmp.ne.s32.totalorder %s382, %s396
      %p398 = scmp.eq.s32.totalorder %s36, 0
      %p399 = por %p397, %p398
      %s401 = sadd.s32 %s400, 1
      %p404 = scmp.eq.s32.totalorder %s30, 1
      %p405 = scmp.ne.s32.totalorder %s400, %s402
      %p406 = scmp.eq.s32.totalorder %s30, 0
      %p407 = por %p405, %p406
      %p408 = scmp.ne.s32.totalorder %s400, %s402
      %p409 = scmp.eq.s32.totalorder %s35, 1
      %p410 = por %p408, %p409
      %p411 = scmp.ne.s32.totalorder %s402, %s403
      %p412 = scmp.eq.s32.totalorder %s35, 0
      %p413 = por %p411, %p412
      %p414 = scmp.ne.s32.totalorder %s402, %s403
      %p415 = scmp.eq.s32.totalorder %s36, 1
      %p416 = por %p414, %p415
      %p418 = scmp.ne.s32.totalorder %s403, %s417
      %p419 = scmp.eq.s32.totalorder %s36, 0
      %p420 = por %p418, %p419
      %s422 = sadd.s32 %s421, 1
      %p425 = scmp.eq.s32.totalorder %s30, 1
      %p426 = scmp.ne.s32.totalorder %s421, %s423
      %p427 = scmp.eq.s32.totalorder %s30, 0
      %p428 = por %p426, %p427
      %p429 = scmp.ne.s32.totalorder %s421, %s423
      %p430 = scmp.eq.s32.totalorder %s35, 1
      %p431 = por %p429, %p430
      %p432 = scmp.ne.s32.totalorder %s423, %s424
      %p433 = scmp.eq.s32.totalorder %s35, 0
      %p434 = por %p432, %p433
      %p435 = scmp.ne.s32.totalorder %s423, %s424
      %p436 = scmp.eq.s32.totalorder %s36, 1
      %p437 = por %p435, %p436
      %p439 = scmp.ne.s32.totalorder %s424, %s438
      %p440 = scmp.eq.s32.totalorder %s36, 0
      %p441 = por %p439, %p440
      %s443 = sadd.s32 %s442, 1
      %p446 = scmp.eq.s32.totalorder %s30, 1
      %p447 = scmp.ne.s32.totalorder %s442, %s444
      %p448 = scmp.eq.s32.totalorder %s30, 0
      %p449 = por %p447, %p448
      %p450 = scmp.ne.s32.totalorder %s442, %s444
      %p451 = scmp.eq.s32.totalorder %s35, 1
      %p452 = por %p450, %p451
      %p453 = scmp.ne.s32.totalorder %s444, %s445
      %p454 = scmp.eq.s32.totalorder %s35, 0
      %p455 = por %p453, %p454
      %p456 = scmp.ne.s32.totalorder %s444, %s445
      %p457 = scmp.eq.s32.totalorder %s36, 1
      %p458 = por %p456, %p457
      %p460 = scmp.ne.s32.totalorder %s445, %s459
      %p461 = scmp.eq.s32.totalorder %s36, 0
      %p462 = por %p460, %p461
      %s463 = ssub.s32 %s30, %s37
      %p464 = scmp.eq.s32.totalorder %s463, 0
      %s466 = sadd.s32 %s465, 1
      %s467 = scalar_select %p464, %s465, %s466
      %p470 = pneg %p464
      %p471 = scmp.eq.s32.totalorder %s30, 1
      %p472 = por %p470, %p471
      %p473 = scmp.ne.s32.totalorder %s465, %s468
      %p474 = scmp.eq.s32.totalorder %s30, 0
      %p475 = por %p473, %p474
      %p476 = scmp.ne.s32.totalorder %s465, %s468
      %p477 = scmp.eq.s32.totalorder %s35, 1
      %p478 = por %p476, %p477
      %p479 = scmp.ne.s32.totalorder %s468, %s469
      %p480 = scmp.eq.s32.totalorder %s35, 0
      %p481 = por %p479, %p480
      %p482 = scmp.ne.s32.totalorder %s468, %s469
      %p483 = scmp.eq.s32.totalorder %s36, 1
      %p484 = por %p482, %p483
      %p486 = scmp.ne.s32.totalorder %s469, %s485
      %p487 = scmp.eq.s32.totalorder %s36, 0
      %p488 = por %p486, %p487
      %p489 = scmp.le.s32.totalorder 1, %s30
      %p490 = scmp.lt.s32.totalorder %s30, 3
      %p491 = pnand %p489, %p490
      %p492 = pneg %p491
      // Predicated region
      $region9: #{forward.1} parent=5 // pred_check
        _
      $region10: #{forward.1} parent=5 // pred_check_branch
        %494 = sbr.rel (%p491) target = $region12
      $region11: #{forward.1} parent=5 // pred_region
        %s495 = ssub.s32 %s30, 1
        // Predicated region
        $region13: #{forward.1} parent=11 // pred_check
          %p496 = pneg %p77
        $region14: #{forward.1} parent=11 // pred_check_branch
          %498 = sbr.rel (%p496) target = $region16
        $region15: #{forward.1} parent=11 // pred_region
          _
        $region16: #{forward.1} parent=11 // pred_fallthru
          _
        // Predicated region
        $region17: #{forward.1} parent=11 // pred_check
          %p499 = pneg %p98
        $region18: #{forward.1} parent=11 // pred_check_branch
          %501 = sbr.rel (%p499) target = $region20
        $region19: #{forward.1} parent=11 // pred_region
          _
        $region20: #{forward.1} parent=11 // pred_fallthru
          _
        // Predicated region
        $region21: #{forward.1} parent=11 // pred_check
          %p502 = pneg %p119
        $region22: #{forward.1} parent=11 // pred_check_branch
          %504 = sbr.rel (%p502) target = $region24
        $region23: #{forward.1} parent=11 // pred_region
          _
        $region24: #{forward.1} parent=11 // pred_fallthru
          _
        // Predicated region
        $region25: #{forward.1} parent=11 // pred_check
          %p505 = pneg %p140
        $region26: #{forward.1} parent=11 // pred_check_branch
          %507 = sbr.rel (%p505) target = $region28
        $region27: #{forward.1} parent=11 // pred_region
          _
        $region28: #{forward.1} parent=11 // pred_fallthru
          _
        // Predicated region
        $region29: #{forward.1} parent=11 // pred_check
          %p508 = pneg %p161
        $region30: #{forward.1} parent=11 // pred_check_branch
          %510 = sbr.rel (%p508) target = $region32
        $region31: #{forward.1} parent=11 // pred_region
          _
        $region32: #{forward.1} parent=11 // pred_fallthru
          _
        // Predicated region
        $region33: #{forward.1} parent=11 // pred_check
          %p511 = pneg %p182
        $region34: #{forward.1} parent=11 // pred_check_branch
          %513 = sbr.rel (%p511) target = $region36
        $region35: #{forward.1} parent=11 // pred_region
          _
        $region36: #{forward.1} parent=11 // pred_fallthru
          _
        // Predicated region
        $region37: #{forward.1} parent=11 // pred_check
          %p514 = pneg %p203
        $region38: #{forward.1} parent=11 // pred_check_branch
          %516 = sbr.rel (%p514) target = $region40
        $region39: #{forward.1} parent=11 // pred_region
          _
        $region40: #{forward.1} parent=11 // pred_fallthru
          _
        // Predicated region
        $region41: #{forward.1} parent=11 // pred_check
          %p517 = pneg %p224
        $region42: #{forward.1} parent=11 // pred_check_branch
          %519 = sbr.rel (%p517) target = $region44
        $region43: #{forward.1} parent=11 // pred_region
          _
        $region44: #{forward.1} parent=11 // pred_fallthru
          _
        // Predicated region
        $region45: #{forward.1} parent=11 // pred_check
          %p520 = pneg %p245
        $region46: #{forward.1} parent=11 // pred_check_branch
          %522 = sbr.rel (%p520) target = $region48
        $region47: #{forward.1} parent=11 // pred_region
          _
        $region48: #{forward.1} parent=11 // pred_fallthru
          _
        // Predicated region
        $region49: #{forward.1} parent=11 // pred_check
          %p523 = pneg %p266
        $region50: #{forward.1} parent=11 // pred_check_branch
          %525 = sbr.rel (%p523) target = $region52
        $region51: #{forward.1} parent=11 // pred_region
          _
        $region52: #{forward.1} parent=11 // pred_fallthru
          _
        // Predicated region
        $region53: #{forward.1} parent=11 // pred_check
          %p526 = pneg %p287
        $region54: #{forward.1} parent=11 // pred_check_branch
          %528 = sbr.rel (%p526) target = $region56
        $region55: #{forward.1} parent=11 // pred_region
          _
        $region56: #{forward.1} parent=11 // pred_fallthru
          _
        // Predicated region
        $region57: #{forward.1} parent=11 // pred_check
          %p529 = pneg %p308
        $region58: #{forward.1} parent=11 // pred_check_branch
          %531 = sbr.rel (%p529) target = $region60
        $region59: #{forward.1} parent=11 // pred_region
          _
        $region60: #{forward.1} parent=11 // pred_fallthru
          _
        // Predicated region
        $region61: #{forward.1} parent=11 // pred_check
          %p532 = pneg %p329
        $region62: #{forward.1} parent=11 // pred_check_branch
          %534 = sbr.rel (%p532) target = $region64
        $region63: #{forward.1} parent=11 // pred_region
          _
        $region64: #{forward.1} parent=11 // pred_fallthru
          _
        // Predicated region
        $region65: #{forward.1} parent=11 // pred_check
          %p535 = pneg %p350
        $region66: #{forward.1} parent=11 // pred_check_branch
          %537 = sbr.rel (%p535) target = $region68
        $region67: #{forward.1} parent=11 // pred_region
          _
        $region68: #{forward.1} parent=11 // pred_fallthru
          _
        // Predicated region
        $region69: #{forward.1} parent=11 // pred_check
          %p538 = pneg %p371
        $region70: #{forward.1} parent=11 // pred_check_branch
          %540 = sbr.rel (%p538) target = $region72
        $region71: #{forward.1} parent=11 // pred_region
          _
        $region72: #{forward.1} parent=11 // pred_fallthru
          _
        // Predicated region
        $region73: #{forward.1} parent=11 // pred_check
          %p541 = pneg %p392
        $region74: #{forward.1} parent=11 // pred_check_branch
          %543 = sbr.rel (%p541) target = $region76
        $region75: #{forward.1} parent=11 // pred_region
          _
        $region76: #{forward.1} parent=11 // pred_fallthru
          _
        // Predicated region
        $region77: #{forward.1} parent=11 // pred_check
          %p544 = pneg %p413
        $region78: #{forward.1} parent=11 // pred_check_branch
          %546 = sbr.rel (%p544) target = $region80
        $region79: #{forward.1} parent=11 // pred_region
          _
        $region80: #{forward.1} parent=11 // pred_fallthru
          _
        // Predicated region
        $region81: #{forward.1} parent=11 // pred_check
          %p547 = pneg %p434
        $region82: #{forward.1} parent=11 // pred_check_branch
          %549 = sbr.rel (%p547) target = $region84
        $region83: #{forward.1} parent=11 // pred_region
          _
        $region84: #{forward.1} parent=11 // pred_fallthru
          _
        // Predicated region
        $region85: #{forward.1} parent=11 // pred_check
          %p550 = pneg %p455
        $region86: #{forward.1} parent=11 // pred_check_branch
          %552 = sbr.rel (%p550) target = $region88
        $region87: #{forward.1} parent=11 // pred_region
          %554 = vsyncadd [#allocation10], 0
          %s556 = sshll.u32 %s19, 4
          %s557 = int_to_ptr.vmem [resolvable:$true] %s556
          %559 = dma.vmem_to_smem %s557, 16, [#allocation8], [#allocation10]
        $region88: #{forward.1} parent=11 // pred_fallthru
          _
      $region12: #{forward.1} parent=5 // pred_fallthru
        _
      %p560 = scmp.lt.s32.totalorder %s30, 2
      // Predicated region
      $region89: #{forward.1} parent=5 // pred_check
        %p561 = pneg %p560
      $region90: #{forward.1} parent=5 // pred_check_branch
        %563 = sbr.rel (%p561) target = $region92
      $region91: #{forward.1} parent=5 // pred_region
        // Predicated region
        $region93: #{forward.1} parent=91 // pred_check
          %p564 = pneg %p50
        $region94: #{forward.1} parent=91 // pred_check_branch
          %566 = sbr.rel (%p564) target = $region96
        $region95: #{forward.1} parent=91 // pred_region
          %s567 = smul.u32 64, %s30
          %p568 = scmp.lt.s32.totalorder %s567, 127
          %s569 = scalar_select %p568, %s567, 127
          %s570 = smul.addr %s569, 4
          %s571 = scalar_lea.vmem %s0, %s570
          %s572 = smul.u32 64, %s30
        $region96: #{forward.1} parent=91 // pred_fallthru
          _
      $region92: #{forward.1} parent=5 // pred_fallthru
        _
      %p573 = scmp.le.s32.totalorder 1, %s30
      %p574 = scmp.lt.s32.totalorder %s30, 3
      %p575 = pnand %p573, %p574
      %p576 = pneg %p575
      // Predicated region
      $region97: #{forward.1} parent=5 // pred_check
        _
      $region98: #{forward.1} parent=5 // pred_check_branch
        %578 = sbr.rel (%p575) target = $region100
      $region99: #{forward.1} parent=5 // pred_region
        %s579 = ssub.s32 %s30, 1
        // Predicated region
        $region101: #{forward.1} parent=99 // pred_check
          %p580 = pneg %p455
        $region102: #{forward.1} parent=99 // pred_check_branch
          %582 = sbr.rel (%p580) target = $region104
        $region103: #{forward.1} parent=99 // pred_region
          %584 = dma.done [#allocation10], 16
        $region104: #{forward.1} parent=99 // pred_fallthru
          _
        %585 = sfence
        %s586 = smul.u32 64, %s35
        %p587 = scmp.lt.s32.totalorder %s586, 127
        %s588 = scalar_select %p587, %s586, 127
        %s589 = smul.addr %s588, 4
        %s590 = scalar_lea.vmem %s0, %s589
        %p591 = pneg %p56
        %p592 = pneg %p53
        %p593 = pneg %p77
        %p594 = pneg %p74
        %p595 = pneg %p98
        %p596 = pneg %p95
        %p597 = pneg %p119
        %p598 = pneg %p116
        %p599 = pneg %p140
        %p600 = pneg %p137
        %p601 = pneg %p161
        %p602 = pneg %p158
        %p603 = pneg %p182
        %p604 = pneg %p179
        %p605 = pneg %p203
        %p606 = pneg %p200
        %p607 = pneg %p224
        %p608 = pneg %p221
        %p609 = pneg %p245
        %p610 = pneg %p242
        %p611 = pneg %p266
        %p612 = pneg %p263
        %p613 = pneg %p287
        %p614 = pneg %p284
        %p615 = pneg %p308
        %p616 = pneg %p305
        %p617 = pneg %p329
        %p618 = pneg %p326
        %p619 = pneg %p350
        %p620 = pneg %p347
        %p621 = pneg %p371
        %p622 = pneg %p368
        %p623 = pneg %p392
        %p624 = pneg %p389
        %p625 = pneg %p413
        %p626 = pneg %p410
        %p627 = pneg %p434
        %p628 = pneg %p431
        %p629 = pneg %p455
        %p630 = pneg %p452
        %p631 = pneg %p481
        %p632 = pneg %p478
        %s633 = sand.u32 %s468, 1
        %s634 = scalar_lea.sflag [#allocation9], %s633
        %s635 = sand.u32 %s468, 1
        %s636 = smul.addr %s635, 32
        %s637 = scalar_lea.vmem [#allocation11], %s636
        %s638 = smul.u32 64, %s35
        %p639 = scmp.lt.s32.totalorder %s638, 127
        %s640 = scalar_select %p639, %s638, 127
        %s641 = smul.addr %s640, 4
        %s642 = scalar_lea.vmem %s0, %s641
        %s643 = smul.u32 64, %s35
        %s644 = smul.u32 4, %s35
        %v646 = vld [vmem:[%s642] sm:$0xf]
        %v647 = vld [vmem:[%s642 + $0x4] sm:$0xf]
        %v648 = vld [vmem:[%s642 + $0x8] sm:$0xf]
        %v649 = vld [vmem:[%s642 + $0xc] sm:$0xf]
        %v650 = vld [vmem:[%s642 + $0x10] sm:$0xf]
        %v651 = vld [vmem:[%s642 + $0x14] sm:$0xf]
        %v652 = vld [vmem:[%s642 + $0x18] sm:$0xf]
        %v653 = vld [vmem:[%s642 + $0x1c] sm:$0xf]
        %v654 = vld [vmem:[%s642 + $0x20] sm:$0xf]
        %v655 = vld [vmem:[%s642 + $0x24] sm:$0xf]
        %v656 = vld [vmem:[%s642 + $0x28] sm:$0xf]
        %v657 = vld [vmem:[%s642 + $0x2c] sm:$0xf]
        %v658 = vld [vmem:[%s642 + $0x30] sm:$0xf]
        %v659 = vld [vmem:[%s642 + $0x34] sm:$0xf]
        %v660 = vld [vmem:[%s642 + $0x38] sm:$0xf]
        %v661 = vld [vmem:[%s642 + $0x3c] sm:$0xf]
        %v662 = vld [vmem:[%s642 + $0x40] sm:$0xf]
        %v663 = vld [vmem:[%s642 + $0x44] sm:$0xf]
        %v664 = vld [vmem:[%s642 + $0x48] sm:$0xf]
        %v665 = vld [vmem:[%s642 + $0x4c] sm:$0xf]
        %v666 = vld [vmem:[%s642 + $0x50] sm:$0xf]
        %v667 = vld [vmem:[%s642 + $0x54] sm:$0xf]
        %v668 = vld [vmem:[%s642 + $0x58] sm:$0xf]
        %v669 = vld [vmem:[%s642 + $0x5c] sm:$0xf]
        %v670 = vld [vmem:[%s642 + $0x60] sm:$0xf]
        %v671 = vld [vmem:[%s642 + $0x64] sm:$0xf]
        %v672 = vld [vmem:[%s642 + $0x68] sm:$0xf]
        %v673 = vld [vmem:[%s642 + $0x6c] sm:$0xf]
        %v674 = vld [vmem:[%s642 + $0x70] sm:$0xf]
        %v675 = vld [vmem:[%s642 + $0x74] sm:$0xf]
        %v676 = vld [vmem:[%s642 + $0x78] sm:$0xf]
        %v677 = vld [vmem:[%s642 + $0x7c] sm:$0xf]
        %v678 = vld [vmem:[%s642 + $0x80] sm:$0xf]
        %v679 = vld [vmem:[%s642 + $0x84] sm:$0xf]
        %v680 = vld [vmem:[%s642 + $0x88] sm:$0xf]
        %v681 = vld [vmem:[%s642 + $0x8c] sm:$0xf]
        %v682 = vld [vmem:[%s642 + $0x90] sm:$0xf]
        %v683 = vld [vmem:[%s642 + $0x94] sm:$0xf]
        %v684 = vld [vmem:[%s642 + $0x98] sm:$0xf]
        %v685 = vld [vmem:[%s642 + $0x9c] sm:$0xf]
        %v686 = vld [vmem:[%s642 + $0xa0] sm:$0xf]
        %v687 = vld [vmem:[%s642 + $0xa4] sm:$0xf]
        %v688 = vld [vmem:[%s642 + $0xa8] sm:$0xf]
        %v689 = vld [vmem:[%s642 + $0xac] sm:$0xf]
        %v690 = vld [vmem:[%s642 + $0xb0] sm:$0xf]
        %v691 = vld [vmem:[%s642 + $0xb4] sm:$0xf]
        %v692 = vld [vmem:[%s642 + $0xb8] sm:$0xf]
        %v693 = vld [vmem:[%s642 + $0xbc] sm:$0xf]
        %v694 = vld [vmem:[%s642 + $0xc0] sm:$0xf]
        %v695 = vld [vmem:[%s642 + $0xc4] sm:$0xf]
        %v696 = vld [vmem:[%s642 + $0xc8] sm:$0xf]
        %v697 = vld [vmem:[%s642 + $0xcc] sm:$0xf]
        %v698 = vld [vmem:[%s642 + $0xd0] sm:$0xf]
        %v699 = vld [vmem:[%s642 + $0xd4] sm:$0xf]
        %v700 = vld [vmem:[%s642 + $0xd8] sm:$0xf]
        %v701 = vld [vmem:[%s642 + $0xdc] sm:$0xf]
        %v702 = vld [vmem:[%s642 + $0xe0] sm:$0xf]
        %v703 = vld [vmem:[%s642 + $0xe4] sm:$0xf]
        %v704 = vld [vmem:[%s642 + $0xe8] sm:$0xf]
        %v705 = vld [vmem:[%s642 + $0xec] sm:$0xf]
        %v706 = vld [vmem:[%s642 + $0xf0] sm:$0xf]
        %v707 = vld [vmem:[%s642 + $0xf4] sm:$0xf]
        %v708 = vld [vmem:[%s642 + $0xf8] sm:$0xf]
        %v709 = vld [vmem:[%s642 + $0xfc] sm:$0xf]
        %v710 = vld [vmem:[%s1] sm:$0x3]
        %v711 = vld [vmem:[%s2] sm:$0x1]
        %v713 = vperm.slane %v711, 0
        %v779 = vunpack.c.l.b16 %v646
        %v780 = vunpack.c.l.b16 %v647
        %v781 = vunpack.c.l.b16 %v648
        %v782 = vunpack.c.l.b16 %v649
        %v783 = vunpack.c.l.b16 %v650
        %v784 = vunpack.c.l.b16 %v651
        %v785 = vunpack.c.l.b16 %v652
        %v786 = vunpack.c.l.b16 %v653
        %v787 = vunpack.c.l.b16 %v654
        %v788 = vunpack.c.l.b16 %v655
        %v789 = vunpack.c.l.b16 %v656
        %v790 = vunpack.c.l.b16 %v657
        %v791 = vunpack.c.l.b16 %v658
        %v792 = vunpack.c.l.b16 %v659
        %v793 = vunpack.c.l.b16 %v660
        %v794 = vunpack.c.l.b16 %v661
        %v795 = vunpack.c.l.b16 %v662
        %v796 = vunpack.c.l.b16 %v663
        %v797 = vunpack.c.l.b16 %v664
        %v798 = vunpack.c.l.b16 %v665
        %v799 = vunpack.c.l.b16 %v666
        %v800 = vunpack.c.l.b16 %v667
        %v801 = vunpack.c.l.b16 %v668
        %v802 = vunpack.c.l.b16 %v669
        %v803 = vunpack.c.l.b16 %v670
        %v804 = vunpack.c.l.b16 %v671
        %v805 = vunpack.c.l.b16 %v672
        %v806 = vunpack.c.l.b16 %v673
        %v807 = vunpack.c.l.b16 %v674
        %v808 = vunpack.c.l.b16 %v675
        %v809 = vunpack.c.l.b16 %v676
        %v810 = vunpack.c.l.b16 %v677
        %v811 = vunpack.c.l.b16 %v678
        %v812 = vunpack.c.l.b16 %v679
        %v813 = vunpack.c.l.b16 %v680
        %v814 = vunpack.c.l.b16 %v681
        %v815 = vunpack.c.l.b16 %v682
        %v816 = vunpack.c.l.b16 %v683
        %v817 = vunpack.c.l.b16 %v684
        %v818 = vunpack.c.l.b16 %v685
        %v819 = vunpack.c.l.b16 %v686
        %v820 = vunpack.c.l.b16 %v687
        %v821 = vunpack.c.l.b16 %v688
        %v822 = vunpack.c.l.b16 %v689
        %v823 = vunpack.c.l.b16 %v690
        %v824 = vunpack.c.l.b16 %v691
        %v825 = vunpack.c.l.b16 %v692
        %v826 = vunpack.c.l.b16 %v693
        %v827 = vunpack.c.l.b16 %v694
        %v828 = vunpack.c.l.b16 %v695
        %v829 = vunpack.c.l.b16 %v696
        %v830 = vunpack.c.l.b16 %v697
        %v831 = vunpack.c.l.b16 %v698
        %v832 = vunpack.c.l.b16 %v699
        %v833 = vunpack.c.l.b16 %v700
        %v834 = vunpack.c.l.b16 %v701
        %v835 = vunpack.c.l.b16 %v702
        %v836 = vunpack.c.l.b16 %v703
        %v837 = vunpack.c.l.b16 %v704
        %v838 = vunpack.c.l.b16 %v705
        %v839 = vunpack.c.l.b16 %v706
        %v840 = vunpack.c.l.b16 %v707
        %v841 = vunpack.c.l.b16 %v708
        %v842 = vunpack.c.l.b16 %v709
        %v843 = vpack.c.b16 %v780, %v779
        %v844 = vpack.c.b16 %v782, %v781
        %v845 = vpack.c.b16 %v784, %v783
        %v846 = vpack.c.b16 %v786, %v785
        %v847 = vpack.c.b16 %v788, %v787
        %v848 = vpack.c.b16 %v790, %v789
        %v849 = vpack.c.b16 %v792, %v791
        %v850 = vpack.c.b16 %v794, %v793
        %v851 = vpack.c.b16 %v796, %v795
        %v852 = vpack.c.b16 %v798, %v797
        %v853 = vpack.c.b16 %v800, %v799
        %v854 = vpack.c.b16 %v802, %v801
        %v855 = vpack.c.b16 %v804, %v803
        %v856 = vpack.c.b16 %v806, %v805
        %v857 = vpack.c.b16 %v808, %v807
        %v858 = vpack.c.b16 %v810, %v809
        %v859 = vpack.c.b16 %v812, %v811
        %v860 = vpack.c.b16 %v814, %v813
        %v861 = vpack.c.b16 %v816, %v815
        %v862 = vpack.c.b16 %v818, %v817
        %v863 = vpack.c.b16 %v820, %v819
        %v864 = vpack.c.b16 %v822, %v821
        %v865 = vpack.c.b16 %v824, %v823
        %v866 = vpack.c.b16 %v826, %v825
        %v867 = vpack.c.b16 %v828, %v827
        %v868 = vpack.c.b16 %v830, %v829
        %v869 = vpack.c.b16 %v832, %v831
        %v870 = vpack.c.b16 %v834, %v833
        %v871 = vpack.c.b16 %v836, %v835
        %v872 = vpack.c.b16 %v838, %v837
        %v873 = vpack.c.b16 %v840, %v839
        %v874 = vpack.c.b16 %v842, %v841
        %vm875 = vcmask 31744
        %v877 = vsel %vm875, %v843, 0
        %v880 = vsel %vm875, %v844, 0
        %v883 = vsel %vm875, %v845, 0
        %v886 = vsel %vm875, %v846, 0
        %v889 = vsel %vm875, %v847, 0
        %v892 = vsel %vm875, %v848, 0
        %v895 = vsel %vm875, %v849, 0
        %v898 = vsel %vm875, %v850, 0
        %v901 = vsel %vm875, %v851, 0
        %v904 = vsel %vm875, %v852, 0
        %v907 = vsel %vm875, %v853, 0
        %v910 = vsel %vm875, %v854, 0
        %v913 = vsel %vm875, %v855, 0
        %v916 = vsel %vm875, %v856, 0
        %v919 = vsel %vm875, %v857, 0
        %v922 = vsel %vm875, %v858, 0
        %v925 = vsel %vm875, %v859, 0
        %v928 = vsel %vm875, %v860, 0
        %v931 = vsel %vm875, %v861, 0
        %v934 = vsel %vm875, %v862, 0
        %v937 = vsel %vm875, %v863, 0
        %v940 = vsel %vm875, %v864, 0
        %v943 = vsel %vm875, %v865, 0
        %v946 = vsel %vm875, %v866, 0
        %v949 = vsel %vm875, %v867, 0
        %v952 = vsel %vm875, %v868, 0
        %v955 = vsel %vm875, %v869, 0
        %v958 = vsel %vm875, %v870, 0
        %v961 = vsel %vm875, %v871, 0
        %v964 = vsel %vm875, %v872, 0
        %v967 = vsel %vm875, %v873, 0
        %v970 = vsel %vm875, %v874, 0
        %vm972 = vcmask 1041408
        %v974 = vsel %vm972, %v710, 0
        %976 = vmatpush.bf16.msra.mxu0 0
        %977 = vmatpush.bf16.msra.mxu0 0
        %978 = vmatpush.bf16.msra.mxu0 0
        %979 = vmatpush.bf16.msra.mxu0 0
        %980 = vmatpush.bf16.msra.mxu0 0
        %981 = vmatpush.bf16.msra.mxu0 0
        %982 = vmatpush.bf16.msra.mxu0 0
        %983 = vmatpush.bf16.msra.mxu0 %v974
        %984 = vmatmul.bf16.gmra.mxu0 %v877
        %v985 = vpop.f32.mrf.mxu0
        %v986 = vadd.f32 %v713, %v985
        %v987 = vpop.f32.mrf.mxu0
        %v988 = vadd.f32 %v713, %v987
        %989 = vmatmul.bf16.gmra.mxu0 %v880
        %v990 = vpop.f32.mrf.mxu0
        %v991 = vadd.f32 %v713, %v990
        %v992 = vpop.f32.mrf.mxu0
        %v993 = vadd.f32 %v713, %v992
        %994 = vmatmul.bf16.gmra.mxu0 %v883
        %v995 = vpop.f32.mrf.mxu0
        %v996 = vadd.f32 %v713, %v995
        %v997 = vpop.f32.mrf.mxu0
        %v998 = vadd.f32 %v713, %v997
        %999 = vmatmul.bf16.gmra.mxu0 %v886
        %v1000 = vpop.f32.mrf.mxu0
        %v1001 = vadd.f32 %v713, %v1000
        %v1002 = vpop.f32.mrf.mxu0
        %v1003 = vadd.f32 %v713, %v1002
        %1004 = vmatmul.bf16.gmra.mxu0 %v889
        %v1005 = vpop.f32.mrf.mxu0
        %v1006 = vadd.f32 %v713, %v1005
        %v1007 = vpop.f32.mrf.mxu0
        %v1008 = vadd.f32 %v713, %v1007
        %1009 = vmatmul.bf16.gmra.mxu0 %v892
        %v1010 = vpop.f32.mrf.mxu0
        %v1011 = vadd.f32 %v713, %v1010
        %v1012 = vpop.f32.mrf.mxu0
        %v1013 = vadd.f32 %v713, %v1012
        %1014 = vmatmul.bf16.gmra.mxu0 %v895
        %v1015 = vpop.f32.mrf.mxu0
        %v1016 = vadd.f32 %v713, %v1015
        %v1017 = vpop.f32.mrf.mxu0
        %v1018 = vadd.f32 %v713, %v1017
        %1019 = vmatmul.bf16.gmra.mxu0 %v898
        %v1020 = vpop.f32.mrf.mxu0
        %v1021 = vadd.f32 %v713, %v1020
        %v1022 = vpop.f32.mrf.mxu0
        %v1023 = vadd.f32 %v713, %v1022
        %1024 = vmatmul.bf16.gmra.mxu0 %v901
        %v1025 = vpop.f32.mrf.mxu0
        %v1026 = vadd.f32 %v713, %v1025
        %v1027 = vpop.f32.mrf.mxu0
        %v1028 = vadd.f32 %v713, %v1027
        %1029 = vmatmul.bf16.gmra.mxu0 %v904
        %v1030 = vpop.f32.mrf.mxu0
        %v1031 = vadd.f32 %v713, %v1030
        %v1032 = vpop.f32.mrf.mxu0
        %v1033 = vadd.f32 %v713, %v1032
        %1034 = vmatmul.bf16.gmra.mxu0 %v907
        %v1035 = vpop.f32.mrf.mxu0
        %v1036 = vadd.f32 %v713, %v1035
        %v1037 = vpop.f32.mrf.mxu0
        %v1038 = vadd.f32 %v713, %v1037
        %1039 = vmatmul.bf16.gmra.mxu0 %v910
        %v1040 = vpop.f32.mrf.mxu0
        %v1041 = vadd.f32 %v713, %v1040
        %v1042 = vpop.f32.mrf.mxu0
        %v1043 = vadd.f32 %v713, %v1042
        %1044 = vmatmul.bf16.gmra.mxu0 %v913
        %v1045 = vpop.f32.mrf.mxu0
        %v1046 = vadd.f32 %v713, %v1045
        %v1047 = vpop.f32.mrf.mxu0
        %v1048 = vadd.f32 %v713, %v1047
        %1049 = vmatmul.bf16.gmra.mxu0 %v916
        %v1050 = vpop.f32.mrf.mxu0
        %v1051 = vadd.f32 %v713, %v1050
        %v1052 = vpop.f32.mrf.mxu0
        %v1053 = vadd.f32 %v713, %v1052
        %1054 = vmatmul.bf16.gmra.mxu0 %v919
        %v1055 = vpop.f32.mrf.mxu0
        %v1056 = vadd.f32 %v713, %v1055
        %v1057 = vpop.f32.mrf.mxu0
        %v1058 = vadd.f32 %v713, %v1057
        %1059 = vmatmul.bf16.gmra.mxu0 %v922
        %v1060 = vpop.f32.mrf.mxu0
        %v1061 = vadd.f32 %v713, %v1060
        %v1062 = vpop.f32.mrf.mxu0
        %v1063 = vadd.f32 %v713, %v1062
        %1064 = vmatmul.bf16.gmra.mxu0 %v925
        %v1065 = vpop.f32.mrf.mxu0
        %v1066 = vadd.f32 %v713, %v1065
        %v1067 = vpop.f32.mrf.mxu0
        %v1068 = vadd.f32 %v713, %v1067
        %1069 = vmatmul.bf16.gmra.mxu0 %v928
        %v1070 = vpop.f32.mrf.mxu0
        %v1071 = vadd.f32 %v713, %v1070
        %v1072 = vpop.f32.mrf.mxu0
        %v1073 = vadd.f32 %v713, %v1072
        %1074 = vmatmul.bf16.gmra.mxu0 %v931
        %v1075 = vpop.f32.mrf.mxu0
        %v1076 = vadd.f32 %v713, %v1075
        %v1077 = vpop.f32.mrf.mxu0
        %v1078 = vadd.f32 %v713, %v1077
        %1079 = vmatmul.bf16.gmra.mxu0 %v934
        %v1080 = vpop.f32.mrf.mxu0
        %v1081 = vadd.f32 %v713, %v1080
        %v1082 = vpop.f32.mrf.mxu0
        %v1083 = vadd.f32 %v713, %v1082
        %1084 = vmatmul.bf16.gmra.mxu0 %v937
        %v1085 = vpop.f32.mrf.mxu0
        %v1086 = vadd.f32 %v713, %v1085
        %v1087 = vpop.f32.mrf.mxu0
        %v1088 = vadd.f32 %v713, %v1087
        %1089 = vmatmul.bf16.gmra.mxu0 %v940
        %v1090 = vpop.f32.mrf.mxu0
        %v1091 = vadd.f32 %v713, %v1090
        %v1092 = vpop.f32.mrf.mxu0
        %v1093 = vadd.f32 %v713, %v1092
        %1094 = vmatmul.bf16.gmra.mxu0 %v943
        %v1095 = vpop.f32.mrf.mxu0
        %v1096 = vadd.f32 %v713, %v1095
        %v1097 = vpop.f32.mrf.mxu0
        %v1098 = vadd.f32 %v713, %v1097
        %1099 = vmatmul.bf16.gmra.mxu0 %v946
        %v1100 = vpop.f32.mrf.mxu0
        %v1101 = vadd.f32 %v713, %v1100
        %v1102 = vpop.f32.mrf.mxu0
        %v1103 = vadd.f32 %v713, %v1102
        %1104 = vmatmul.bf16.gmra.mxu0 %v949
        %v1105 = vpop.f32.mrf.mxu0
        %v1106 = vadd.f32 %v713, %v1105
        %v1107 = vpop.f32.mrf.mxu0
        %v1108 = vadd.f32 %v713, %v1107
        %1109 = vmatmul.bf16.gmra.mxu0 %v952
        %v1110 = vpop.f32.mrf.mxu0
        %v1111 = vadd.f32 %v713, %v1110
        %v1112 = vpop.f32.mrf.mxu0
        %v1113 = vadd.f32 %v713, %v1112
        %1114 = vmatmul.bf16.gmra.mxu0 %v955
        %v1115 = vpop.f32.mrf.mxu0
        %v1116 = vadd.f32 %v713, %v1115
        %v1117 = vpop.f32.mrf.mxu0
        %v1118 = vadd.f32 %v713, %v1117
        %1119 = vmatmul.bf16.gmra.mxu0 %v958
        %v1120 = vpop.f32.mrf.mxu0
        %v1121 = vadd.f32 %v713, %v1120
        %v1122 = vpop.f32.mrf.mxu0
        %v1123 = vadd.f32 %v713, %v1122
        %1124 = vmatmul.bf16.gmra.mxu0 %v961
        %v1125 = vpop.f32.mrf.mxu0
        %v1126 = vadd.f32 %v713, %v1125
        %v1127 = vpop.f32.mrf.mxu0
        %v1128 = vadd.f32 %v713, %v1127
        %1129 = vmatmul.bf16.gmra.mxu0 %v964
        %v1130 = vpop.f32.mrf.mxu0
        %v1131 = vadd.f32 %v713, %v1130
        %v1132 = vpop.f32.mrf.mxu0
        %v1133 = vadd.f32 %v713, %v1132
        %1134 = vmatmul.bf16.gmra.mxu0 %v967
        %v1135 = vpop.f32.mrf.mxu0
        %v1136 = vadd.f32 %v713, %v1135
        %v1137 = vpop.f32.mrf.mxu0
        %v1138 = vadd.f32 %v713, %v1137
        %1139 = vmatmul.bf16.gmra.mxu0 %v970
        %v1140 = vpop.f32.mrf.mxu0
        %v1141 = vadd.f32 %v713, %v1140
        %v1142 = vpop.f32.mrf.mxu0
        %v1143 = vadd.f32 %v713, %v1142
        %1144 = vdwg.mxu0
        %vm1145 = vcmask 130048
        %1146 = vst.msk [vmem:[#allocation2] sm:$0xff] %vm1145, %v986
        %1147 = vst.msk [vmem:[#allocation2 + $0x8] sm:$0xff] %vm1145, %v988
        %1148 = vst.msk [vmem:[#allocation2 + $0x10] sm:$0xff] %vm1145, %v991
        %1149 = vst.msk [vmem:[#allocation2 + $0x18] sm:$0xff] %vm1145, %v993
        %1150 = vst.msk [vmem:[#allocation2 + $0x20] sm:$0xff] %vm1145, %v996
        %1151 = vst.msk [vmem:[#allocation2 + $0x28] sm:$0xff] %vm1145, %v998
        %1152 = vst.msk [vmem:[#allocation2 + $0x30] sm:$0xff] %vm1145, %v1001
        %1153 = vst.msk [vmem:[#allocation2 + $0x38] sm:$0xff] %vm1145, %v1003
        %1154 = vst.msk [vmem:[#allocation2 + $0x40] sm:$0xff] %vm1145, %v1006
        %1155 = vst.msk [vmem:[#allocation2 + $0x48] sm:$0xff] %vm1145, %v1008
        %1156 = vst.msk [vmem:[#allocation2 + $0x50] sm:$0xff] %vm1145, %v1011
        %1157 = vst.msk [vmem:[#allocation2 + $0x58] sm:$0xff] %vm1145, %v1013
        %1158 = vst.msk [vmem:[#allocation2 + $0x60] sm:$0xff] %vm1145, %v1016
        %1159 = vst.msk [vmem:[#allocation2 + $0x68] sm:$0xff] %vm1145, %v1018
        %1160 = vst.msk [vmem:[#allocation2 + $0x70] sm:$0xff] %vm1145, %v1021
        %1161 = vst.msk [vmem:[#allocation2 + $0x78] sm:$0xff] %vm1145, %v1023
        %1162 = vst.msk [vmem:[#allocation2 + $0x80] sm:$0xff] %vm1145, %v1026
        %1163 = vst.msk [vmem:[#allocation2 + $0x88] sm:$0xff] %vm1145, %v1028
        %1164 = vst.msk [vmem:[#allocation2 + $0x90] sm:$0xff] %vm1145, %v1031
        %1165 = vst.msk [vmem:[#allocation2 + $0x98] sm:$0xff] %vm1145, %v1033
        %1166 = vst.msk [vmem:[#allocation2 + $0xa0] sm:$0xff] %vm1145, %v1036
        %1167 = vst.msk [vmem:[#allocation2 + $0xa8] sm:$0xff] %vm1145, %v1038
        %1168 = vst.msk [vmem:[#allocation2 + $0xb0] sm:$0xff] %vm1145, %v1041
        %1169 = vst.msk [vmem:[#allocation2 + $0xb8] sm:$0xff] %vm1145, %v1043
        %1170 = vst.msk [vmem:[#allocation2 + $0xc0] sm:$0xff] %vm1145, %v1046
        %1171 = vst.msk [vmem:[#allocation2 + $0xc8] sm:$0xff] %vm1145, %v1048
        %1172 = vst.msk [vmem:[#allocation2 + $0xd0] sm:$0xff] %vm1145, %v1051
        %1173 = vst.msk [vmem:[#allocation2 + $0xd8] sm:$0xff] %vm1145, %v1053
        %1174 = vst.msk [vmem:[#allocation2 + $0xe0] sm:$0xff] %vm1145, %v1056
        %1175 = vst.msk [vmem:[#allocation2 + $0xe8] sm:$0xff] %vm1145, %v1058
        %1176 = vst.msk [vmem:[#allocation2 + $0xf0] sm:$0xff] %vm1145, %v1061
        %1177 = vst.msk [vmem:[#allocation2 + $0xf8] sm:$0xff] %vm1145, %v1063
        %1178 = vst.msk [vmem:[#allocation2 + $0x100] sm:$0xff] %vm1145, %v1066
        %1179 = vst.msk [vmem:[#allocation2 + $0x108] sm:$0xff] %vm1145, %v1068
        %1180 = vst.msk [vmem:[#allocation2 + $0x110] sm:$0xff] %vm1145, %v1071
        %1181 = vst.msk [vmem:[#allocation2 + $0x118] sm:$0xff] %vm1145, %v1073
        %1182 = vst.msk [vmem:[#allocation2 + $0x120] sm:$0xff] %vm1145, %v1076
        %1183 = vst.msk [vmem:[#allocation2 + $0x128] sm:$0xff] %vm1145, %v1078
        %1184 = vst.msk [vmem:[#allocation2 + $0x130] sm:$0xff] %vm1145, %v1081
        %1185 = vst.msk [vmem:[#allocation2 + $0x138] sm:$0xff] %vm1145, %v1083
        %1186 = vst.msk [vmem:[#allocation2 + $0x140] sm:$0xff] %vm1145, %v1086
        %1187 = vst.msk [vmem:[#allocation2 + $0x148] sm:$0xff] %vm1145, %v1088
        %1188 = vst.msk [vmem:[#allocation2 + $0x150] sm:$0xff] %vm1145, %v1091
        %1189 = vst.msk [vmem:[#allocation2 + $0x158] sm:$0xff] %vm1145, %v1093
        %1190 = vst.msk [vmem:[#allocation2 + $0x160] sm:$0xff] %vm1145, %v1096
        %1191 = vst.msk [vmem:[#allocation2 + $0x168] sm:$0xff] %vm1145, %v1098
        %1192 = vst.msk [vmem:[#allocation2 + $0x170] sm:$0xff] %vm1145, %v1101
        %1193 = vst.msk [vmem:[#allocation2 + $0x178] sm:$0xff] %vm1145, %v1103
        %1194 = vst.msk [vmem:[#allocation2 + $0x180] sm:$0xff] %vm1145, %v1106
        %1195 = vst.msk [vmem:[#allocation2 + $0x188] sm:$0xff] %vm1145, %v1108
        %1196 = vst.msk [vmem:[#allocation2 + $0x190] sm:$0xff] %vm1145, %v1111
        %1197 = vst.msk [vmem:[#allocation2 + $0x198] sm:$0xff] %vm1145, %v1113
        %1198 = vst.msk [vmem:[#allocation2 + $0x1a0] sm:$0xff] %vm1145, %v1116
        %1199 = vst.msk [vmem:[#allocation2 + $0x1a8] sm:$0xff] %vm1145, %v1118
        %1200 = vst.msk [vmem:[#allocation2 + $0x1b0] sm:$0xff] %vm1145, %v1121
        %1201 = vst.msk [vmem:[#allocation2 + $0x1b8] sm:$0xff] %vm1145, %v1123
        %1202 = vst.msk [vmem:[#allocation2 + $0x1c0] sm:$0xff] %vm1145, %v1126
        %1203 = vst.msk [vmem:[#allocation2 + $0x1c8] sm:$0xff] %vm1145, %v1128
        %1204 = vst.msk [vmem:[#allocation2 + $0x1d0] sm:$0xff] %vm1145, %v1131
        %1205 = vst.msk [vmem:[#allocation2 + $0x1d8] sm:$0xff] %vm1145, %v1133
        %1206 = vst.msk [vmem:[#allocation2 + $0x1e0] sm:$0xff] %vm1145, %v1136
        %1207 = vst.msk [vmem:[#allocation2 + $0x1e8] sm:$0xff] %vm1145, %v1138
        %1208 = vst.msk [vmem:[#allocation2 + $0x1f0] sm:$0xff] %vm1145, %v1141
        %1209 = vst.msk [vmem:[#allocation2 + $0x1f8] sm:$0xff] %vm1145, %v1143
        %v1210 = vld [vmem:[#allocation2] sm:$0xff]
        %v1211 = vld [vmem:[#allocation2 + $0x8] sm:$0xff]
        %v1212 = vld [vmem:[#allocation2 + $0x10] sm:$0xff]
        %v1213 = vld [vmem:[#allocation2 + $0x18] sm:$0xff]
        %v1214 = vld [vmem:[#allocation2 + $0x20] sm:$0xff]
        %v1215 = vld [vmem:[#allocation2 + $0x28] sm:$0xff]
        %v1216 = vld [vmem:[#allocation2 + $0x30] sm:$0xff]
        %v1217 = vld [vmem:[#allocation2 + $0x38] sm:$0xff]
        %v1218 = vld [vmem:[#allocation2 + $0x40] sm:$0xff]
        %v1219 = vld [vmem:[#allocation2 + $0x48] sm:$0xff]
        %v1220 = vld [vmem:[#allocation2 + $0x50] sm:$0xff]
        %v1221 = vld [vmem:[#allocation2 + $0x58] sm:$0xff]
        %v1222 = vld [vmem:[#allocation2 + $0x60] sm:$0xff]
        %v1223 = vld [vmem:[#allocation2 + $0x68] sm:$0xff]
        %v1224 = vld [vmem:[#allocation2 + $0x70] sm:$0xff]
        %v1225 = vld [vmem:[#allocation2 + $0x78] sm:$0xff]
        %v1226 = vld [vmem:[#allocation2 + $0x80] sm:$0xff]
        %v1227 = vld [vmem:[#allocation2 + $0x88] sm:$0xff]
        %v1228 = vld [vmem:[#allocation2 + $0x90] sm:$0xff]
        %v1229 = vld [vmem:[#allocation2 + $0x98] sm:$0xff]
        %v1230 = vld [vmem:[#allocation2 + $0xa0] sm:$0xff]
        %v1231 = vld [vmem:[#allocation2 + $0xa8] sm:$0xff]
        %v1232 = vld [vmem:[#allocation2 + $0xb0] sm:$0xff]
        %v1233 = vld [vmem:[#allocation2 + $0xb8] sm:$0xff]
        %v1234 = vld [vmem:[#allocation2 + $0xc0] sm:$0xff]
        %v1235 = vld [vmem:[#allocation2 + $0xc8] sm:$0xff]
        %v1236 = vld [vmem:[#allocation2 + $0xd0] sm:$0xff]
        %v1237 = vld [vmem:[#allocation2 + $0xd8] sm:$0xff]
        %v1238 = vld [vmem:[#allocation2 + $0xe0] sm:$0xff]
        %v1239 = vld [vmem:[#allocation2 + $0xe8] sm:$0xff]
        %v1240 = vld [vmem:[#allocation2 + $0xf0] sm:$0xff]
        %v1241 = vld [vmem:[#allocation2 + $0xf8] sm:$0xff]
        %v1242 = vld [vmem:[#allocation2 + $0x100] sm:$0xff]
        %v1243 = vld [vmem:[#allocation2 + $0x108] sm:$0xff]
        %v1244 = vld [vmem:[#allocation2 + $0x110] sm:$0xff]
        %v1245 = vld [vmem:[#allocation2 + $0x118] sm:$0xff]
        %v1246 = vld [vmem:[#allocation2 + $0x120] sm:$0xff]
        %v1247 = vld [vmem:[#allocation2 + $0x128] sm:$0xff]
        %v1248 = vld [vmem:[#allocation2 + $0x130] sm:$0xff]
        %v1249 = vld [vmem:[#allocation2 + $0x138] sm:$0xff]
        %v1250 = vld [vmem:[#allocation2 + $0x140] sm:$0xff]
        %v1251 = vld [vmem:[#allocation2 + $0x148] sm:$0xff]
        %v1252 = vld [vmem:[#allocation2 + $0x150] sm:$0xff]
        %v1253 = vld [vmem:[#allocation2 + $0x158] sm:$0xff]
        %v1254 = vld [vmem:[#allocation2 + $0x160] sm:$0xff]
        %v1255 = vld [vmem:[#allocation2 + $0x168] sm:$0xff]
        %v1256 = vld [vmem:[#allocation2 + $0x170] sm:$0xff]
        %v1257 = vld [vmem:[#allocation2 + $0x178] sm:$0xff]
        %v1258 = vld [vmem:[#allocation2 + $0x180] sm:$0xff]
        %v1259 = vld [vmem:[#allocation2 + $0x188] sm:$0xff]
        %v1260 = vld [vmem:[#allocation2 + $0x190] sm:$0xff]
        %v1261 = vld [vmem:[#allocation2 + $0x198] sm:$0xff]
        %v1262 = vld [vmem:[#allocation2 + $0x1a0] sm:$0xff]
        %v1263 = vld [vmem:[#allocation2 + $0x1a8] sm:$0xff]
        %v1264 = vld [vmem:[#allocation2 + $0x1b0] sm:$0xff]
        %v1265 = vld [vmem:[#allocation2 + $0x1b8] sm:$0xff]
        %v1266 = vld [vmem:[#allocation2 + $0x1c0] sm:$0xff]
        %v1267 = vld [vmem:[#allocation2 + $0x1c8] sm:$0xff]
        %v1268 = vld [vmem:[#allocation2 + $0x1d0] sm:$0xff]
        %v1269 = vld [vmem:[#allocation2 + $0x1d8] sm:$0xff]
        %v1270 = vld [vmem:[#allocation2 + $0x1e0] sm:$0xff]
        %v1271 = vld [vmem:[#allocation2 + $0x1e8] sm:$0xff]
        %v1272 = vld [vmem:[#allocation2 + $0x1f0] sm:$0xff]
        %v1273 = vld [vmem:[#allocation2 + $0x1f8] sm:$0xff]
        %v1274 = vld [vmem:[%s13] sm:$0xff]
        %v1275 = vld [vmem:[%s13 + $0x8] sm:$0xff]
        %v1276 = vld [vmem:[%s13 + $0x10] sm:$0xff]
        %v1277 = vld [vmem:[%s13 + $0x18] sm:$0xff]
        %v1278 = vld [vmem:[%s13 + $0x20] sm:$0xff]
        %v1279 = vld [vmem:[%s13 + $0x28] sm:$0xff]
        %v1280 = vld [vmem:[%s13 + $0x30] sm:$0xff]
        %v1281 = vld [vmem:[%s13 + $0x38] sm:$0xff]
        %v1282 = vld [vmem:[%s13 + $0x40] sm:$0xff]
        %v1283 = vld [vmem:[%s13 + $0x48] sm:$0xff]
        %v1284 = vld [vmem:[%s13 + $0x50] sm:$0xff]
        %v1285 = vld [vmem:[%s13 + $0x58] sm:$0xff]
        %v1286 = vld [vmem:[%s13 + $0x60] sm:$0xff]
        %v1287 = vld [vmem:[%s13 + $0x68] sm:$0xff]
        %v1288 = vld [vmem:[%s13 + $0x70] sm:$0xff]
        %v1289 = vld [vmem:[%s13 + $0x78] sm:$0xff]
        %v1290 = vld [vmem:[%s13 + $0x80] sm:$0xff]
        %v1291 = vld [vmem:[%s13 + $0x88] sm:$0xff]
        %v1292 = vld [vmem:[%s13 + $0x90] sm:$0xff]
        %v1293 = vld [vmem:[%s13 + $0x98] sm:$0xff]
        %v1294 = vld [vmem:[%s13 + $0xa0] sm:$0xff]
        %v1295 = vld [vmem:[%s13 + $0xa8] sm:$0xff]
        %v1296 = vld [vmem:[%s13 + $0xb0] sm:$0xff]
        %v1297 = vld [vmem:[%s13 + $0xb8] sm:$0xff]
        %v1298 = vld [vmem:[%s13 + $0xc0] sm:$0xff]
        %v1299 = vld [vmem:[%s13 + $0xc8] sm:$0xff]
        %v1300 = vld [vmem:[%s13 + $0xd0] sm:$0xff]
        %v1301 = vld [vmem:[%s13 + $0xd8] sm:$0xff]
        %v1302 = vld [vmem:[%s13 + $0xe0] sm:$0xff]
        %v1303 = vld [vmem:[%s13 + $0xe8] sm:$0xff]
        %v1304 = vld [vmem:[%s13 + $0xf0] sm:$0xff]
        %v1305 = vld [vmem:[%s13 + $0xf8] sm:$0xff]
        %v1306 = vpack.c.bf16 %v1210, %v1210
        %v1307 = vpack.c.bf16 %v1211, %v1211
        %v1308 = vpack.c.bf16 %v1212, %v1212
        %v1309 = vpack.c.bf16 %v1213, %v1213
        %v1310 = vpack.c.bf16 %v1214, %v1214
        %v1311 = vpack.c.bf16 %v1215, %v1215
        %v1312 = vpack.c.bf16 %v1216, %v1216
        %v1313 = vpack.c.bf16 %v1217, %v1217
        %v1314 = vpack.c.bf16 %v1218, %v1218
        %v1315 = vpack.c.bf16 %v1219, %v1219
        %v1316 = vpack.c.bf16 %v1220, %v1220
        %v1317 = vpack.c.bf16 %v1221, %v1221
        %v1318 = vpack.c.bf16 %v1222, %v1222
        %v1319 = vpack.c.bf16 %v1223, %v1223
        %v1320 = vpack.c.bf16 %v1224, %v1224
        %v1321 = vpack.c.bf16 %v1225, %v1225
        %v1322 = vpack.c.bf16 %v1226, %v1226
        %v1323 = vpack.c.bf16 %v1227, %v1227
        %v1324 = vpack.c.bf16 %v1228, %v1228
        %v1325 = vpack.c.bf16 %v1229, %v1229
        %v1326 = vpack.c.bf16 %v1230, %v1230
        %v1327 = vpack.c.bf16 %v1231, %v1231
        %v1328 = vpack.c.bf16 %v1232, %v1232
        %v1329 = vpack.c.bf16 %v1233, %v1233
        %v1330 = vpack.c.bf16 %v1234, %v1234
        %v1331 = vpack.c.bf16 %v1235, %v1235
        %v1332 = vpack.c.bf16 %v1236, %v1236
        %v1333 = vpack.c.bf16 %v1237, %v1237
        %v1334 = vpack.c.bf16 %v1238, %v1238
        %v1335 = vpack.c.bf16 %v1239, %v1239
        %v1336 = vpack.c.bf16 %v1240, %v1240
        %v1337 = vpack.c.bf16 %v1241, %v1241
        %v1338 = vpack.c.bf16 %v1242, %v1242
        %v1339 = vpack.c.bf16 %v1243, %v1243
        %v1340 = vpack.c.bf16 %v1244, %v1244
        %v1341 = vpack.c.bf16 %v1245, %v1245
        %v1342 = vpack.c.bf16 %v1246, %v1246
        %v1343 = vpack.c.bf16 %v1247, %v1247
        %v1344 = vpack.c.bf16 %v1248, %v1248
        %v1345 = vpack.c.bf16 %v1249, %v1249
        %v1346 = vpack.c.bf16 %v1250, %v1250
        %v1347 = vpack.c.bf16 %v1251, %v1251
        %v1348 = vpack.c.bf16 %v1252, %v1252
        %v1349 = vpack.c.bf16 %v1253, %v1253
        %v1350 = vpack.c.bf16 %v1254, %v1254
        %v1351 = vpack.c.bf16 %v1255, %v1255
        %v1352 = vpack.c.bf16 %v1256, %v1256
        %v1353 = vpack.c.bf16 %v1257, %v1257
        %v1354 = vpack.c.bf16 %v1258, %v1258
        %v1355 = vpack.c.bf16 %v1259, %v1259
        %v1356 = vpack.c.bf16 %v1260, %v1260
        %v1357 = vpack.c.bf16 %v1261, %v1261
        %v1358 = vpack.c.bf16 %v1262, %v1262
        %v1359 = vpack.c.bf16 %v1263, %v1263
        %v1360 = vpack.c.bf16 %v1264, %v1264
        %v1361 = vpack.c.bf16 %v1265, %v1265
        %v1362 = vpack.c.bf16 %v1266, %v1266
        %v1363 = vpack.c.bf16 %v1267, %v1267
        %v1364 = vpack.c.bf16 %v1268, %v1268
        %v1365 = vpack.c.bf16 %v1269, %v1269
        %v1366 = vpack.c.bf16 %v1270, %v1270
        %v1367 = vpack.c.bf16 %v1271, %v1271
        %v1368 = vpack.c.bf16 %v1272, %v1272
        %v1369 = vpack.c.bf16 %v1273, %v1273
        %v1402 = vunpack.c.l.b16 %v1274
        %v1403 = vunpack.c.h.b16 %v1274
        %v1404 = vunpack.c.l.b16 %v1275
        %v1405 = vunpack.c.h.b16 %v1275
        %v1406 = vunpack.c.l.b16 %v1276
        %v1407 = vunpack.c.h.b16 %v1276
        %v1408 = vunpack.c.l.b16 %v1277
        %v1409 = vunpack.c.h.b16 %v1277
        %v1410 = vunpack.c.l.b16 %v1278
        %v1411 = vunpack.c.h.b16 %v1278
        %v1412 = vunpack.c.l.b16 %v1279
        %v1413 = vunpack.c.h.b16 %v1279
        %v1414 = vunpack.c.l.b16 %v1280
        %v1415 = vunpack.c.h.b16 %v1280
        %v1416 = vunpack.c.l.b16 %v1281
        %v1417 = vunpack.c.h.b16 %v1281
        %v1418 = vunpack.c.l.b16 %v1282
        %v1419 = vunpack.c.h.b16 %v1282
        %v1420 = vunpack.c.l.b16 %v1283
        %v1421 = vunpack.c.h.b16 %v1283
        %v1422 = vunpack.c.l.b16 %v1284
        %v1423 = vunpack.c.h.b16 %v1284
        %v1424 = vunpack.c.l.b16 %v1285
        %v1425 = vunpack.c.h.b16 %v1285
        %v1426 = vunpack.c.l.b16 %v1286
        %v1427 = vunpack.c.h.b16 %v1286
        %v1428 = vunpack.c.l.b16 %v1287
        %v1429 = vunpack.c.h.b16 %v1287
        %v1430 = vunpack.c.l.b16 %v1288
        %v1431 = vunpack.c.h.b16 %v1288
        %v1432 = vunpack.c.l.b16 %v1289
        %v1433 = vunpack.c.h.b16 %v1289
        %v1434 = vunpack.c.l.b16 %v1290
        %v1435 = vunpack.c.h.b16 %v1290
        %v1436 = vunpack.c.l.b16 %v1291
        %v1437 = vunpack.c.h.b16 %v1291
        %v1438 = vunpack.c.l.b16 %v1292
        %v1439 = vunpack.c.h.b16 %v1292
        %v1440 = vunpack.c.l.b16 %v1293
        %v1441 = vunpack.c.h.b16 %v1293
        %v1442 = vunpack.c.l.b16 %v1294
        %v1443 = vunpack.c.h.b16 %v1294
        %v1444 = vunpack.c.l.b16 %v1295
        %v1445 = vunpack.c.h.b16 %v1295
        %v1446 = vunpack.c.l.b16 %v1296
        %v1447 = vunpack.c.h.b16 %v1296
        %v1448 = vunpack.c.l.b16 %v1297
        %v1449 = vunpack.c.h.b16 %v1297
        %v1450 = vunpack.c.l.b16 %v1298
        %v1451 = vunpack.c.h.b16 %v1298
        %v1452 = vunpack.c.l.b16 %v1299
        %v1453 = vunpack.c.h.b16 %v1299
        %v1454 = vunpack.c.l.b16 %v1300
        %v1455 = vunpack.c.h.b16 %v1300
        %v1456 = vunpack.c.l.b16 %v1301
        %v1457 = vunpack.c.h.b16 %v1301
        %v1458 = vunpack.c.l.b16 %v1302
        %v1459 = vunpack.c.h.b16 %v1302
        %v1460 = vunpack.c.l.b16 %v1303
        %v1461 = vunpack.c.h.b16 %v1303
        %v1462 = vunpack.c.l.b16 %v1304
        %v1463 = vunpack.c.h.b16 %v1304
        %v1464 = vunpack.c.l.b16 %v1305
        %v1465 = vunpack.c.h.b16 %v1305
        %v1466 = vpack.c.b16 %v1404, %v1402
        %v1467 = vpack.c.b16 %v1405, %v1403
        %v1468 = vpack.c.b16 %v1408, %v1406
        %v1469 = vpack.c.b16 %v1409, %v1407
        %v1470 = vpack.c.b16 %v1412, %v1410
        %v1471 = vpack.c.b16 %v1413, %v1411
        %v1472 = vpack.c.b16 %v1416, %v1414
        %v1473 = vpack.c.b16 %v1417, %v1415
        %v1474 = vpack.c.b16 %v1420, %v1418
        %v1475 = vpack.c.b16 %v1421, %v1419
        %v1476 = vpack.c.b16 %v1424, %v1422
        %v1477 = vpack.c.b16 %v1425, %v1423
        %v1478 = vpack.c.b16 %v1428, %v1426
        %v1479 = vpack.c.b16 %v1429, %v1427
        %v1480 = vpack.c.b16 %v1432, %v1430
        %v1481 = vpack.c.b16 %v1433, %v1431
        %v1482 = vpack.c.b16 %v1436, %v1434
        %v1483 = vpack.c.b16 %v1437, %v1435
        %v1484 = vpack.c.b16 %v1440, %v1438
        %v1485 = vpack.c.b16 %v1441, %v1439
        %v1486 = vpack.c.b16 %v1444, %v1442
        %v1487 = vpack.c.b16 %v1445, %v1443
        %v1488 = vpack.c.b16 %v1448, %v1446
        %v1489 = vpack.c.b16 %v1449, %v1447
        %v1490 = vpack.c.b16 %v1452, %v1450
        %v1491 = vpack.c.b16 %v1453, %v1451
        %v1492 = vpack.c.b16 %v1456, %v1454
        %v1493 = vpack.c.b16 %v1457, %v1455
        %v1494 = vpack.c.b16 %v1460, %v1458
        %v1495 = vpack.c.b16 %v1461, %v1459
        %v1496 = vpack.c.b16 %v1464, %v1462
        %v1497 = vpack.c.b16 %v1465, %v1463
        %v1562 = vunpack.c.l.b16 %v1306
        %v1563 = vunpack.c.l.b16 %v1307
        %v1564 = vunpack.c.l.b16 %v1308
        %v1565 = vunpack.c.l.b16 %v1309
        %v1566 = vunpack.c.l.b16 %v1310
        %v1567 = vunpack.c.l.b16 %v1311
        %v1568 = vunpack.c.l.b16 %v1312
        %v1569 = vunpack.c.l.b16 %v1313
        %v1570 = vunpack.c.l.b16 %v1314
        %v1571 = vunpack.c.l.b16 %v1315
        %v1572 = vunpack.c.l.b16 %v1316
        %v1573 = vunpack.c.l.b16 %v1317
        %v1574 = vunpack.c.l.b16 %v1318
        %v1575 = vunpack.c.l.b16 %v1319
        %v1576 = vunpack.c.l.b16 %v1320
        %v1577 = vunpack.c.l.b16 %v1321
        %v1578 = vunpack.c.l.b16 %v1322
        %v1579 = vunpack.c.l.b16 %v1323
        %v1580 = vunpack.c.l.b16 %v1324
        %v1581 = vunpack.c.l.b16 %v1325
        %v1582 = vunpack.c.l.b16 %v1326
        %v1583 = vunpack.c.l.b16 %v1327
        %v1584 = vunpack.c.l.b16 %v1328
        %v1585 = vunpack.c.l.b16 %v1329
        %v1586 = vunpack.c.l.b16 %v1330
        %v1587 = vunpack.c.l.b16 %v1331
        %v1588 = vunpack.c.l.b16 %v1332
        %v1589 = vunpack.c.l.b16 %v1333
        %v1590 = vunpack.c.l.b16 %v1334
        %v1591 = vunpack.c.l.b16 %v1335
        %v1592 = vunpack.c.l.b16 %v1336
        %v1593 = vunpack.c.l.b16 %v1337
        %v1594 = vpack.c.b16 %v1563, %v1562
        %v1595 = vpack.c.b16 %v1565, %v1564
        %v1596 = vpack.c.b16 %v1567, %v1566
        %v1597 = vpack.c.b16 %v1569, %v1568
        %v1598 = vpack.c.b16 %v1571, %v1570
        %v1599 = vpack.c.b16 %v1573, %v1572
        %v1600 = vpack.c.b16 %v1575, %v1574
        %v1601 = vpack.c.b16 %v1577, %v1576
        %v1602 = vpack.c.b16 %v1579, %v1578
        %v1603 = vpack.c.b16 %v1581, %v1580
        %v1604 = vpack.c.b16 %v1583, %v1582
        %v1605 = vpack.c.b16 %v1585, %v1584
        %v1606 = vpack.c.b16 %v1587, %v1586
        %v1607 = vpack.c.b16 %v1589, %v1588
        %v1608 = vpack.c.b16 %v1591, %v1590
        %v1609 = vpack.c.b16 %v1593, %v1592
        %1626 = vmatpush.bf16.msra.mxu0 %v1601
        %1627 = vmatpush.bf16.msra.mxu0 %v1600
        %1628 = vmatpush.bf16.msra.mxu0 %v1599
        %1629 = vmatpush.bf16.msra.mxu0 %v1598
        %1630 = vmatpush.bf16.msra.mxu0 %v1597
        %1631 = vmatpush.bf16.msra.mxu0 %v1596
        %1632 = vmatpush.bf16.msra.mxu0 %v1595
        %1633 = vmatpush.bf16.msra.mxu0 %v1594
        %1634 = vmatmul.bf16.gmra.mxu0 %v1466
        %v1635 = vpop.f32.mrf.mxu0
        %v1636 = vadd.f32 0.0, %v1635
        %v1637 = vpop.f32.mrf.mxu0
        %v1638 = vadd.f32 0.0, %v1637
        %1639 = vmatmul.bf16.gmra.mxu0 %v1468
        %v1640 = vpop.f32.mrf.mxu0
        %v1641 = vadd.f32 0.0, %v1640
        %v1642 = vpop.f32.mrf.mxu0
        %v1643 = vadd.f32 0.0, %v1642
        %1644 = vmatmul.bf16.gmra.mxu0 %v1470
        %v1645 = vpop.f32.mrf.mxu0
        %v1646 = vadd.f32 0.0, %v1645
        %v1647 = vpop.f32.mrf.mxu0
        %v1648 = vadd.f32 0.0, %v1647
        %1649 = vmatmul.bf16.gmra.mxu0 %v1472
        %v1650 = vpop.f32.mrf.mxu0
        %v1651 = vadd.f32 0.0, %v1650
        %v1652 = vpop.f32.mrf.mxu0
        %v1653 = vadd.f32 0.0, %v1652
        %1654 = vmatmul.bf16.gmra.mxu0 %v1474
        %v1655 = vpop.f32.mrf.mxu0
        %v1656 = vadd.f32 0.0, %v1655
        %v1657 = vpop.f32.mrf.mxu0
        %v1658 = vadd.f32 0.0, %v1657
        %1659 = vmatmul.bf16.gmra.mxu0 %v1476
        %v1660 = vpop.f32.mrf.mxu0
        %v1661 = vadd.f32 0.0, %v1660
        %v1662 = vpop.f32.mrf.mxu0
        %v1663 = vadd.f32 0.0, %v1662
        %1664 = vmatmul.bf16.gmra.mxu0 %v1478
        %v1665 = vpop.f32.mrf.mxu0
        %v1666 = vadd.f32 0.0, %v1665
        %v1667 = vpop.f32.mrf.mxu0
        %v1668 = vadd.f32 0.0, %v1667
        %1669 = vmatmul.bf16.gmra.mxu0 %v1480
        %v1670 = vpop.f32.mrf.mxu0
        %v1671 = vadd.f32 0.0, %v1670
        %v1672 = vpop.f32.mrf.mxu0
        %v1673 = vadd.f32 0.0, %v1672
        %1674 = vmatmul.bf16.gmra.mxu0 %v1482
        %v1675 = vpop.f32.mrf.mxu0
        %v1676 = vadd.f32 0.0, %v1675
        %v1677 = vpop.f32.mrf.mxu0
        %v1678 = vadd.f32 0.0, %v1677
        %1679 = vmatmul.bf16.gmra.mxu0 %v1484
        %v1680 = vpop.f32.mrf.mxu0
        %v1681 = vadd.f32 0.0, %v1680
        %v1682 = vpop.f32.mrf.mxu0
        %v1683 = vadd.f32 0.0, %v1682
        %1684 = vmatmul.bf16.gmra.mxu0 %v1486
        %v1685 = vpop.f32.mrf.mxu0
        %v1686 = vadd.f32 0.0, %v1685
        %v1687 = vpop.f32.mrf.mxu0
        %v1688 = vadd.f32 0.0, %v1687
        %1689 = vmatmul.bf16.gmra.mxu0 %v1488
        %v1690 = vpop.f32.mrf.mxu0
        %v1691 = vadd.f32 0.0, %v1690
        %v1692 = vpop.f32.mrf.mxu0
        %v1693 = vadd.f32 0.0, %v1692
        %1694 = vmatmul.bf16.gmra.mxu0 %v1490
        %v1695 = vpop.f32.mrf.mxu0
        %v1696 = vadd.f32 0.0, %v1695
        %v1697 = vpop.f32.mrf.mxu0
        %v1698 = vadd.f32 0.0, %v1697
        %1699 = vmatmul.bf16.gmra.mxu0 %v1492
        %v1700 = vpop.f32.mrf.mxu0
        %v1701 = vadd.f32 0.0, %v1700
        %v1702 = vpop.f32.mrf.mxu0
        %v1703 = vadd.f32 0.0, %v1702
        %1704 = vmatmul.bf16.gmra.mxu0 %v1494
        %v1705 = vpop.f32.mrf.mxu0
        %v1706 = vadd.f32 0.0, %v1705
        %v1707 = vpop.f32.mrf.mxu0
        %v1708 = vadd.f32 0.0, %v1707
        %1709 = vmatmul.bf16.gmra.mxu0 %v1496
        %v1710 = vpop.f32.mrf.mxu0
        %v1711 = vadd.f32 0.0, %v1710
        %v1712 = vpop.f32.mrf.mxu0
        %v1713 = vadd.f32 0.0, %v1712
        %1714 = vdwg.mxu0
        %1715 = vmatpush.bf16.msra.mxu0 %v1609
        %1716 = vmatpush.bf16.msra.mxu0 %v1608
        %1717 = vmatpush.bf16.msra.mxu0 %v1607
        %1718 = vmatpush.bf16.msra.mxu0 %v1606
        %1719 = vmatpush.bf16.msra.mxu0 %v1605
        %1720 = vmatpush.bf16.msra.mxu0 %v1604
        %1721 = vmatpush.bf16.msra.mxu0 %v1603
        %1722 = vmatpush.bf16.msra.mxu0 %v1602
        %1723 = vmatmul.bf16.gmra.mxu0 %v1467
        %v1724 = vpop.f32.mrf.mxu0
        %v1725 = vadd.f32 %v1636, %v1724
        %v1726 = vpop.f32.mrf.mxu0
        %v1727 = vadd.f32 %v1638, %v1726
        %1728 = vmatmul.bf16.gmra.mxu0 %v1469
        %v1729 = vpop.f32.mrf.mxu0
        %v1730 = vadd.f32 %v1641, %v1729
        %v1731 = vpop.f32.mrf.mxu0
        %v1732 = vadd.f32 %v1643, %v1731
        %1733 = vmatmul.bf16.gmra.mxu0 %v1471
        %v1734 = vpop.f32.mrf.mxu0
        %v1735 = vadd.f32 %v1646, %v1734
        %v1736 = vpop.f32.mrf.mxu0
        %v1737 = vadd.f32 %v1648, %v1736
        %1738 = vmatmul.bf16.gmra.mxu0 %v1473
        %v1739 = vpop.f32.mrf.mxu0
        %v1740 = vadd.f32 %v1651, %v1739
        %v1741 = vpop.f32.mrf.mxu0
        %v1742 = vadd.f32 %v1653, %v1741
        %1743 = vmatmul.bf16.gmra.mxu0 %v1475
        %v1744 = vpop.f32.mrf.mxu0
        %v1745 = vadd.f32 %v1656, %v1744
        %v1746 = vpop.f32.mrf.mxu0
        %v1747 = vadd.f32 %v1658, %v1746
        %1748 = vmatmul.bf16.gmra.mxu0 %v1477
        %v1749 = vpop.f32.mrf.mxu0
        %v1750 = vadd.f32 %v1661, %v1749
        %v1751 = vpop.f32.mrf.mxu0
        %v1752 = vadd.f32 %v1663, %v1751
        %1753 = vmatmul.bf16.gmra.mxu0 %v1479
        %v1754 = vpop.f32.mrf.mxu0
        %v1755 = vadd.f32 %v1666, %v1754
        %v1756 = vpop.f32.mrf.mxu0
        %v1757 = vadd.f32 %v1668, %v1756
        %1758 = vmatmul.bf16.gmra.mxu0 %v1481
        %v1759 = vpop.f32.mrf.mxu0
        %v1760 = vadd.f32 %v1671, %v1759
        %v1761 = vpop.f32.mrf.mxu0
        %v1762 = vadd.f32 %v1673, %v1761
        %1763 = vmatmul.bf16.gmra.mxu0 %v1483
        %v1764 = vpop.f32.mrf.mxu0
        %v1765 = vadd.f32 %v1676, %v1764
        %v1766 = vpop.f32.mrf.mxu0
        %v1767 = vadd.f32 %v1678, %v1766
        %1768 = vmatmul.bf16.gmra.mxu0 %v1485
        %v1769 = vpop.f32.mrf.mxu0
        %v1770 = vadd.f32 %v1681, %v1769
        %v1771 = vpop.f32.mrf.mxu0
        %v1772 = vadd.f32 %v1683, %v1771
        %1773 = vmatmul.bf16.gmra.mxu0 %v1487
        %v1774 = vpop.f32.mrf.mxu0
        %v1775 = vadd.f32 %v1686, %v1774
        %v1776 = vpop.f32.mrf.mxu0
        %v1777 = vadd.f32 %v1688, %v1776
        %1778 = vmatmul.bf16.gmra.mxu0 %v1489
        %v1779 = vpop.f32.mrf.mxu0
        %v1780 = vadd.f32 %v1691, %v1779
        %v1781 = vpop.f32.mrf.mxu0
        %v1782 = vadd.f32 %v1693, %v1781
        %1783 = vmatmul.bf16.gmra.mxu0 %v1491
        %v1784 = vpop.f32.mrf.mxu0
        %v1785 = vadd.f32 %v1696, %v1784
        %v1786 = vpop.f32.mrf.mxu0
        %v1787 = vadd.f32 %v1698, %v1786
        %1788 = vmatmul.bf16.gmra.mxu0 %v1493
        %v1789 = vpop.f32.mrf.mxu0
        %v1790 = vadd.f32 %v1701, %v1789
        %v1791 = vpop.f32.mrf.mxu0
        %v1792 = vadd.f32 %v1703, %v1791
        %1793 = vmatmul.bf16.gmra.mxu0 %v1495
        %v1794 = vpop.f32.mrf.mxu0
        %v1795 = vadd.f32 %v1706, %v1794
        %v1796 = vpop.f32.mrf.mxu0
        %v1797 = vadd.f32 %v1708, %v1796
        %1798 = vmatmul.bf16.gmra.mxu0 %v1497
        %v1799 = vpop.f32.mrf.mxu0
        %v1800 = vadd.f32 %v1711, %v1799
        %v1801 = vpop.f32.mrf.mxu0
        %v1802 = vadd.f32 %v1713, %v1801
        %1803 = vdwg.mxu0
        %v1836 = vunpack.c.l.b16 %v1338
        %v1837 = vunpack.c.l.b16 %v1339
        %v1838 = vunpack.c.l.b16 %v1340
        %v1839 = vunpack.c.l.b16 %v1341
        %v1840 = vunpack.c.l.b16 %v1342
        %v1841 = vunpack.c.l.b16 %v1343
        %v1842 = vunpack.c.l.b16 %v1344
        %v1843 = vunpack.c.l.b16 %v1345
        %v1844 = vunpack.c.l.b16 %v1346
        %v1845 = vunpack.c.l.b16 %v1347
        %v1846 = vunpack.c.l.b16 %v1348
        %v1847 = vunpack.c.l.b16 %v1349
        %v1848 = vunpack.c.l.b16 %v1350
        %v1849 = vunpack.c.l.b16 %v1351
        %v1850 = vunpack.c.l.b16 %v1352
        %v1851 = vunpack.c.l.b16 %v1353
        %v1852 = vunpack.c.l.b16 %v1354
        %v1853 = vunpack.c.l.b16 %v1355
        %v1854 = vunpack.c.l.b16 %v1356
        %v1855 = vunpack.c.l.b16 %v1357
        %v1856 = vunpack.c.l.b16 %v1358
        %v1857 = vunpack.c.l.b16 %v1359
        %v1858 = vunpack.c.l.b16 %v1360
        %v1859 = vunpack.c.l.b16 %v1361
        %v1860 = vunpack.c.l.b16 %v1362
        %v1861 = vunpack.c.l.b16 %v1363
        %v1862 = vunpack.c.l.b16 %v1364
        %v1863 = vunpack.c.l.b16 %v1365
        %v1864 = vunpack.c.l.b16 %v1366
        %v1865 = vunpack.c.l.b16 %v1367
        %v1866 = vunpack.c.l.b16 %v1368
        %v1867 = vunpack.c.l.b16 %v1369
        %v1868 = vpack.c.b16 %v1837, %v1836
        %v1869 = vpack.c.b16 %v1839, %v1838
        %v1870 = vpack.c.b16 %v1841, %v1840
        %v1871 = vpack.c.b16 %v1843, %v1842
        %v1872 = vpack.c.b16 %v1845, %v1844
        %v1873 = vpack.c.b16 %v1847, %v1846
        %v1874 = vpack.c.b16 %v1849, %v1848
        %v1875 = vpack.c.b16 %v1851, %v1850
        %v1876 = vpack.c.b16 %v1853, %v1852
        %v1877 = vpack.c.b16 %v1855, %v1854
        %v1878 = vpack.c.b16 %v1857, %v1856
        %v1879 = vpack.c.b16 %v1859, %v1858
        %v1880 = vpack.c.b16 %v1861, %v1860
        %v1881 = vpack.c.b16 %v1863, %v1862
        %v1882 = vpack.c.b16 %v1865, %v1864
        %v1883 = vpack.c.b16 %v1867, %v1866
        %1900 = vmatpush.bf16.msra.mxu0 %v1875
        %1901 = vmatpush.bf16.msra.mxu0 %v1874
        %1902 = vmatpush.bf16.msra.mxu0 %v1873
        %1903 = vmatpush.bf16.msra.mxu0 %v1872
        %1904 = vmatpush.bf16.msra.mxu0 %v1871
        %1905 = vmatpush.bf16.msra.mxu0 %v1870
        %1906 = vmatpush.bf16.msra.mxu0 %v1869
        %1907 = vmatpush.bf16.msra.mxu0 %v1868
        %1908 = vmatmul.bf16.gmra.mxu0 %v1466
        %v1909 = vpop.f32.mrf.mxu0
        %v1910 = vadd.f32 0.0, %v1909
        %v1911 = vpop.f32.mrf.mxu0
        %v1912 = vadd.f32 0.0, %v1911
        %1913 = vmatmul.bf16.gmra.mxu0 %v1468
        %v1914 = vpop.f32.mrf.mxu0
        %v1915 = vadd.f32 0.0, %v1914
        %v1916 = vpop.f32.mrf.mxu0
        %v1917 = vadd.f32 0.0, %v1916
        %1918 = vmatmul.bf16.gmra.mxu0 %v1470
        %v1919 = vpop.f32.mrf.mxu0
        %v1920 = vadd.f32 0.0, %v1919
        %v1921 = vpop.f32.mrf.mxu0
        %v1922 = vadd.f32 0.0, %v1921
        %1923 = vmatmul.bf16.gmra.mxu0 %v1472
        %v1924 = vpop.f32.mrf.mxu0
        %v1925 = vadd.f32 0.0, %v1924
        %v1926 = vpop.f32.mrf.mxu0
        %v1927 = vadd.f32 0.0, %v1926
        %1928 = vmatmul.bf16.gmra.mxu0 %v1474
        %v1929 = vpop.f32.mrf.mxu0
        %v1930 = vadd.f32 0.0, %v1929
        %v1931 = vpop.f32.mrf.mxu0
        %v1932 = vadd.f32 0.0, %v1931
        %1933 = vmatmul.bf16.gmra.mxu0 %v1476
        %v1934 = vpop.f32.mrf.mxu0
        %v1935 = vadd.f32 0.0, %v1934
        %v1936 = vpop.f32.mrf.mxu0
        %v1937 = vadd.f32 0.0, %v1936
        %1938 = vmatmul.bf16.gmra.mxu0 %v1478
        %v1939 = vpop.f32.mrf.mxu0
        %v1940 = vadd.f32 0.0, %v1939
        %v1941 = vpop.f32.mrf.mxu0
        %v1942 = vadd.f32 0.0, %v1941
        %1943 = vmatmul.bf16.gmra.mxu0 %v1480
        %v1944 = vpop.f32.mrf.mxu0
        %v1945 = vadd.f32 0.0, %v1944
        %v1946 = vpop.f32.mrf.mxu0
        %v1947 = vadd.f32 0.0, %v1946
        %1948 = vmatmul.bf16.gmra.mxu0 %v1482
        %v1949 = vpop.f32.mrf.mxu0
        %v1950 = vadd.f32 0.0, %v1949
        %v1951 = vpop.f32.mrf.mxu0
        %v1952 = vadd.f32 0.0, %v1951
        %1953 = vmatmul.bf16.gmra.mxu0 %v1484
        %v1954 = vpop.f32.mrf.mxu0
        %v1955 = vadd.f32 0.0, %v1954
        %v1956 = vpop.f32.mrf.mxu0
        %v1957 = vadd.f32 0.0, %v1956
        %1958 = vmatmul.bf16.gmra.mxu0 %v1486
        %v1959 = vpop.f32.mrf.mxu0
        %v1960 = vadd.f32 0.0, %v1959
        %v1961 = vpop.f32.mrf.mxu0
        %v1962 = vadd.f32 0.0, %v1961
        %1963 = vmatmul.bf16.gmra.mxu0 %v1488
        %v1964 = vpop.f32.mrf.mxu0
        %v1965 = vadd.f32 0.0, %v1964
        %v1966 = vpop.f32.mrf.mxu0
        %v1967 = vadd.f32 0.0, %v1966
        %1968 = vmatmul.bf16.gmra.mxu0 %v1490
        %v1969 = vpop.f32.mrf.mxu0
        %v1970 = vadd.f32 0.0, %v1969
        %v1971 = vpop.f32.mrf.mxu0
        %v1972 = vadd.f32 0.0, %v1971
        %1973 = vmatmul.bf16.gmra.mxu0 %v1492
        %v1974 = vpop.f32.mrf.mxu0
        %v1975 = vadd.f32 0.0, %v1974
        %v1976 = vpop.f32.mrf.mxu0
        %v1977 = vadd.f32 0.0, %v1976
        %1978 = vmatmul.bf16.gmra.mxu0 %v1494
        %v1979 = vpop.f32.mrf.mxu0
        %v1980 = vadd.f32 0.0, %v1979
        %v1981 = vpop.f32.mrf.mxu0
        %v1982 = vadd.f32 0.0, %v1981
        %1983 = vmatmul.bf16.gmra.mxu0 %v1496
        %v1984 = vpop.f32.mrf.mxu0
        %v1985 = vadd.f32 0.0, %v1984
        %v1986 = vpop.f32.mrf.mxu0
        %v1987 = vadd.f32 0.0, %v1986
        %1988 = vdwg.mxu0
        %1989 = vmatpush.bf16.msra.mxu0 %v1883
        %1990 = vmatpush.bf16.msra.mxu0 %v1882
        %1991 = vmatpush.bf16.msra.mxu0 %v1881
        %1992 = vmatpush.bf16.msra.mxu0 %v1880
        %1993 = vmatpush.bf16.msra.mxu0 %v1879
        %1994 = vmatpush.bf16.msra.mxu0 %v1878
        %1995 = vmatpush.bf16.msra.mxu0 %v1877
        %1996 = vmatpush.bf16.msra.mxu0 %v1876
        %1997 = vmatmul.bf16.gmra.mxu0 %v1467
        %v1998 = vpop.f32.mrf.mxu0
        %v1999 = vadd.f32 %v1910, %v1998
        %v2000 = vpop.f32.mrf.mxu0
        %v2001 = vadd.f32 %v1912, %v2000
        %2002 = vmatmul.bf16.gmra.mxu0 %v1469
        %v2003 = vpop.f32.mrf.mxu0
        %v2004 = vadd.f32 %v1915, %v2003
        %v2005 = vpop.f32.mrf.mxu0
        %v2006 = vadd.f32 %v1917, %v2005
        %2007 = vmatmul.bf16.gmra.mxu0 %v1471
        %v2008 = vpop.f32.mrf.mxu0
        %v2009 = vadd.f32 %v1920, %v2008
        %v2010 = vpop.f32.mrf.mxu0
        %v2011 = vadd.f32 %v1922, %v2010
        %2012 = vmatmul.bf16.gmra.mxu0 %v1473
        %v2013 = vpop.f32.mrf.mxu0
        %v2014 = vadd.f32 %v1925, %v2013
        %v2015 = vpop.f32.mrf.mxu0
        %v2016 = vadd.f32 %v1927, %v2015
        %2017 = vmatmul.bf16.gmra.mxu0 %v1475
        %v2018 = vpop.f32.mrf.mxu0
        %v2019 = vadd.f32 %v1930, %v2018
        %v2020 = vpop.f32.mrf.mxu0
        %v2021 = vadd.f32 %v1932, %v2020
        %2022 = vmatmul.bf16.gmra.mxu0 %v1477
        %v2023 = vpop.f32.mrf.mxu0
        %v2024 = vadd.f32 %v1935, %v2023
        %v2025 = vpop.f32.mrf.mxu0
        %v2026 = vadd.f32 %v1937, %v2025
        %2027 = vmatmul.bf16.gmra.mxu0 %v1479
        %v2028 = vpop.f32.mrf.mxu0
        %v2029 = vadd.f32 %v1940, %v2028
        %v2030 = vpop.f32.mrf.mxu0
        %v2031 = vadd.f32 %v1942, %v2030
        %2032 = vmatmul.bf16.gmra.mxu0 %v1481
        %v2033 = vpop.f32.mrf.mxu0
        %v2034 = vadd.f32 %v1945, %v2033
        %v2035 = vpop.f32.mrf.mxu0
        %v2036 = vadd.f32 %v1947, %v2035
        %2037 = vmatmul.bf16.gmra.mxu0 %v1483
        %v2038 = vpop.f32.mrf.mxu0
        %v2039 = vadd.f32 %v1950, %v2038
        %v2040 = vpop.f32.mrf.mxu0
        %v2041 = vadd.f32 %v1952, %v2040
        %2042 = vmatmul.bf16.gmra.mxu0 %v1485
        %v2043 = vpop.f32.mrf.mxu0
        %v2044 = vadd.f32 %v1955, %v2043
        %v2045 = vpop.f32.mrf.mxu0
        %v2046 = vadd.f32 %v1957, %v2045
        %2047 = vmatmul.bf16.gmra.mxu0 %v1487
        %v2048 = vpop.f32.mrf.mxu0
        %v2049 = vadd.f32 %v1960, %v2048
        %v2050 = vpop.f32.mrf.mxu0
        %v2051 = vadd.f32 %v1962, %v2050
        %2052 = vmatmul.bf16.gmra.mxu0 %v1489
        %v2053 = vpop.f32.mrf.mxu0
        %v2054 = vadd.f32 %v1965, %v2053
        %v2055 = vpop.f32.mrf.mxu0
        %v2056 = vadd.f32 %v1967, %v2055
        %2057 = vmatmul.bf16.gmra.mxu0 %v1491
        %v2058 = vpop.f32.mrf.mxu0
        %v2059 = vadd.f32 %v1970, %v2058
        %v2060 = vpop.f32.mrf.mxu0
        %v2061 = vadd.f32 %v1972, %v2060
        %2062 = vmatmul.bf16.gmra.mxu0 %v1493
        %v2063 = vpop.f32.mrf.mxu0
        %v2064 = vadd.f32 %v1975, %v2063
        %v2065 = vpop.f32.mrf.mxu0
        %v2066 = vadd.f32 %v1977, %v2065
        %2067 = vmatmul.bf16.gmra.mxu0 %v1495
        %v2068 = vpop.f32.mrf.mxu0
        %v2069 = vadd.f32 %v1980, %v2068
        %v2070 = vpop.f32.mrf.mxu0
        %v2071 = vadd.f32 %v1982, %v2070
        %2072 = vmatmul.bf16.gmra.mxu0 %v1497
        %v2073 = vpop.f32.mrf.mxu0
        %v2074 = vadd.f32 %v1985, %v2073
        %v2075 = vpop.f32.mrf.mxu0
        %v2076 = vadd.f32 %v1987, %v2075
        %2077 = vdwg.mxu0
        %v2078 = vmax.f32 %v1210, 0.0
        %v2079 = vmax.f32 %v1211, 0.0
        %v2080 = vmax.f32 %v1212, 0.0
        %v2081 = vmax.f32 %v1213, 0.0
        %v2082 = vmax.f32 %v1214, 0.0
        %v2083 = vmax.f32 %v1215, 0.0
        %v2084 = vmax.f32 %v1216, 0.0
        %v2085 = vmax.f32 %v1217, 0.0
        %v2086 = vmax.f32 %v1218, 0.0
        %v2087 = vmax.f32 %v1219, 0.0
        %v2088 = vmax.f32 %v1220, 0.0
        %v2089 = vmax.f32 %v1221, 0.0
        %v2090 = vmax.f32 %v1222, 0.0
        %v2091 = vmax.f32 %v1223, 0.0
        %v2092 = vmax.f32 %v1224, 0.0
        %v2093 = vmax.f32 %v1225, 0.0
        %v2094 = vmax.f32 %v1226, 0.0
        %v2095 = vmax.f32 %v1227, 0.0
        %v2096 = vmax.f32 %v1228, 0.0
        %v2097 = vmax.f32 %v1229, 0.0
        %v2098 = vmax.f32 %v1230, 0.0
        %v2099 = vmax.f32 %v1231, 0.0
        %v2100 = vmax.f32 %v1232, 0.0
        %v2101 = vmax.f32 %v1233, 0.0
        %v2102 = vmax.f32 %v1234, 0.0
        %v2103 = vmax.f32 %v1235, 0.0
        %v2104 = vmax.f32 %v1236, 0.0
        %v2105 = vmax.f32 %v1237, 0.0
        %v2106 = vmax.f32 %v1238, 0.0
        %v2107 = vmax.f32 %v1239, 0.0
        %v2108 = vmax.f32 %v1240, 0.0
        %v2109 = vmax.f32 %v1241, 0.0
        %v2110 = vmax.f32 %v1242, 0.0
        %v2111 = vmax.f32 %v1243, 0.0
        %v2112 = vmax.f32 %v1244, 0.0
        %v2113 = vmax.f32 %v1245, 0.0
        %v2114 = vmax.f32 %v1246, 0.0
        %v2115 = vmax.f32 %v1247, 0.0
        %v2116 = vmax.f32 %v1248, 0.0
        %v2117 = vmax.f32 %v1249, 0.0
        %v2118 = vmax.f32 %v1250, 0.0
        %v2119 = vmax.f32 %v1251, 0.0
        %v2120 = vmax.f32 %v1252, 0.0
        %v2121 = vmax.f32 %v1253, 0.0
        %v2122 = vmax.f32 %v1254, 0.0
        %v2123 = vmax.f32 %v1255, 0.0
        %v2124 = vmax.f32 %v1256, 0.0
        %v2125 = vmax.f32 %v1257, 0.0
        %v2126 = vmax.f32 %v1258, 0.0
        %v2127 = vmax.f32 %v1259, 0.0
        %v2128 = vmax.f32 %v1260, 0.0
        %v2129 = vmax.f32 %v1261, 0.0
        %v2130 = vmax.f32 %v1262, 0.0
        %v2131 = vmax.f32 %v1263, 0.0
        %v2132 = vmax.f32 %v1264, 0.0
        %v2133 = vmax.f32 %v1265, 0.0
        %v2134 = vmax.f32 %v1266, 0.0
        %v2135 = vmax.f32 %v1267, 0.0
        %v2136 = vmax.f32 %v1268, 0.0
        %v2137 = vmax.f32 %v1269, 0.0
        %v2138 = vmax.f32 %v1270, 0.0
        %v2139 = vmax.f32 %v1271, 0.0
        %v2140 = vmax.f32 %v1272, 0.0
        %v2141 = vmax.f32 %v1273, 0.0
        %v2142 = vpack.c.bf16 %v2079, %v2078
        %v2143 = vpack.c.bf16 %v2081, %v2080
        %v2144 = vpack.c.bf16 %v2083, %v2082
        %v2145 = vpack.c.bf16 %v2085, %v2084
        %v2146 = vpack.c.bf16 %v2087, %v2086
        %v2147 = vpack.c.bf16 %v2089, %v2088
        %v2148 = vpack.c.bf16 %v2091, %v2090
        %v2149 = vpack.c.bf16 %v2093, %v2092
        %v2150 = vpack.c.bf16 %v2095, %v2094
        %v2151 = vpack.c.bf16 %v2097, %v2096
        %v2152 = vpack.c.bf16 %v2099, %v2098
        %v2153 = vpack.c.bf16 %v2101, %v2100
        %v2154 = vpack.c.bf16 %v2103, %v2102
        %v2155 = vpack.c.bf16 %v2105, %v2104
        %v2156 = vpack.c.bf16 %v2107, %v2106
        %v2157 = vpack.c.bf16 %v2109, %v2108
        %v2158 = vpack.c.bf16 %v2111, %v2110
        %v2159 = vpack.c.bf16 %v2113, %v2112
        %v2160 = vpack.c.bf16 %v2115, %v2114
        %v2161 = vpack.c.bf16 %v2117, %v2116
        %v2162 = vpack.c.bf16 %v2119, %v2118
        %v2163 = vpack.c.bf16 %v2121, %v2120
        %v2164 = vpack.c.bf16 %v2123, %v2122
        %v2165 = vpack.c.bf16 %v2125, %v2124
        %v2166 = vpack.c.bf16 %v2127, %v2126
        %v2167 = vpack.c.bf16 %v2129, %v2128
        %v2168 = vpack.c.bf16 %v2131, %v2130
        %v2169 = vpack.c.bf16 %v2133, %v2132
        %v2170 = vpack.c.bf16 %v2135, %v2134
        %v2171 = vpack.c.bf16 %v2137, %v2136
        %v2172 = vpack.c.bf16 %v2139, %v2138
        %v2173 = vpack.c.bf16 %v2141, %v2140
        %v2174 = vld [vmem:[%s3] sm:$0xf]
        %v2175 = vld [vmem:[%s3 + $0x4] sm:$0xf]
        %v2176 = vld [vmem:[%s4] sm:$0x1]
        %v2178 = vperm.slane %v2176, 0
        %v2182 = vunpack.c.l.b16 %v2174
        %v2183 = vunpack.c.l.b16 %v2175
        %v2184 = vpack.c.b16 %v2183, %v2182
        %v2187 = vsel %vm1145, %v2142, 0
        %v2190 = vsel %vm1145, %v2143, 0
        %v2193 = vsel %vm1145, %v2144, 0
        %v2196 = vsel %vm1145, %v2145, 0
        %v2199 = vsel %vm1145, %v2146, 0
        %v2202 = vsel %vm1145, %v2147, 0
        %v2205 = vsel %vm1145, %v2148, 0
        %v2208 = vsel %vm1145, %v2149, 0
        %v2211 = vsel %vm1145, %v2150, 0
        %v2214 = vsel %vm1145, %v2151, 0
        %v2217 = vsel %vm1145, %v2152, 0
        %v2220 = vsel %vm1145, %v2153, 0
        %v2223 = vsel %vm1145, %v2154, 0
        %v2226 = vsel %vm1145, %v2155, 0
        %v2229 = vsel %vm1145, %v2156, 0
        %v2232 = vsel %vm1145, %v2157, 0
        %v2235 = vsel %vm1145, %v2158, 0
        %v2238 = vsel %vm1145, %v2159, 0
        %v2241 = vsel %vm1145, %v2160, 0
        %v2244 = vsel %vm1145, %v2161, 0
        %v2247 = vsel %vm1145, %v2162, 0
        %v2250 = vsel %vm1145, %v2163, 0
        %v2253 = vsel %vm1145, %v2164, 0
        %v2256 = vsel %vm1145, %v2165, 0
        %v2259 = vsel %vm1145, %v2166, 0
        %v2262 = vsel %vm1145, %v2167, 0
        %v2265 = vsel %vm1145, %v2168, 0
        %v2268 = vsel %vm1145, %v2169, 0
        %v2271 = vsel %vm1145, %v2170, 0
        %v2274 = vsel %vm1145, %v2171, 0
        %v2277 = vsel %vm1145, %v2172, 0
        %v2280 = vsel %vm1145, %v2173, 0
        %2282 = vmatpush.bf16.msra.mxu0 0
        %2283 = vmatpush.bf16.msra.mxu0 0
        %2284 = vmatpush.bf16.msra.mxu0 0
        %2285 = vmatpush.bf16.msra.mxu0 0
        %2286 = vmatpush.bf16.msra.mxu0 0
        %2287 = vmatpush.bf16.msra.mxu0 0
        %2288 = vmatpush.bf16.msra.mxu0 0
        %2289 = vmatpush.bf16.msra.mxu0 %v2184
        %2290 = vmatmul.bf16.gmra.mxu0 %v2187
        %v2291 = vpop.f32.mrf.mxu0
        %v2292 = vadd.f32 %v2178, %v2291
        %v2293 = vpop.f32.mrf.mxu0
        %v2294 = vadd.f32 %v2178, %v2293
        %2295 = vmatmul.bf16.gmra.mxu0 %v2190
        %v2296 = vpop.f32.mrf.mxu0
        %v2297 = vadd.f32 %v2178, %v2296
        %v2298 = vpop.f32.mrf.mxu0
        %v2299 = vadd.f32 %v2178, %v2298
        %2300 = vmatmul.bf16.gmra.mxu0 %v2193
        %v2301 = vpop.f32.mrf.mxu0
        %v2302 = vadd.f32 %v2178, %v2301
        %v2303 = vpop.f32.mrf.mxu0
        %v2304 = vadd.f32 %v2178, %v2303
        %2305 = vmatmul.bf16.gmra.mxu0 %v2196
        %v2306 = vpop.f32.mrf.mxu0
        %v2307 = vadd.f32 %v2178, %v2306
        %v2308 = vpop.f32.mrf.mxu0
        %v2309 = vadd.f32 %v2178, %v2308
        %2310 = vmatmul.bf16.gmra.mxu0 %v2199
        %v2311 = vpop.f32.mrf.mxu0
        %v2312 = vadd.f32 %v2178, %v2311
        %v2313 = vpop.f32.mrf.mxu0
        %v2314 = vadd.f32 %v2178, %v2313
        %2315 = vmatmul.bf16.gmra.mxu0 %v2202
        %v2316 = vpop.f32.mrf.mxu0
        %v2317 = vadd.f32 %v2178, %v2316
        %v2318 = vpop.f32.mrf.mxu0
        %v2319 = vadd.f32 %v2178, %v2318
        %2320 = vmatmul.bf16.gmra.mxu0 %v2205
        %v2321 = vpop.f32.mrf.mxu0
        %v2322 = vadd.f32 %v2178, %v2321
        %v2323 = vpop.f32.mrf.mxu0
        %v2324 = vadd.f32 %v2178, %v2323
        %2325 = vmatmul.bf16.gmra.mxu0 %v2208
        %v2326 = vpop.f32.mrf.mxu0
        %v2327 = vadd.f32 %v2178, %v2326
        %v2328 = vpop.f32.mrf.mxu0
        %v2329 = vadd.f32 %v2178, %v2328
        %2330 = vmatmul.bf16.gmra.mxu0 %v2211
        %v2331 = vpop.f32.mrf.mxu0
        %v2332 = vadd.f32 %v2178, %v2331
        %v2333 = vpop.f32.mrf.mxu0
        %v2334 = vadd.f32 %v2178, %v2333
        %2335 = vmatmul.bf16.gmra.mxu0 %v2214
        %v2336 = vpop.f32.mrf.mxu0
        %v2337 = vadd.f32 %v2178, %v2336
        %v2338 = vpop.f32.mrf.mxu0
        %v2339 = vadd.f32 %v2178, %v2338
        %2340 = vmatmul.bf16.gmra.mxu0 %v2217
        %v2341 = vpop.f32.mrf.mxu0
        %v2342 = vadd.f32 %v2178, %v2341
        %v2343 = vpop.f32.mrf.mxu0
        %v2344 = vadd.f32 %v2178, %v2343
        %2345 = vmatmul.bf16.gmra.mxu0 %v2220
        %v2346 = vpop.f32.mrf.mxu0
        %v2347 = vadd.f32 %v2178, %v2346
        %v2348 = vpop.f32.mrf.mxu0
        %v2349 = vadd.f32 %v2178, %v2348
        %2350 = vmatmul.bf16.gmra.mxu0 %v2223
        %v2351 = vpop.f32.mrf.mxu0
        %v2352 = vadd.f32 %v2178, %v2351
        %v2353 = vpop.f32.mrf.mxu0
        %v2354 = vadd.f32 %v2178, %v2353
        %2355 = vmatmul.bf16.gmra.mxu0 %v2226
        %v2356 = vpop.f32.mrf.mxu0
        %v2357 = vadd.f32 %v2178, %v2356
        %v2358 = vpop.f32.mrf.mxu0
        %v2359 = vadd.f32 %v2178, %v2358
        %2360 = vmatmul.bf16.gmra.mxu0 %v2229
        %v2361 = vpop.f32.mrf.mxu0
        %v2362 = vadd.f32 %v2178, %v2361
        %v2363 = vpop.f32.mrf.mxu0
        %v2364 = vadd.f32 %v2178, %v2363
        %2365 = vmatmul.bf16.gmra.mxu0 %v2232
        %v2366 = vpop.f32.mrf.mxu0
        %v2367 = vadd.f32 %v2178, %v2366
        %v2368 = vpop.f32.mrf.mxu0
        %v2369 = vadd.f32 %v2178, %v2368
        %2370 = vmatmul.bf16.gmra.mxu0 %v2235
        %v2371 = vpop.f32.mrf.mxu0
        %v2372 = vadd.f32 %v2178, %v2371
        %v2373 = vpop.f32.mrf.mxu0
        %v2374 = vadd.f32 %v2178, %v2373
        %2375 = vmatmul.bf16.gmra.mxu0 %v2238
        %v2376 = vpop.f32.mrf.mxu0
        %v2377 = vadd.f32 %v2178, %v2376
        %v2378 = vpop.f32.mrf.mxu0
        %v2379 = vadd.f32 %v2178, %v2378
        %2380 = vmatmul.bf16.gmra.mxu0 %v2241
        %v2381 = vpop.f32.mrf.mxu0
        %v2382 = vadd.f32 %v2178, %v2381
        %v2383 = vpop.f32.mrf.mxu0
        %v2384 = vadd.f32 %v2178, %v2383
        %2385 = vmatmul.bf16.gmra.mxu0 %v2244
        %v2386 = vpop.f32.mrf.mxu0
        %v2387 = vadd.f32 %v2178, %v2386
        %v2388 = vpop.f32.mrf.mxu0
        %v2389 = vadd.f32 %v2178, %v2388
        %2390 = vmatmul.bf16.gmra.mxu0 %v2247
        %v2391 = vpop.f32.mrf.mxu0
        %v2392 = vadd.f32 %v2178, %v2391
        %v2393 = vpop.f32.mrf.mxu0
        %v2394 = vadd.f32 %v2178, %v2393
        %2395 = vmatmul.bf16.gmra.mxu0 %v2250
        %v2396 = vpop.f32.mrf.mxu0
        %v2397 = vadd.f32 %v2178, %v2396
        %v2398 = vpop.f32.mrf.mxu0
        %v2399 = vadd.f32 %v2178, %v2398
        %2400 = vmatmul.bf16.gmra.mxu0 %v2253
        %v2401 = vpop.f32.mrf.mxu0
        %v2402 = vadd.f32 %v2178, %v2401
        %v2403 = vpop.f32.mrf.mxu0
        %v2404 = vadd.f32 %v2178, %v2403
        %2405 = vmatmul.bf16.gmra.mxu0 %v2256
        %v2406 = vpop.f32.mrf.mxu0
        %v2407 = vadd.f32 %v2178, %v2406
        %v2408 = vpop.f32.mrf.mxu0
        %v2409 = vadd.f32 %v2178, %v2408
        %2410 = vmatmul.bf16.gmra.mxu0 %v2259
        %v2411 = vpop.f32.mrf.mxu0
        %v2412 = vadd.f32 %v2178, %v2411
        %v2413 = vpop.f32.mrf.mxu0
        %v2414 = vadd.f32 %v2178, %v2413
        %2415 = vmatmul.bf16.gmra.mxu0 %v2262
        %v2416 = vpop.f32.mrf.mxu0
        %v2417 = vadd.f32 %v2178, %v2416
        %v2418 = vpop.f32.mrf.mxu0
        %v2419 = vadd.f32 %v2178, %v2418
        %2420 = vmatmul.bf16.gmra.mxu0 %v2265
        %v2421 = vpop.f32.mrf.mxu0
        %v2422 = vadd.f32 %v2178, %v2421
        %v2423 = vpop.f32.mrf.mxu0
        %v2424 = vadd.f32 %v2178, %v2423
        %2425 = vmatmul.bf16.gmra.mxu0 %v2268
        %v2426 = vpop.f32.mrf.mxu0
        %v2427 = vadd.f32 %v2178, %v2426
        %v2428 = vpop.f32.mrf.mxu0
        %v2429 = vadd.f32 %v2178, %v2428
        %2430 = vmatmul.bf16.gmra.mxu0 %v2271
        %v2431 = vpop.f32.mrf.mxu0
        %v2432 = vadd.f32 %v2178, %v2431
        %v2433 = vpop.f32.mrf.mxu0
        %v2434 = vadd.f32 %v2178, %v2433
        %2435 = vmatmul.bf16.gmra.mxu0 %v2274
        %v2436 = vpop.f32.mrf.mxu0
        %v2437 = vadd.f32 %v2178, %v2436
        %v2438 = vpop.f32.mrf.mxu0
        %v2439 = vadd.f32 %v2178, %v2438
        %2440 = vmatmul.bf16.gmra.mxu0 %v2277
        %v2441 = vpop.f32.mrf.mxu0
        %v2442 = vadd.f32 %v2178, %v2441
        %v2443 = vpop.f32.mrf.mxu0
        %v2444 = vadd.f32 %v2178, %v2443
        %2445 = vmatmul.bf16.gmra.mxu0 %v2280
        %v2446 = vpop.f32.mrf.mxu0
        %v2447 = vadd.f32 %v2178, %v2446
        %v2448 = vpop.f32.mrf.mxu0
        %v2449 = vadd.f32 %v2178, %v2448
        %2450 = vdwg.mxu0
        %s2451 = sld [smem:[#allocation8]]
        %s2452 = sld [smem:[#allocation8 + $0x2]]
        %v2453 = vstv %s2451
        %v2454 = vmul.f32 %v2453, %v1210
        %v2455 = vmul.f32 %v2453, %v1211
        %v2456 = vmul.f32 %v2453, %v1212
        %v2457 = vmul.f32 %v2453, %v1213
        %v2458 = vmul.f32 %v2453, %v1214
        %v2459 = vmul.f32 %v2453, %v1215
        %v2460 = vmul.f32 %v2453, %v1216
        %v2461 = vmul.f32 %v2453, %v1217
        %v2462 = vmul.f32 %v2453, %v1218
        %v2463 = vmul.f32 %v2453, %v1219
        %v2464 = vmul.f32 %v2453, %v1220
        %v2465 = vmul.f32 %v2453, %v1221
        %v2466 = vmul.f32 %v2453, %v1222
        %v2467 = vmul.f32 %v2453, %v1223
        %v2468 = vmul.f32 %v2453, %v1224
        %v2469 = vmul.f32 %v2453, %v1225
        %v2470 = vmul.f32 %v2453, %v1226
        %v2471 = vmul.f32 %v2453, %v1227
        %v2472 = vmul.f32 %v2453, %v1228
        %v2473 = vmul.f32 %v2453, %v1229
        %v2474 = vmul.f32 %v2453, %v1230
        %v2475 = vmul.f32 %v2453, %v1231
        %v2476 = vmul.f32 %v2453, %v1232
        %v2477 = vmul.f32 %v2453, %v1233
        %v2478 = vmul.f32 %v2453, %v1234
        %v2479 = vmul.f32 %v2453, %v1235
        %v2480 = vmul.f32 %v2453, %v1236
        %v2481 = vmul.f32 %v2453, %v1237
        %v2482 = vmul.f32 %v2453, %v1238
        %v2483 = vmul.f32 %v2453, %v1239
        %v2484 = vmul.f32 %v2453, %v1240
        %v2485 = vmul.f32 %v2453, %v1241
        %v2486 = vmul.f32 %v2453, %v1242
        %v2487 = vmul.f32 %v2453, %v1243
        %v2488 = vmul.f32 %v2453, %v1244
        %v2489 = vmul.f32 %v2453, %v1245
        %v2490 = vmul.f32 %v2453, %v1246
        %v2491 = vmul.f32 %v2453, %v1247
        %v2492 = vmul.f32 %v2453, %v1248
        %v2493 = vmul.f32 %v2453, %v1249
        %v2494 = vmul.f32 %v2453, %v1250
        %v2495 = vmul.f32 %v2453, %v1251
        %v2496 = vmul.f32 %v2453, %v1252
        %v2497 = vmul.f32 %v2453, %v1253
        %v2498 = vmul.f32 %v2453, %v1254
        %v2499 = vmul.f32 %v2453, %v1255
        %v2500 = vmul.f32 %v2453, %v1256
        %v2501 = vmul.f32 %v2453, %v1257
        %v2502 = vmul.f32 %v2453, %v1258
        %v2503 = vmul.f32 %v2453, %v1259
        %v2504 = vmul.f32 %v2453, %v1260
        %v2505 = vmul.f32 %v2453, %v1261
        %v2506 = vmul.f32 %v2453, %v1262
        %v2507 = vmul.f32 %v2453, %v1263
        %v2508 = vmul.f32 %v2453, %v1264
        %v2509 = vmul.f32 %v2453, %v1265
        %v2510 = vmul.f32 %v2453, %v1266
        %v2511 = vmul.f32 %v2453, %v1267
        %v2512 = vmul.f32 %v2453, %v1268
        %v2513 = vmul.f32 %v2453, %v1269
        %v2514 = vmul.f32 %v2453, %v1270
        %v2515 = vmul.f32 %v2453, %v1271
        %v2516 = vmul.f32 %v2453, %v1272
        %v2517 = vmul.f32 %v2453, %v1273
        %v2518 = vstv %s2452
        %v2519 = vmul.f32 %v2518, %v1725
        %v2520 = vmul.f32 %v2518, %v1727
        %v2521 = vmul.f32 %v2518, %v1730
        %v2522 = vmul.f32 %v2518, %v1732
        %v2523 = vmul.f32 %v2518, %v1735
        %v2524 = vmul.f32 %v2518, %v1737
        %v2525 = vmul.f32 %v2518, %v1740
        %v2526 = vmul.f32 %v2518, %v1742
        %v2527 = vmul.f32 %v2518, %v1745
        %v2528 = vmul.f32 %v2518, %v1747
        %v2529 = vmul.f32 %v2518, %v1750
        %v2530 = vmul.f32 %v2518, %v1752
        %v2531 = vmul.f32 %v2518, %v1755
        %v2532 = vmul.f32 %v2518, %v1757
        %v2533 = vmul.f32 %v2518, %v1760
        %v2534 = vmul.f32 %v2518, %v1762
        %v2535 = vmul.f32 %v2518, %v1765
        %v2536 = vmul.f32 %v2518, %v1767
        %v2537 = vmul.f32 %v2518, %v1770
        %v2538 = vmul.f32 %v2518, %v1772
        %v2539 = vmul.f32 %v2518, %v1775
        %v2540 = vmul.f32 %v2518, %v1777
        %v2541 = vmul.f32 %v2518, %v1780
        %v2542 = vmul.f32 %v2518, %v1782
        %v2543 = vmul.f32 %v2518, %v1785
        %v2544 = vmul.f32 %v2518, %v1787
        %v2545 = vmul.f32 %v2518, %v1790
        %v2546 = vmul.f32 %v2518, %v1792
        %v2547 = vmul.f32 %v2518, %v1795
        %v2548 = vmul.f32 %v2518, %v1797
        %v2549 = vmul.f32 %v2518, %v1800
        %v2550 = vmul.f32 %v2518, %v1802
        %v2551 = vmul.f32 %v2518, %v1999
        %v2552 = vmul.f32 %v2518, %v2001
        %v2553 = vmul.f32 %v2518, %v2004
        %v2554 = vmul.f32 %v2518, %v2006
        %v2555 = vmul.f32 %v2518, %v2009
        %v2556 = vmul.f32 %v2518, %v2011
        %v2557 = vmul.f32 %v2518, %v2014
        %v2558 = vmul.f32 %v2518, %v2016
        %v2559 = vmul.f32 %v2518, %v2019
        %v2560 = vmul.f32 %v2518, %v2021
        %v2561 = vmul.f32 %v2518, %v2024
        %v2562 = vmul.f32 %v2518, %v2026
        %v2563 = vmul.f32 %v2518, %v2029
        %v2564 = vmul.f32 %v2518, %v2031
        %v2565 = vmul.f32 %v2518, %v2034
        %v2566 = vmul.f32 %v2518, %v2036
        %v2567 = vmul.f32 %v2518, %v2039
        %v2568 = vmul.f32 %v2518, %v2041
        %v2569 = vmul.f32 %v2518, %v2044
        %v2570 = vmul.f32 %v2518, %v2046
        %v2571 = vmul.f32 %v2518, %v2049
        %v2572 = vmul.f32 %v2518, %v2051
        %v2573 = vmul.f32 %v2518, %v2054
        %v2574 = vmul.f32 %v2518, %v2056
        %v2575 = vmul.f32 %v2518, %v2059
        %v2576 = vmul.f32 %v2518, %v2061
        %v2577 = vmul.f32 %v2518, %v2064
        %v2578 = vmul.f32 %v2518, %v2066
        %v2579 = vmul.f32 %v2518, %v2069
        %v2580 = vmul.f32 %v2518, %v2071
        %v2581 = vmul.f32 %v2518, %v2074
        %v2582 = vmul.f32 %v2518, %v2076
        %v2583 = vadd.f32 %v2454, %v2519
        %v2584 = vadd.f32 %v2455, %v2520
        %v2585 = vadd.f32 %v2456, %v2521
        %v2586 = vadd.f32 %v2457, %v2522
        %v2587 = vadd.f32 %v2458, %v2523
        %v2588 = vadd.f32 %v2459, %v2524
        %v2589 = vadd.f32 %v2460, %v2525
        %v2590 = vadd.f32 %v2461, %v2526
        %v2591 = vadd.f32 %v2462, %v2527
        %v2592 = vadd.f32 %v2463, %v2528
        %v2593 = vadd.f32 %v2464, %v2529
        %v2594 = vadd.f32 %v2465, %v2530
        %v2595 = vadd.f32 %v2466, %v2531
        %v2596 = vadd.f32 %v2467, %v2532
        %v2597 = vadd.f32 %v2468, %v2533
        %v2598 = vadd.f32 %v2469, %v2534
        %v2599 = vadd.f32 %v2470, %v2535
        %v2600 = vadd.f32 %v2471, %v2536
        %v2601 = vadd.f32 %v2472, %v2537
        %v2602 = vadd.f32 %v2473, %v2538
        %v2603 = vadd.f32 %v2474, %v2539
        %v2604 = vadd.f32 %v2475, %v2540
        %v2605 = vadd.f32 %v2476, %v2541
        %v2606 = vadd.f32 %v2477, %v2542
        %v2607 = vadd.f32 %v2478, %v2543
        %v2608 = vadd.f32 %v2479, %v2544
        %v2609 = vadd.f32 %v2480, %v2545
        %v2610 = vadd.f32 %v2481, %v2546
        %v2611 = vadd.f32 %v2482, %v2547
        %v2612 = vadd.f32 %v2483, %v2548
        %v2613 = vadd.f32 %v2484, %v2549
        %v2614 = vadd.f32 %v2485, %v2550
        %v2615 = vadd.f32 %v2486, %v2551
        %v2616 = vadd.f32 %v2487, %v2552
        %v2617 = vadd.f32 %v2488, %v2553
        %v2618 = vadd.f32 %v2489, %v2554
        %v2619 = vadd.f32 %v2490, %v2555
        %v2620 = vadd.f32 %v2491, %v2556
        %v2621 = vadd.f32 %v2492, %v2557
        %v2622 = vadd.f32 %v2493, %v2558
        %v2623 = vadd.f32 %v2494, %v2559
        %v2624 = vadd.f32 %v2495, %v2560
        %v2625 = vadd.f32 %v2496, %v2561
        %v2626 = vadd.f32 %v2497, %v2562
        %v2627 = vadd.f32 %v2498, %v2563
        %v2628 = vadd.f32 %v2499, %v2564
        %v2629 = vadd.f32 %v2500, %v2565
        %v2630 = vadd.f32 %v2501, %v2566
        %v2631 = vadd.f32 %v2502, %v2567
        %v2632 = vadd.f32 %v2503, %v2568
        %v2633 = vadd.f32 %v2504, %v2569
        %v2634 = vadd.f32 %v2505, %v2570
        %v2635 = vadd.f32 %v2506, %v2571
        %v2636 = vadd.f32 %v2507, %v2572
        %v2637 = vadd.f32 %v2508, %v2573
        %v2638 = vadd.f32 %v2509, %v2574
        %v2639 = vadd.f32 %v2510, %v2575
        %v2640 = vadd.f32 %v2511, %v2576
        %v2641 = vadd.f32 %v2512, %v2577
        %v2642 = vadd.f32 %v2513, %v2578
        %v2643 = vadd.f32 %v2514, %v2579
        %v2644 = vadd.f32 %v2515, %v2580
        %v2645 = vadd.f32 %v2516, %v2581
        %v2646 = vadd.f32 %v2517, %v2582
        %v2647 = vadd.f32 %v2583, %v2292
        %v2648 = vadd.f32 %v2584, %v2294
        %v2649 = vadd.f32 %v2585, %v2297
        %v2650 = vadd.f32 %v2586, %v2299
        %v2651 = vadd.f32 %v2587, %v2302
        %v2652 = vadd.f32 %v2588, %v2304
        %v2653 = vadd.f32 %v2589, %v2307
        %v2654 = vadd.f32 %v2590, %v2309
        %v2655 = vadd.f32 %v2591, %v2312
        %v2656 = vadd.f32 %v2592, %v2314
        %v2657 = vadd.f32 %v2593, %v2317
        %v2658 = vadd.f32 %v2594, %v2319
        %v2659 = vadd.f32 %v2595, %v2322
        %v2660 = vadd.f32 %v2596, %v2324
        %v2661 = vadd.f32 %v2597, %v2327
        %v2662 = vadd.f32 %v2598, %v2329
        %v2663 = vadd.f32 %v2599, %v2332
        %v2664 = vadd.f32 %v2600, %v2334
        %v2665 = vadd.f32 %v2601, %v2337
        %v2666 = vadd.f32 %v2602, %v2339
        %v2667 = vadd.f32 %v2603, %v2342
        %v2668 = vadd.f32 %v2604, %v2344
        %v2669 = vadd.f32 %v2605, %v2347
        %v2670 = vadd.f32 %v2606, %v2349
        %v2671 = vadd.f32 %v2607, %v2352
        %v2672 = vadd.f32 %v2608, %v2354
        %v2673 = vadd.f32 %v2609, %v2357
        %v2674 = vadd.f32 %v2610, %v2359
        %v2675 = vadd.f32 %v2611, %v2362
        %v2676 = vadd.f32 %v2612, %v2364
        %v2677 = vadd.f32 %v2613, %v2367
        %v2678 = vadd.f32 %v2614, %v2369
        %v2679 = vadd.f32 %v2615, %v2372
        %v2680 = vadd.f32 %v2616, %v2374
        %v2681 = vadd.f32 %v2617, %v2377
        %v2682 = vadd.f32 %v2618, %v2379
        %v2683 = vadd.f32 %v2619, %v2382
        %v2684 = vadd.f32 %v2620, %v2384
        %v2685 = vadd.f32 %v2621, %v2387
        %v2686 = vadd.f32 %v2622, %v2389
        %v2687 = vadd.f32 %v2623, %v2392
        %v2688 = vadd.f32 %v2624, %v2394
        %v2689 = vadd.f32 %v2625, %v2397
        %v2690 = vadd.f32 %v2626, %v2399
        %v2691 = vadd.f32 %v2627, %v2402
        %v2692 = vadd.f32 %v2628, %v2404
        %v2693 = vadd.f32 %v2629, %v2407
        %v2694 = vadd.f32 %v2630, %v2409
        %v2695 = vadd.f32 %v2631, %v2412
        %v2696 = vadd.f32 %v2632, %v2414
        %v2697 = vadd.f32 %v2633, %v2417
        %v2698 = vadd.f32 %v2634, %v2419
        %v2699 = vadd.f32 %v2635, %v2422
        %v2700 = vadd.f32 %v2636, %v2424
        %v2701 = vadd.f32 %v2637, %v2427
        %v2702 = vadd.f32 %v2638, %v2429
        %v2703 = vadd.f32 %v2639, %v2432
        %v2704 = vadd.f32 %v2640, %v2434
        %v2705 = vadd.f32 %v2641, %v2437
        %v2706 = vadd.f32 %v2642, %v2439
        %v2707 = vadd.f32 %v2643, %v2442
        %v2708 = vadd.f32 %v2644, %v2444
        %v2709 = vadd.f32 %v2645, %v2447
        %v2710 = vadd.f32 %v2646, %v2449
        %2711 = vst.msk [vmem:[#allocation3] sm:$0xff] %vm1145, %v2647
        %2712 = vst.msk [vmem:[#allocation3 + $0x8] sm:$0xff] %vm1145, %v2648
        %2713 = vst.msk [vmem:[#allocation3 + $0x10] sm:$0xff] %vm1145, %v2649
        %2714 = vst.msk [vmem:[#allocation3 + $0x18] sm:$0xff] %vm1145, %v2650
        %2715 = vst.msk [vmem:[#allocation3 + $0x20] sm:$0xff] %vm1145, %v2651
        %2716 = vst.msk [vmem:[#allocation3 + $0x28] sm:$0xff] %vm1145, %v2652
        %2717 = vst.msk [vmem:[#allocation3 + $0x30] sm:$0xff] %vm1145, %v2653
        %2718 = vst.msk [vmem:[#allocation3 + $0x38] sm:$0xff] %vm1145, %v2654
        %2719 = vst.msk [vmem:[#allocation3 + $0x40] sm:$0xff] %vm1145, %v2655
        %2720 = vst.msk [vmem:[#allocation3 + $0x48] sm:$0xff] %vm1145, %v2656
        %2721 = vst.msk [vmem:[#allocation3 + $0x50] sm:$0xff] %vm1145, %v2657
        %2722 = vst.msk [vmem:[#allocation3 + $0x58] sm:$0xff] %vm1145, %v2658
        %2723 = vst.msk [vmem:[#allocation3 + $0x60] sm:$0xff] %vm1145, %v2659
        %2724 = vst.msk [vmem:[#allocation3 + $0x68] sm:$0xff] %vm1145, %v2660
        %2725 = vst.msk [vmem:[#allocation3 + $0x70] sm:$0xff] %vm1145, %v2661
        %2726 = vst.msk [vmem:[#allocation3 + $0x78] sm:$0xff] %vm1145, %v2662
        %2727 = vst.msk [vmem:[#allocation3 + $0x80] sm:$0xff] %vm1145, %v2663
        %2728 = vst.msk [vmem:[#allocation3 + $0x88] sm:$0xff] %vm1145, %v2664
        %2729 = vst.msk [vmem:[#allocation3 + $0x90] sm:$0xff] %vm1145, %v2665
        %2730 = vst.msk [vmem:[#allocation3 + $0x98] sm:$0xff] %vm1145, %v2666
        %2731 = vst.msk [vmem:[#allocation3 + $0xa0] sm:$0xff] %vm1145, %v2667
        %2732 = vst.msk [vmem:[#allocation3 + $0xa8] sm:$0xff] %vm1145, %v2668
        %2733 = vst.msk [vmem:[#allocation3 + $0xb0] sm:$0xff] %vm1145, %v2669
        %2734 = vst.msk [vmem:[#allocation3 + $0xb8] sm:$0xff] %vm1145, %v2670
        %2735 = vst.msk [vmem:[#allocation3 + $0xc0] sm:$0xff] %vm1145, %v2671
        %2736 = vst.msk [vmem:[#allocation3 + $0xc8] sm:$0xff] %vm1145, %v2672
        %2737 = vst.msk [vmem:[#allocation3 + $0xd0] sm:$0xff] %vm1145, %v2673
        %2738 = vst.msk [vmem:[#allocation3 + $0xd8] sm:$0xff] %vm1145, %v2674
        %2739 = vst.msk [vmem:[#allocation3 + $0xe0] sm:$0xff] %vm1145, %v2675
        %2740 = vst.msk [vmem:[#allocation3 + $0xe8] sm:$0xff] %vm1145, %v2676
        %2741 = vst.msk [vmem:[#allocation3 + $0xf0] sm:$0xff] %vm1145, %v2677
        %2742 = vst.msk [vmem:[#allocation3 + $0xf8] sm:$0xff] %vm1145, %v2678
        %2743 = vst.msk [vmem:[#allocation3 + $0x100] sm:$0xff] %vm1145, %v2679
        %2744 = vst.msk [vmem:[#allocation3 + $0x108] sm:$0xff] %vm1145, %v2680
        %2745 = vst.msk [vmem:[#allocation3 + $0x110] sm:$0xff] %vm1145, %v2681
        %2746 = vst.msk [vmem:[#allocation3 + $0x118] sm:$0xff] %vm1145, %v2682
        %2747 = vst.msk [vmem:[#allocation3 + $0x120] sm:$0xff] %vm1145, %v2683
        %2748 = vst.msk [vmem:[#allocation3 + $0x128] sm:$0xff] %vm1145, %v2684
        %2749 = vst.msk [vmem:[#allocation3 + $0x130] sm:$0xff] %vm1145, %v2685
        %2750 = vst.msk [vmem:[#allocation3 + $0x138] sm:$0xff] %vm1145, %v2686
        %2751 = vst.msk [vmem:[#allocation3 + $0x140] sm:$0xff] %vm1145, %v2687
        %2752 = vst.msk [vmem:[#allocation3 + $0x148] sm:$0xff] %vm1145, %v2688
        %2753 = vst.msk [vmem:[#allocation3 + $0x150] sm:$0xff] %vm1145, %v2689
        %2754 = vst.msk [vmem:[#allocation3 + $0x158] sm:$0xff] %vm1145, %v2690
        %2755 = vst.msk [vmem:[#allocation3 + $0x160] sm:$0xff] %vm1145, %v2691
        %2756 = vst.msk [vmem:[#allocation3 + $0x168] sm:$0xff] %vm1145, %v2692
        %2757 = vst.msk [vmem:[#allocation3 + $0x170] sm:$0xff] %vm1145, %v2693
        %2758 = vst.msk [vmem:[#allocation3 + $0x178] sm:$0xff] %vm1145, %v2694
        %2759 = vst.msk [vmem:[#allocation3 + $0x180] sm:$0xff] %vm1145, %v2695
        %2760 = vst.msk [vmem:[#allocation3 + $0x188] sm:$0xff] %vm1145, %v2696
        %2761 = vst.msk [vmem:[#allocation3 + $0x190] sm:$0xff] %vm1145, %v2697
        %2762 = vst.msk [vmem:[#allocation3 + $0x198] sm:$0xff] %vm1145, %v2698
        %2763 = vst.msk [vmem:[#allocation3 + $0x1a0] sm:$0xff] %vm1145, %v2699
        %2764 = vst.msk [vmem:[#allocation3 + $0x1a8] sm:$0xff] %vm1145, %v2700
        %2765 = vst.msk [vmem:[#allocation3 + $0x1b0] sm:$0xff] %vm1145, %v2701
        %2766 = vst.msk [vmem:[#allocation3 + $0x1b8] sm:$0xff] %vm1145, %v2702
        %2767 = vst.msk [vmem:[#allocation3 + $0x1c0] sm:$0xff] %vm1145, %v2703
        %2768 = vst.msk [vmem:[#allocation3 + $0x1c8] sm:$0xff] %vm1145, %v2704
        %2769 = vst.msk [vmem:[#allocation3 + $0x1d0] sm:$0xff] %vm1145, %v2705
        %2770 = vst.msk [vmem:[#allocation3 + $0x1d8] sm:$0xff] %vm1145, %v2706
        %2771 = vst.msk [vmem:[#allocation3 + $0x1e0] sm:$0xff] %vm1145, %v2707
        %2772 = vst.msk [vmem:[#allocation3 + $0x1e8] sm:$0xff] %vm1145, %v2708
        %2773 = vst.msk [vmem:[#allocation3 + $0x1f0] sm:$0xff] %vm1145, %v2709
        %2774 = vst.msk [vmem:[#allocation3 + $0x1f8] sm:$0xff] %vm1145, %v2710
        %s2775 = sld [smem:[#allocation8 + $0x3]]
        %s2776 = sld [smem:[#allocation8 + $0x5]]
        %v2777 = vstv %s2775
        %v2778 = vmul.f32 %v2777, %v1210
        %v2779 = vmul.f32 %v2777, %v1211
        %v2780 = vmul.f32 %v2777, %v1212
        %v2781 = vmul.f32 %v2777, %v1213
        %v2782 = vmul.f32 %v2777, %v1214
        %v2783 = vmul.f32 %v2777, %v1215
        %v2784 = vmul.f32 %v2777, %v1216
        %v2785 = vmul.f32 %v2777, %v1217
        %v2786 = vmul.f32 %v2777, %v1218
        %v2787 = vmul.f32 %v2777, %v1219
        %v2788 = vmul.f32 %v2777, %v1220
        %v2789 = vmul.f32 %v2777, %v1221
        %v2790 = vmul.f32 %v2777, %v1222
        %v2791 = vmul.f32 %v2777, %v1223
        %v2792 = vmul.f32 %v2777, %v1224
        %v2793 = vmul.f32 %v2777, %v1225
        %v2794 = vmul.f32 %v2777, %v1226
        %v2795 = vmul.f32 %v2777, %v1227
        %v2796 = vmul.f32 %v2777, %v1228
        %v2797 = vmul.f32 %v2777, %v1229
        %v2798 = vmul.f32 %v2777, %v1230
        %v2799 = vmul.f32 %v2777, %v1231
        %v2800 = vmul.f32 %v2777, %v1232
        %v2801 = vmul.f32 %v2777, %v1233
        %v2802 = vmul.f32 %v2777, %v1234
        %v2803 = vmul.f32 %v2777, %v1235
        %v2804 = vmul.f32 %v2777, %v1236
        %v2805 = vmul.f32 %v2777, %v1237
        %v2806 = vmul.f32 %v2777, %v1238
        %v2807 = vmul.f32 %v2777, %v1239
        %v2808 = vmul.f32 %v2777, %v1240
        %v2809 = vmul.f32 %v2777, %v1241
        %v2810 = vmul.f32 %v2777, %v1242
        %v2811 = vmul.f32 %v2777, %v1243
        %v2812 = vmul.f32 %v2777, %v1244
        %v2813 = vmul.f32 %v2777, %v1245
        %v2814 = vmul.f32 %v2777, %v1246
        %v2815 = vmul.f32 %v2777, %v1247
        %v2816 = vmul.f32 %v2777, %v1248
        %v2817 = vmul.f32 %v2777, %v1249
        %v2818 = vmul.f32 %v2777, %v1250
        %v2819 = vmul.f32 %v2777, %v1251
        %v2820 = vmul.f32 %v2777, %v1252
        %v2821 = vmul.f32 %v2777, %v1253
        %v2822 = vmul.f32 %v2777, %v1254
        %v2823 = vmul.f32 %v2777, %v1255
        %v2824 = vmul.f32 %v2777, %v1256
        %v2825 = vmul.f32 %v2777, %v1257
        %v2826 = vmul.f32 %v2777, %v1258
        %v2827 = vmul.f32 %v2777, %v1259
        %v2828 = vmul.f32 %v2777, %v1260
        %v2829 = vmul.f32 %v2777, %v1261
        %v2830 = vmul.f32 %v2777, %v1262
        %v2831 = vmul.f32 %v2777, %v1263
        %v2832 = vmul.f32 %v2777, %v1264
        %v2833 = vmul.f32 %v2777, %v1265
        %v2834 = vmul.f32 %v2777, %v1266
        %v2835 = vmul.f32 %v2777, %v1267
        %v2836 = vmul.f32 %v2777, %v1268
        %v2837 = vmul.f32 %v2777, %v1269
        %v2838 = vmul.f32 %v2777, %v1270
        %v2839 = vmul.f32 %v2777, %v1271
        %v2840 = vmul.f32 %v2777, %v1272
        %v2841 = vmul.f32 %v2777, %v1273
        %v2842 = vstv %s2776
        %v2843 = vmul.f32 %v2842, %v1725
        %v2844 = vmul.f32 %v2842, %v1727
        %v2845 = vmul.f32 %v2842, %v1730
        %v2846 = vmul.f32 %v2842, %v1732
        %v2847 = vmul.f32 %v2842, %v1735
        %v2848 = vmul.f32 %v2842, %v1737
        %v2849 = vmul.f32 %v2842, %v1740
        %v2850 = vmul.f32 %v2842, %v1742
        %v2851 = vmul.f32 %v2842, %v1745
        %v2852 = vmul.f32 %v2842, %v1747
        %v2853 = vmul.f32 %v2842, %v1750
        %v2854 = vmul.f32 %v2842, %v1752
        %v2855 = vmul.f32 %v2842, %v1755
        %v2856 = vmul.f32 %v2842, %v1757
        %v2857 = vmul.f32 %v2842, %v1760
        %v2858 = vmul.f32 %v2842, %v1762
        %v2859 = vmul.f32 %v2842, %v1765
        %v2860 = vmul.f32 %v2842, %v1767
        %v2861 = vmul.f32 %v2842, %v1770
        %v2862 = vmul.f32 %v2842, %v1772
        %v2863 = vmul.f32 %v2842, %v1775
        %v2864 = vmul.f32 %v2842, %v1777
        %v2865 = vmul.f32 %v2842, %v1780
        %v2866 = vmul.f32 %v2842, %v1782
        %v2867 = vmul.f32 %v2842, %v1785
        %v2868 = vmul.f32 %v2842, %v1787
        %v2869 = vmul.f32 %v2842, %v1790
        %v2870 = vmul.f32 %v2842, %v1792
        %v2871 = vmul.f32 %v2842, %v1795
        %v2872 = vmul.f32 %v2842, %v1797
        %v2873 = vmul.f32 %v2842, %v1800
        %v2874 = vmul.f32 %v2842, %v1802
        %v2875 = vmul.f32 %v2842, %v1999
        %v2876 = vmul.f32 %v2842, %v2001
        %v2877 = vmul.f32 %v2842, %v2004
        %v2878 = vmul.f32 %v2842, %v2006
        %v2879 = vmul.f32 %v2842, %v2009
        %v2880 = vmul.f32 %v2842, %v2011
        %v2881 = vmul.f32 %v2842, %v2014
        %v2882 = vmul.f32 %v2842, %v2016
        %v2883 = vmul.f32 %v2842, %v2019
        %v2884 = vmul.f32 %v2842, %v2021
        %v2885 = vmul.f32 %v2842, %v2024
        %v2886 = vmul.f32 %v2842, %v2026
        %v2887 = vmul.f32 %v2842, %v2029
        %v2888 = vmul.f32 %v2842, %v2031
        %v2889 = vmul.f32 %v2842, %v2034
        %v2890 = vmul.f32 %v2842, %v2036
        %v2891 = vmul.f32 %v2842, %v2039
        %v2892 = vmul.f32 %v2842, %v2041
        %v2893 = vmul.f32 %v2842, %v2044
        %v2894 = vmul.f32 %v2842, %v2046
        %v2895 = vmul.f32 %v2842, %v2049
        %v2896 = vmul.f32 %v2842, %v2051
        %v2897 = vmul.f32 %v2842, %v2054
        %v2898 = vmul.f32 %v2842, %v2056
        %v2899 = vmul.f32 %v2842, %v2059
        %v2900 = vmul.f32 %v2842, %v2061
        %v2901 = vmul.f32 %v2842, %v2064
        %v2902 = vmul.f32 %v2842, %v2066
        %v2903 = vmul.f32 %v2842, %v2069
        %v2904 = vmul.f32 %v2842, %v2071
        %v2905 = vmul.f32 %v2842, %v2074
        %v2906 = vmul.f32 %v2842, %v2076
        %v2907 = vadd.f32 %v2778, %v2843
        %v2908 = vadd.f32 %v2779, %v2844
        %v2909 = vadd.f32 %v2780, %v2845
        %v2910 = vadd.f32 %v2781, %v2846
        %v2911 = vadd.f32 %v2782, %v2847
        %v2912 = vadd.f32 %v2783, %v2848
        %v2913 = vadd.f32 %v2784, %v2849
        %v2914 = vadd.f32 %v2785, %v2850
        %v2915 = vadd.f32 %v2786, %v2851
        %v2916 = vadd.f32 %v2787, %v2852
        %v2917 = vadd.f32 %v2788, %v2853
        %v2918 = vadd.f32 %v2789, %v2854
        %v2919 = vadd.f32 %v2790, %v2855
        %v2920 = vadd.f32 %v2791, %v2856
        %v2921 = vadd.f32 %v2792, %v2857
        %v2922 = vadd.f32 %v2793, %v2858
        %v2923 = vadd.f32 %v2794, %v2859
        %v2924 = vadd.f32 %v2795, %v2860
        %v2925 = vadd.f32 %v2796, %v2861
        %v2926 = vadd.f32 %v2797, %v2862
        %v2927 = vadd.f32 %v2798, %v2863
        %v2928 = vadd.f32 %v2799, %v2864
        %v2929 = vadd.f32 %v2800, %v2865
        %v2930 = vadd.f32 %v2801, %v2866
        %v2931 = vadd.f32 %v2802, %v2867
        %v2932 = vadd.f32 %v2803, %v2868
        %v2933 = vadd.f32 %v2804, %v2869
        %v2934 = vadd.f32 %v2805, %v2870
        %v2935 = vadd.f32 %v2806, %v2871
        %v2936 = vadd.f32 %v2807, %v2872
        %v2937 = vadd.f32 %v2808, %v2873
        %v2938 = vadd.f32 %v2809, %v2874
        %v2939 = vadd.f32 %v2810, %v2875
        %v2940 = vadd.f32 %v2811, %v2876
        %v2941 = vadd.f32 %v2812, %v2877
        %v2942 = vadd.f32 %v2813, %v2878
        %v2943 = vadd.f32 %v2814, %v2879
        %v2944 = vadd.f32 %v2815, %v2880
        %v2945 = vadd.f32 %v2816, %v2881
        %v2946 = vadd.f32 %v2817, %v2882
        %v2947 = vadd.f32 %v2818, %v2883
        %v2948 = vadd.f32 %v2819, %v2884
        %v2949 = vadd.f32 %v2820, %v2885
        %v2950 = vadd.f32 %v2821, %v2886
        %v2951 = vadd.f32 %v2822, %v2887
        %v2952 = vadd.f32 %v2823, %v2888
        %v2953 = vadd.f32 %v2824, %v2889
        %v2954 = vadd.f32 %v2825, %v2890
        %v2955 = vadd.f32 %v2826, %v2891
        %v2956 = vadd.f32 %v2827, %v2892
        %v2957 = vadd.f32 %v2828, %v2893
        %v2958 = vadd.f32 %v2829, %v2894
        %v2959 = vadd.f32 %v2830, %v2895
        %v2960 = vadd.f32 %v2831, %v2896
        %v2961 = vadd.f32 %v2832, %v2897
        %v2962 = vadd.f32 %v2833, %v2898
        %v2963 = vadd.f32 %v2834, %v2899
        %v2964 = vadd.f32 %v2835, %v2900
        %v2965 = vadd.f32 %v2836, %v2901
        %v2966 = vadd.f32 %v2837, %v2902
        %v2967 = vadd.f32 %v2838, %v2903
        %v2968 = vadd.f32 %v2839, %v2904
        %v2969 = vadd.f32 %v2840, %v2905
        %v2970 = vadd.f32 %v2841, %v2906
        %3035 = vrot.lane.b32.xlu0 %v2292, 112
        %v3036 = vpop.permute.xlu0 %3035
        %3037 = vrot.lane.b32.xlu0 %v2294, 112
        %v3038 = vpop.permute.xlu0 %3037
        %3039 = vrot.lane.b32.xlu0 %v2297, 112
        %v3040 = vpop.permute.xlu0 %3039
        %3041 = vrot.lane.b32.xlu0 %v2299, 112
        %v3042 = vpop.permute.xlu0 %3041
        %3043 = vrot.lane.b32.xlu0 %v2302, 112
        %v3044 = vpop.permute.xlu0 %3043
        %3045 = vrot.lane.b32.xlu0 %v2304, 112
        %v3046 = vpop.permute.xlu0 %3045
        %3047 = vrot.lane.b32.xlu0 %v2307, 112
        %v3048 = vpop.permute.xlu0 %3047
        %3049 = vrot.lane.b32.xlu0 %v2309, 112
        %v3050 = vpop.permute.xlu0 %3049
        %3051 = vrot.lane.b32.xlu0 %v2312, 112
        %v3052 = vpop.permute.xlu0 %3051
        %3053 = vrot.lane.b32.xlu0 %v2314, 112
        %v3054 = vpop.permute.xlu0 %3053
        %3055 = vrot.lane.b32.xlu0 %v2317, 112
        %v3056 = vpop.permute.xlu0 %3055
        %3057 = vrot.lane.b32.xlu0 %v2319, 112
        %v3058 = vpop.permute.xlu0 %3057
        %3059 = vrot.lane.b32.xlu0 %v2322, 112
        %v3060 = vpop.permute.xlu0 %3059
        %3061 = vrot.lane.b32.xlu0 %v2324, 112
        %v3062 = vpop.permute.xlu0 %3061
        %3063 = vrot.lane.b32.xlu0 %v2327, 112
        %v3064 = vpop.permute.xlu0 %3063
        %3065 = vrot.lane.b32.xlu0 %v2329, 112
        %v3066 = vpop.permute.xlu0 %3065
        %3067 = vrot.lane.b32.xlu0 %v2332, 112
        %v3068 = vpop.permute.xlu0 %3067
        %3069 = vrot.lane.b32.xlu0 %v2334, 112
        %v3070 = vpop.permute.xlu0 %3069
        %3071 = vrot.lane.b32.xlu0 %v2337, 112
        %v3072 = vpop.permute.xlu0 %3071
        %3073 = vrot.lane.b32.xlu0 %v2339, 112
        %v3074 = vpop.permute.xlu0 %3073
        %3075 = vrot.lane.b32.xlu0 %v2342, 112
        %v3076 = vpop.permute.xlu0 %3075
        %3077 = vrot.lane.b32.xlu0 %v2344, 112
        %v3078 = vpop.permute.xlu0 %3077
        %3079 = vrot.lane.b32.xlu0 %v2347, 112
        %v3080 = vpop.permute.xlu0 %3079
        %3081 = vrot.lane.b32.xlu0 %v2349, 112
        %v3082 = vpop.permute.xlu0 %3081
        %3083 = vrot.lane.b32.xlu0 %v2352, 112
        %v3084 = vpop.permute.xlu0 %3083
        %3085 = vrot.lane.b32.xlu0 %v2354, 112
        %v3086 = vpop.permute.xlu0 %3085
        %3087 = vrot.lane.b32.xlu0 %v2357, 112
        %v3088 = vpop.permute.xlu0 %3087
        %3089 = vrot.lane.b32.xlu0 %v2359, 112
        %v3090 = vpop.permute.xlu0 %3089
        %3091 = vrot.lane.b32.xlu0 %v2362, 112
        %v3092 = vpop.permute.xlu0 %3091
        %3093 = vrot.lane.b32.xlu0 %v2364, 112
        %v3094 = vpop.permute.xlu0 %3093
        %3095 = vrot.lane.b32.xlu0 %v2367, 112
        %v3096 = vpop.permute.xlu0 %3095
        %3097 = vrot.lane.b32.xlu0 %v2369, 112
        %v3098 = vpop.permute.xlu0 %3097
        %3099 = vrot.lane.b32.xlu0 %v2372, 112
        %v3100 = vpop.permute.xlu0 %3099
        %3101 = vrot.lane.b32.xlu0 %v2374, 112
        %v3102 = vpop.permute.xlu0 %3101
        %3103 = vrot.lane.b32.xlu0 %v2377, 112
        %v3104 = vpop.permute.xlu0 %3103
        %3105 = vrot.lane.b32.xlu0 %v2379, 112
        %v3106 = vpop.permute.xlu0 %3105
        %3107 = vrot.lane.b32.xlu0 %v2382, 112
        %v3108 = vpop.permute.xlu0 %3107
        %3109 = vrot.lane.b32.xlu0 %v2384, 112
        %v3110 = vpop.permute.xlu0 %3109
        %3111 = vrot.lane.b32.xlu0 %v2387, 112
        %v3112 = vpop.permute.xlu0 %3111
        %3113 = vrot.lane.b32.xlu0 %v2389, 112
        %v3114 = vpop.permute.xlu0 %3113
        %3115 = vrot.lane.b32.xlu0 %v2392, 112
        %v3116 = vpop.permute.xlu0 %3115
        %3117 = vrot.lane.b32.xlu0 %v2394, 112
        %v3118 = vpop.permute.xlu0 %3117
        %3119 = vrot.lane.b32.xlu0 %v2397, 112
        %v3120 = vpop.permute.xlu0 %3119
        %3121 = vrot.lane.b32.xlu0 %v2399, 112
        %v3122 = vpop.permute.xlu0 %3121
        %3123 = vrot.lane.b32.xlu0 %v2402, 112
        %v3124 = vpop.permute.xlu0 %3123
        %3125 = vrot.lane.b32.xlu0 %v2404, 112
        %v3126 = vpop.permute.xlu0 %3125
        %3127 = vrot.lane.b32.xlu0 %v2407, 112
        %v3128 = vpop.permute.xlu0 %3127
        %3129 = vrot.lane.b32.xlu0 %v2409, 112
        %v3130 = vpop.permute.xlu0 %3129
        %3131 = vrot.lane.b32.xlu0 %v2412, 112
        %v3132 = vpop.permute.xlu0 %3131
        %3133 = vrot.lane.b32.xlu0 %v2414, 112
        %v3134 = vpop.permute.xlu0 %3133
        %3135 = vrot.lane.b32.xlu0 %v2417, 112
        %v3136 = vpop.permute.xlu0 %3135
        %3137 = vrot.lane.b32.xlu0 %v2419, 112
        %v3138 = vpop.permute.xlu0 %3137
        %3139 = vrot.lane.b32.xlu0 %v2422, 112
        %v3140 = vpop.permute.xlu0 %3139
        %3141 = vrot.lane.b32.xlu0 %v2424, 112
        %v3142 = vpop.permute.xlu0 %3141
        %3143 = vrot.lane.b32.xlu0 %v2427, 112
        %v3144 = vpop.permute.xlu0 %3143
        %3145 = vrot.lane.b32.xlu0 %v2429, 112
        %v3146 = vpop.permute.xlu0 %3145
        %3147 = vrot.lane.b32.xlu0 %v2432, 112
        %v3148 = vpop.permute.xlu0 %3147
        %3149 = vrot.lane.b32.xlu0 %v2434, 112
        %v3150 = vpop.permute.xlu0 %3149
        %3151 = vrot.lane.b32.xlu0 %v2437, 112
        %v3152 = vpop.permute.xlu0 %3151
        %3153 = vrot.lane.b32.xlu0 %v2439, 112
        %v3154 = vpop.permute.xlu0 %3153
        %3155 = vrot.lane.b32.xlu0 %v2442, 112
        %v3156 = vpop.permute.xlu0 %3155
        %3157 = vrot.lane.b32.xlu0 %v2444, 112
        %v3158 = vpop.permute.xlu0 %3157
        %3159 = vrot.lane.b32.xlu0 %v2447, 112
        %v3160 = vpop.permute.xlu0 %3159
        %3161 = vrot.lane.b32.xlu0 %v2449, 112
        %v3162 = vpop.permute.xlu0 %3161
        %v3227 = vadd.f32 %v2907, %v3036
        %v3228 = vadd.f32 %v2908, %v3038
        %v3229 = vadd.f32 %v2909, %v3040
        %v3230 = vadd.f32 %v2910, %v3042
        %v3231 = vadd.f32 %v2911, %v3044
        %v3232 = vadd.f32 %v2912, %v3046
        %v3233 = vadd.f32 %v2913, %v3048
        %v3234 = vadd.f32 %v2914, %v3050
        %v3235 = vadd.f32 %v2915, %v3052
        %v3236 = vadd.f32 %v2916, %v3054
        %v3237 = vadd.f32 %v2917, %v3056
        %v3238 = vadd.f32 %v2918, %v3058
        %v3239 = vadd.f32 %v2919, %v3060
        %v3240 = vadd.f32 %v2920, %v3062
        %v3241 = vadd.f32 %v2921, %v3064
        %v3242 = vadd.f32 %v2922, %v3066
        %v3243 = vadd.f32 %v2923, %v3068
        %v3244 = vadd.f32 %v2924, %v3070
        %v3245 = vadd.f32 %v2925, %v3072
        %v3246 = vadd.f32 %v2926, %v3074
        %v3247 = vadd.f32 %v2927, %v3076
        %v3248 = vadd.f32 %v2928, %v3078
        %v3249 = vadd.f32 %v2929, %v3080
        %v3250 = vadd.f32 %v2930, %v3082
        %v3251 = vadd.f32 %v2931, %v3084
        %v3252 = vadd.f32 %v2932, %v3086
        %v3253 = vadd.f32 %v2933, %v3088
        %v3254 = vadd.f32 %v2934, %v3090
        %v3255 = vadd.f32 %v2935, %v3092
        %v3256 = vadd.f32 %v2936, %v3094
        %v3257 = vadd.f32 %v2937, %v3096
        %v3258 = vadd.f32 %v2938, %v3098
        %v3259 = vadd.f32 %v2939, %v3100
        %v3260 = vadd.f32 %v2940, %v3102
        %v3261 = vadd.f32 %v2941, %v3104
        %v3262 = vadd.f32 %v2942, %v3106
        %v3263 = vadd.f32 %v2943, %v3108
        %v3264 = vadd.f32 %v2944, %v3110
        %v3265 = vadd.f32 %v2945, %v3112
        %v3266 = vadd.f32 %v2946, %v3114
        %v3267 = vadd.f32 %v2947, %v3116
        %v3268 = vadd.f32 %v2948, %v3118
        %v3269 = vadd.f32 %v2949, %v3120
        %v3270 = vadd.f32 %v2950, %v3122
        %v3271 = vadd.f32 %v2951, %v3124
        %v3272 = vadd.f32 %v2952, %v3126
        %v3273 = vadd.f32 %v2953, %v3128
        %v3274 = vadd.f32 %v2954, %v3130
        %v3275 = vadd.f32 %v2955, %v3132
        %v3276 = vadd.f32 %v2956, %v3134
        %v3277 = vadd.f32 %v2957, %v3136
        %v3278 = vadd.f32 %v2958, %v3138
        %v3279 = vadd.f32 %v2959, %v3140
        %v3280 = vadd.f32 %v2960, %v3142
        %v3281 = vadd.f32 %v2961, %v3144
        %v3282 = vadd.f32 %v2962, %v3146
        %v3283 = vadd.f32 %v2963, %v3148
        %v3284 = vadd.f32 %v2964, %v3150
        %v3285 = vadd.f32 %v2965, %v3152
        %v3286 = vadd.f32 %v2966, %v3154
        %v3287 = vadd.f32 %v2967, %v3156
        %v3288 = vadd.f32 %v2968, %v3158
        %v3289 = vadd.f32 %v2969, %v3160
        %v3290 = vadd.f32 %v2970, %v3162
        %v3291 = vld [vmem:[%s18] sm:$0xff]
        %v3292 = vld [vmem:[%s18 + $0x8] sm:$0xff]
        %v3293 = vld [vmem:[%s18 + $0x10] sm:$0xff]
        %v3294 = vld [vmem:[%s18 + $0x18] sm:$0xff]
        %v3295 = vld [vmem:[%s18 + $0x20] sm:$0xff]
        %v3296 = vld [vmem:[%s18 + $0x28] sm:$0xff]
        %v3297 = vld [vmem:[%s18 + $0x30] sm:$0xff]
        %v3298 = vld [vmem:[%s18 + $0x38] sm:$0xff]
        %v3299 = vpack.c.bf16 %v3227, %v3227
        %v3300 = vpack.c.bf16 %v3228, %v3228
        %v3301 = vpack.c.bf16 %v3229, %v3229
        %v3302 = vpack.c.bf16 %v3230, %v3230
        %v3303 = vpack.c.bf16 %v3231, %v3231
        %v3304 = vpack.c.bf16 %v3232, %v3232
        %v3305 = vpack.c.bf16 %v3233, %v3233
        %v3306 = vpack.c.bf16 %v3234, %v3234
        %v3307 = vpack.c.bf16 %v3235, %v3235
        %v3308 = vpack.c.bf16 %v3236, %v3236
        %v3309 = vpack.c.bf16 %v3237, %v3237
        %v3310 = vpack.c.bf16 %v3238, %v3238
        %v3311 = vpack.c.bf16 %v3239, %v3239
        %v3312 = vpack.c.bf16 %v3240, %v3240
        %v3313 = vpack.c.bf16 %v3241, %v3241
        %v3314 = vpack.c.bf16 %v3242, %v3242
        %v3315 = vpack.c.bf16 %v3243, %v3243
        %v3316 = vpack.c.bf16 %v3244, %v3244
        %v3317 = vpack.c.bf16 %v3245, %v3245
        %v3318 = vpack.c.bf16 %v3246, %v3246
        %v3319 = vpack.c.bf16 %v3247, %v3247
        %v3320 = vpack.c.bf16 %v3248, %v3248
        %v3321 = vpack.c.bf16 %v3249, %v3249
        %v3322 = vpack.c.bf16 %v3250, %v3250
        %v3323 = vpack.c.bf16 %v3251, %v3251
        %v3324 = vpack.c.bf16 %v3252, %v3252
        %v3325 = vpack.c.bf16 %v3253, %v3253
        %v3326 = vpack.c.bf16 %v3254, %v3254
        %v3327 = vpack.c.bf16 %v3255, %v3255
        %v3328 = vpack.c.bf16 %v3256, %v3256
        %v3329 = vpack.c.bf16 %v3257, %v3257
        %v3330 = vpack.c.bf16 %v3258, %v3258
        %v3331 = vpack.c.bf16 %v3259, %v3259
        %v3332 = vpack.c.bf16 %v3260, %v3260
        %v3333 = vpack.c.bf16 %v3261, %v3261
        %v3334 = vpack.c.bf16 %v3262, %v3262
        %v3335 = vpack.c.bf16 %v3263, %v3263
        %v3336 = vpack.c.bf16 %v3264, %v3264
        %v3337 = vpack.c.bf16 %v3265, %v3265
        %v3338 = vpack.c.bf16 %v3266, %v3266
        %v3339 = vpack.c.bf16 %v3267, %v3267
        %v3340 = vpack.c.bf16 %v3268, %v3268
        %v3341 = vpack.c.bf16 %v3269, %v3269
        %v3342 = vpack.c.bf16 %v3270, %v3270
        %v3343 = vpack.c.bf16 %v3271, %v3271
        %v3344 = vpack.c.bf16 %v3272, %v3272
        %v3345 = vpack.c.bf16 %v3273, %v3273
        %v3346 = vpack.c.bf16 %v3274, %v3274
        %v3347 = vpack.c.bf16 %v3275, %v3275
        %v3348 = vpack.c.bf16 %v3276, %v3276
        %v3349 = vpack.c.bf16 %v3277, %v3277
        %v3350 = vpack.c.bf16 %v3278, %v3278
        %v3351 = vpack.c.bf16 %v3279, %v3279
        %v3352 = vpack.c.bf16 %v3280, %v3280
        %v3353 = vpack.c.bf16 %v3281, %v3281
        %v3354 = vpack.c.bf16 %v3282, %v3282
        %v3355 = vpack.c.bf16 %v3283, %v3283
        %v3356 = vpack.c.bf16 %v3284, %v3284
        %v3357 = vpack.c.bf16 %v3285, %v3285
        %v3358 = vpack.c.bf16 %v3286, %v3286
        %v3359 = vpack.c.bf16 %v3287, %v3287
        %v3360 = vpack.c.bf16 %v3288, %v3288
        %v3361 = vpack.c.bf16 %v3289, %v3289
        %v3362 = vpack.c.bf16 %v3290, %v3290
        %v3371 = vunpack.c.l.b16 %v3291
        %v3372 = vunpack.c.h.b16 %v3291
        %v3373 = vunpack.c.l.b16 %v3292
        %v3374 = vunpack.c.h.b16 %v3292
        %v3375 = vunpack.c.l.b16 %v3293
        %v3376 = vunpack.c.h.b16 %v3293
        %v3377 = vunpack.c.l.b16 %v3294
        %v3378 = vunpack.c.h.b16 %v3294
        %v3379 = vunpack.c.l.b16 %v3295
        %v3380 = vunpack.c.h.b16 %v3295
        %v3381 = vunpack.c.l.b16 %v3296
        %v3382 = vunpack.c.h.b16 %v3296
        %v3383 = vunpack.c.l.b16 %v3297
        %v3384 = vunpack.c.h.b16 %v3297
        %v3385 = vunpack.c.l.b16 %v3298
        %v3386 = vunpack.c.h.b16 %v3298
        %v3387 = vpack.c.b16 %v3373, %v3371
        %v3388 = vpack.c.b16 %v3374, %v3372
        %v3389 = vpack.c.b16 %v3377, %v3375
        %v3390 = vpack.c.b16 %v3378, %v3376
        %v3391 = vpack.c.b16 %v3381, %v3379
        %v3392 = vpack.c.b16 %v3382, %v3380
        %v3393 = vpack.c.b16 %v3385, %v3383
        %v3394 = vpack.c.b16 %v3386, %v3384
        %v3435 = vunpack.c.l.b16 %v3299
        %v3436 = vunpack.c.l.b16 %v3300
        %v3437 = vunpack.c.l.b16 %v3301
        %v3438 = vunpack.c.l.b16 %v3302
        %v3439 = vunpack.c.l.b16 %v3303
        %v3440 = vunpack.c.l.b16 %v3304
        %v3441 = vunpack.c.l.b16 %v3305
        %v3442 = vunpack.c.l.b16 %v3306
        %v3443 = vunpack.c.l.b16 %v3307
        %v3444 = vunpack.c.l.b16 %v3308
        %v3445 = vunpack.c.l.b16 %v3309
        %v3446 = vunpack.c.l.b16 %v3310
        %v3447 = vunpack.c.l.b16 %v3311
        %v3448 = vunpack.c.l.b16 %v3312
        %v3449 = vunpack.c.l.b16 %v3313
        %v3450 = vunpack.c.l.b16 %v3314
        %v3451 = vunpack.c.l.b16 %v3315
        %v3452 = vunpack.c.l.b16 %v3316
        %v3453 = vunpack.c.l.b16 %v3317
        %v3454 = vunpack.c.l.b16 %v3318
        %v3455 = vunpack.c.l.b16 %v3319
        %v3456 = vunpack.c.l.b16 %v3320
        %v3457 = vunpack.c.l.b16 %v3321
        %v3458 = vunpack.c.l.b16 %v3322
        %v3459 = vunpack.c.l.b16 %v3323
        %v3460 = vunpack.c.l.b16 %v3324
        %v3461 = vunpack.c.l.b16 %v3325
        %v3462 = vunpack.c.l.b16 %v3326
        %v3463 = vunpack.c.l.b16 %v3327
        %v3464 = vunpack.c.l.b16 %v3328
        %v3465 = vunpack.c.l.b16 %v3329
        %v3466 = vunpack.c.l.b16 %v3330
        %v3467 = vpack.c.b16 %v3436, %v3435
        %v3468 = vpack.c.b16 %v3438, %v3437
        %v3469 = vpack.c.b16 %v3440, %v3439
        %v3470 = vpack.c.b16 %v3442, %v3441
        %v3471 = vpack.c.b16 %v3444, %v3443
        %v3472 = vpack.c.b16 %v3446, %v3445
        %v3473 = vpack.c.b16 %v3448, %v3447
        %v3474 = vpack.c.b16 %v3450, %v3449
        %v3475 = vpack.c.b16 %v3452, %v3451
        %v3476 = vpack.c.b16 %v3454, %v3453
        %v3477 = vpack.c.b16 %v3456, %v3455
        %v3478 = vpack.c.b16 %v3458, %v3457
        %v3479 = vpack.c.b16 %v3460, %v3459
        %v3480 = vpack.c.b16 %v3462, %v3461
        %v3481 = vpack.c.b16 %v3464, %v3463
        %v3482 = vpack.c.b16 %v3466, %v3465
        %3499 = vmatpush.bf16.msra.mxu0 %v3474
        %3500 = vmatpush.bf16.msra.mxu0 %v3473
        %3501 = vmatpush.bf16.msra.mxu0 %v3472
        %3502 = vmatpush.bf16.msra.mxu0 %v3471
        %3503 = vmatpush.bf16.msra.mxu0 %v3470
        %3504 = vmatpush.bf16.msra.mxu0 %v3469
        %3505 = vmatpush.bf16.msra.mxu0 %v3468
        %3506 = vmatpush.bf16.msra.mxu0 %v3467
        %3507 = vmatmul.bf16.gmra.mxu0 %v3387
        %v3508 = vpop.f32.mrf.mxu0
        %v3509 = vadd.f32 0.0, %v3508
        %v3510 = vpop.f32.mrf.mxu0
        %v3511 = vadd.f32 0.0, %v3510
        %3512 = vmatmul.bf16.gmra.mxu0 %v3389
        %v3513 = vpop.f32.mrf.mxu0
        %v3514 = vadd.f32 0.0, %v3513
        %v3515 = vpop.f32.mrf.mxu0
        %v3516 = vadd.f32 0.0, %v3515
        %3517 = vmatmul.bf16.gmra.mxu0 %v3391
        %v3518 = vpop.f32.mrf.mxu0
        %v3519 = vadd.f32 0.0, %v3518
        %v3520 = vpop.f32.mrf.mxu0
        %v3521 = vadd.f32 0.0, %v3520
        %3522 = vmatmul.bf16.gmra.mxu0 %v3393
        %v3523 = vpop.f32.mrf.mxu0
        %v3524 = vadd.f32 0.0, %v3523
        %v3525 = vpop.f32.mrf.mxu0
        %v3526 = vadd.f32 0.0, %v3525
        %3527 = vdwg.mxu0
        %3528 = vmatpush.bf16.msra.mxu0 %v3482
        %3529 = vmatpush.bf16.msra.mxu0 %v3481
        %3530 = vmatpush.bf16.msra.mxu0 %v3480
        %3531 = vmatpush.bf16.msra.mxu0 %v3479
        %3532 = vmatpush.bf16.msra.mxu0 %v3478
        %3533 = vmatpush.bf16.msra.mxu0 %v3477
        %3534 = vmatpush.bf16.msra.mxu0 %v3476
        %3535 = vmatpush.bf16.msra.mxu0 %v3475
        %3536 = vmatmul.bf16.gmra.mxu0 %v3388
        %v3537 = vpop.f32.mrf.mxu0
        %v3538 = vadd.f32 %v3509, %v3537
        %v3539 = vpop.f32.mrf.mxu0
        %v3540 = vadd.f32 %v3511, %v3539
        %3541 = vmatmul.bf16.gmra.mxu0 %v3390
        %v3542 = vpop.f32.mrf.mxu0
        %v3543 = vadd.f32 %v3514, %v3542
        %v3544 = vpop.f32.mrf.mxu0
        %v3545 = vadd.f32 %v3516, %v3544
        %3546 = vmatmul.bf16.gmra.mxu0 %v3392
        %v3547 = vpop.f32.mrf.mxu0
        %v3548 = vadd.f32 %v3519, %v3547
        %v3549 = vpop.f32.mrf.mxu0
        %v3550 = vadd.f32 %v3521, %v3549
        %3551 = vmatmul.bf16.gmra.mxu0 %v3394
        %v3552 = vpop.f32.mrf.mxu0
        %v3553 = vadd.f32 %v3524, %v3552
        %v3554 = vpop.f32.mrf.mxu0
        %v3555 = vadd.f32 %v3526, %v3554
        %3556 = vdwg.mxu0
        %v3589 = vunpack.c.l.b16 %v3331
        %v3590 = vunpack.c.l.b16 %v3332
        %v3591 = vunpack.c.l.b16 %v3333
        %v3592 = vunpack.c.l.b16 %v3334
        %v3593 = vunpack.c.l.b16 %v3335
        %v3594 = vunpack.c.l.b16 %v3336
        %v3595 = vunpack.c.l.b16 %v3337
        %v3596 = vunpack.c.l.b16 %v3338
        %v3597 = vunpack.c.l.b16 %v3339
        %v3598 = vunpack.c.l.b16 %v3340
        %v3599 = vunpack.c.l.b16 %v3341
        %v3600 = vunpack.c.l.b16 %v3342
        %v3601 = vunpack.c.l.b16 %v3343
        %v3602 = vunpack.c.l.b16 %v3344
        %v3603 = vunpack.c.l.b16 %v3345
        %v3604 = vunpack.c.l.b16 %v3346
        %v3605 = vunpack.c.l.b16 %v3347
        %v3606 = vunpack.c.l.b16 %v3348
        %v3607 = vunpack.c.l.b16 %v3349
        %v3608 = vunpack.c.l.b16 %v3350
        %v3609 = vunpack.c.l.b16 %v3351
        %v3610 = vunpack.c.l.b16 %v3352
        %v3611 = vunpack.c.l.b16 %v3353
        %v3612 = vunpack.c.l.b16 %v3354
        %v3613 = vunpack.c.l.b16 %v3355
        %v3614 = vunpack.c.l.b16 %v3356
        %v3615 = vunpack.c.l.b16 %v3357
        %v3616 = vunpack.c.l.b16 %v3358
        %v3617 = vunpack.c.l.b16 %v3359
        %v3618 = vunpack.c.l.b16 %v3360
        %v3619 = vunpack.c.l.b16 %v3361
        %v3620 = vunpack.c.l.b16 %v3362
        %v3621 = vpack.c.b16 %v3590, %v3589
        %v3622 = vpack.c.b16 %v3592, %v3591
        %v3623 = vpack.c.b16 %v3594, %v3593
        %v3624 = vpack.c.b16 %v3596, %v3595
        %v3625 = vpack.c.b16 %v3598, %v3597
        %v3626 = vpack.c.b16 %v3600, %v3599
        %v3627 = vpack.c.b16 %v3602, %v3601
        %v3628 = vpack.c.b16 %v3604, %v3603
        %v3629 = vpack.c.b16 %v3606, %v3605
        %v3630 = vpack.c.b16 %v3608, %v3607
        %v3631 = vpack.c.b16 %v3610, %v3609
        %v3632 = vpack.c.b16 %v3612, %v3611
        %v3633 = vpack.c.b16 %v3614, %v3613
        %v3634 = vpack.c.b16 %v3616, %v3615
        %v3635 = vpack.c.b16 %v3618, %v3617
        %v3636 = vpack.c.b16 %v3620, %v3619
        %3653 = vmatpush.bf16.msra.mxu0 %v3628
        %3654 = vmatpush.bf16.msra.mxu0 %v3627
        %3655 = vmatpush.bf16.msra.mxu0 %v3626
        %3656 = vmatpush.bf16.msra.mxu0 %v3625
        %3657 = vmatpush.bf16.msra.mxu0 %v3624
        %3658 = vmatpush.bf16.msra.mxu0 %v3623
        %3659 = vmatpush.bf16.msra.mxu0 %v3622
        %3660 = vmatpush.bf16.msra.mxu0 %v3621
        %3661 = vmatmul.bf16.gmra.mxu0 %v3387
        %v3662 = vpop.f32.mrf.mxu0
        %v3663 = vadd.f32 0.0, %v3662
        %v3664 = vpop.f32.mrf.mxu0
        %v3665 = vadd.f32 0.0, %v3664
        %3666 = vmatmul.bf16.gmra.mxu0 %v3389
        %v3667 = vpop.f32.mrf.mxu0
        %v3668 = vadd.f32 0.0, %v3667
        %v3669 = vpop.f32.mrf.mxu0
        %v3670 = vadd.f32 0.0, %v3669
        %3671 = vmatmul.bf16.gmra.mxu0 %v3391
        %v3672 = vpop.f32.mrf.mxu0
        %v3673 = vadd.f32 0.0, %v3672
        %v3674 = vpop.f32.mrf.mxu0
        %v3675 = vadd.f32 0.0, %v3674
        %3676 = vmatmul.bf16.gmra.mxu0 %v3393
        %v3677 = vpop.f32.mrf.mxu0
        %v3678 = vadd.f32 0.0, %v3677
        %v3679 = vpop.f32.mrf.mxu0
        %v3680 = vadd.f32 0.0, %v3679
        %3681 = vdwg.mxu0
        %3682 = vmatpush.bf16.msra.mxu0 %v3636
        %3683 = vmatpush.bf16.msra.mxu0 %v3635
        %3684 = vmatpush.bf16.msra.mxu0 %v3634
        %3685 = vmatpush.bf16.msra.mxu0 %v3633
        %3686 = vmatpush.bf16.msra.mxu0 %v3632
        %3687 = vmatpush.bf16.msra.mxu0 %v3631
        %3688 = vmatpush.bf16.msra.mxu0 %v3630
        %3689 = vmatpush.bf16.msra.mxu0 %v3629
        %3690 = vmatmul.bf16.gmra.mxu0 %v3388
        %v3691 = vpop.f32.mrf.mxu0
        %v3692 = vadd.f32 %v3663, %v3691
        %v3693 = vpop.f32.mrf.mxu0
        %v3694 = vadd.f32 %v3665, %v3693
        %3695 = vmatmul.bf16.gmra.mxu0 %v3390
        %v3696 = vpop.f32.mrf.mxu0
        %v3697 = vadd.f32 %v3668, %v3696
        %v3698 = vpop.f32.mrf.mxu0
        %v3699 = vadd.f32 %v3670, %v3698
        %3700 = vmatmul.bf16.gmra.mxu0 %v3392
        %v3701 = vpop.f32.mrf.mxu0
        %v3702 = vadd.f32 %v3673, %v3701
        %v3703 = vpop.f32.mrf.mxu0
        %v3704 = vadd.f32 %v3675, %v3703
        %3705 = vmatmul.bf16.gmra.mxu0 %v3394
        %v3706 = vpop.f32.mrf.mxu0
        %v3707 = vadd.f32 %v3678, %v3706
        %v3708 = vpop.f32.mrf.mxu0
        %v3709 = vadd.f32 %v3680, %v3708
        %3710 = vdwg.mxu0
        %3711 = vst.msk [vmem:[#allocation4] sm:$0xff] %vm1145, %v3538
        %3712 = vst.msk [vmem:[#allocation4 + $0x8] sm:$0xff] %vm1145, %v3540
        %3713 = vst.msk [vmem:[#allocation4 + $0x10] sm:$0xff] %vm1145, %v3543
        %3714 = vst.msk [vmem:[#allocation4 + $0x18] sm:$0xff] %vm1145, %v3545
        %3715 = vst.msk [vmem:[#allocation4 + $0x20] sm:$0xff] %vm1145, %v3548
        %3716 = vst.msk [vmem:[#allocation4 + $0x28] sm:$0xff] %vm1145, %v3550
        %3717 = vst.msk [vmem:[#allocation4 + $0x30] sm:$0xff] %vm1145, %v3553
        %3718 = vst.msk [vmem:[#allocation4 + $0x38] sm:$0xff] %vm1145, %v3555
        %3719 = vst.msk [vmem:[#allocation4 + $0x40] sm:$0xff] %vm1145, %v3692
        %3720 = vst.msk [vmem:[#allocation4 + $0x48] sm:$0xff] %vm1145, %v3694
        %3721 = vst.msk [vmem:[#allocation4 + $0x50] sm:$0xff] %vm1145, %v3697
        %3722 = vst.msk [vmem:[#allocation4 + $0x58] sm:$0xff] %vm1145, %v3699
        %3723 = vst.msk [vmem:[#allocation4 + $0x60] sm:$0xff] %vm1145, %v3702
        %3724 = vst.msk [vmem:[#allocation4 + $0x68] sm:$0xff] %vm1145, %v3704
        %3725 = vst.msk [vmem:[#allocation4 + $0x70] sm:$0xff] %vm1145, %v3707
        %3726 = vst.msk [vmem:[#allocation4 + $0x78] sm:$0xff] %vm1145, %v3709
        %s3727 = sld [smem:[#allocation8 + $0x12]]
        %s3728 = sld [smem:[#allocation8 + $0x14]]
        %v3729 = vstv %s3727
        %v3730 = vmul.f32 %v3729, %v1210
        %v3731 = vmul.f32 %v3729, %v1211
        %v3732 = vmul.f32 %v3729, %v1212
        %v3733 = vmul.f32 %v3729, %v1213
        %v3734 = vmul.f32 %v3729, %v1214
        %v3735 = vmul.f32 %v3729, %v1215
        %v3736 = vmul.f32 %v3729, %v1216
        %v3737 = vmul.f32 %v3729, %v1217
        %v3738 = vmul.f32 %v3729, %v1218
        %v3739 = vmul.f32 %v3729, %v1219
        %v3740 = vmul.f32 %v3729, %v1220
        %v3741 = vmul.f32 %v3729, %v1221
        %v3742 = vmul.f32 %v3729, %v1222
        %v3743 = vmul.f32 %v3729, %v1223
        %v3744 = vmul.f32 %v3729, %v1224
        %v3745 = vmul.f32 %v3729, %v1225
        %v3746 = vmul.f32 %v3729, %v1226
        %v3747 = vmul.f32 %v3729, %v1227
        %v3748 = vmul.f32 %v3729, %v1228
        %v3749 = vmul.f32 %v3729, %v1229
        %v3750 = vmul.f32 %v3729, %v1230
        %v3751 = vmul.f32 %v3729, %v1231
        %v3752 = vmul.f32 %v3729, %v1232
        %v3753 = vmul.f32 %v3729, %v1233
        %v3754 = vmul.f32 %v3729, %v1234
        %v3755 = vmul.f32 %v3729, %v1235
        %v3756 = vmul.f32 %v3729, %v1236
        %v3757 = vmul.f32 %v3729, %v1237
        %v3758 = vmul.f32 %v3729, %v1238
        %v3759 = vmul.f32 %v3729, %v1239
        %v3760 = vmul.f32 %v3729, %v1240
        %v3761 = vmul.f32 %v3729, %v1241
        %v3762 = vmul.f32 %v3729, %v1242
        %v3763 = vmul.f32 %v3729, %v1243
        %v3764 = vmul.f32 %v3729, %v1244
        %v3765 = vmul.f32 %v3729, %v1245
        %v3766 = vmul.f32 %v3729, %v1246
        %v3767 = vmul.f32 %v3729, %v1247
        %v3768 = vmul.f32 %v3729, %v1248
        %v3769 = vmul.f32 %v3729, %v1249
        %v3770 = vmul.f32 %v3729, %v1250
        %v3771 = vmul.f32 %v3729, %v1251
        %v3772 = vmul.f32 %v3729, %v1252
        %v3773 = vmul.f32 %v3729, %v1253
        %v3774 = vmul.f32 %v3729, %v1254
        %v3775 = vmul.f32 %v3729, %v1255
        %v3776 = vmul.f32 %v3729, %v1256
        %v3777 = vmul.f32 %v3729, %v1257
        %v3778 = vmul.f32 %v3729, %v1258
        %v3779 = vmul.f32 %v3729, %v1259
        %v3780 = vmul.f32 %v3729, %v1260
        %v3781 = vmul.f32 %v3729, %v1261
        %v3782 = vmul.f32 %v3729, %v1262
        %v3783 = vmul.f32 %v3729, %v1263
        %v3784 = vmul.f32 %v3729, %v1264
        %v3785 = vmul.f32 %v3729, %v1265
        %v3786 = vmul.f32 %v3729, %v1266
        %v3787 = vmul.f32 %v3729, %v1267
        %v3788 = vmul.f32 %v3729, %v1268
        %v3789 = vmul.f32 %v3729, %v1269
        %v3790 = vmul.f32 %v3729, %v1270
        %v3791 = vmul.f32 %v3729, %v1271
        %v3792 = vmul.f32 %v3729, %v1272
        %v3793 = vmul.f32 %v3729, %v1273
        %v3794 = vstv %s3728
        %v3795 = vmul.f32 %v3794, %v1725
        %v3796 = vmul.f32 %v3794, %v1727
        %v3797 = vmul.f32 %v3794, %v1730
        %v3798 = vmul.f32 %v3794, %v1732
        %v3799 = vmul.f32 %v3794, %v1735
        %v3800 = vmul.f32 %v3794, %v1737
        %v3801 = vmul.f32 %v3794, %v1740
        %v3802 = vmul.f32 %v3794, %v1742
        %v3803 = vmul.f32 %v3794, %v1745
        %v3804 = vmul.f32 %v3794, %v1747
        %v3805 = vmul.f32 %v3794, %v1750
        %v3806 = vmul.f32 %v3794, %v1752
        %v3807 = vmul.f32 %v3794, %v1755
        %v3808 = vmul.f32 %v3794, %v1757
        %v3809 = vmul.f32 %v3794, %v1760
        %v3810 = vmul.f32 %v3794, %v1762
        %v3811 = vmul.f32 %v3794, %v1765
        %v3812 = vmul.f32 %v3794, %v1767
        %v3813 = vmul.f32 %v3794, %v1770
        %v3814 = vmul.f32 %v3794, %v1772
        %v3815 = vmul.f32 %v3794, %v1775
        %v3816 = vmul.f32 %v3794, %v1777
        %v3817 = vmul.f32 %v3794, %v1780
        %v3818 = vmul.f32 %v3794, %v1782
        %v3819 = vmul.f32 %v3794, %v1785
        %v3820 = vmul.f32 %v3794, %v1787
        %v3821 = vmul.f32 %v3794, %v1790
        %v3822 = vmul.f32 %v3794, %v1792
        %v3823 = vmul.f32 %v3794, %v1795
        %v3824 = vmul.f32 %v3794, %v1797
        %v3825 = vmul.f32 %v3794, %v1800
        %v3826 = vmul.f32 %v3794, %v1802
        %v3827 = vmul.f32 %v3794, %v1999
        %v3828 = vmul.f32 %v3794, %v2001
        %v3829 = vmul.f32 %v3794, %v2004
        %v3830 = vmul.f32 %v3794, %v2006
        %v3831 = vmul.f32 %v3794, %v2009
        %v3832 = vmul.f32 %v3794, %v2011
        %v3833 = vmul.f32 %v3794, %v2014
        %v3834 = vmul.f32 %v3794, %v2016
        %v3835 = vmul.f32 %v3794, %v2019
        %v3836 = vmul.f32 %v3794, %v2021
        %v3837 = vmul.f32 %v3794, %v2024
        %v3838 = vmul.f32 %v3794, %v2026
        %v3839 = vmul.f32 %v3794, %v2029
        %v3840 = vmul.f32 %v3794, %v2031
        %v3841 = vmul.f32 %v3794, %v2034
        %v3842 = vmul.f32 %v3794, %v2036
        %v3843 = vmul.f32 %v3794, %v2039
        %v3844 = vmul.f32 %v3794, %v2041
        %v3845 = vmul.f32 %v3794, %v2044
        %v3846 = vmul.f32 %v3794, %v2046
        %v3847 = vmul.f32 %v3794, %v2049
        %v3848 = vmul.f32 %v3794, %v2051
        %v3849 = vmul.f32 %v3794, %v2054
        %v3850 = vmul.f32 %v3794, %v2056
        %v3851 = vmul.f32 %v3794, %v2059
        %v3852 = vmul.f32 %v3794, %v2061
        %v3853 = vmul.f32 %v3794, %v2064
        %v3854 = vmul.f32 %v3794, %v2066
        %v3855 = vmul.f32 %v3794, %v2069
        %v3856 = vmul.f32 %v3794, %v2071
        %v3857 = vmul.f32 %v3794, %v2074
        %v3858 = vmul.f32 %v3794, %v2076
        %v3859 = vadd.f32 %v3730, %v3795
        %v3860 = vadd.f32 %v3731, %v3796
        %v3861 = vadd.f32 %v3732, %v3797
        %v3862 = vadd.f32 %v3733, %v3798
        %v3863 = vadd.f32 %v3734, %v3799
        %v3864 = vadd.f32 %v3735, %v3800
        %v3865 = vadd.f32 %v3736, %v3801
        %v3866 = vadd.f32 %v3737, %v3802
        %v3867 = vadd.f32 %v3738, %v3803
        %v3868 = vadd.f32 %v3739, %v3804
        %v3869 = vadd.f32 %v3740, %v3805
        %v3870 = vadd.f32 %v3741, %v3806
        %v3871 = vadd.f32 %v3742, %v3807
        %v3872 = vadd.f32 %v3743, %v3808
        %v3873 = vadd.f32 %v3744, %v3809
        %v3874 = vadd.f32 %v3745, %v3810
        %v3875 = vadd.f32 %v3746, %v3811
        %v3876 = vadd.f32 %v3747, %v3812
        %v3877 = vadd.f32 %v3748, %v3813
        %v3878 = vadd.f32 %v3749, %v3814
        %v3879 = vadd.f32 %v3750, %v3815
        %v3880 = vadd.f32 %v3751, %v3816
        %v3881 = vadd.f32 %v3752, %v3817
        %v3882 = vadd.f32 %v3753, %v3818
        %v3883 = vadd.f32 %v3754, %v3819
        %v3884 = vadd.f32 %v3755, %v3820
        %v3885 = vadd.f32 %v3756, %v3821
        %v3886 = vadd.f32 %v3757, %v3822
        %v3887 = vadd.f32 %v3758, %v3823
        %v3888 = vadd.f32 %v3759, %v3824
        %v3889 = vadd.f32 %v3760, %v3825
        %v3890 = vadd.f32 %v3761, %v3826
        %v3891 = vadd.f32 %v3762, %v3827
        %v3892 = vadd.f32 %v3763, %v3828
        %v3893 = vadd.f32 %v3764, %v3829
        %v3894 = vadd.f32 %v3765, %v3830
        %v3895 = vadd.f32 %v3766, %v3831
        %v3896 = vadd.f32 %v3767, %v3832
        %v3897 = vadd.f32 %v3768, %v3833
        %v3898 = vadd.f32 %v3769, %v3834
        %v3899 = vadd.f32 %v3770, %v3835
        %v3900 = vadd.f32 %v3771, %v3836
        %v3901 = vadd.f32 %v3772, %v3837
        %v3902 = vadd.f32 %v3773, %v3838
        %v3903 = vadd.f32 %v3774, %v3839
        %v3904 = vadd.f32 %v3775, %v3840
        %v3905 = vadd.f32 %v3776, %v3841
        %v3906 = vadd.f32 %v3777, %v3842
        %v3907 = vadd.f32 %v3778, %v3843
        %v3908 = vadd.f32 %v3779, %v3844
        %v3909 = vadd.f32 %v3780, %v3845
        %v3910 = vadd.f32 %v3781, %v3846
        %v3911 = vadd.f32 %v3782, %v3847
        %v3912 = vadd.f32 %v3783, %v3848
        %v3913 = vadd.f32 %v3784, %v3849
        %v3914 = vadd.f32 %v3785, %v3850
        %v3915 = vadd.f32 %v3786, %v3851
        %v3916 = vadd.f32 %v3787, %v3852
        %v3917 = vadd.f32 %v3788, %v3853
        %v3918 = vadd.f32 %v3789, %v3854
        %v3919 = vadd.f32 %v3790, %v3855
        %v3920 = vadd.f32 %v3791, %v3856
        %v3921 = vadd.f32 %v3792, %v3857
        %v3922 = vadd.f32 %v3793, %v3858
        %3923 = vrot.lane.b32.xlu0 %v2292, 96
        %v3924 = vpop.permute.xlu0 %3923
        %3925 = vrot.lane.b32.xlu0 %v2294, 96
        %v3926 = vpop.permute.xlu0 %3925
        %3927 = vrot.lane.b32.xlu0 %v2297, 96
        %v3928 = vpop.permute.xlu0 %3927
        %3929 = vrot.lane.b32.xlu0 %v2299, 96
        %v3930 = vpop.permute.xlu0 %3929
        %3931 = vrot.lane.b32.xlu0 %v2302, 96
        %v3932 = vpop.permute.xlu0 %3931
        %3933 = vrot.lane.b32.xlu0 %v2304, 96
        %v3934 = vpop.permute.xlu0 %3933
        %3935 = vrot.lane.b32.xlu0 %v2307, 96
        %v3936 = vpop.permute.xlu0 %3935
        %3937 = vrot.lane.b32.xlu0 %v2309, 96
        %v3938 = vpop.permute.xlu0 %3937
        %3939 = vrot.lane.b32.xlu0 %v2312, 96
        %v3940 = vpop.permute.xlu0 %3939
        %3941 = vrot.lane.b32.xlu0 %v2314, 96
        %v3942 = vpop.permute.xlu0 %3941
        %3943 = vrot.lane.b32.xlu0 %v2317, 96
        %v3944 = vpop.permute.xlu0 %3943
        %3945 = vrot.lane.b32.xlu0 %v2319, 96
        %v3946 = vpop.permute.xlu0 %3945
        %3947 = vrot.lane.b32.xlu0 %v2322, 96
        %v3948 = vpop.permute.xlu0 %3947
        %3949 = vrot.lane.b32.xlu0 %v2324, 96
        %v3950 = vpop.permute.xlu0 %3949
        %3951 = vrot.lane.b32.xlu0 %v2327, 96
        %v3952 = vpop.permute.xlu0 %3951
        %3953 = vrot.lane.b32.xlu0 %v2329, 96
        %v3954 = vpop.permute.xlu0 %3953
        %3955 = vrot.lane.b32.xlu0 %v2332, 96
        %v3956 = vpop.permute.xlu0 %3955
        %3957 = vrot.lane.b32.xlu0 %v2334, 96
        %v3958 = vpop.permute.xlu0 %3957
        %3959 = vrot.lane.b32.xlu0 %v2337, 96
        %v3960 = vpop.permute.xlu0 %3959
        %3961 = vrot.lane.b32.xlu0 %v2339, 96
        %v3962 = vpop.permute.xlu0 %3961
        %3963 = vrot.lane.b32.xlu0 %v2342, 96
        %v3964 = vpop.permute.xlu0 %3963
        %3965 = vrot.lane.b32.xlu0 %v2344, 96
        %v3966 = vpop.permute.xlu0 %3965
        %3967 = vrot.lane.b32.xlu0 %v2347, 96
        %v3968 = vpop.permute.xlu0 %3967
        %3969 = vrot.lane.b32.xlu0 %v2349, 96
        %v3970 = vpop.permute.xlu0 %3969
        %3971 = vrot.lane.b32.xlu0 %v2352, 96
        %v3972 = vpop.permute.xlu0 %3971
        %3973 = vrot.lane.b32.xlu0 %v2354, 96
        %v3974 = vpop.permute.xlu0 %3973
        %3975 = vrot.lane.b32.xlu0 %v2357, 96
        %v3976 = vpop.permute.xlu0 %3975
        %3977 = vrot.lane.b32.xlu0 %v2359, 96
        %v3978 = vpop.permute.xlu0 %3977
        %3979 = vrot.lane.b32.xlu0 %v2362, 96
        %v3980 = vpop.permute.xlu0 %3979
        %3981 = vrot.lane.b32.xlu0 %v2364, 96
        %v3982 = vpop.permute.xlu0 %3981
        %3983 = vrot.lane.b32.xlu0 %v2367, 96
        %v3984 = vpop.permute.xlu0 %3983
        %3985 = vrot.lane.b32.xlu0 %v2369, 96
        %v3986 = vpop.permute.xlu0 %3985
        %3987 = vrot.lane.b32.xlu0 %v2372, 96
        %v3988 = vpop.permute.xlu0 %3987
        %3989 = vrot.lane.b32.xlu0 %v2374, 96
        %v3990 = vpop.permute.xlu0 %3989
        %3991 = vrot.lane.b32.xlu0 %v2377, 96
        %v3992 = vpop.permute.xlu0 %3991
        %3993 = vrot.lane.b32.xlu0 %v2379, 96
        %v3994 = vpop.permute.xlu0 %3993
        %3995 = vrot.lane.b32.xlu0 %v2382, 96
        %v3996 = vpop.permute.xlu0 %3995
        %3997 = vrot.lane.b32.xlu0 %v2384, 96
        %v3998 = vpop.permute.xlu0 %3997
        %3999 = vrot.lane.b32.xlu0 %v2387, 96
        %v4000 = vpop.permute.xlu0 %3999
        %4001 = vrot.lane.b32.xlu0 %v2389, 96
        %v4002 = vpop.permute.xlu0 %4001
        %4003 = vrot.lane.b32.xlu0 %v2392, 96
        %v4004 = vpop.permute.xlu0 %4003
        %4005 = vrot.lane.b32.xlu0 %v2394, 96
        %v4006 = vpop.permute.xlu0 %4005
        %4007 = vrot.lane.b32.xlu0 %v2397, 96
        %v4008 = vpop.permute.xlu0 %4007
        %4009 = vrot.lane.b32.xlu0 %v2399, 96
        %v4010 = vpop.permute.xlu0 %4009
        %4011 = vrot.lane.b32.xlu0 %v2402, 96
        %v4012 = vpop.permute.xlu0 %4011
        %4013 = vrot.lane.b32.xlu0 %v2404, 96
        %v4014 = vpop.permute.xlu0 %4013
        %4015 = vrot.lane.b32.xlu0 %v2407, 96
        %v4016 = vpop.permute.xlu0 %4015
        %4017 = vrot.lane.b32.xlu0 %v2409, 96
        %v4018 = vpop.permute.xlu0 %4017
        %4019 = vrot.lane.b32.xlu0 %v2412, 96
        %v4020 = vpop.permute.xlu0 %4019
        %4021 = vrot.lane.b32.xlu0 %v2414, 96
        %v4022 = vpop.permute.xlu0 %4021
        %4023 = vrot.lane.b32.xlu0 %v2417, 96
        %v4024 = vpop.permute.xlu0 %4023
        %4025 = vrot.lane.b32.xlu0 %v2419, 96
        %v4026 = vpop.permute.xlu0 %4025
        %4027 = vrot.lane.b32.xlu0 %v2422, 96
        %v4028 = vpop.permute.xlu0 %4027
        %4029 = vrot.lane.b32.xlu0 %v2424, 96
        %v4030 = vpop.permute.xlu0 %4029
        %4031 = vrot.lane.b32.xlu0 %v2427, 96
        %v4032 = vpop.permute.xlu0 %4031
        %4033 = vrot.lane.b32.xlu0 %v2429, 96
        %v4034 = vpop.permute.xlu0 %4033
        %4035 = vrot.lane.b32.xlu0 %v2432, 96
        %v4036 = vpop.permute.xlu0 %4035
        %4037 = vrot.lane.b32.xlu0 %v2434, 96
        %v4038 = vpop.permute.xlu0 %4037
        %4039 = vrot.lane.b32.xlu0 %v2437, 96
        %v4040 = vpop.permute.xlu0 %4039
        %4041 = vrot.lane.b32.xlu0 %v2439, 96
        %v4042 = vpop.permute.xlu0 %4041
        %4043 = vrot.lane.b32.xlu0 %v2442, 96
        %v4044 = vpop.permute.xlu0 %4043
        %4045 = vrot.lane.b32.xlu0 %v2444, 96
        %v4046 = vpop.permute.xlu0 %4045
        %4047 = vrot.lane.b32.xlu0 %v2447, 96
        %v4048 = vpop.permute.xlu0 %4047
        %4049 = vrot.lane.b32.xlu0 %v2449, 96
        %v4050 = vpop.permute.xlu0 %4049
        %v4115 = vadd.f32 %v3859, %v3924
        %v4116 = vadd.f32 %v3860, %v3926
        %v4117 = vadd.f32 %v3861, %v3928
        %v4118 = vadd.f32 %v3862, %v3930
        %v4119 = vadd.f32 %v3863, %v3932
        %v4120 = vadd.f32 %v3864, %v3934
        %v4121 = vadd.f32 %v3865, %v3936
        %v4122 = vadd.f32 %v3866, %v3938
        %v4123 = vadd.f32 %v3867, %v3940
        %v4124 = vadd.f32 %v3868, %v3942
        %v4125 = vadd.f32 %v3869, %v3944
        %v4126 = vadd.f32 %v3870, %v3946
        %v4127 = vadd.f32 %v3871, %v3948
        %v4128 = vadd.f32 %v3872, %v3950
        %v4129 = vadd.f32 %v3873, %v3952
        %v4130 = vadd.f32 %v3874, %v3954
        %v4131 = vadd.f32 %v3875, %v3956
        %v4132 = vadd.f32 %v3876, %v3958
        %v4133 = vadd.f32 %v3877, %v3960
        %v4134 = vadd.f32 %v3878, %v3962
        %v4135 = vadd.f32 %v3879, %v3964
        %v4136 = vadd.f32 %v3880, %v3966
        %v4137 = vadd.f32 %v3881, %v3968
        %v4138 = vadd.f32 %v3882, %v3970
        %v4139 = vadd.f32 %v3883, %v3972
        %v4140 = vadd.f32 %v3884, %v3974
        %v4141 = vadd.f32 %v3885, %v3976
        %v4142 = vadd.f32 %v3886, %v3978
        %v4143 = vadd.f32 %v3887, %v3980
        %v4144 = vadd.f32 %v3888, %v3982
        %v4145 = vadd.f32 %v3889, %v3984
        %v4146 = vadd.f32 %v3890, %v3986
        %v4147 = vadd.f32 %v3891, %v3988
        %v4148 = vadd.f32 %v3892, %v3990
        %v4149 = vadd.f32 %v3893, %v3992
        %v4150 = vadd.f32 %v3894, %v3994
        %v4151 = vadd.f32 %v3895, %v3996
        %v4152 = vadd.f32 %v3896, %v3998
        %v4153 = vadd.f32 %v3897, %v4000
        %v4154 = vadd.f32 %v3898, %v4002
        %v4155 = vadd.f32 %v3899, %v4004
        %v4156 = vadd.f32 %v3900, %v4006
        %v4157 = vadd.f32 %v3901, %v4008
        %v4158 = vadd.f32 %v3902, %v4010
        %v4159 = vadd.f32 %v3903, %v4012
        %v4160 = vadd.f32 %v3904, %v4014
        %v4161 = vadd.f32 %v3905, %v4016
        %v4162 = vadd.f32 %v3906, %v4018
        %v4163 = vadd.f32 %v3907, %v4020
        %v4164 = vadd.f32 %v3908, %v4022
        %v4165 = vadd.f32 %v3909, %v4024
        %v4166 = vadd.f32 %v3910, %v4026
        %v4167 = vadd.f32 %v3911, %v4028
        %v4168 = vadd.f32 %v3912, %v4030
        %v4169 = vadd.f32 %v3913, %v4032
        %v4170 = vadd.f32 %v3914, %v4034
        %v4171 = vadd.f32 %v3915, %v4036
        %v4172 = vadd.f32 %v3916, %v4038
        %v4173 = vadd.f32 %v3917, %v4040
        %v4174 = vadd.f32 %v3918, %v4042
        %v4175 = vadd.f32 %v3919, %v4044
        %v4176 = vadd.f32 %v3920, %v4046
        %v4177 = vadd.f32 %v3921, %v4048
        %v4178 = vadd.f32 %v3922, %v4050
        %s4179 = sld [smem:[#allocation8 + $0x1e]]
        %s4180 = sld [smem:[#allocation8 + $0x20]]
        %v4181 = vstv %s4179
        %v4182 = vmul.f32 %v4181, %v1210
        %v4183 = vmul.f32 %v4181, %v1211
        %v4184 = vmul.f32 %v4181, %v1212
        %v4185 = vmul.f32 %v4181, %v1213
        %v4186 = vmul.f32 %v4181, %v1214
        %v4187 = vmul.f32 %v4181, %v1215
        %v4188 = vmul.f32 %v4181, %v1216
        %v4189 = vmul.f32 %v4181, %v1217
        %v4190 = vmul.f32 %v4181, %v1218
        %v4191 = vmul.f32 %v4181, %v1219
        %v4192 = vmul.f32 %v4181, %v1220
        %v4193 = vmul.f32 %v4181, %v1221
        %v4194 = vmul.f32 %v4181, %v1222
        %v4195 = vmul.f32 %v4181, %v1223
        %v4196 = vmul.f32 %v4181, %v1224
        %v4197 = vmul.f32 %v4181, %v1225
        %v4198 = vmul.f32 %v4181, %v1226
        %v4199 = vmul.f32 %v4181, %v1227
        %v4200 = vmul.f32 %v4181, %v1228
        %v4201 = vmul.f32 %v4181, %v1229
        %v4202 = vmul.f32 %v4181, %v1230
        %v4203 = vmul.f32 %v4181, %v1231
        %v4204 = vmul.f32 %v4181, %v1232
        %v4205 = vmul.f32 %v4181, %v1233
        %v4206 = vmul.f32 %v4181, %v1234
        %v4207 = vmul.f32 %v4181, %v1235
        %v4208 = vmul.f32 %v4181, %v1236
        %v4209 = vmul.f32 %v4181, %v1237
        %v4210 = vmul.f32 %v4181, %v1238
        %v4211 = vmul.f32 %v4181, %v1239
        %v4212 = vmul.f32 %v4181, %v1240
        %v4213 = vmul.f32 %v4181, %v1241
        %v4214 = vmul.f32 %v4181, %v1242
        %v4215 = vmul.f32 %v4181, %v1243
        %v4216 = vmul.f32 %v4181, %v1244
        %v4217 = vmul.f32 %v4181, %v1245
        %v4218 = vmul.f32 %v4181, %v1246
        %v4219 = vmul.f32 %v4181, %v1247
        %v4220 = vmul.f32 %v4181, %v1248
        %v4221 = vmul.f32 %v4181, %v1249
        %v4222 = vmul.f32 %v4181, %v1250
        %v4223 = vmul.f32 %v4181, %v1251
        %v4224 = vmul.f32 %v4181, %v1252
        %v4225 = vmul.f32 %v4181, %v1253
        %v4226 = vmul.f32 %v4181, %v1254
        %v4227 = vmul.f32 %v4181, %v1255
        %v4228 = vmul.f32 %v4181, %v1256
        %v4229 = vmul.f32 %v4181, %v1257
        %v4230 = vmul.f32 %v4181, %v1258
        %v4231 = vmul.f32 %v4181, %v1259
        %v4232 = vmul.f32 %v4181, %v1260
        %v4233 = vmul.f32 %v4181, %v1261
        %v4234 = vmul.f32 %v4181, %v1262
        %v4235 = vmul.f32 %v4181, %v1263
        %v4236 = vmul.f32 %v4181, %v1264
        %v4237 = vmul.f32 %v4181, %v1265
        %v4238 = vmul.f32 %v4181, %v1266
        %v4239 = vmul.f32 %v4181, %v1267
        %v4240 = vmul.f32 %v4181, %v1268
        %v4241 = vmul.f32 %v4181, %v1269
        %v4242 = vmul.f32 %v4181, %v1270
        %v4243 = vmul.f32 %v4181, %v1271
        %v4244 = vmul.f32 %v4181, %v1272
        %v4245 = vmul.f32 %v4181, %v1273
        %v4246 = vstv %s4180
        %v4247 = vmul.f32 %v4246, %v1725
        %v4248 = vmul.f32 %v4246, %v1727
        %v4249 = vmul.f32 %v4246, %v1730
        %v4250 = vmul.f32 %v4246, %v1732
        %v4251 = vmul.f32 %v4246, %v1735
        %v4252 = vmul.f32 %v4246, %v1737
        %v4253 = vmul.f32 %v4246, %v1740
        %v4254 = vmul.f32 %v4246, %v1742
        %v4255 = vmul.f32 %v4246, %v1745
        %v4256 = vmul.f32 %v4246, %v1747
        %v4257 = vmul.f32 %v4246, %v1750
        %v4258 = vmul.f32 %v4246, %v1752
        %v4259 = vmul.f32 %v4246, %v1755
        %v4260 = vmul.f32 %v4246, %v1757
        %v4261 = vmul.f32 %v4246, %v1760
        %v4262 = vmul.f32 %v4246, %v1762
        %v4263 = vmul.f32 %v4246, %v1765
        %v4264 = vmul.f32 %v4246, %v1767
        %v4265 = vmul.f32 %v4246, %v1770
        %v4266 = vmul.f32 %v4246, %v1772
        %v4267 = vmul.f32 %v4246, %v1775
        %v4268 = vmul.f32 %v4246, %v1777
        %v4269 = vmul.f32 %v4246, %v1780
        %v4270 = vmul.f32 %v4246, %v1782
        %v4271 = vmul.f32 %v4246, %v1785
        %v4272 = vmul.f32 %v4246, %v1787
        %v4273 = vmul.f32 %v4246, %v1790
        %v4274 = vmul.f32 %v4246, %v1792
        %v4275 = vmul.f32 %v4246, %v1795
        %v4276 = vmul.f32 %v4246, %v1797
        %v4277 = vmul.f32 %v4246, %v1800
        %v4278 = vmul.f32 %v4246, %v1802
        %v4279 = vmul.f32 %v4246, %v1999
        %v4280 = vmul.f32 %v4246, %v2001
        %v4281 = vmul.f32 %v4246, %v2004
        %v4282 = vmul.f32 %v4246, %v2006
        %v4283 = vmul.f32 %v4246, %v2009
        %v4284 = vmul.f32 %v4246, %v2011
        %v4285 = vmul.f32 %v4246, %v2014
        %v4286 = vmul.f32 %v4246, %v2016
        %v4287 = vmul.f32 %v4246, %v2019
        %v4288 = vmul.f32 %v4246, %v2021
        %v4289 = vmul.f32 %v4246, %v2024
        %v4290 = vmul.f32 %v4246, %v2026
        %v4291 = vmul.f32 %v4246, %v2029
        %v4292 = vmul.f32 %v4246, %v2031
        %v4293 = vmul.f32 %v4246, %v2034
        %v4294 = vmul.f32 %v4246, %v2036
        %v4295 = vmul.f32 %v4246, %v2039
        %v4296 = vmul.f32 %v4246, %v2041
        %v4297 = vmul.f32 %v4246, %v2044
        %v4298 = vmul.f32 %v4246, %v2046
        %v4299 = vmul.f32 %v4246, %v2049
        %v4300 = vmul.f32 %v4246, %v2051
        %v4301 = vmul.f32 %v4246, %v2054
        %v4302 = vmul.f32 %v4246, %v2056
        %v4303 = vmul.f32 %v4246, %v2059
        %v4304 = vmul.f32 %v4246, %v2061
        %v4305 = vmul.f32 %v4246, %v2064
        %v4306 = vmul.f32 %v4246, %v2066
        %v4307 = vmul.f32 %v4246, %v2069
        %v4308 = vmul.f32 %v4246, %v2071
        %v4309 = vmul.f32 %v4246, %v2074
        %v4310 = vmul.f32 %v4246, %v2076
        %v4311 = vadd.f32 %v4182, %v4247
        %v4312 = vadd.f32 %v4183, %v4248
        %v4313 = vadd.f32 %v4184, %v4249
        %v4314 = vadd.f32 %v4185, %v4250
        %v4315 = vadd.f32 %v4186, %v4251
        %v4316 = vadd.f32 %v4187, %v4252
        %v4317 = vadd.f32 %v4188, %v4253
        %v4318 = vadd.f32 %v4189, %v4254
        %v4319 = vadd.f32 %v4190, %v4255
        %v4320 = vadd.f32 %v4191, %v4256
        %v4321 = vadd.f32 %v4192, %v4257
        %v4322 = vadd.f32 %v4193, %v4258
        %v4323 = vadd.f32 %v4194, %v4259
        %v4324 = vadd.f32 %v4195, %v4260
        %v4325 = vadd.f32 %v4196, %v4261
        %v4326 = vadd.f32 %v4197, %v4262
        %v4327 = vadd.f32 %v4198, %v4263
        %v4328 = vadd.f32 %v4199, %v4264
        %v4329 = vadd.f32 %v4200, %v4265
        %v4330 = vadd.f32 %v4201, %v4266
        %v4331 = vadd.f32 %v4202, %v4267
        %v4332 = vadd.f32 %v4203, %v4268
        %v4333 = vadd.f32 %v4204, %v4269
        %v4334 = vadd.f32 %v4205, %v4270
        %v4335 = vadd.f32 %v4206, %v4271
        %v4336 = vadd.f32 %v4207, %v4272
        %v4337 = vadd.f32 %v4208, %v4273
        %v4338 = vadd.f32 %v4209, %v4274
        %v4339 = vadd.f32 %v4210, %v4275
        %v4340 = vadd.f32 %v4211, %v4276
        %v4341 = vadd.f32 %v4212, %v4277
        %v4342 = vadd.f32 %v4213, %v4278
        %v4343 = vadd.f32 %v4214, %v4279
        %v4344 = vadd.f32 %v4215, %v4280
        %v4345 = vadd.f32 %v4216, %v4281
        %v4346 = vadd.f32 %v4217, %v4282
        %v4347 = vadd.f32 %v4218, %v4283
        %v4348 = vadd.f32 %v4219, %v4284
        %v4349 = vadd.f32 %v4220, %v4285
        %v4350 = vadd.f32 %v4221, %v4286
        %v4351 = vadd.f32 %v4222, %v4287
        %v4352 = vadd.f32 %v4223, %v4288
        %v4353 = vadd.f32 %v4224, %v4289
        %v4354 = vadd.f32 %v4225, %v4290
        %v4355 = vadd.f32 %v4226, %v4291
        %v4356 = vadd.f32 %v4227, %v4292
        %v4357 = vadd.f32 %v4228, %v4293
        %v4358 = vadd.f32 %v4229, %v4294
        %v4359 = vadd.f32 %v4230, %v4295
        %v4360 = vadd.f32 %v4231, %v4296
        %v4361 = vadd.f32 %v4232, %v4297
        %v4362 = vadd.f32 %v4233, %v4298
        %v4363 = vadd.f32 %v4234, %v4299
        %v4364 = vadd.f32 %v4235, %v4300
        %v4365 = vadd.f32 %v4236, %v4301
        %v4366 = vadd.f32 %v4237, %v4302
        %v4367 = vadd.f32 %v4238, %v4303
        %v4368 = vadd.f32 %v4239, %v4304
        %v4369 = vadd.f32 %v4240, %v4305
        %v4370 = vadd.f32 %v4241, %v4306
        %v4371 = vadd.f32 %v4242, %v4307
        %v4372 = vadd.f32 %v4243, %v4308
        %v4373 = vadd.f32 %v4244, %v4309
        %v4374 = vadd.f32 %v4245, %v4310
        %4375 = vrot.lane.b32.xlu0 %v2292, 80
        %v4376 = vpop.permute.xlu0 %4375
        %4377 = vrot.lane.b32.xlu0 %v2294, 80
        %v4378 = vpop.permute.xlu0 %4377
        %4379 = vrot.lane.b32.xlu0 %v2297, 80
        %v4380 = vpop.permute.xlu0 %4379
        %4381 = vrot.lane.b32.xlu0 %v2299, 80
        %v4382 = vpop.permute.xlu0 %4381
        %4383 = vrot.lane.b32.xlu0 %v2302, 80
        %v4384 = vpop.permute.xlu0 %4383
        %4385 = vrot.lane.b32.xlu0 %v2304, 80
        %v4386 = vpop.permute.xlu0 %4385
        %4387 = vrot.lane.b32.xlu0 %v2307, 80
        %v4388 = vpop.permute.xlu0 %4387
        %4389 = vrot.lane.b32.xlu0 %v2309, 80
        %v4390 = vpop.permute.xlu0 %4389
        %4391 = vrot.lane.b32.xlu0 %v2312, 80
        %v4392 = vpop.permute.xlu0 %4391
        %4393 = vrot.lane.b32.xlu0 %v2314, 80
        %v4394 = vpop.permute.xlu0 %4393
        %4395 = vrot.lane.b32.xlu0 %v2317, 80
        %v4396 = vpop.permute.xlu0 %4395
        %4397 = vrot.lane.b32.xlu0 %v2319, 80
        %v4398 = vpop.permute.xlu0 %4397
        %4399 = vrot.lane.b32.xlu0 %v2322, 80
        %v4400 = vpop.permute.xlu0 %4399
        %4401 = vrot.lane.b32.xlu0 %v2324, 80
        %v4402 = vpop.permute.xlu0 %4401
        %4403 = vrot.lane.b32.xlu0 %v2327, 80
        %v4404 = vpop.permute.xlu0 %4403
        %4405 = vrot.lane.b32.xlu0 %v2329, 80
        %v4406 = vpop.permute.xlu0 %4405
        %4407 = vrot.lane.b32.xlu0 %v2332, 80
        %v4408 = vpop.permute.xlu0 %4407
        %4409 = vrot.lane.b32.xlu0 %v2334, 80
        %v4410 = vpop.permute.xlu0 %4409
        %4411 = vrot.lane.b32.xlu0 %v2337, 80
        %v4412 = vpop.permute.xlu0 %4411
        %4413 = vrot.lane.b32.xlu0 %v2339, 80
        %v4414 = vpop.permute.xlu0 %4413
        %4415 = vrot.lane.b32.xlu0 %v2342, 80
        %v4416 = vpop.permute.xlu0 %4415
        %4417 = vrot.lane.b32.xlu0 %v2344, 80
        %v4418 = vpop.permute.xlu0 %4417
        %4419 = vrot.lane.b32.xlu0 %v2347, 80
        %v4420 = vpop.permute.xlu0 %4419
        %4421 = vrot.lane.b32.xlu0 %v2349, 80
        %v4422 = vpop.permute.xlu0 %4421
        %4423 = vrot.lane.b32.xlu0 %v2352, 80
        %v4424 = vpop.permute.xlu0 %4423
        %4425 = vrot.lane.b32.xlu0 %v2354, 80
        %v4426 = vpop.permute.xlu0 %4425
        %4427 = vrot.lane.b32.xlu0 %v2357, 80
        %v4428 = vpop.permute.xlu0 %4427
        %4429 = vrot.lane.b32.xlu0 %v2359, 80
        %v4430 = vpop.permute.xlu0 %4429
        %4431 = vrot.lane.b32.xlu0 %v2362, 80
        %v4432 = vpop.permute.xlu0 %4431
        %4433 = vrot.lane.b32.xlu0 %v2364, 80
        %v4434 = vpop.permute.xlu0 %4433
        %4435 = vrot.lane.b32.xlu0 %v2367, 80
        %v4436 = vpop.permute.xlu0 %4435
        %4437 = vrot.lane.b32.xlu0 %v2369, 80
        %v4438 = vpop.permute.xlu0 %4437
        %4439 = vrot.lane.b32.xlu0 %v2372, 80
        %v4440 = vpop.permute.xlu0 %4439
        %4441 = vrot.lane.b32.xlu0 %v2374, 80
        %v4442 = vpop.permute.xlu0 %4441
        %4443 = vrot.lane.b32.xlu0 %v2377, 80
        %v4444 = vpop.permute.xlu0 %4443
        %4445 = vrot.lane.b32.xlu0 %v2379, 80
        %v4446 = vpop.permute.xlu0 %4445
        %4447 = vrot.lane.b32.xlu0 %v2382, 80
        %v4448 = vpop.permute.xlu0 %4447
        %4449 = vrot.lane.b32.xlu0 %v2384, 80
        %v4450 = vpop.permute.xlu0 %4449
        %4451 = vrot.lane.b32.xlu0 %v2387, 80
        %v4452 = vpop.permute.xlu0 %4451
        %4453 = vrot.lane.b32.xlu0 %v2389, 80
        %v4454 = vpop.permute.xlu0 %4453
        %4455 = vrot.lane.b32.xlu0 %v2392, 80
        %v4456 = vpop.permute.xlu0 %4455
        %4457 = vrot.lane.b32.xlu0 %v2394, 80
        %v4458 = vpop.permute.xlu0 %4457
        %4459 = vrot.lane.b32.xlu0 %v2397, 80
        %v4460 = vpop.permute.xlu0 %4459
        %4461 = vrot.lane.b32.xlu0 %v2399, 80
        %v4462 = vpop.permute.xlu0 %4461
        %4463 = vrot.lane.b32.xlu0 %v2402, 80
        %v4464 = vpop.permute.xlu0 %4463
        %4465 = vrot.lane.b32.xlu0 %v2404, 80
        %v4466 = vpop.permute.xlu0 %4465
        %4467 = vrot.lane.b32.xlu0 %v2407, 80
        %v4468 = vpop.permute.xlu0 %4467
        %4469 = vrot.lane.b32.xlu0 %v2409, 80
        %v4470 = vpop.permute.xlu0 %4469
        %4471 = vrot.lane.b32.xlu0 %v2412, 80
        %v4472 = vpop.permute.xlu0 %4471
        %4473 = vrot.lane.b32.xlu0 %v2414, 80
        %v4474 = vpop.permute.xlu0 %4473
        %4475 = vrot.lane.b32.xlu0 %v2417, 80
        %v4476 = vpop.permute.xlu0 %4475
        %4477 = vrot.lane.b32.xlu0 %v2419, 80
        %v4478 = vpop.permute.xlu0 %4477
        %4479 = vrot.lane.b32.xlu0 %v2422, 80
        %v4480 = vpop.permute.xlu0 %4479
        %4481 = vrot.lane.b32.xlu0 %v2424, 80
        %v4482 = vpop.permute.xlu0 %4481
        %4483 = vrot.lane.b32.xlu0 %v2427, 80
        %v4484 = vpop.permute.xlu0 %4483
        %4485 = vrot.lane.b32.xlu0 %v2429, 80
        %v4486 = vpop.permute.xlu0 %4485
        %4487 = vrot.lane.b32.xlu0 %v2432, 80
        %v4488 = vpop.permute.xlu0 %4487
        %4489 = vrot.lane.b32.xlu0 %v2434, 80
        %v4490 = vpop.permute.xlu0 %4489
        %4491 = vrot.lane.b32.xlu0 %v2437, 80
        %v4492 = vpop.permute.xlu0 %4491
        %4493 = vrot.lane.b32.xlu0 %v2439, 80
        %v4494 = vpop.permute.xlu0 %4493
        %4495 = vrot.lane.b32.xlu0 %v2442, 80
        %v4496 = vpop.permute.xlu0 %4495
        %4497 = vrot.lane.b32.xlu0 %v2444, 80
        %v4498 = vpop.permute.xlu0 %4497
        %4499 = vrot.lane.b32.xlu0 %v2447, 80
        %v4500 = vpop.permute.xlu0 %4499
        %4501 = vrot.lane.b32.xlu0 %v2449, 80
        %v4502 = vpop.permute.xlu0 %4501
        %v4567 = vadd.f32 %v4311, %v4376
        %v4568 = vadd.f32 %v4312, %v4378
        %v4569 = vadd.f32 %v4313, %v4380
        %v4570 = vadd.f32 %v4314, %v4382
        %v4571 = vadd.f32 %v4315, %v4384
        %v4572 = vadd.f32 %v4316, %v4386
        %v4573 = vadd.f32 %v4317, %v4388
        %v4574 = vadd.f32 %v4318, %v4390
        %v4575 = vadd.f32 %v4319, %v4392
        %v4576 = vadd.f32 %v4320, %v4394
        %v4577 = vadd.f32 %v4321, %v4396
        %v4578 = vadd.f32 %v4322, %v4398
        %v4579 = vadd.f32 %v4323, %v4400
        %v4580 = vadd.f32 %v4324, %v4402
        %v4581 = vadd.f32 %v4325, %v4404
        %v4582 = vadd.f32 %v4326, %v4406
        %v4583 = vadd.f32 %v4327, %v4408
        %v4584 = vadd.f32 %v4328, %v4410
        %v4585 = vadd.f32 %v4329, %v4412
        %v4586 = vadd.f32 %v4330, %v4414
        %v4587 = vadd.f32 %v4331, %v4416
        %v4588 = vadd.f32 %v4332, %v4418
        %v4589 = vadd.f32 %v4333, %v4420
        %v4590 = vadd.f32 %v4334, %v4422
        %v4591 = vadd.f32 %v4335, %v4424
        %v4592 = vadd.f32 %v4336, %v4426
        %v4593 = vadd.f32 %v4337, %v4428
        %v4594 = vadd.f32 %v4338, %v4430
        %v4595 = vadd.f32 %v4339, %v4432
        %v4596 = vadd.f32 %v4340, %v4434
        %v4597 = vadd.f32 %v4341, %v4436
        %v4598 = vadd.f32 %v4342, %v4438
        %v4599 = vadd.f32 %v4343, %v4440
        %v4600 = vadd.f32 %v4344, %v4442
        %v4601 = vadd.f32 %v4345, %v4444
        %v4602 = vadd.f32 %v4346, %v4446
        %v4603 = vadd.f32 %v4347, %v4448
        %v4604 = vadd.f32 %v4348, %v4450
        %v4605 = vadd.f32 %v4349, %v4452
        %v4606 = vadd.f32 %v4350, %v4454
        %v4607 = vadd.f32 %v4351, %v4456
        %v4608 = vadd.f32 %v4352, %v4458
        %v4609 = vadd.f32 %v4353, %v4460
        %v4610 = vadd.f32 %v4354, %v4462
        %v4611 = vadd.f32 %v4355, %v4464
        %v4612 = vadd.f32 %v4356, %v4466
        %v4613 = vadd.f32 %v4357, %v4468
        %v4614 = vadd.f32 %v4358, %v4470
        %v4615 = vadd.f32 %v4359, %v4472
        %v4616 = vadd.f32 %v4360, %v4474
        %v4617 = vadd.f32 %v4361, %v4476
        %v4618 = vadd.f32 %v4362, %v4478
        %v4619 = vadd.f32 %v4363, %v4480
        %v4620 = vadd.f32 %v4364, %v4482
        %v4621 = vadd.f32 %v4365, %v4484
        %v4622 = vadd.f32 %v4366, %v4486
        %v4623 = vadd.f32 %v4367, %v4488
        %v4624 = vadd.f32 %v4368, %v4490
        %v4625 = vadd.f32 %v4369, %v4492
        %v4626 = vadd.f32 %v4370, %v4494
        %v4627 = vadd.f32 %v4371, %v4496
        %v4628 = vadd.f32 %v4372, %v4498
        %v4629 = vadd.f32 %v4373, %v4500
        %v4630 = vadd.f32 %v4374, %v4502
        %4695 = vrot.lane.b32.xlu0 %v4567, 16
        %v4696 = vpop.permute.xlu0 %4695
        %4697 = vrot.lane.b32.xlu0 %v4568, 16
        %v4698 = vpop.permute.xlu0 %4697
        %4699 = vrot.lane.b32.xlu0 %v4569, 16
        %v4700 = vpop.permute.xlu0 %4699
        %4701 = vrot.lane.b32.xlu0 %v4570, 16
        %v4702 = vpop.permute.xlu0 %4701
        %4703 = vrot.lane.b32.xlu0 %v4571, 16
        %v4704 = vpop.permute.xlu0 %4703
        %4705 = vrot.lane.b32.xlu0 %v4572, 16
        %v4706 = vpop.permute.xlu0 %4705
        %4707 = vrot.lane.b32.xlu0 %v4573, 16
        %v4708 = vpop.permute.xlu0 %4707
        %4709 = vrot.lane.b32.xlu0 %v4574, 16
        %v4710 = vpop.permute.xlu0 %4709
        %4711 = vrot.lane.b32.xlu0 %v4575, 16
        %v4712 = vpop.permute.xlu0 %4711
        %4713 = vrot.lane.b32.xlu0 %v4576, 16
        %v4714 = vpop.permute.xlu0 %4713
        %4715 = vrot.lane.b32.xlu0 %v4577, 16
        %v4716 = vpop.permute.xlu0 %4715
        %4717 = vrot.lane.b32.xlu0 %v4578, 16
        %v4718 = vpop.permute.xlu0 %4717
        %4719 = vrot.lane.b32.xlu0 %v4579, 16
        %v4720 = vpop.permute.xlu0 %4719
        %4721 = vrot.lane.b32.xlu0 %v4580, 16
        %v4722 = vpop.permute.xlu0 %4721
        %4723 = vrot.lane.b32.xlu0 %v4581, 16
        %v4724 = vpop.permute.xlu0 %4723
        %4725 = vrot.lane.b32.xlu0 %v4582, 16
        %v4726 = vpop.permute.xlu0 %4725
        %4727 = vrot.lane.b32.xlu0 %v4583, 16
        %v4728 = vpop.permute.xlu0 %4727
        %4729 = vrot.lane.b32.xlu0 %v4584, 16
        %v4730 = vpop.permute.xlu0 %4729
        %4731 = vrot.lane.b32.xlu0 %v4585, 16
        %v4732 = vpop.permute.xlu0 %4731
        %4733 = vrot.lane.b32.xlu0 %v4586, 16
        %v4734 = vpop.permute.xlu0 %4733
        %4735 = vrot.lane.b32.xlu0 %v4587, 16
        %v4736 = vpop.permute.xlu0 %4735
        %4737 = vrot.lane.b32.xlu0 %v4588, 16
        %v4738 = vpop.permute.xlu0 %4737
        %4739 = vrot.lane.b32.xlu0 %v4589, 16
        %v4740 = vpop.permute.xlu0 %4739
        %4741 = vrot.lane.b32.xlu0 %v4590, 16
        %v4742 = vpop.permute.xlu0 %4741
        %4743 = vrot.lane.b32.xlu0 %v4591, 16
        %v4744 = vpop.permute.xlu0 %4743
        %4745 = vrot.lane.b32.xlu0 %v4592, 16
        %v4746 = vpop.permute.xlu0 %4745
        %4747 = vrot.lane.b32.xlu0 %v4593, 16
        %v4748 = vpop.permute.xlu0 %4747
        %4749 = vrot.lane.b32.xlu0 %v4594, 16
        %v4750 = vpop.permute.xlu0 %4749
        %4751 = vrot.lane.b32.xlu0 %v4595, 16
        %v4752 = vpop.permute.xlu0 %4751
        %4753 = vrot.lane.b32.xlu0 %v4596, 16
        %v4754 = vpop.permute.xlu0 %4753
        %4755 = vrot.lane.b32.xlu0 %v4597, 16
        %v4756 = vpop.permute.xlu0 %4755
        %4757 = vrot.lane.b32.xlu0 %v4598, 16
        %v4758 = vpop.permute.xlu0 %4757
        %4759 = vrot.lane.b32.xlu0 %v4599, 16
        %v4760 = vpop.permute.xlu0 %4759
        %4761 = vrot.lane.b32.xlu0 %v4600, 16
        %v4762 = vpop.permute.xlu0 %4761
        %4763 = vrot.lane.b32.xlu0 %v4601, 16
        %v4764 = vpop.permute.xlu0 %4763
        %4765 = vrot.lane.b32.xlu0 %v4602, 16
        %v4766 = vpop.permute.xlu0 %4765
        %4767 = vrot.lane.b32.xlu0 %v4603, 16
        %v4768 = vpop.permute.xlu0 %4767
        %4769 = vrot.lane.b32.xlu0 %v4604, 16
        %v4770 = vpop.permute.xlu0 %4769
        %4771 = vrot.lane.b32.xlu0 %v4605, 16
        %v4772 = vpop.permute.xlu0 %4771
        %4773 = vrot.lane.b32.xlu0 %v4606, 16
        %v4774 = vpop.permute.xlu0 %4773
        %4775 = vrot.lane.b32.xlu0 %v4607, 16
        %v4776 = vpop.permute.xlu0 %4775
        %4777 = vrot.lane.b32.xlu0 %v4608, 16
        %v4778 = vpop.permute.xlu0 %4777
        %4779 = vrot.lane.b32.xlu0 %v4609, 16
        %v4780 = vpop.permute.xlu0 %4779
        %4781 = vrot.lane.b32.xlu0 %v4610, 16
        %v4782 = vpop.permute.xlu0 %4781
        %4783 = vrot.lane.b32.xlu0 %v4611, 16
        %v4784 = vpop.permute.xlu0 %4783
        %4785 = vrot.lane.b32.xlu0 %v4612, 16
        %v4786 = vpop.permute.xlu0 %4785
        %4787 = vrot.lane.b32.xlu0 %v4613, 16
        %v4788 = vpop.permute.xlu0 %4787
        %4789 = vrot.lane.b32.xlu0 %v4614, 16
        %v4790 = vpop.permute.xlu0 %4789
        %4791 = vrot.lane.b32.xlu0 %v4615, 16
        %v4792 = vpop.permute.xlu0 %4791
        %4793 = vrot.lane.b32.xlu0 %v4616, 16
        %v4794 = vpop.permute.xlu0 %4793
        %4795 = vrot.lane.b32.xlu0 %v4617, 16
        %v4796 = vpop.permute.xlu0 %4795
        %4797 = vrot.lane.b32.xlu0 %v4618, 16
        %v4798 = vpop.permute.xlu0 %4797
        %4799 = vrot.lane.b32.xlu0 %v4619, 16
        %v4800 = vpop.permute.xlu0 %4799
        %4801 = vrot.lane.b32.xlu0 %v4620, 16
        %v4802 = vpop.permute.xlu0 %4801
        %4803 = vrot.lane.b32.xlu0 %v4621, 16
        %v4804 = vpop.permute.xlu0 %4803
        %4805 = vrot.lane.b32.xlu0 %v4622, 16
        %v4806 = vpop.permute.xlu0 %4805
        %4807 = vrot.lane.b32.xlu0 %v4623, 16
        %v4808 = vpop.permute.xlu0 %4807
        %4809 = vrot.lane.b32.xlu0 %v4624, 16
        %v4810 = vpop.permute.xlu0 %4809
        %4811 = vrot.lane.b32.xlu0 %v4625, 16
        %v4812 = vpop.permute.xlu0 %4811
        %4813 = vrot.lane.b32.xlu0 %v4626, 16
        %v4814 = vpop.permute.xlu0 %4813
        %4815 = vrot.lane.b32.xlu0 %v4627, 16
        %v4816 = vpop.permute.xlu0 %4815
        %4817 = vrot.lane.b32.xlu0 %v4628, 16
        %v4818 = vpop.permute.xlu0 %4817
        %4819 = vrot.lane.b32.xlu0 %v4629, 16
        %v4820 = vpop.permute.xlu0 %4819
        %4821 = vrot.lane.b32.xlu0 %v4630, 16
        %v4822 = vpop.permute.xlu0 %4821
        %v4887 = vsel %vm1145, %v4115, %v4696
        %v4888 = vsel %vm1145, %v4116, %v4698
        %v4889 = vsel %vm1145, %v4117, %v4700
        %v4890 = vsel %vm1145, %v4118, %v4702
        %v4891 = vsel %vm1145, %v4119, %v4704
        %v4892 = vsel %vm1145, %v4120, %v4706
        %v4893 = vsel %vm1145, %v4121, %v4708
        %v4894 = vsel %vm1145, %v4122, %v4710
        %v4895 = vsel %vm1145, %v4123, %v4712
        %v4896 = vsel %vm1145, %v4124, %v4714
        %v4897 = vsel %vm1145, %v4125, %v4716
        %v4898 = vsel %vm1145, %v4126, %v4718
        %v4899 = vsel %vm1145, %v4127, %v4720
        %v4900 = vsel %vm1145, %v4128, %v4722
        %v4901 = vsel %vm1145, %v4129, %v4724
        %v4902 = vsel %vm1145, %v4130, %v4726
        %v4903 = vsel %vm1145, %v4131, %v4728
        %v4904 = vsel %vm1145, %v4132, %v4730
        %v4905 = vsel %vm1145, %v4133, %v4732
        %v4906 = vsel %vm1145, %v4134, %v4734
        %v4907 = vsel %vm1145, %v4135, %v4736
        %v4908 = vsel %vm1145, %v4136, %v4738
        %v4909 = vsel %vm1145, %v4137, %v4740
        %v4910 = vsel %vm1145, %v4138, %v4742
        %v4911 = vsel %vm1145, %v4139, %v4744
        %v4912 = vsel %vm1145, %v4140, %v4746
        %v4913 = vsel %vm1145, %v4141, %v4748
        %v4914 = vsel %vm1145, %v4142, %v4750
        %v4915 = vsel %vm1145, %v4143, %v4752
        %v4916 = vsel %vm1145, %v4144, %v4754
        %v4917 = vsel %vm1145, %v4145, %v4756
        %v4918 = vsel %vm1145, %v4146, %v4758
        %v4919 = vsel %vm1145, %v4147, %v4760
        %v4920 = vsel %vm1145, %v4148, %v4762
        %v4921 = vsel %vm1145, %v4149, %v4764
        %v4922 = vsel %vm1145, %v4150, %v4766
        %v4923 = vsel %vm1145, %v4151, %v4768
        %v4924 = vsel %vm1145, %v4152, %v4770
        %v4925 = vsel %vm1145, %v4153, %v4772
        %v4926 = vsel %vm1145, %v4154, %v4774
        %v4927 = vsel %vm1145, %v4155, %v4776
        %v4928 = vsel %vm1145, %v4156, %v4778
        %v4929 = vsel %vm1145, %v4157, %v4780
        %v4930 = vsel %vm1145, %v4158, %v4782
        %v4931 = vsel %vm1145, %v4159, %v4784
        %v4932 = vsel %vm1145, %v4160, %v4786
        %v4933 = vsel %vm1145, %v4161, %v4788
        %v4934 = vsel %vm1145, %v4162, %v4790
        %v4935 = vsel %vm1145, %v4163, %v4792
        %v4936 = vsel %vm1145, %v4164, %v4794
        %v4937 = vsel %vm1145, %v4165, %v4796
        %v4938 = vsel %vm1145, %v4166, %v4798
        %v4939 = vsel %vm1145, %v4167, %v4800
        %v4940 = vsel %vm1145, %v4168, %v4802
        %v4941 = vsel %vm1145, %v4169, %v4804
        %v4942 = vsel %vm1145, %v4170, %v4806
        %v4943 = vsel %vm1145, %v4171, %v4808
        %v4944 = vsel %vm1145, %v4172, %v4810
        %v4945 = vsel %vm1145, %v4173, %v4812
        %v4946 = vsel %vm1145, %v4174, %v4814
        %v4947 = vsel %vm1145, %v4175, %v4816
        %v4948 = vsel %vm1145, %v4176, %v4818
        %v4949 = vsel %vm1145, %v4177, %v4820
        %v4950 = vsel %vm1145, %v4178, %v4822
        %v4951 = vld [vmem:[%s17] sm:$0xff]
        %v4952 = vld [vmem:[%s17 + $0x8] sm:$0xff]
        %v4953 = vpack.c.bf16 %v4887, %v4887
        %v4954 = vpack.c.bf16 %v4888, %v4888
        %v4955 = vpack.c.bf16 %v4889, %v4889
        %v4956 = vpack.c.bf16 %v4890, %v4890
        %v4957 = vpack.c.bf16 %v4891, %v4891
        %v4958 = vpack.c.bf16 %v4892, %v4892
        %v4959 = vpack.c.bf16 %v4893, %v4893
        %v4960 = vpack.c.bf16 %v4894, %v4894
        %v4961 = vpack.c.bf16 %v4895, %v4895
        %v4962 = vpack.c.bf16 %v4896, %v4896
        %v4963 = vpack.c.bf16 %v4897, %v4897
        %v4964 = vpack.c.bf16 %v4898, %v4898
        %v4965 = vpack.c.bf16 %v4899, %v4899
        %v4966 = vpack.c.bf16 %v4900, %v4900
        %v4967 = vpack.c.bf16 %v4901, %v4901
        %v4968 = vpack.c.bf16 %v4902, %v4902
        %v4969 = vpack.c.bf16 %v4903, %v4903
        %v4970 = vpack.c.bf16 %v4904, %v4904
        %v4971 = vpack.c.bf16 %v4905, %v4905
        %v4972 = vpack.c.bf16 %v4906, %v4906
        %v4973 = vpack.c.bf16 %v4907, %v4907
        %v4974 = vpack.c.bf16 %v4908, %v4908
        %v4975 = vpack.c.bf16 %v4909, %v4909
        %v4976 = vpack.c.bf16 %v4910, %v4910
        %v4977 = vpack.c.bf16 %v4911, %v4911
        %v4978 = vpack.c.bf16 %v4912, %v4912
        %v4979 = vpack.c.bf16 %v4913, %v4913
        %v4980 = vpack.c.bf16 %v4914, %v4914
        %v4981 = vpack.c.bf16 %v4915, %v4915
        %v4982 = vpack.c.bf16 %v4916, %v4916
        %v4983 = vpack.c.bf16 %v4917, %v4917
        %v4984 = vpack.c.bf16 %v4918, %v4918
        %v4985 = vpack.c.bf16 %v4919, %v4919
        %v4986 = vpack.c.bf16 %v4920, %v4920
        %v4987 = vpack.c.bf16 %v4921, %v4921
        %v4988 = vpack.c.bf16 %v4922, %v4922
        %v4989 = vpack.c.bf16 %v4923, %v4923
        %v4990 = vpack.c.bf16 %v4924, %v4924
        %v4991 = vpack.c.bf16 %v4925, %v4925
        %v4992 = vpack.c.bf16 %v4926, %v4926
        %v4993 = vpack.c.bf16 %v4927, %v4927
        %v4994 = vpack.c.bf16 %v4928, %v4928
        %v4995 = vpack.c.bf16 %v4929, %v4929
        %v4996 = vpack.c.bf16 %v4930, %v4930
        %v4997 = vpack.c.bf16 %v4931, %v4931
        %v4998 = vpack.c.bf16 %v4932, %v4932
        %v4999 = vpack.c.bf16 %v4933, %v4933
        %v5000 = vpack.c.bf16 %v4934, %v4934
        %v5001 = vpack.c.bf16 %v4935, %v4935
        %v5002 = vpack.c.bf16 %v4936, %v4936
        %v5003 = vpack.c.bf16 %v4937, %v4937
        %v5004 = vpack.c.bf16 %v4938, %v4938
        %v5005 = vpack.c.bf16 %v4939, %v4939
        %v5006 = vpack.c.bf16 %v4940, %v4940
        %v5007 = vpack.c.bf16 %v4941, %v4941
        %v5008 = vpack.c.bf16 %v4942, %v4942
        %v5009 = vpack.c.bf16 %v4943, %v4943
        %v5010 = vpack.c.bf16 %v4944, %v4944
        %v5011 = vpack.c.bf16 %v4945, %v4945
        %v5012 = vpack.c.bf16 %v4946, %v4946
        %v5013 = vpack.c.bf16 %v4947, %v4947
        %v5014 = vpack.c.bf16 %v4948, %v4948
        %v5015 = vpack.c.bf16 %v4949, %v4949
        %v5016 = vpack.c.bf16 %v4950, %v4950
        %v5019 = vunpack.c.l.b16 %v4951
        %v5020 = vunpack.c.h.b16 %v4951
        %v5021 = vunpack.c.l.b16 %v4952
        %v5022 = vunpack.c.h.b16 %v4952
        %v5023 = vpack.c.b16 %v5021, %v5019
        %v5024 = vpack.c.b16 %v5022, %v5020
        %v5059 = vunpack.c.l.b16 %v4953
        %v5060 = vunpack.c.l.b16 %v4954
        %v5061 = vunpack.c.l.b16 %v4955
        %v5062 = vunpack.c.l.b16 %v4956
        %v5063 = vunpack.c.l.b16 %v4957
        %v5064 = vunpack.c.l.b16 %v4958
        %v5065 = vunpack.c.l.b16 %v4959
        %v5066 = vunpack.c.l.b16 %v4960
        %v5067 = vunpack.c.l.b16 %v4961
        %v5068 = vunpack.c.l.b16 %v4962
        %v5069 = vunpack.c.l.b16 %v4963
        %v5070 = vunpack.c.l.b16 %v4964
        %v5071 = vunpack.c.l.b16 %v4965
        %v5072 = vunpack.c.l.b16 %v4966
        %v5073 = vunpack.c.l.b16 %v4967
        %v5074 = vunpack.c.l.b16 %v4968
        %v5075 = vunpack.c.l.b16 %v4969
        %v5076 = vunpack.c.l.b16 %v4970
        %v5077 = vunpack.c.l.b16 %v4971
        %v5078 = vunpack.c.l.b16 %v4972
        %v5079 = vunpack.c.l.b16 %v4973
        %v5080 = vunpack.c.l.b16 %v4974
        %v5081 = vunpack.c.l.b16 %v4975
        %v5082 = vunpack.c.l.b16 %v4976
        %v5083 = vunpack.c.l.b16 %v4977
        %v5084 = vunpack.c.l.b16 %v4978
        %v5085 = vunpack.c.l.b16 %v4979
        %v5086 = vunpack.c.l.b16 %v4980
        %v5087 = vunpack.c.l.b16 %v4981
        %v5088 = vunpack.c.l.b16 %v4982
        %v5089 = vunpack.c.l.b16 %v4983
        %v5090 = vunpack.c.l.b16 %v4984
        %v5091 = vpack.c.b16 %v5060, %v5059
        %v5092 = vpack.c.b16 %v5062, %v5061
        %v5093 = vpack.c.b16 %v5064, %v5063
        %v5094 = vpack.c.b16 %v5066, %v5065
        %v5095 = vpack.c.b16 %v5068, %v5067
        %v5096 = vpack.c.b16 %v5070, %v5069
        %v5097 = vpack.c.b16 %v5072, %v5071
        %v5098 = vpack.c.b16 %v5074, %v5073
        %v5099 = vpack.c.b16 %v5076, %v5075
        %v5100 = vpack.c.b16 %v5078, %v5077
        %v5101 = vpack.c.b16 %v5080, %v5079
        %v5102 = vpack.c.b16 %v5082, %v5081
        %v5103 = vpack.c.b16 %v5084, %v5083
        %v5104 = vpack.c.b16 %v5086, %v5085
        %v5105 = vpack.c.b16 %v5088, %v5087
        %v5106 = vpack.c.b16 %v5090, %v5089
        %5123 = vmatpush.bf16.msra.mxu0 %v5098
        %5124 = vmatpush.bf16.msra.mxu0 %v5097
        %5125 = vmatpush.bf16.msra.mxu0 %v5096
        %5126 = vmatpush.bf16.msra.mxu0 %v5095
        %5127 = vmatpush.bf16.msra.mxu0 %v5094
        %5128 = vmatpush.bf16.msra.mxu0 %v5093
        %5129 = vmatpush.bf16.msra.mxu0 %v5092
        %5130 = vmatpush.bf16.msra.mxu0 %v5091
        %5131 = vmatmul.bf16.gmra.mxu0 %v5023
        %v5132 = vpop.f32.mrf.mxu0
        %v5133 = vadd.f32 0.0, %v5132
        %v5134 = vpop.f32.mrf.mxu0
        %v5135 = vadd.f32 0.0, %v5134
        %5136 = vdwg.mxu0
        %5137 = vmatpush.bf16.msra.mxu0 %v5106
        %5138 = vmatpush.bf16.msra.mxu0 %v5105
        %5139 = vmatpush.bf16.msra.mxu0 %v5104
        %5140 = vmatpush.bf16.msra.mxu0 %v5103
        %5141 = vmatpush.bf16.msra.mxu0 %v5102
        %5142 = vmatpush.bf16.msra.mxu0 %v5101
        %5143 = vmatpush.bf16.msra.mxu0 %v5100
        %5144 = vmatpush.bf16.msra.mxu0 %v5099
        %5145 = vmatmul.bf16.gmra.mxu0 %v5024
        %v5146 = vpop.f32.mrf.mxu0
        %v5147 = vadd.f32 %v5133, %v5146
        %v5148 = vpop.f32.mrf.mxu0
        %v5149 = vadd.f32 %v5135, %v5148
        %5150 = vdwg.mxu0
        %v5183 = vunpack.c.l.b16 %v4985
        %v5184 = vunpack.c.l.b16 %v4986
        %v5185 = vunpack.c.l.b16 %v4987
        %v5186 = vunpack.c.l.b16 %v4988
        %v5187 = vunpack.c.l.b16 %v4989
        %v5188 = vunpack.c.l.b16 %v4990
        %v5189 = vunpack.c.l.b16 %v4991
        %v5190 = vunpack.c.l.b16 %v4992
        %v5191 = vunpack.c.l.b16 %v4993
        %v5192 = vunpack.c.l.b16 %v4994
        %v5193 = vunpack.c.l.b16 %v4995
        %v5194 = vunpack.c.l.b16 %v4996
        %v5195 = vunpack.c.l.b16 %v4997
        %v5196 = vunpack.c.l.b16 %v4998
        %v5197 = vunpack.c.l.b16 %v4999
        %v5198 = vunpack.c.l.b16 %v5000
        %v5199 = vunpack.c.l.b16 %v5001
        %v5200 = vunpack.c.l.b16 %v5002
        %v5201 = vunpack.c.l.b16 %v5003
        %v5202 = vunpack.c.l.b16 %v5004
        %v5203 = vunpack.c.l.b16 %v5005
        %v5204 = vunpack.c.l.b16 %v5006
        %v5205 = vunpack.c.l.b16 %v5007
        %v5206 = vunpack.c.l.b16 %v5008
        %v5207 = vunpack.c.l.b16 %v5009
        %v5208 = vunpack.c.l.b16 %v5010
        %v5209 = vunpack.c.l.b16 %v5011
        %v5210 = vunpack.c.l.b16 %v5012
        %v5211 = vunpack.c.l.b16 %v5013
        %v5212 = vunpack.c.l.b16 %v5014
        %v5213 = vunpack.c.l.b16 %v5015
        %v5214 = vunpack.c.l.b16 %v5016
        %v5215 = vpack.c.b16 %v5184, %v5183
        %v5216 = vpack.c.b16 %v5186, %v5185
        %v5217 = vpack.c.b16 %v5188, %v5187
        %v5218 = vpack.c.b16 %v5190, %v5189
        %v5219 = vpack.c.b16 %v5192, %v5191
        %v5220 = vpack.c.b16 %v5194, %v5193
        %v5221 = vpack.c.b16 %v5196, %v5195
        %v5222 = vpack.c.b16 %v5198, %v5197
        %v5223 = vpack.c.b16 %v5200, %v5199
        %v5224 = vpack.c.b16 %v5202, %v5201
        %v5225 = vpack.c.b16 %v5204, %v5203
        %v5226 = vpack.c.b16 %v5206, %v5205
        %v5227 = vpack.c.b16 %v5208, %v5207
        %v5228 = vpack.c.b16 %v5210, %v5209
        %v5229 = vpack.c.b16 %v5212, %v5211
        %v5230 = vpack.c.b16 %v5214, %v5213
        %5247 = vmatpush.bf16.msra.mxu0 %v5222
        %5248 = vmatpush.bf16.msra.mxu0 %v5221
        %5249 = vmatpush.bf16.msra.mxu0 %v5220
        %5250 = vmatpush.bf16.msra.mxu0 %v5219
        %5251 = vmatpush.bf16.msra.mxu0 %v5218
        %5252 = vmatpush.bf16.msra.mxu0 %v5217
        %5253 = vmatpush.bf16.msra.mxu0 %v5216
        %5254 = vmatpush.bf16.msra.mxu0 %v5215
        %5255 = vmatmul.bf16.gmra.mxu0 %v5023
        %v5256 = vpop.f32.mrf.mxu0
        %v5257 = vadd.f32 0.0, %v5256
        %v5258 = vpop.f32.mrf.mxu0
        %v5259 = vadd.f32 0.0, %v5258
        %5260 = vdwg.mxu0
        %5261 = vmatpush.bf16.msra.mxu0 %v5230
        %5262 = vmatpush.bf16.msra.mxu0 %v5229
        %5263 = vmatpush.bf16.msra.mxu0 %v5228
        %5264 = vmatpush.bf16.msra.mxu0 %v5227
        %5265 = vmatpush.bf16.msra.mxu0 %v5226
        %5266 = vmatpush.bf16.msra.mxu0 %v5225
        %5267 = vmatpush.bf16.msra.mxu0 %v5224
        %5268 = vmatpush.bf16.msra.mxu0 %v5223
        %5269 = vmatmul.bf16.gmra.mxu0 %v5024
        %v5270 = vpop.f32.mrf.mxu0
        %v5271 = vadd.f32 %v5257, %v5270
        %v5272 = vpop.f32.mrf.mxu0
        %v5273 = vadd.f32 %v5259, %v5272
        %5274 = vdwg.mxu0
        %5275 = vst.msk [vmem:[#allocation6] sm:$0xff] %vm1145, %v5147
        %5276 = vst.msk [vmem:[#allocation6 + $0x8] sm:$0xff] %vm1145, %v5149
        %5277 = vst.msk [vmem:[#allocation6 + $0x10] sm:$0xff] %vm1145, %v5271
        %5278 = vst.msk [vmem:[#allocation6 + $0x18] sm:$0xff] %vm1145, %v5273
        %5283 = vrot.lane.b32.xlu0 %v5147, 112
        %v5284 = vpop.permute.xlu0 %5283
        %5285 = vrot.lane.b32.xlu0 %v5149, 112
        %v5286 = vpop.permute.xlu0 %5285
        %5287 = vrot.lane.b32.xlu0 %v5271, 112
        %v5288 = vpop.permute.xlu0 %5287
        %5289 = vrot.lane.b32.xlu0 %v5273, 112
        %v5290 = vpop.permute.xlu0 %5289
        %5295 = vst.msk [vmem:[#allocation7] sm:$0xff] %vm1145, %v5284
        %5296 = vst.msk [vmem:[#allocation7 + $0x8] sm:$0xff] %vm1145, %v5286
        %5297 = vst.msk [vmem:[#allocation7 + $0x10] sm:$0xff] %vm1145, %v5288
        %5298 = vst.msk [vmem:[#allocation7 + $0x18] sm:$0xff] %vm1145, %v5290
        %v5299 = vld [vmem:[#allocation3] sm:$0xff]
        %v5300 = vld [vmem:[#allocation3 + $0x8] sm:$0xff]
        %v5301 = vld [vmem:[#allocation3 + $0x10] sm:$0xff]
        %v5302 = vld [vmem:[#allocation3 + $0x18] sm:$0xff]
        %v5303 = vld [vmem:[#allocation3 + $0x20] sm:$0xff]
        %v5304 = vld [vmem:[#allocation3 + $0x28] sm:$0xff]
        %v5305 = vld [vmem:[#allocation3 + $0x30] sm:$0xff]
        %v5306 = vld [vmem:[#allocation3 + $0x38] sm:$0xff]
        %v5307 = vld [vmem:[#allocation3 + $0x40] sm:$0xff]
        %v5308 = vld [vmem:[#allocation3 + $0x48] sm:$0xff]
        %v5309 = vld [vmem:[#allocation3 + $0x50] sm:$0xff]
        %v5310 = vld [vmem:[#allocation3 + $0x58] sm:$0xff]
        %v5311 = vld [vmem:[#allocation3 + $0x60] sm:$0xff]
        %v5312 = vld [vmem:[#allocation3 + $0x68] sm:$0xff]
        %v5313 = vld [vmem:[#allocation3 + $0x70] sm:$0xff]
        %v5314 = vld [vmem:[#allocation3 + $0x78] sm:$0xff]
        %v5315 = vld [vmem:[#allocation3 + $0x80] sm:$0xff]
        %v5316 = vld [vmem:[#allocation3 + $0x88] sm:$0xff]
        %v5317 = vld [vmem:[#allocation3 + $0x90] sm:$0xff]
        %v5318 = vld [vmem:[#allocation3 + $0x98] sm:$0xff]
        %v5319 = vld [vmem:[#allocation3 + $0xa0] sm:$0xff]
        %v5320 = vld [vmem:[#allocation3 + $0xa8] sm:$0xff]
        %v5321 = vld [vmem:[#allocation3 + $0xb0] sm:$0xff]
        %v5322 = vld [vmem:[#allocation3 + $0xb8] sm:$0xff]
        %v5323 = vld [vmem:[#allocation3 + $0xc0] sm:$0xff]
        %v5324 = vld [vmem:[#allocation3 + $0xc8] sm:$0xff]
        %v5325 = vld [vmem:[#allocation3 + $0xd0] sm:$0xff]
        %v5326 = vld [vmem:[#allocation3 + $0xd8] sm:$0xff]
        %v5327 = vld [vmem:[#allocation3 + $0xe0] sm:$0xff]
        %v5328 = vld [vmem:[#allocation3 + $0xe8] sm:$0xff]
        %v5329 = vld [vmem:[#allocation3 + $0xf0] sm:$0xff]
        %v5330 = vld [vmem:[#allocation3 + $0xf8] sm:$0xff]
        %v5331 = vld [vmem:[#allocation3 + $0x100] sm:$0xff]
        %v5332 = vld [vmem:[#allocation3 + $0x108] sm:$0xff]
        %v5333 = vld [vmem:[#allocation3 + $0x110] sm:$0xff]
        %v5334 = vld [vmem:[#allocation3 + $0x118] sm:$0xff]
        %v5335 = vld [vmem:[#allocation3 + $0x120] sm:$0xff]
        %v5336 = vld [vmem:[#allocation3 + $0x128] sm:$0xff]
        %v5337 = vld [vmem:[#allocation3 + $0x130] sm:$0xff]
        %v5338 = vld [vmem:[#allocation3 + $0x138] sm:$0xff]
        %v5339 = vld [vmem:[#allocation3 + $0x140] sm:$0xff]
        %v5340 = vld [vmem:[#allocation3 + $0x148] sm:$0xff]
        %v5341 = vld [vmem:[#allocation3 + $0x150] sm:$0xff]
        %v5342 = vld [vmem:[#allocation3 + $0x158] sm:$0xff]
        %v5343 = vld [vmem:[#allocation3 + $0x160] sm:$0xff]
        %v5344 = vld [vmem:[#allocation3 + $0x168] sm:$0xff]
        %v5345 = vld [vmem:[#allocation3 + $0x170] sm:$0xff]
        %v5346 = vld [vmem:[#allocation3 + $0x178] sm:$0xff]
        %v5347 = vld [vmem:[#allocation3 + $0x180] sm:$0xff]
        %v5348 = vld [vmem:[#allocation3 + $0x188] sm:$0xff]
        %v5349 = vld [vmem:[#allocation3 + $0x190] sm:$0xff]
        %v5350 = vld [vmem:[#allocation3 + $0x198] sm:$0xff]
        %v5351 = vld [vmem:[#allocation3 + $0x1a0] sm:$0xff]
        %v5352 = vld [vmem:[#allocation3 + $0x1a8] sm:$0xff]
        %v5353 = vld [vmem:[#allocation3 + $0x1b0] sm:$0xff]
        %v5354 = vld [vmem:[#allocation3 + $0x1b8] sm:$0xff]
        %v5355 = vld [vmem:[#allocation3 + $0x1c0] sm:$0xff]
        %v5356 = vld [vmem:[#allocation3 + $0x1c8] sm:$0xff]
        %v5357 = vld [vmem:[#allocation3 + $0x1d0] sm:$0xff]
        %v5358 = vld [vmem:[#allocation3 + $0x1d8] sm:$0xff]
        %v5359 = vld [vmem:[#allocation3 + $0x1e0] sm:$0xff]
        %v5360 = vld [vmem:[#allocation3 + $0x1e8] sm:$0xff]
        %v5361 = vld [vmem:[#allocation3 + $0x1f0] sm:$0xff]
        %v5362 = vld [vmem:[#allocation3 + $0x1f8] sm:$0xff]
        %v5363 = vld [vmem:[%s13] sm:$0xff]
        %v5364 = vld [vmem:[%s13 + $0x8] sm:$0xff]
        %v5365 = vld [vmem:[%s13 + $0x10] sm:$0xff]
        %v5366 = vld [vmem:[%s13 + $0x18] sm:$0xff]
        %v5367 = vld [vmem:[%s13 + $0x20] sm:$0xff]
        %v5368 = vld [vmem:[%s13 + $0x28] sm:$0xff]
        %v5369 = vld [vmem:[%s13 + $0x30] sm:$0xff]
        %v5370 = vld [vmem:[%s13 + $0x38] sm:$0xff]
        %v5371 = vld [vmem:[%s13 + $0x40] sm:$0xff]
        %v5372 = vld [vmem:[%s13 + $0x48] sm:$0xff]
        %v5373 = vld [vmem:[%s13 + $0x50] sm:$0xff]
        %v5374 = vld [vmem:[%s13 + $0x58] sm:$0xff]
        %v5375 = vld [vmem:[%s13 + $0x60] sm:$0xff]
        %v5376 = vld [vmem:[%s13 + $0x68] sm:$0xff]
        %v5377 = vld [vmem:[%s13 + $0x70] sm:$0xff]
        %v5378 = vld [vmem:[%s13 + $0x78] sm:$0xff]
        %v5379 = vld [vmem:[%s13 + $0x80] sm:$0xff]
        %v5380 = vld [vmem:[%s13 + $0x88] sm:$0xff]
        %v5381 = vld [vmem:[%s13 + $0x90] sm:$0xff]
        %v5382 = vld [vmem:[%s13 + $0x98] sm:$0xff]
        %v5383 = vld [vmem:[%s13 + $0xa0] sm:$0xff]
        %v5384 = vld [vmem:[%s13 + $0xa8] sm:$0xff]
        %v5385 = vld [vmem:[%s13 + $0xb0] sm:$0xff]
        %v5386 = vld [vmem:[%s13 + $0xb8] sm:$0xff]
        %v5387 = vld [vmem:[%s13 + $0xc0] sm:$0xff]
        %v5388 = vld [vmem:[%s13 + $0xc8] sm:$0xff]
        %v5389 = vld [vmem:[%s13 + $0xd0] sm:$0xff]
        %v5390 = vld [vmem:[%s13 + $0xd8] sm:$0xff]
        %v5391 = vld [vmem:[%s13 + $0xe0] sm:$0xff]
        %v5392 = vld [vmem:[%s13 + $0xe8] sm:$0xff]
        %v5393 = vld [vmem:[%s13 + $0xf0] sm:$0xff]
        %v5394 = vld [vmem:[%s13 + $0xf8] sm:$0xff]
        %v5395 = vpack.c.bf16 %v5299, %v5299
        %v5396 = vpack.c.bf16 %v5300, %v5300
        %v5397 = vpack.c.bf16 %v5301, %v5301
        %v5398 = vpack.c.bf16 %v5302, %v5302
        %v5399 = vpack.c.bf16 %v5303, %v5303
        %v5400 = vpack.c.bf16 %v5304, %v5304
        %v5401 = vpack.c.bf16 %v5305, %v5305
        %v5402 = vpack.c.bf16 %v5306, %v5306
        %v5403 = vpack.c.bf16 %v5307, %v5307
        %v5404 = vpack.c.bf16 %v5308, %v5308
        %v5405 = vpack.c.bf16 %v5309, %v5309
        %v5406 = vpack.c.bf16 %v5310, %v5310
        %v5407 = vpack.c.bf16 %v5311, %v5311
        %v5408 = vpack.c.bf16 %v5312, %v5312
        %v5409 = vpack.c.bf16 %v5313, %v5313
        %v5410 = vpack.c.bf16 %v5314, %v5314
        %v5411 = vpack.c.bf16 %v5315, %v5315
        %v5412 = vpack.c.bf16 %v5316, %v5316
        %v5413 = vpack.c.bf16 %v5317, %v5317
        %v5414 = vpack.c.bf16 %v5318, %v5318
        %v5415 = vpack.c.bf16 %v5319, %v5319
        %v5416 = vpack.c.bf16 %v5320, %v5320
        %v5417 = vpack.c.bf16 %v5321, %v5321
        %v5418 = vpack.c.bf16 %v5322, %v5322
        %v5419 = vpack.c.bf16 %v5323, %v5323
        %v5420 = vpack.c.bf16 %v5324, %v5324
        %v5421 = vpack.c.bf16 %v5325, %v5325
        %v5422 = vpack.c.bf16 %v5326, %v5326
        %v5423 = vpack.c.bf16 %v5327, %v5327
        %v5424 = vpack.c.bf16 %v5328, %v5328
        %v5425 = vpack.c.bf16 %v5329, %v5329
        %v5426 = vpack.c.bf16 %v5330, %v5330
        %v5427 = vpack.c.bf16 %v5331, %v5331
        %v5428 = vpack.c.bf16 %v5332, %v5332
        %v5429 = vpack.c.bf16 %v5333, %v5333
        %v5430 = vpack.c.bf16 %v5334, %v5334
        %v5431 = vpack.c.bf16 %v5335, %v5335
        %v5432 = vpack.c.bf16 %v5336, %v5336
        %v5433 = vpack.c.bf16 %v5337, %v5337
        %v5434 = vpack.c.bf16 %v5338, %v5338
        %v5435 = vpack.c.bf16 %v5339, %v5339
        %v5436 = vpack.c.bf16 %v5340, %v5340
        %v5437 = vpack.c.bf16 %v5341, %v5341
        %v5438 = vpack.c.bf16 %v5342, %v5342
        %v5439 = vpack.c.bf16 %v5343, %v5343
        %v5440 = vpack.c.bf16 %v5344, %v5344
        %v5441 = vpack.c.bf16 %v5345, %v5345
        %v5442 = vpack.c.bf16 %v5346, %v5346
        %v5443 = vpack.c.bf16 %v5347, %v5347
        %v5444 = vpack.c.bf16 %v5348, %v5348
        %v5445 = vpack.c.bf16 %v5349, %v5349
        %v5446 = vpack.c.bf16 %v5350, %v5350
        %v5447 = vpack.c.bf16 %v5351, %v5351
        %v5448 = vpack.c.bf16 %v5352, %v5352
        %v5449 = vpack.c.bf16 %v5353, %v5353
        %v5450 = vpack.c.bf16 %v5354, %v5354
        %v5451 = vpack.c.bf16 %v5355, %v5355
        %v5452 = vpack.c.bf16 %v5356, %v5356
        %v5453 = vpack.c.bf16 %v5357, %v5357
        %v5454 = vpack.c.bf16 %v5358, %v5358
        %v5455 = vpack.c.bf16 %v5359, %v5359
        %v5456 = vpack.c.bf16 %v5360, %v5360
        %v5457 = vpack.c.bf16 %v5361, %v5361
        %v5458 = vpack.c.bf16 %v5362, %v5362
        %v5491 = vunpack.c.l.b16 %v5363
        %v5492 = vunpack.c.h.b16 %v5363
        %v5493 = vunpack.c.l.b16 %v5364
        %v5494 = vunpack.c.h.b16 %v5364
        %v5495 = vunpack.c.l.b16 %v5365
        %v5496 = vunpack.c.h.b16 %v5365
        %v5497 = vunpack.c.l.b16 %v5366
        %v5498 = vunpack.c.h.b16 %v5366
        %v5499 = vunpack.c.l.b16 %v5367
        %v5500 = vunpack.c.h.b16 %v5367
        %v5501 = vunpack.c.l.b16 %v5368
        %v5502 = vunpack.c.h.b16 %v5368
        %v5503 = vunpack.c.l.b16 %v5369
        %v5504 = vunpack.c.h.b16 %v5369
        %v5505 = vunpack.c.l.b16 %v5370
        %v5506 = vunpack.c.h.b16 %v5370
        %v5507 = vunpack.c.l.b16 %v5371
        %v5508 = vunpack.c.h.b16 %v5371
        %v5509 = vunpack.c.l.b16 %v5372
        %v5510 = vunpack.c.h.b16 %v5372
        %v5511 = vunpack.c.l.b16 %v5373
        %v5512 = vunpack.c.h.b16 %v5373
        %v5513 = vunpack.c.l.b16 %v5374
        %v5514 = vunpack.c.h.b16 %v5374
        %v5515 = vunpack.c.l.b16 %v5375
        %v5516 = vunpack.c.h.b16 %v5375
        %v5517 = vunpack.c.l.b16 %v5376
        %v5518 = vunpack.c.h.b16 %v5376
        %v5519 = vunpack.c.l.b16 %v5377
        %v5520 = vunpack.c.h.b16 %v5377
        %v5521 = vunpack.c.l.b16 %v5378
        %v5522 = vunpack.c.h.b16 %v5378
        %v5523 = vunpack.c.l.b16 %v5379
        %v5524 = vunpack.c.h.b16 %v5379
        %v5525 = vunpack.c.l.b16 %v5380
        %v5526 = vunpack.c.h.b16 %v5380
        %v5527 = vunpack.c.l.b16 %v5381
        %v5528 = vunpack.c.h.b16 %v5381
        %v5529 = vunpack.c.l.b16 %v5382
        %v5530 = vunpack.c.h.b16 %v5382
        %v5531 = vunpack.c.l.b16 %v5383
        %v5532 = vunpack.c.h.b16 %v5383
        %v5533 = vunpack.c.l.b16 %v5384
        %v5534 = vunpack.c.h.b16 %v5384
        %v5535 = vunpack.c.l.b16 %v5385
        %v5536 = vunpack.c.h.b16 %v5385
        %v5537 = vunpack.c.l.b16 %v5386
        %v5538 = vunpack.c.h.b16 %v5386
        %v5539 = vunpack.c.l.b16 %v5387
        %v5540 = vunpack.c.h.b16 %v5387
        %v5541 = vunpack.c.l.b16 %v5388
        %v5542 = vunpack.c.h.b16 %v5388
        %v5543 = vunpack.c.l.b16 %v5389
        %v5544 = vunpack.c.h.b16 %v5389
        %v5545 = vunpack.c.l.b16 %v5390
        %v5546 = vunpack.c.h.b16 %v5390
        %v5547 = vunpack.c.l.b16 %v5391
        %v5548 = vunpack.c.h.b16 %v5391
        %v5549 = vunpack.c.l.b16 %v5392
        %v5550 = vunpack.c.h.b16 %v5392
        %v5551 = vunpack.c.l.b16 %v5393
        %v5552 = vunpack.c.h.b16 %v5393
        %v5553 = vunpack.c.l.b16 %v5394
        %v5554 = vunpack.c.h.b16 %v5394
        %v5555 = vpack.c.b16 %v5493, %v5491
        %v5556 = vpack.c.b16 %v5494, %v5492
        %v5557 = vpack.c.b16 %v5497, %v5495
        %v5558 = vpack.c.b16 %v5498, %v5496
        %v5559 = vpack.c.b16 %v5501, %v5499
        %v5560 = vpack.c.b16 %v5502, %v5500
        %v5561 = vpack.c.b16 %v5505, %v5503
        %v5562 = vpack.c.b16 %v5506, %v5504
        %v5563 = vpack.c.b16 %v5509, %v5507
        %v5564 = vpack.c.b16 %v5510, %v5508
        %v5565 = vpack.c.b16 %v5513, %v5511
        %v5566 = vpack.c.b16 %v5514, %v5512
        %v5567 = vpack.c.b16 %v5517, %v5515
        %v5568 = vpack.c.b16 %v5518, %v5516
        %v5569 = vpack.c.b16 %v5521, %v5519
        %v5570 = vpack.c.b16 %v5522, %v5520
        %v5571 = vpack.c.b16 %v5525, %v5523
        %v5572 = vpack.c.b16 %v5526, %v5524
        %v5573 = vpack.c.b16 %v5529, %v5527
        %v5574 = vpack.c.b16 %v5530, %v5528
        %v5575 = vpack.c.b16 %v5533, %v5531
        %v5576 = vpack.c.b16 %v5534, %v5532
        %v5577 = vpack.c.b16 %v5537, %v5535
        %v5578 = vpack.c.b16 %v5538, %v5536
        %v5579 = vpack.c.b16 %v5541, %v5539
        %v5580 = vpack.c.b16 %v5542, %v5540
        %v5581 = vpack.c.b16 %v5545, %v5543
        %v5582 = vpack.c.b16 %v5546, %v5544
        %v5583 = vpack.c.b16 %v5549, %v5547
        %v5584 = vpack.c.b16 %v5550, %v5548
        %v5585 = vpack.c.b16 %v5553, %v5551
        %v5586 = vpack.c.b16 %v5554, %v5552
        %v5651 = vunpack.c.l.b16 %v5395
        %v5652 = vunpack.c.l.b16 %v5396
        %v5653 = vunpack.c.l.b16 %v5397
        %v5654 = vunpack.c.l.b16 %v5398
        %v5655 = vunpack.c.l.b16 %v5399
        %v5656 = vunpack.c.l.b16 %v5400
        %v5657 = vunpack.c.l.b16 %v5401
        %v5658 = vunpack.c.l.b16 %v5402
        %v5659 = vunpack.c.l.b16 %v5403
        %v5660 = vunpack.c.l.b16 %v5404
        %v5661 = vunpack.c.l.b16 %v5405
        %v5662 = vunpack.c.l.b16 %v5406
        %v5663 = vunpack.c.l.b16 %v5407
        %v5664 = vunpack.c.l.b16 %v5408
        %v5665 = vunpack.c.l.b16 %v5409
        %v5666 = vunpack.c.l.b16 %v5410
        %v5667 = vunpack.c.l.b16 %v5411
        %v5668 = vunpack.c.l.b16 %v5412
        %v5669 = vunpack.c.l.b16 %v5413
        %v5670 = vunpack.c.l.b16 %v5414
        %v5671 = vunpack.c.l.b16 %v5415
        %v5672 = vunpack.c.l.b16 %v5416
        %v5673 = vunpack.c.l.b16 %v5417
        %v5674 = vunpack.c.l.b16 %v5418
        %v5675 = vunpack.c.l.b16 %v5419
        %v5676 = vunpack.c.l.b16 %v5420
        %v5677 = vunpack.c.l.b16 %v5421
        %v5678 = vunpack.c.l.b16 %v5422
        %v5679 = vunpack.c.l.b16 %v5423
        %v5680 = vunpack.c.l.b16 %v5424
        %v5681 = vunpack.c.l.b16 %v5425
        %v5682 = vunpack.c.l.b16 %v5426
        %v5683 = vpack.c.b16 %v5652, %v5651
        %v5684 = vpack.c.b16 %v5654, %v5653
        %v5685 = vpack.c.b16 %v5656, %v5655
        %v5686 = vpack.c.b16 %v5658, %v5657
        %v5687 = vpack.c.b16 %v5660, %v5659
        %v5688 = vpack.c.b16 %v5662, %v5661
        %v5689 = vpack.c.b16 %v5664, %v5663
        %v5690 = vpack.c.b16 %v5666, %v5665
        %v5691 = vpack.c.b16 %v5668, %v5667
        %v5692 = vpack.c.b16 %v5670, %v5669
        %v5693 = vpack.c.b16 %v5672, %v5671
        %v5694 = vpack.c.b16 %v5674, %v5673
        %v5695 = vpack.c.b16 %v5676, %v5675
        %v5696 = vpack.c.b16 %v5678, %v5677
        %v5697 = vpack.c.b16 %v5680, %v5679
        %v5698 = vpack.c.b16 %v5682, %v5681
        %5715 = vmatpush.bf16.msra.mxu0 %v5690
        %5716 = vmatpush.bf16.msra.mxu0 %v5689
        %5717 = vmatpush.bf16.msra.mxu0 %v5688
        %5718 = vmatpush.bf16.msra.mxu0 %v5687
        %5719 = vmatpush.bf16.msra.mxu0 %v5686
        %5720 = vmatpush.bf16.msra.mxu0 %v5685
        %5721 = vmatpush.bf16.msra.mxu0 %v5684
        %5722 = vmatpush.bf16.msra.mxu0 %v5683
        %5723 = vmatmul.bf16.gmra.mxu0 %v5555
        %v5724 = vpop.f32.mrf.mxu0
        %v5725 = vadd.f32 0.0, %v5724
        %v5726 = vpop.f32.mrf.mxu0
        %v5727 = vadd.f32 0.0, %v5726
        %5728 = vmatmul.bf16.gmra.mxu0 %v5557
        %v5729 = vpop.f32.mrf.mxu0
        %v5730 = vadd.f32 0.0, %v5729
        %v5731 = vpop.f32.mrf.mxu0
        %v5732 = vadd.f32 0.0, %v5731
        %5733 = vmatmul.bf16.gmra.mxu0 %v5559
        %v5734 = vpop.f32.mrf.mxu0
        %v5735 = vadd.f32 0.0, %v5734
        %v5736 = vpop.f32.mrf.mxu0
        %v5737 = vadd.f32 0.0, %v5736
        %5738 = vmatmul.bf16.gmra.mxu0 %v5561
        %v5739 = vpop.f32.mrf.mxu0
        %v5740 = vadd.f32 0.0, %v5739
        %v5741 = vpop.f32.mrf.mxu0
        %v5742 = vadd.f32 0.0, %v5741
        %5743 = vmatmul.bf16.gmra.mxu0 %v5563
        %v5744 = vpop.f32.mrf.mxu0
        %v5745 = vadd.f32 0.0, %v5744
        %v5746 = vpop.f32.mrf.mxu0
        %v5747 = vadd.f32 0.0, %v5746
        %5748 = vmatmul.bf16.gmra.mxu0 %v5565
        %v5749 = vpop.f32.mrf.mxu0
        %v5750 = vadd.f32 0.0, %v5749
        %v5751 = vpop.f32.mrf.mxu0
        %v5752 = vadd.f32 0.0, %v5751
        %5753 = vmatmul.bf16.gmra.mxu0 %v5567
        %v5754 = vpop.f32.mrf.mxu0
        %v5755 = vadd.f32 0.0, %v5754
        %v5756 = vpop.f32.mrf.mxu0
        %v5757 = vadd.f32 0.0, %v5756
        %5758 = vmatmul.bf16.gmra.mxu0 %v5569
        %v5759 = vpop.f32.mrf.mxu0
        %v5760 = vadd.f32 0.0, %v5759
        %v5761 = vpop.f32.mrf.mxu0
        %v5762 = vadd.f32 0.0, %v5761
        %5763 = vmatmul.bf16.gmra.mxu0 %v5571
        %v5764 = vpop.f32.mrf.mxu0
        %v5765 = vadd.f32 0.0, %v5764
        %v5766 = vpop.f32.mrf.mxu0
        %v5767 = vadd.f32 0.0, %v5766
        %5768 = vmatmul.bf16.gmra.mxu0 %v5573
        %v5769 = vpop.f32.mrf.mxu0
        %v5770 = vadd.f32 0.0, %v5769
        %v5771 = vpop.f32.mrf.mxu0
        %v5772 = vadd.f32 0.0, %v5771
        %5773 = vmatmul.bf16.gmra.mxu0 %v5575
        %v5774 = vpop.f32.mrf.mxu0
        %v5775 = vadd.f32 0.0, %v5774
        %v5776 = vpop.f32.mrf.mxu0
        %v5777 = vadd.f32 0.0, %v5776
        %5778 = vmatmul.bf16.gmra.mxu0 %v5577
        %v5779 = vpop.f32.mrf.mxu0
        %v5780 = vadd.f32 0.0, %v5779
        %v5781 = vpop.f32.mrf.mxu0
        %v5782 = vadd.f32 0.0, %v5781
        %5783 = vmatmul.bf16.gmra.mxu0 %v5579
        %v5784 = vpop.f32.mrf.mxu0
        %v5785 = vadd.f32 0.0, %v5784
        %v5786 = vpop.f32.mrf.mxu0
        %v5787 = vadd.f32 0.0, %v5786
        %5788 = vmatmul.bf16.gmra.mxu0 %v5581
        %v5789 = vpop.f32.mrf.mxu0
        %v5790 = vadd.f32 0.0, %v5789
        %v5791 = vpop.f32.mrf.mxu0
        %v5792 = vadd.f32 0.0, %v5791
        %5793 = vmatmul.bf16.gmra.mxu0 %v5583
        %v5794 = vpop.f32.mrf.mxu0
        %v5795 = vadd.f32 0.0, %v5794
        %v5796 = vpop.f32.mrf.mxu0
        %v5797 = vadd.f32 0.0, %v5796
        %5798 = vmatmul.bf16.gmra.mxu0 %v5585
        %v5799 = vpop.f32.mrf.mxu0
        %v5800 = vadd.f32 0.0, %v5799
        %v5801 = vpop.f32.mrf.mxu0
        %v5802 = vadd.f32 0.0, %v5801
        %5803 = vdwg.mxu0
        %5804 = vmatpush.bf16.msra.mxu0 %v5698
        %5805 = vmatpush.bf16.msra.mxu0 %v5697
        %5806 = vmatpush.bf16.msra.mxu0 %v5696
        %5807 = vmatpush.bf16.msra.mxu0 %v5695
        %5808 = vmatpush.bf16.msra.mxu0 %v5694
        %5809 = vmatpush.bf16.msra.mxu0 %v5693
        %5810 = vmatpush.bf16.msra.mxu0 %v5692
        %5811 = vmatpush.bf16.msra.mxu0 %v5691
        %5812 = vmatmul.bf16.gmra.mxu0 %v5556
        %v5813 = vpop.f32.mrf.mxu0
        %v5814 = vadd.f32 %v5725, %v5813
        %v5815 = vpop.f32.mrf.mxu0
        %v5816 = vadd.f32 %v5727, %v5815
        %5817 = vmatmul.bf16.gmra.mxu0 %v5558
        %v5818 = vpop.f32.mrf.mxu0
        %v5819 = vadd.f32 %v5730, %v5818
        %v5820 = vpop.f32.mrf.mxu0
        %v5821 = vadd.f32 %v5732, %v5820
        %5822 = vmatmul.bf16.gmra.mxu0 %v5560
        %v5823 = vpop.f32.mrf.mxu0
        %v5824 = vadd.f32 %v5735, %v5823
        %v5825 = vpop.f32.mrf.mxu0
        %v5826 = vadd.f32 %v5737, %v5825
        %5827 = vmatmul.bf16.gmra.mxu0 %v5562
        %v5828 = vpop.f32.mrf.mxu0
        %v5829 = vadd.f32 %v5740, %v5828
        %v5830 = vpop.f32.mrf.mxu0
        %v5831 = vadd.f32 %v5742, %v5830
        %5832 = vmatmul.bf16.gmra.mxu0 %v5564
        %v5833 = vpop.f32.mrf.mxu0
        %v5834 = vadd.f32 %v5745, %v5833
        %v5835 = vpop.f32.mrf.mxu0
        %v5836 = vadd.f32 %v5747, %v5835
        %5837 = vmatmul.bf16.gmra.mxu0 %v5566
        %v5838 = vpop.f32.mrf.mxu0
        %v5839 = vadd.f32 %v5750, %v5838
        %v5840 = vpop.f32.mrf.mxu0
        %v5841 = vadd.f32 %v5752, %v5840
        %5842 = vmatmul.bf16.gmra.mxu0 %v5568
        %v5843 = vpop.f32.mrf.mxu0
        %v5844 = vadd.f32 %v5755, %v5843
        %v5845 = vpop.f32.mrf.mxu0
        %v5846 = vadd.f32 %v5757, %v5845
        %5847 = vmatmul.bf16.gmra.mxu0 %v5570
        %v5848 = vpop.f32.mrf.mxu0
        %v5849 = vadd.f32 %v5760, %v5848
        %v5850 = vpop.f32.mrf.mxu0
        %v5851 = vadd.f32 %v5762, %v5850
        %5852 = vmatmul.bf16.gmra.mxu0 %v5572
        %v5853 = vpop.f32.mrf.mxu0
        %v5854 = vadd.f32 %v5765, %v5853
        %v5855 = vpop.f32.mrf.mxu0
        %v5856 = vadd.f32 %v5767, %v5855
        %5857 = vmatmul.bf16.gmra.mxu0 %v5574
        %v5858 = vpop.f32.mrf.mxu0
        %v5859 = vadd.f32 %v5770, %v5858
        %v5860 = vpop.f32.mrf.mxu0
        %v5861 = vadd.f32 %v5772, %v5860
        %5862 = vmatmul.bf16.gmra.mxu0 %v5576
        %v5863 = vpop.f32.mrf.mxu0
        %v5864 = vadd.f32 %v5775, %v5863
        %v5865 = vpop.f32.mrf.mxu0
        %v5866 = vadd.f32 %v5777, %v5865
        %5867 = vmatmul.bf16.gmra.mxu0 %v5578
        %v5868 = vpop.f32.mrf.mxu0
        %v5869 = vadd.f32 %v5780, %v5868
        %v5870 = vpop.f32.mrf.mxu0
        %v5871 = vadd.f32 %v5782, %v5870
        %5872 = vmatmul.bf16.gmra.mxu0 %v5580
        %v5873 = vpop.f32.mrf.mxu0
        %v5874 = vadd.f32 %v5785, %v5873
        %v5875 = vpop.f32.mrf.mxu0
        %v5876 = vadd.f32 %v5787, %v5875
        %5877 = vmatmul.bf16.gmra.mxu0 %v5582
        %v5878 = vpop.f32.mrf.mxu0
        %v5879 = vadd.f32 %v5790, %v5878
        %v5880 = vpop.f32.mrf.mxu0
        %v5881 = vadd.f32 %v5792, %v5880
        %5882 = vmatmul.bf16.gmra.mxu0 %v5584
        %v5883 = vpop.f32.mrf.mxu0
        %v5884 = vadd.f32 %v5795, %v5883
        %v5885 = vpop.f32.mrf.mxu0
        %v5886 = vadd.f32 %v5797, %v5885
        %5887 = vmatmul.bf16.gmra.mxu0 %v5586
        %v5888 = vpop.f32.mrf.mxu0
        %v5889 = vadd.f32 %v5800, %v5888
        %v5890 = vpop.f32.mrf.mxu0
        %v5891 = vadd.f32 %v5802, %v5890
        %5892 = vdwg.mxu0
        %v5925 = vunpack.c.l.b16 %v5427
        %v5926 = vunpack.c.l.b16 %v5428
        %v5927 = vunpack.c.l.b16 %v5429
        %v5928 = vunpack.c.l.b16 %v5430
        %v5929 = vunpack.c.l.b16 %v5431
        %v5930 = vunpack.c.l.b16 %v5432
        %v5931 = vunpack.c.l.b16 %v5433
        %v5932 = vunpack.c.l.b16 %v5434
        %v5933 = vunpack.c.l.b16 %v5435
        %v5934 = vunpack.c.l.b16 %v5436
        %v5935 = vunpack.c.l.b16 %v5437
        %v5936 = vunpack.c.l.b16 %v5438
        %v5937 = vunpack.c.l.b16 %v5439
        %v5938 = vunpack.c.l.b16 %v5440
        %v5939 = vunpack.c.l.b16 %v5441
        %v5940 = vunpack.c.l.b16 %v5442
        %v5941 = vunpack.c.l.b16 %v5443
        %v5942 = vunpack.c.l.b16 %v5444
        %v5943 = vunpack.c.l.b16 %v5445
        %v5944 = vunpack.c.l.b16 %v5446
        %v5945 = vunpack.c.l.b16 %v5447
        %v5946 = vunpack.c.l.b16 %v5448
        %v5947 = vunpack.c.l.b16 %v5449
        %v5948 = vunpack.c.l.b16 %v5450
        %v5949 = vunpack.c.l.b16 %v5451
        %v5950 = vunpack.c.l.b16 %v5452
        %v5951 = vunpack.c.l.b16 %v5453
        %v5952 = vunpack.c.l.b16 %v5454
        %v5953 = vunpack.c.l.b16 %v5455
        %v5954 = vunpack.c.l.b16 %v5456
        %v5955 = vunpack.c.l.b16 %v5457
        %v5956 = vunpack.c.l.b16 %v5458
        %v5957 = vpack.c.b16 %v5926, %v5925
        %v5958 = vpack.c.b16 %v5928, %v5927
        %v5959 = vpack.c.b16 %v5930, %v5929
        %v5960 = vpack.c.b16 %v5932, %v5931
        %v5961 = vpack.c.b16 %v5934, %v5933
        %v5962 = vpack.c.b16 %v5936, %v5935
        %v5963 = vpack.c.b16 %v5938, %v5937
        %v5964 = vpack.c.b16 %v5940, %v5939
        %v5965 = vpack.c.b16 %v5942, %v5941
        %v5966 = vpack.c.b16 %v5944, %v5943
        %v5967 = vpack.c.b16 %v5946, %v5945
        %v5968 = vpack.c.b16 %v5948, %v5947
        %v5969 = vpack.c.b16 %v5950, %v5949
        %v5970 = vpack.c.b16 %v5952, %v5951
        %v5971 = vpack.c.b16 %v5954, %v5953
        %v5972 = vpack.c.b16 %v5956, %v5955
        %5989 = vmatpush.bf16.msra.mxu0 %v5964
        %5990 = vmatpush.bf16.msra.mxu0 %v5963
        %5991 = vmatpush.bf16.msra.mxu0 %v5962
        %5992 = vmatpush.bf16.msra.mxu0 %v5961
        %5993 = vmatpush.bf16.msra.mxu0 %v5960
        %5994 = vmatpush.bf16.msra.mxu0 %v5959
        %5995 = vmatpush.bf16.msra.mxu0 %v5958
        %5996 = vmatpush.bf16.msra.mxu0 %v5957
        %5997 = vmatmul.bf16.gmra.mxu0 %v5555
        %v5998 = vpop.f32.mrf.mxu0
        %v5999 = vadd.f32 0.0, %v5998
        %v6000 = vpop.f32.mrf.mxu0
        %v6001 = vadd.f32 0.0, %v6000
        %6002 = vmatmul.bf16.gmra.mxu0 %v5557
        %v6003 = vpop.f32.mrf.mxu0
        %v6004 = vadd.f32 0.0, %v6003
        %v6005 = vpop.f32.mrf.mxu0
        %v6006 = vadd.f32 0.0, %v6005
        %6007 = vmatmul.bf16.gmra.mxu0 %v5559
        %v6008 = vpop.f32.mrf.mxu0
        %v6009 = vadd.f32 0.0, %v6008
        %v6010 = vpop.f32.mrf.mxu0
        %v6011 = vadd.f32 0.0, %v6010
        %6012 = vmatmul.bf16.gmra.mxu0 %v5561
        %v6013 = vpop.f32.mrf.mxu0
        %v6014 = vadd.f32 0.0, %v6013
        %v6015 = vpop.f32.mrf.mxu0
        %v6016 = vadd.f32 0.0, %v6015
        %6017 = vmatmul.bf16.gmra.mxu0 %v5563
        %v6018 = vpop.f32.mrf.mxu0
        %v6019 = vadd.f32 0.0, %v6018
        %v6020 = vpop.f32.mrf.mxu0
        %v6021 = vadd.f32 0.0, %v6020
        %6022 = vmatmul.bf16.gmra.mxu0 %v5565
        %v6023 = vpop.f32.mrf.mxu0
        %v6024 = vadd.f32 0.0, %v6023
        %v6025 = vpop.f32.mrf.mxu0
        %v6026 = vadd.f32 0.0, %v6025
        %6027 = vmatmul.bf16.gmra.mxu0 %v5567
        %v6028 = vpop.f32.mrf.mxu0
        %v6029 = vadd.f32 0.0, %v6028
        %v6030 = vpop.f32.mrf.mxu0
        %v6031 = vadd.f32 0.0, %v6030
        %6032 = vmatmul.bf16.gmra.mxu0 %v5569
        %v6033 = vpop.f32.mrf.mxu0
        %v6034 = vadd.f32 0.0, %v6033
        %v6035 = vpop.f32.mrf.mxu0
        %v6036 = vadd.f32 0.0, %v6035
        %6037 = vmatmul.bf16.gmra.mxu0 %v5571
        %v6038 = vpop.f32.mrf.mxu0
        %v6039 = vadd.f32 0.0, %v6038
        %v6040 = vpop.f32.mrf.mxu0
        %v6041 = vadd.f32 0.0, %v6040
        %6042 = vmatmul.bf16.gmra.mxu0 %v5573
        %v6043 = vpop.f32.mrf.mxu0
        %v6044 = vadd.f32 0.0, %v6043
        %v6045 = vpop.f32.mrf.mxu0
        %v6046 = vadd.f32 0.0, %v6045
        %6047 = vmatmul.bf16.gmra.mxu0 %v5575
        %v6048 = vpop.f32.mrf.mxu0
        %v6049 = vadd.f32 0.0, %v6048
        %v6050 = vpop.f32.mrf.mxu0
        %v6051 = vadd.f32 0.0, %v6050
        %6052 = vmatmul.bf16.gmra.mxu0 %v5577
        %v6053 = vpop.f32.mrf.mxu0
        %v6054 = vadd.f32 0.0, %v6053
        %v6055 = vpop.f32.mrf.mxu0
        %v6056 = vadd.f32 0.0, %v6055
        %6057 = vmatmul.bf16.gmra.mxu0 %v5579
        %v6058 = vpop.f32.mrf.mxu0
        %v6059 = vadd.f32 0.0, %v6058
        %v6060 = vpop.f32.mrf.mxu0
        %v6061 = vadd.f32 0.0, %v6060
        %6062 = vmatmul.bf16.gmra.mxu0 %v5581
        %v6063 = vpop.f32.mrf.mxu0
        %v6064 = vadd.f32 0.0, %v6063
        %v6065 = vpop.f32.mrf.mxu0
        %v6066 = vadd.f32 0.0, %v6065
        %6067 = vmatmul.bf16.gmra.mxu0 %v5583
        %v6068 = vpop.f32.mrf.mxu0
        %v6069 = vadd.f32 0.0, %v6068
        %v6070 = vpop.f32.mrf.mxu0
        %v6071 = vadd.f32 0.0, %v6070
        %6072 = vmatmul.bf16.gmra.mxu0 %v5585
        %v6073 = vpop.f32.mrf.mxu0
        %v6074 = vadd.f32 0.0, %v6073
        %v6075 = vpop.f32.mrf.mxu0
        %v6076 = vadd.f32 0.0, %v6075
        %6077 = vdwg.mxu0
        %6078 = vmatpush.bf16.msra.mxu0 %v5972
        %6079 = vmatpush.bf16.msra.mxu0 %v5971
        %6080 = vmatpush.bf16.msra.mxu0 %v5970
        %6081 = vmatpush.bf16.msra.mxu0 %v5969
        %6082 = vmatpush.bf16.msra.mxu0 %v5968
        %6083 = vmatpush.bf16.msra.mxu0 %v5967
        %6084 = vmatpush.bf16.msra.mxu0 %v5966
        %6085 = vmatpush.bf16.msra.mxu0 %v5965
        %6086 = vmatmul.bf16.gmra.mxu0 %v5556
        %v6087 = vpop.f32.mrf.mxu0
        %v6088 = vadd.f32 %v5999, %v6087
        %v6089 = vpop.f32.mrf.mxu0
        %v6090 = vadd.f32 %v6001, %v6089
        %6091 = vmatmul.bf16.gmra.mxu0 %v5558
        %v6092 = vpop.f32.mrf.mxu0
        %v6093 = vadd.f32 %v6004, %v6092
        %v6094 = vpop.f32.mrf.mxu0
        %v6095 = vadd.f32 %v6006, %v6094
        %6096 = vmatmul.bf16.gmra.mxu0 %v5560
        %v6097 = vpop.f32.mrf.mxu0
        %v6098 = vadd.f32 %v6009, %v6097
        %v6099 = vpop.f32.mrf.mxu0
        %v6100 = vadd.f32 %v6011, %v6099
        %6101 = vmatmul.bf16.gmra.mxu0 %v5562
        %v6102 = vpop.f32.mrf.mxu0
        %v6103 = vadd.f32 %v6014, %v6102
        %v6104 = vpop.f32.mrf.mxu0
        %v6105 = vadd.f32 %v6016, %v6104
        %6106 = vmatmul.bf16.gmra.mxu0 %v5564
        %v6107 = vpop.f32.mrf.mxu0
        %v6108 = vadd.f32 %v6019, %v6107
        %v6109 = vpop.f32.mrf.mxu0
        %v6110 = vadd.f32 %v6021, %v6109
        %6111 = vmatmul.bf16.gmra.mxu0 %v5566
        %v6112 = vpop.f32.mrf.mxu0
        %v6113 = vadd.f32 %v6024, %v6112
        %v6114 = vpop.f32.mrf.mxu0
        %v6115 = vadd.f32 %v6026, %v6114
        %6116 = vmatmul.bf16.gmra.mxu0 %v5568
        %v6117 = vpop.f32.mrf.mxu0
        %v6118 = vadd.f32 %v6029, %v6117
        %v6119 = vpop.f32.mrf.mxu0
        %v6120 = vadd.f32 %v6031, %v6119
        %6121 = vmatmul.bf16.gmra.mxu0 %v5570
        %v6122 = vpop.f32.mrf.mxu0
        %v6123 = vadd.f32 %v6034, %v6122
        %v6124 = vpop.f32.mrf.mxu0
        %v6125 = vadd.f32 %v6036, %v6124
        %6126 = vmatmul.bf16.gmra.mxu0 %v5572
        %v6127 = vpop.f32.mrf.mxu0
        %v6128 = vadd.f32 %v6039, %v6127
        %v6129 = vpop.f32.mrf.mxu0
        %v6130 = vadd.f32 %v6041, %v6129
        %6131 = vmatmul.bf16.gmra.mxu0 %v5574
        %v6132 = vpop.f32.mrf.mxu0
        %v6133 = vadd.f32 %v6044, %v6132
        %v6134 = vpop.f32.mrf.mxu0
        %v6135 = vadd.f32 %v6046, %v6134
        %6136 = vmatmul.bf16.gmra.mxu0 %v5576
        %v6137 = vpop.f32.mrf.mxu0
        %v6138 = vadd.f32 %v6049, %v6137
        %v6139 = vpop.f32.mrf.mxu0
        %v6140 = vadd.f32 %v6051, %v6139
        %6141 = vmatmul.bf16.gmra.mxu0 %v5578
        %v6142 = vpop.f32.mrf.mxu0
        %v6143 = vadd.f32 %v6054, %v6142
        %v6144 = vpop.f32.mrf.mxu0
        %v6145 = vadd.f32 %v6056, %v6144
        %6146 = vmatmul.bf16.gmra.mxu0 %v5580
        %v6147 = vpop.f32.mrf.mxu0
        %v6148 = vadd.f32 %v6059, %v6147
        %v6149 = vpop.f32.mrf.mxu0
        %v6150 = vadd.f32 %v6061, %v6149
        %6151 = vmatmul.bf16.gmra.mxu0 %v5582
        %v6152 = vpop.f32.mrf.mxu0
        %v6153 = vadd.f32 %v6064, %v6152
        %v6154 = vpop.f32.mrf.mxu0
        %v6155 = vadd.f32 %v6066, %v6154
        %6156 = vmatmul.bf16.gmra.mxu0 %v5584
        %v6157 = vpop.f32.mrf.mxu0
        %v6158 = vadd.f32 %v6069, %v6157
        %v6159 = vpop.f32.mrf.mxu0
        %v6160 = vadd.f32 %v6071, %v6159
        %6161 = vmatmul.bf16.gmra.mxu0 %v5586
        %v6162 = vpop.f32.mrf.mxu0
        %v6163 = vadd.f32 %v6074, %v6162
        %v6164 = vpop.f32.mrf.mxu0
        %v6165 = vadd.f32 %v6076, %v6164
        %6166 = vdwg.mxu0
        %v6167 = vmax.f32 %v5299, 0.0
        %v6168 = vmax.f32 %v5300, 0.0
        %v6169 = vmax.f32 %v5301, 0.0
        %v6170 = vmax.f32 %v5302, 0.0
        %v6171 = vmax.f32 %v5303, 0.0
        %v6172 = vmax.f32 %v5304, 0.0
        %v6173 = vmax.f32 %v5305, 0.0
        %v6174 = vmax.f32 %v5306, 0.0
        %v6175 = vmax.f32 %v5307, 0.0
        %v6176 = vmax.f32 %v5308, 0.0
        %v6177 = vmax.f32 %v5309, 0.0
        %v6178 = vmax.f32 %v5310, 0.0
        %v6179 = vmax.f32 %v5311, 0.0
        %v6180 = vmax.f32 %v5312, 0.0
        %v6181 = vmax.f32 %v5313, 0.0
        %v6182 = vmax.f32 %v5314, 0.0
        %v6183 = vmax.f32 %v5315, 0.0
        %v6184 = vmax.f32 %v5316, 0.0
        %v6185 = vmax.f32 %v5317, 0.0
        %v6186 = vmax.f32 %v5318, 0.0
        %v6187 = vmax.f32 %v5319, 0.0
        %v6188 = vmax.f32 %v5320, 0.0
        %v6189 = vmax.f32 %v5321, 0.0
        %v6190 = vmax.f32 %v5322, 0.0
        %v6191 = vmax.f32 %v5323, 0.0
        %v6192 = vmax.f32 %v5324, 0.0
        %v6193 = vmax.f32 %v5325, 0.0
        %v6194 = vmax.f32 %v5326, 0.0
        %v6195 = vmax.f32 %v5327, 0.0
        %v6196 = vmax.f32 %v5328, 0.0
        %v6197 = vmax.f32 %v5329, 0.0
        %v6198 = vmax.f32 %v5330, 0.0
        %v6199 = vmax.f32 %v5331, 0.0
        %v6200 = vmax.f32 %v5332, 0.0
        %v6201 = vmax.f32 %v5333, 0.0
        %v6202 = vmax.f32 %v5334, 0.0
        %v6203 = vmax.f32 %v5335, 0.0
        %v6204 = vmax.f32 %v5336, 0.0
        %v6205 = vmax.f32 %v5337, 0.0
        %v6206 = vmax.f32 %v5338, 0.0
        %v6207 = vmax.f32 %v5339, 0.0
        %v6208 = vmax.f32 %v5340, 0.0
        %v6209 = vmax.f32 %v5341, 0.0
        %v6210 = vmax.f32 %v5342, 0.0
        %v6211 = vmax.f32 %v5343, 0.0
        %v6212 = vmax.f32 %v5344, 0.0
        %v6213 = vmax.f32 %v5345, 0.0
        %v6214 = vmax.f32 %v5346, 0.0
        %v6215 = vmax.f32 %v5347, 0.0
        %v6216 = vmax.f32 %v5348, 0.0
        %v6217 = vmax.f32 %v5349, 0.0
        %v6218 = vmax.f32 %v5350, 0.0
        %v6219 = vmax.f32 %v5351, 0.0
        %v6220 = vmax.f32 %v5352, 0.0
        %v6221 = vmax.f32 %v5353, 0.0
        %v6222 = vmax.f32 %v5354, 0.0
        %v6223 = vmax.f32 %v5355, 0.0
        %v6224 = vmax.f32 %v5356, 0.0
        %v6225 = vmax.f32 %v5357, 0.0
        %v6226 = vmax.f32 %v5358, 0.0
        %v6227 = vmax.f32 %v5359, 0.0
        %v6228 = vmax.f32 %v5360, 0.0
        %v6229 = vmax.f32 %v5361, 0.0
        %v6230 = vmax.f32 %v5362, 0.0
        %v6231 = vpack.c.bf16 %v6168, %v6167
        %v6232 = vpack.c.bf16 %v6170, %v6169
        %v6233 = vpack.c.bf16 %v6172, %v6171
        %v6234 = vpack.c.bf16 %v6174, %v6173
        %v6235 = vpack.c.bf16 %v6176, %v6175
        %v6236 = vpack.c.bf16 %v6178, %v6177
        %v6237 = vpack.c.bf16 %v6180, %v6179
        %v6238 = vpack.c.bf16 %v6182, %v6181
        %v6239 = vpack.c.bf16 %v6184, %v6183
        %v6240 = vpack.c.bf16 %v6186, %v6185
        %v6241 = vpack.c.bf16 %v6188, %v6187
        %v6242 = vpack.c.bf16 %v6190, %v6189
        %v6243 = vpack.c.bf16 %v6192, %v6191
        %v6244 = vpack.c.bf16 %v6194, %v6193
        %v6245 = vpack.c.bf16 %v6196, %v6195
        %v6246 = vpack.c.bf16 %v6198, %v6197
        %v6247 = vpack.c.bf16 %v6200, %v6199
        %v6248 = vpack.c.bf16 %v6202, %v6201
        %v6249 = vpack.c.bf16 %v6204, %v6203
        %v6250 = vpack.c.bf16 %v6206, %v6205
        %v6251 = vpack.c.bf16 %v6208, %v6207
        %v6252 = vpack.c.bf16 %v6210, %v6209
        %v6253 = vpack.c.bf16 %v6212, %v6211
        %v6254 = vpack.c.bf16 %v6214, %v6213
        %v6255 = vpack.c.bf16 %v6216, %v6215
        %v6256 = vpack.c.bf16 %v6218, %v6217
        %v6257 = vpack.c.bf16 %v6220, %v6219
        %v6258 = vpack.c.bf16 %v6222, %v6221
        %v6259 = vpack.c.bf16 %v6224, %v6223
        %v6260 = vpack.c.bf16 %v6226, %v6225
        %v6261 = vpack.c.bf16 %v6228, %v6227
        %v6262 = vpack.c.bf16 %v6230, %v6229
        %v6263 = vld [vmem:[%s5] sm:$0xf]
        %v6264 = vld [vmem:[%s5 + $0x4] sm:$0xf]
        %v6265 = vld [vmem:[%s6] sm:$0x1]
        %v6267 = vperm.slane %v6265, 0
        %v6271 = vunpack.c.l.b16 %v6263
        %v6272 = vunpack.c.l.b16 %v6264
        %v6273 = vpack.c.b16 %v6272, %v6271
        %v6276 = vsel %vm1145, %v6231, 0
        %v6279 = vsel %vm1145, %v6232, 0
        %v6282 = vsel %vm1145, %v6233, 0
        %v6285 = vsel %vm1145, %v6234, 0
        %v6288 = vsel %vm1145, %v6235, 0
        %v6291 = vsel %vm1145, %v6236, 0
        %v6294 = vsel %vm1145, %v6237, 0
        %v6297 = vsel %vm1145, %v6238, 0
        %v6300 = vsel %vm1145, %v6239, 0
        %v6303 = vsel %vm1145, %v6240, 0
        %v6306 = vsel %vm1145, %v6241, 0
        %v6309 = vsel %vm1145, %v6242, 0
        %v6312 = vsel %vm1145, %v6243, 0
        %v6315 = vsel %vm1145, %v6244, 0
        %v6318 = vsel %vm1145, %v6245, 0
        %v6321 = vsel %vm1145, %v6246, 0
        %v6324 = vsel %vm1145, %v6247, 0
        %v6327 = vsel %vm1145, %v6248, 0
        %v6330 = vsel %vm1145, %v6249, 0
        %v6333 = vsel %vm1145, %v6250, 0
        %v6336 = vsel %vm1145, %v6251, 0
        %v6339 = vsel %vm1145, %v6252, 0
        %v6342 = vsel %vm1145, %v6253, 0
        %v6345 = vsel %vm1145, %v6254, 0
        %v6348 = vsel %vm1145, %v6255, 0
        %v6351 = vsel %vm1145, %v6256, 0
        %v6354 = vsel %vm1145, %v6257, 0
        %v6357 = vsel %vm1145, %v6258, 0
        %v6360 = vsel %vm1145, %v6259, 0
        %v6363 = vsel %vm1145, %v6260, 0
        %v6366 = vsel %vm1145, %v6261, 0
        %v6369 = vsel %vm1145, %v6262, 0
        %6371 = vmatpush.bf16.msra.mxu0 0
        %6372 = vmatpush.bf16.msra.mxu0 0
        %6373 = vmatpush.bf16.msra.mxu0 0
        %6374 = vmatpush.bf16.msra.mxu0 0
        %6375 = vmatpush.bf16.msra.mxu0 0
        %6376 = vmatpush.bf16.msra.mxu0 0
        %6377 = vmatpush.bf16.msra.mxu0 0
        %6378 = vmatpush.bf16.msra.mxu0 %v6273
        %6379 = vmatmul.bf16.gmra.mxu0 %v6276
        %v6380 = vpop.f32.mrf.mxu0
        %v6381 = vadd.f32 %v6267, %v6380
        %v6382 = vpop.f32.mrf.mxu0
        %v6383 = vadd.f32 %v6267, %v6382
        %6384 = vmatmul.bf16.gmra.mxu0 %v6279
        %v6385 = vpop.f32.mrf.mxu0
        %v6386 = vadd.f32 %v6267, %v6385
        %v6387 = vpop.f32.mrf.mxu0
        %v6388 = vadd.f32 %v6267, %v6387
        %6389 = vmatmul.bf16.gmra.mxu0 %v6282
        %v6390 = vpop.f32.mrf.mxu0
        %v6391 = vadd.f32 %v6267, %v6390
        %v6392 = vpop.f32.mrf.mxu0
        %v6393 = vadd.f32 %v6267, %v6392
        %6394 = vmatmul.bf16.gmra.mxu0 %v6285
        %v6395 = vpop.f32.mrf.mxu0
        %v6396 = vadd.f32 %v6267, %v6395
        %v6397 = vpop.f32.mrf.mxu0
        %v6398 = vadd.f32 %v6267, %v6397
        %6399 = vmatmul.bf16.gmra.mxu0 %v6288
        %v6400 = vpop.f32.mrf.mxu0
        %v6401 = vadd.f32 %v6267, %v6400
        %v6402 = vpop.f32.mrf.mxu0
        %v6403 = vadd.f32 %v6267, %v6402
        %6404 = vmatmul.bf16.gmra.mxu0 %v6291
        %v6405 = vpop.f32.mrf.mxu0
        %v6406 = vadd.f32 %v6267, %v6405
        %v6407 = vpop.f32.mrf.mxu0
        %v6408 = vadd.f32 %v6267, %v6407
        %6409 = vmatmul.bf16.gmra.mxu0 %v6294
        %v6410 = vpop.f32.mrf.mxu0
        %v6411 = vadd.f32 %v6267, %v6410
        %v6412 = vpop.f32.mrf.mxu0
        %v6413 = vadd.f32 %v6267, %v6412
        %6414 = vmatmul.bf16.gmra.mxu0 %v6297
        %v6415 = vpop.f32.mrf.mxu0
        %v6416 = vadd.f32 %v6267, %v6415
        %v6417 = vpop.f32.mrf.mxu0
        %v6418 = vadd.f32 %v6267, %v6417
        %6419 = vmatmul.bf16.gmra.mxu0 %v6300
        %v6420 = vpop.f32.mrf.mxu0
        %v6421 = vadd.f32 %v6267, %v6420
        %v6422 = vpop.f32.mrf.mxu0
        %v6423 = vadd.f32 %v6267, %v6422
        %6424 = vmatmul.bf16.gmra.mxu0 %v6303
        %v6425 = vpop.f32.mrf.mxu0
        %v6426 = vadd.f32 %v6267, %v6425
        %v6427 = vpop.f32.mrf.mxu0
        %v6428 = vadd.f32 %v6267, %v6427
        %6429 = vmatmul.bf16.gmra.mxu0 %v6306
        %v6430 = vpop.f32.mrf.mxu0
        %v6431 = vadd.f32 %v6267, %v6430
        %v6432 = vpop.f32.mrf.mxu0
        %v6433 = vadd.f32 %v6267, %v6432
        %6434 = vmatmul.bf16.gmra.mxu0 %v6309
        %v6435 = vpop.f32.mrf.mxu0
        %v6436 = vadd.f32 %v6267, %v6435
        %v6437 = vpop.f32.mrf.mxu0
        %v6438 = vadd.f32 %v6267, %v6437
        %6439 = vmatmul.bf16.gmra.mxu0 %v6312
        %v6440 = vpop.f32.mrf.mxu0
        %v6441 = vadd.f32 %v6267, %v6440
        %v6442 = vpop.f32.mrf.mxu0
        %v6443 = vadd.f32 %v6267, %v6442
        %6444 = vmatmul.bf16.gmra.mxu0 %v6315
        %v6445 = vpop.f32.mrf.mxu0
        %v6446 = vadd.f32 %v6267, %v6445
        %v6447 = vpop.f32.mrf.mxu0
        %v6448 = vadd.f32 %v6267, %v6447
        %6449 = vmatmul.bf16.gmra.mxu0 %v6318
        %v6450 = vpop.f32.mrf.mxu0
        %v6451 = vadd.f32 %v6267, %v6450
        %v6452 = vpop.f32.mrf.mxu0
        %v6453 = vadd.f32 %v6267, %v6452
        %6454 = vmatmul.bf16.gmra.mxu0 %v6321
        %v6455 = vpop.f32.mrf.mxu0
        %v6456 = vadd.f32 %v6267, %v6455
        %v6457 = vpop.f32.mrf.mxu0
        %v6458 = vadd.f32 %v6267, %v6457
        %6459 = vmatmul.bf16.gmra.mxu0 %v6324
        %v6460 = vpop.f32.mrf.mxu0
        %v6461 = vadd.f32 %v6267, %v6460
        %v6462 = vpop.f32.mrf.mxu0
        %v6463 = vadd.f32 %v6267, %v6462
        %6464 = vmatmul.bf16.gmra.mxu0 %v6327
        %v6465 = vpop.f32.mrf.mxu0
        %v6466 = vadd.f32 %v6267, %v6465
        %v6467 = vpop.f32.mrf.mxu0
        %v6468 = vadd.f32 %v6267, %v6467
        %6469 = vmatmul.bf16.gmra.mxu0 %v6330
        %v6470 = vpop.f32.mrf.mxu0
        %v6471 = vadd.f32 %v6267, %v6470
        %v6472 = vpop.f32.mrf.mxu0
        %v6473 = vadd.f32 %v6267, %v6472
        %6474 = vmatmul.bf16.gmra.mxu0 %v6333
        %v6475 = vpop.f32.mrf.mxu0
        %v6476 = vadd.f32 %v6267, %v6475
        %v6477 = vpop.f32.mrf.mxu0
        %v6478 = vadd.f32 %v6267, %v6477
        %6479 = vmatmul.bf16.gmra.mxu0 %v6336
        %v6480 = vpop.f32.mrf.mxu0
        %v6481 = vadd.f32 %v6267, %v6480
        %v6482 = vpop.f32.mrf.mxu0
        %v6483 = vadd.f32 %v6267, %v6482
        %6484 = vmatmul.bf16.gmra.mxu0 %v6339
        %v6485 = vpop.f32.mrf.mxu0
        %v6486 = vadd.f32 %v6267, %v6485
        %v6487 = vpop.f32.mrf.mxu0
        %v6488 = vadd.f32 %v6267, %v6487
        %6489 = vmatmul.bf16.gmra.mxu0 %v6342
        %v6490 = vpop.f32.mrf.mxu0
        %v6491 = vadd.f32 %v6267, %v6490
        %v6492 = vpop.f32.mrf.mxu0
        %v6493 = vadd.f32 %v6267, %v6492
        %6494 = vmatmul.bf16.gmra.mxu0 %v6345
        %v6495 = vpop.f32.mrf.mxu0
        %v6496 = vadd.f32 %v6267, %v6495
        %v6497 = vpop.f32.mrf.mxu0
        %v6498 = vadd.f32 %v6267, %v6497
        %6499 = vmatmul.bf16.gmra.mxu0 %v6348
        %v6500 = vpop.f32.mrf.mxu0
        %v6501 = vadd.f32 %v6267, %v6500
        %v6502 = vpop.f32.mrf.mxu0
        %v6503 = vadd.f32 %v6267, %v6502
        %6504 = vmatmul.bf16.gmra.mxu0 %v6351
        %v6505 = vpop.f32.mrf.mxu0
        %v6506 = vadd.f32 %v6267, %v6505
        %v6507 = vpop.f32.mrf.mxu0
        %v6508 = vadd.f32 %v6267, %v6507
        %6509 = vmatmul.bf16.gmra.mxu0 %v6354
        %v6510 = vpop.f32.mrf.mxu0
        %v6511 = vadd.f32 %v6267, %v6510
        %v6512 = vpop.f32.mrf.mxu0
        %v6513 = vadd.f32 %v6267, %v6512
        %6514 = vmatmul.bf16.gmra.mxu0 %v6357
        %v6515 = vpop.f32.mrf.mxu0
        %v6516 = vadd.f32 %v6267, %v6515
        %v6517 = vpop.f32.mrf.mxu0
        %v6518 = vadd.f32 %v6267, %v6517
        %6519 = vmatmul.bf16.gmra.mxu0 %v6360
        %v6520 = vpop.f32.mrf.mxu0
        %v6521 = vadd.f32 %v6267, %v6520
        %v6522 = vpop.f32.mrf.mxu0
        %v6523 = vadd.f32 %v6267, %v6522
        %6524 = vmatmul.bf16.gmra.mxu0 %v6363
        %v6525 = vpop.f32.mrf.mxu0
        %v6526 = vadd.f32 %v6267, %v6525
        %v6527 = vpop.f32.mrf.mxu0
        %v6528 = vadd.f32 %v6267, %v6527
        %6529 = vmatmul.bf16.gmra.mxu0 %v6366
        %v6530 = vpop.f32.mrf.mxu0
        %v6531 = vadd.f32 %v6267, %v6530
        %v6532 = vpop.f32.mrf.mxu0
        %v6533 = vadd.f32 %v6267, %v6532
        %6534 = vmatmul.bf16.gmra.mxu0 %v6369
        %v6535 = vpop.f32.mrf.mxu0
        %v6536 = vadd.f32 %v6267, %v6535
        %v6537 = vpop.f32.mrf.mxu0
        %v6538 = vadd.f32 %v6267, %v6537
        %6539 = vdwg.mxu0
        %s6540 = sld [smem:[#allocation8 + $0x6]]
        %s6541 = sld [smem:[#allocation8 + $0x8]]
        %v6542 = vstv %s6540
        %v6543 = vmul.f32 %v6542, %v5299
        %v6544 = vmul.f32 %v6542, %v5300
        %v6545 = vmul.f32 %v6542, %v5301
        %v6546 = vmul.f32 %v6542, %v5302
        %v6547 = vmul.f32 %v6542, %v5303
        %v6548 = vmul.f32 %v6542, %v5304
        %v6549 = vmul.f32 %v6542, %v5305
        %v6550 = vmul.f32 %v6542, %v5306
        %v6551 = vmul.f32 %v6542, %v5307
        %v6552 = vmul.f32 %v6542, %v5308
        %v6553 = vmul.f32 %v6542, %v5309
        %v6554 = vmul.f32 %v6542, %v5310
        %v6555 = vmul.f32 %v6542, %v5311
        %v6556 = vmul.f32 %v6542, %v5312
        %v6557 = vmul.f32 %v6542, %v5313
        %v6558 = vmul.f32 %v6542, %v5314
        %v6559 = vmul.f32 %v6542, %v5315
        %v6560 = vmul.f32 %v6542, %v5316
        %v6561 = vmul.f32 %v6542, %v5317
        %v6562 = vmul.f32 %v6542, %v5318
        %v6563 = vmul.f32 %v6542, %v5319
        %v6564 = vmul.f32 %v6542, %v5320
        %v6565 = vmul.f32 %v6542, %v5321
        %v6566 = vmul.f32 %v6542, %v5322
        %v6567 = vmul.f32 %v6542, %v5323
        %v6568 = vmul.f32 %v6542, %v5324
        %v6569 = vmul.f32 %v6542, %v5325
        %v6570 = vmul.f32 %v6542, %v5326
        %v6571 = vmul.f32 %v6542, %v5327
        %v6572 = vmul.f32 %v6542, %v5328
        %v6573 = vmul.f32 %v6542, %v5329
        %v6574 = vmul.f32 %v6542, %v5330
        %v6575 = vmul.f32 %v6542, %v5331
        %v6576 = vmul.f32 %v6542, %v5332
        %v6577 = vmul.f32 %v6542, %v5333
        %v6578 = vmul.f32 %v6542, %v5334
        %v6579 = vmul.f32 %v6542, %v5335
        %v6580 = vmul.f32 %v6542, %v5336
        %v6581 = vmul.f32 %v6542, %v5337
        %v6582 = vmul.f32 %v6542, %v5338
        %v6583 = vmul.f32 %v6542, %v5339
        %v6584 = vmul.f32 %v6542, %v5340
        %v6585 = vmul.f32 %v6542, %v5341
        %v6586 = vmul.f32 %v6542, %v5342
        %v6587 = vmul.f32 %v6542, %v5343
        %v6588 = vmul.f32 %v6542, %v5344
        %v6589 = vmul.f32 %v6542, %v5345
        %v6590 = vmul.f32 %v6542, %v5346
        %v6591 = vmul.f32 %v6542, %v5347
        %v6592 = vmul.f32 %v6542, %v5348
        %v6593 = vmul.f32 %v6542, %v5349
        %v6594 = vmul.f32 %v6542, %v5350
        %v6595 = vmul.f32 %v6542, %v5351
        %v6596 = vmul.f32 %v6542, %v5352
        %v6597 = vmul.f32 %v6542, %v5353
        %v6598 = vmul.f32 %v6542, %v5354
        %v6599 = vmul.f32 %v6542, %v5355
        %v6600 = vmul.f32 %v6542, %v5356
        %v6601 = vmul.f32 %v6542, %v5357
        %v6602 = vmul.f32 %v6542, %v5358
        %v6603 = vmul.f32 %v6542, %v5359
        %v6604 = vmul.f32 %v6542, %v5360
        %v6605 = vmul.f32 %v6542, %v5361
        %v6606 = vmul.f32 %v6542, %v5362
        %v6607 = vstv %s6541
        %v6608 = vmul.f32 %v6607, %v5814
        %v6609 = vmul.f32 %v6607, %v5816
        %v6610 = vmul.f32 %v6607, %v5819
        %v6611 = vmul.f32 %v6607, %v5821
        %v6612 = vmul.f32 %v6607, %v5824
        %v6613 = vmul.f32 %v6607, %v5826
        %v6614 = vmul.f32 %v6607, %v5829
        %v6615 = vmul.f32 %v6607, %v5831
        %v6616 = vmul.f32 %v6607, %v5834
        %v6617 = vmul.f32 %v6607, %v5836
        %v6618 = vmul.f32 %v6607, %v5839
        %v6619 = vmul.f32 %v6607, %v5841
        %v6620 = vmul.f32 %v6607, %v5844
        %v6621 = vmul.f32 %v6607, %v5846
        %v6622 = vmul.f32 %v6607, %v5849
        %v6623 = vmul.f32 %v6607, %v5851
        %v6624 = vmul.f32 %v6607, %v5854
        %v6625 = vmul.f32 %v6607, %v5856
        %v6626 = vmul.f32 %v6607, %v5859
        %v6627 = vmul.f32 %v6607, %v5861
        %v6628 = vmul.f32 %v6607, %v5864
        %v6629 = vmul.f32 %v6607, %v5866
        %v6630 = vmul.f32 %v6607, %v5869
        %v6631 = vmul.f32 %v6607, %v5871
        %v6632 = vmul.f32 %v6607, %v5874
        %v6633 = vmul.f32 %v6607, %v5876
        %v6634 = vmul.f32 %v6607, %v5879
        %v6635 = vmul.f32 %v6607, %v5881
        %v6636 = vmul.f32 %v6607, %v5884
        %v6637 = vmul.f32 %v6607, %v5886
        %v6638 = vmul.f32 %v6607, %v5889
        %v6639 = vmul.f32 %v6607, %v5891
        %v6640 = vmul.f32 %v6607, %v6088
        %v6641 = vmul.f32 %v6607, %v6090
        %v6642 = vmul.f32 %v6607, %v6093
        %v6643 = vmul.f32 %v6607, %v6095
        %v6644 = vmul.f32 %v6607, %v6098
        %v6645 = vmul.f32 %v6607, %v6100
        %v6646 = vmul.f32 %v6607, %v6103
        %v6647 = vmul.f32 %v6607, %v6105
        %v6648 = vmul.f32 %v6607, %v6108
        %v6649 = vmul.f32 %v6607, %v6110
        %v6650 = vmul.f32 %v6607, %v6113
        %v6651 = vmul.f32 %v6607, %v6115
        %v6652 = vmul.f32 %v6607, %v6118
        %v6653 = vmul.f32 %v6607, %v6120
        %v6654 = vmul.f32 %v6607, %v6123
        %v6655 = vmul.f32 %v6607, %v6125
        %v6656 = vmul.f32 %v6607, %v6128
        %v6657 = vmul.f32 %v6607, %v6130
        %v6658 = vmul.f32 %v6607, %v6133
        %v6659 = vmul.f32 %v6607, %v6135
        %v6660 = vmul.f32 %v6607, %v6138
        %v6661 = vmul.f32 %v6607, %v6140
        %v6662 = vmul.f32 %v6607, %v6143
        %v6663 = vmul.f32 %v6607, %v6145
        %v6664 = vmul.f32 %v6607, %v6148
        %v6665 = vmul.f32 %v6607, %v6150
        %v6666 = vmul.f32 %v6607, %v6153
        %v6667 = vmul.f32 %v6607, %v6155
        %v6668 = vmul.f32 %v6607, %v6158
        %v6669 = vmul.f32 %v6607, %v6160
        %v6670 = vmul.f32 %v6607, %v6163
        %v6671 = vmul.f32 %v6607, %v6165
        %v6672 = vadd.f32 %v6543, %v6608
        %v6673 = vadd.f32 %v6544, %v6609
        %v6674 = vadd.f32 %v6545, %v6610
        %v6675 = vadd.f32 %v6546, %v6611
        %v6676 = vadd.f32 %v6547, %v6612
        %v6677 = vadd.f32 %v6548, %v6613
        %v6678 = vadd.f32 %v6549, %v6614
        %v6679 = vadd.f32 %v6550, %v6615
        %v6680 = vadd.f32 %v6551, %v6616
        %v6681 = vadd.f32 %v6552, %v6617
        %v6682 = vadd.f32 %v6553, %v6618
        %v6683 = vadd.f32 %v6554, %v6619
        %v6684 = vadd.f32 %v6555, %v6620
        %v6685 = vadd.f32 %v6556, %v6621
        %v6686 = vadd.f32 %v6557, %v6622
        %v6687 = vadd.f32 %v6558, %v6623
        %v6688 = vadd.f32 %v6559, %v6624
        %v6689 = vadd.f32 %v6560, %v6625
        %v6690 = vadd.f32 %v6561, %v6626
        %v6691 = vadd.f32 %v6562, %v6627
        %v6692 = vadd.f32 %v6563, %v6628
        %v6693 = vadd.f32 %v6564, %v6629
        %v6694 = vadd.f32 %v6565, %v6630
        %v6695 = vadd.f32 %v6566, %v6631
        %v6696 = vadd.f32 %v6567, %v6632
        %v6697 = vadd.f32 %v6568, %v6633
        %v6698 = vadd.f32 %v6569, %v6634
        %v6699 = vadd.f32 %v6570, %v6635
        %v6700 = vadd.f32 %v6571, %v6636
        %v6701 = vadd.f32 %v6572, %v6637
        %v6702 = vadd.f32 %v6573, %v6638
        %v6703 = vadd.f32 %v6574, %v6639
        %v6704 = vadd.f32 %v6575, %v6640
        %v6705 = vadd.f32 %v6576, %v6641
        %v6706 = vadd.f32 %v6577, %v6642
        %v6707 = vadd.f32 %v6578, %v6643
        %v6708 = vadd.f32 %v6579, %v6644
        %v6709 = vadd.f32 %v6580, %v6645
        %v6710 = vadd.f32 %v6581, %v6646
        %v6711 = vadd.f32 %v6582, %v6647
        %v6712 = vadd.f32 %v6583, %v6648
        %v6713 = vadd.f32 %v6584, %v6649
        %v6714 = vadd.f32 %v6585, %v6650
        %v6715 = vadd.f32 %v6586, %v6651
        %v6716 = vadd.f32 %v6587, %v6652
        %v6717 = vadd.f32 %v6588, %v6653
        %v6718 = vadd.f32 %v6589, %v6654
        %v6719 = vadd.f32 %v6590, %v6655
        %v6720 = vadd.f32 %v6591, %v6656
        %v6721 = vadd.f32 %v6592, %v6657
        %v6722 = vadd.f32 %v6593, %v6658
        %v6723 = vadd.f32 %v6594, %v6659
        %v6724 = vadd.f32 %v6595, %v6660
        %v6725 = vadd.f32 %v6596, %v6661
        %v6726 = vadd.f32 %v6597, %v6662
        %v6727 = vadd.f32 %v6598, %v6663
        %v6728 = vadd.f32 %v6599, %v6664
        %v6729 = vadd.f32 %v6600, %v6665
        %v6730 = vadd.f32 %v6601, %v6666
        %v6731 = vadd.f32 %v6602, %v6667
        %v6732 = vadd.f32 %v6603, %v6668
        %v6733 = vadd.f32 %v6604, %v6669
        %v6734 = vadd.f32 %v6605, %v6670
        %v6735 = vadd.f32 %v6606, %v6671
        %v6736 = vadd.f32 %v6672, %v6381
        %v6737 = vadd.f32 %v6673, %v6383
        %v6738 = vadd.f32 %v6674, %v6386
        %v6739 = vadd.f32 %v6675, %v6388
        %v6740 = vadd.f32 %v6676, %v6391
        %v6741 = vadd.f32 %v6677, %v6393
        %v6742 = vadd.f32 %v6678, %v6396
        %v6743 = vadd.f32 %v6679, %v6398
        %v6744 = vadd.f32 %v6680, %v6401
        %v6745 = vadd.f32 %v6681, %v6403
        %v6746 = vadd.f32 %v6682, %v6406
        %v6747 = vadd.f32 %v6683, %v6408
        %v6748 = vadd.f32 %v6684, %v6411
        %v6749 = vadd.f32 %v6685, %v6413
        %v6750 = vadd.f32 %v6686, %v6416
        %v6751 = vadd.f32 %v6687, %v6418
        %v6752 = vadd.f32 %v6688, %v6421
        %v6753 = vadd.f32 %v6689, %v6423
        %v6754 = vadd.f32 %v6690, %v6426
        %v6755 = vadd.f32 %v6691, %v6428
        %v6756 = vadd.f32 %v6692, %v6431
        %v6757 = vadd.f32 %v6693, %v6433
        %v6758 = vadd.f32 %v6694, %v6436
        %v6759 = vadd.f32 %v6695, %v6438
        %v6760 = vadd.f32 %v6696, %v6441
        %v6761 = vadd.f32 %v6697, %v6443
        %v6762 = vadd.f32 %v6698, %v6446
        %v6763 = vadd.f32 %v6699, %v6448
        %v6764 = vadd.f32 %v6700, %v6451
        %v6765 = vadd.f32 %v6701, %v6453
        %v6766 = vadd.f32 %v6702, %v6456
        %v6767 = vadd.f32 %v6703, %v6458
        %v6768 = vadd.f32 %v6704, %v6461
        %v6769 = vadd.f32 %v6705, %v6463
        %v6770 = vadd.f32 %v6706, %v6466
        %v6771 = vadd.f32 %v6707, %v6468
        %v6772 = vadd.f32 %v6708, %v6471
        %v6773 = vadd.f32 %v6709, %v6473
        %v6774 = vadd.f32 %v6710, %v6476
        %v6775 = vadd.f32 %v6711, %v6478
        %v6776 = vadd.f32 %v6712, %v6481
        %v6777 = vadd.f32 %v6713, %v6483
        %v6778 = vadd.f32 %v6714, %v6486
        %v6779 = vadd.f32 %v6715, %v6488
        %v6780 = vadd.f32 %v6716, %v6491
        %v6781 = vadd.f32 %v6717, %v6493
        %v6782 = vadd.f32 %v6718, %v6496
        %v6783 = vadd.f32 %v6719, %v6498
        %v6784 = vadd.f32 %v6720, %v6501
        %v6785 = vadd.f32 %v6721, %v6503
        %v6786 = vadd.f32 %v6722, %v6506
        %v6787 = vadd.f32 %v6723, %v6508
        %v6788 = vadd.f32 %v6724, %v6511
        %v6789 = vadd.f32 %v6725, %v6513
        %v6790 = vadd.f32 %v6726, %v6516
        %v6791 = vadd.f32 %v6727, %v6518
        %v6792 = vadd.f32 %v6728, %v6521
        %v6793 = vadd.f32 %v6729, %v6523
        %v6794 = vadd.f32 %v6730, %v6526
        %v6795 = vadd.f32 %v6731, %v6528
        %v6796 = vadd.f32 %v6732, %v6531
        %v6797 = vadd.f32 %v6733, %v6533
        %v6798 = vadd.f32 %v6734, %v6536
        %v6799 = vadd.f32 %v6735, %v6538
        %s6800 = sld [smem:[#allocation8 + $0xc]]
        %s6801 = sld [smem:[#allocation8 + $0xe]]
        %v6802 = vstv %s6800
        %v6803 = vmul.f32 %v6802, %v5299
        %v6804 = vmul.f32 %v6802, %v5300
        %v6805 = vmul.f32 %v6802, %v5301
        %v6806 = vmul.f32 %v6802, %v5302
        %v6807 = vmul.f32 %v6802, %v5303
        %v6808 = vmul.f32 %v6802, %v5304
        %v6809 = vmul.f32 %v6802, %v5305
        %v6810 = vmul.f32 %v6802, %v5306
        %v6811 = vmul.f32 %v6802, %v5307
        %v6812 = vmul.f32 %v6802, %v5308
        %v6813 = vmul.f32 %v6802, %v5309
        %v6814 = vmul.f32 %v6802, %v5310
        %v6815 = vmul.f32 %v6802, %v5311
        %v6816 = vmul.f32 %v6802, %v5312
        %v6817 = vmul.f32 %v6802, %v5313
        %v6818 = vmul.f32 %v6802, %v5314
        %v6819 = vmul.f32 %v6802, %v5315
        %v6820 = vmul.f32 %v6802, %v5316
        %v6821 = vmul.f32 %v6802, %v5317
        %v6822 = vmul.f32 %v6802, %v5318
        %v6823 = vmul.f32 %v6802, %v5319
        %v6824 = vmul.f32 %v6802, %v5320
        %v6825 = vmul.f32 %v6802, %v5321
        %v6826 = vmul.f32 %v6802, %v5322
        %v6827 = vmul.f32 %v6802, %v5323
        %v6828 = vmul.f32 %v6802, %v5324
        %v6829 = vmul.f32 %v6802, %v5325
        %v6830 = vmul.f32 %v6802, %v5326
        %v6831 = vmul.f32 %v6802, %v5327
        %v6832 = vmul.f32 %v6802, %v5328
        %v6833 = vmul.f32 %v6802, %v5329
        %v6834 = vmul.f32 %v6802, %v5330
        %v6835 = vmul.f32 %v6802, %v5331
        %v6836 = vmul.f32 %v6802, %v5332
        %v6837 = vmul.f32 %v6802, %v5333
        %v6838 = vmul.f32 %v6802, %v5334
        %v6839 = vmul.f32 %v6802, %v5335
        %v6840 = vmul.f32 %v6802, %v5336
        %v6841 = vmul.f32 %v6802, %v5337
        %v6842 = vmul.f32 %v6802, %v5338
        %v6843 = vmul.f32 %v6802, %v5339
        %v6844 = vmul.f32 %v6802, %v5340
        %v6845 = vmul.f32 %v6802, %v5341
        %v6846 = vmul.f32 %v6802, %v5342
        %v6847 = vmul.f32 %v6802, %v5343
        %v6848 = vmul.f32 %v6802, %v5344
        %v6849 = vmul.f32 %v6802, %v5345
        %v6850 = vmul.f32 %v6802, %v5346
        %v6851 = vmul.f32 %v6802, %v5347
        %v6852 = vmul.f32 %v6802, %v5348
        %v6853 = vmul.f32 %v6802, %v5349
        %v6854 = vmul.f32 %v6802, %v5350
        %v6855 = vmul.f32 %v6802, %v5351
        %v6856 = vmul.f32 %v6802, %v5352
        %v6857 = vmul.f32 %v6802, %v5353
        %v6858 = vmul.f32 %v6802, %v5354
        %v6859 = vmul.f32 %v6802, %v5355
        %v6860 = vmul.f32 %v6802, %v5356
        %v6861 = vmul.f32 %v6802, %v5357
        %v6862 = vmul.f32 %v6802, %v5358
        %v6863 = vmul.f32 %v6802, %v5359
        %v6864 = vmul.f32 %v6802, %v5360
        %v6865 = vmul.f32 %v6802, %v5361
        %v6866 = vmul.f32 %v6802, %v5362
        %v6867 = vstv %s6801
        %v6868 = vmul.f32 %v6867, %v5814
        %v6869 = vmul.f32 %v6867, %v5816
        %v6870 = vmul.f32 %v6867, %v5819
        %v6871 = vmul.f32 %v6867, %v5821
        %v6872 = vmul.f32 %v6867, %v5824
        %v6873 = vmul.f32 %v6867, %v5826
        %v6874 = vmul.f32 %v6867, %v5829
        %v6875 = vmul.f32 %v6867, %v5831
        %v6876 = vmul.f32 %v6867, %v5834
        %v6877 = vmul.f32 %v6867, %v5836
        %v6878 = vmul.f32 %v6867, %v5839
        %v6879 = vmul.f32 %v6867, %v5841
        %v6880 = vmul.f32 %v6867, %v5844
        %v6881 = vmul.f32 %v6867, %v5846
        %v6882 = vmul.f32 %v6867, %v5849
        %v6883 = vmul.f32 %v6867, %v5851
        %v6884 = vmul.f32 %v6867, %v5854
        %v6885 = vmul.f32 %v6867, %v5856
        %v6886 = vmul.f32 %v6867, %v5859
        %v6887 = vmul.f32 %v6867, %v5861
        %v6888 = vmul.f32 %v6867, %v5864
        %v6889 = vmul.f32 %v6867, %v5866
        %v6890 = vmul.f32 %v6867, %v5869
        %v6891 = vmul.f32 %v6867, %v5871
        %v6892 = vmul.f32 %v6867, %v5874
        %v6893 = vmul.f32 %v6867, %v5876
        %v6894 = vmul.f32 %v6867, %v5879
        %v6895 = vmul.f32 %v6867, %v5881
        %v6896 = vmul.f32 %v6867, %v5884
        %v6897 = vmul.f32 %v6867, %v5886
        %v6898 = vmul.f32 %v6867, %v5889
        %v6899 = vmul.f32 %v6867, %v5891
        %v6900 = vmul.f32 %v6867, %v6088
        %v6901 = vmul.f32 %v6867, %v6090
        %v6902 = vmul.f32 %v6867, %v6093
        %v6903 = vmul.f32 %v6867, %v6095
        %v6904 = vmul.f32 %v6867, %v6098
        %v6905 = vmul.f32 %v6867, %v6100
        %v6906 = vmul.f32 %v6867, %v6103
        %v6907 = vmul.f32 %v6867, %v6105
        %v6908 = vmul.f32 %v6867, %v6108
        %v6909 = vmul.f32 %v6867, %v6110
        %v6910 = vmul.f32 %v6867, %v6113
        %v6911 = vmul.f32 %v6867, %v6115
        %v6912 = vmul.f32 %v6867, %v6118
        %v6913 = vmul.f32 %v6867, %v6120
        %v6914 = vmul.f32 %v6867, %v6123
        %v6915 = vmul.f32 %v6867, %v6125
        %v6916 = vmul.f32 %v6867, %v6128
        %v6917 = vmul.f32 %v6867, %v6130
        %v6918 = vmul.f32 %v6867, %v6133
        %v6919 = vmul.f32 %v6867, %v6135
        %v6920 = vmul.f32 %v6867, %v6138
        %v6921 = vmul.f32 %v6867, %v6140
        %v6922 = vmul.f32 %v6867, %v6143
        %v6923 = vmul.f32 %v6867, %v6145
        %v6924 = vmul.f32 %v6867, %v6148
        %v6925 = vmul.f32 %v6867, %v6150
        %v6926 = vmul.f32 %v6867, %v6153
        %v6927 = vmul.f32 %v6867, %v6155
        %v6928 = vmul.f32 %v6867, %v6158
        %v6929 = vmul.f32 %v6867, %v6160
        %v6930 = vmul.f32 %v6867, %v6163
        %v6931 = vmul.f32 %v6867, %v6165
        %v6932 = vadd.f32 %v6803, %v6868
        %v6933 = vadd.f32 %v6804, %v6869
        %v6934 = vadd.f32 %v6805, %v6870
        %v6935 = vadd.f32 %v6806, %v6871
        %v6936 = vadd.f32 %v6807, %v6872
        %v6937 = vadd.f32 %v6808, %v6873
        %v6938 = vadd.f32 %v6809, %v6874
        %v6939 = vadd.f32 %v6810, %v6875
        %v6940 = vadd.f32 %v6811, %v6876
        %v6941 = vadd.f32 %v6812, %v6877
        %v6942 = vadd.f32 %v6813, %v6878
        %v6943 = vadd.f32 %v6814, %v6879
        %v6944 = vadd.f32 %v6815, %v6880
        %v6945 = vadd.f32 %v6816, %v6881
        %v6946 = vadd.f32 %v6817, %v6882
        %v6947 = vadd.f32 %v6818, %v6883
        %v6948 = vadd.f32 %v6819, %v6884
        %v6949 = vadd.f32 %v6820, %v6885
        %v6950 = vadd.f32 %v6821, %v6886
        %v6951 = vadd.f32 %v6822, %v6887
        %v6952 = vadd.f32 %v6823, %v6888
        %v6953 = vadd.f32 %v6824, %v6889
        %v6954 = vadd.f32 %v6825, %v6890
        %v6955 = vadd.f32 %v6826, %v6891
        %v6956 = vadd.f32 %v6827, %v6892
        %v6957 = vadd.f32 %v6828, %v6893
        %v6958 = vadd.f32 %v6829, %v6894
        %v6959 = vadd.f32 %v6830, %v6895
        %v6960 = vadd.f32 %v6831, %v6896
        %v6961 = vadd.f32 %v6832, %v6897
        %v6962 = vadd.f32 %v6833, %v6898
        %v6963 = vadd.f32 %v6834, %v6899
        %v6964 = vadd.f32 %v6835, %v6900
        %v6965 = vadd.f32 %v6836, %v6901
        %v6966 = vadd.f32 %v6837, %v6902
        %v6967 = vadd.f32 %v6838, %v6903
        %v6968 = vadd.f32 %v6839, %v6904
        %v6969 = vadd.f32 %v6840, %v6905
        %v6970 = vadd.f32 %v6841, %v6906
        %v6971 = vadd.f32 %v6842, %v6907
        %v6972 = vadd.f32 %v6843, %v6908
        %v6973 = vadd.f32 %v6844, %v6909
        %v6974 = vadd.f32 %v6845, %v6910
        %v6975 = vadd.f32 %v6846, %v6911
        %v6976 = vadd.f32 %v6847, %v6912
        %v6977 = vadd.f32 %v6848, %v6913
        %v6978 = vadd.f32 %v6849, %v6914
        %v6979 = vadd.f32 %v6850, %v6915
        %v6980 = vadd.f32 %v6851, %v6916
        %v6981 = vadd.f32 %v6852, %v6917
        %v6982 = vadd.f32 %v6853, %v6918
        %v6983 = vadd.f32 %v6854, %v6919
        %v6984 = vadd.f32 %v6855, %v6920
        %v6985 = vadd.f32 %v6856, %v6921
        %v6986 = vadd.f32 %v6857, %v6922
        %v6987 = vadd.f32 %v6858, %v6923
        %v6988 = vadd.f32 %v6859, %v6924
        %v6989 = vadd.f32 %v6860, %v6925
        %v6990 = vadd.f32 %v6861, %v6926
        %v6991 = vadd.f32 %v6862, %v6927
        %v6992 = vadd.f32 %v6863, %v6928
        %v6993 = vadd.f32 %v6864, %v6929
        %v6994 = vadd.f32 %v6865, %v6930
        %v6995 = vadd.f32 %v6866, %v6931
        %7060 = vrot.lane.b32.xlu0 %v6381, 112
        %v7061 = vpop.permute.xlu0 %7060
        %7062 = vrot.lane.b32.xlu0 %v6383, 112
        %v7063 = vpop.permute.xlu0 %7062
        %7064 = vrot.lane.b32.xlu0 %v6386, 112
        %v7065 = vpop.permute.xlu0 %7064
        %7066 = vrot.lane.b32.xlu0 %v6388, 112
        %v7067 = vpop.permute.xlu0 %7066
        %7068 = vrot.lane.b32.xlu0 %v6391, 112
        %v7069 = vpop.permute.xlu0 %7068
        %7070 = vrot.lane.b32.xlu0 %v6393, 112
        %v7071 = vpop.permute.xlu0 %7070
        %7072 = vrot.lane.b32.xlu0 %v6396, 112
        %v7073 = vpop.permute.xlu0 %7072
        %7074 = vrot.lane.b32.xlu0 %v6398, 112
        %v7075 = vpop.permute.xlu0 %7074
        %7076 = vrot.lane.b32.xlu0 %v6401, 112
        %v7077 = vpop.permute.xlu0 %7076
        %7078 = vrot.lane.b32.xlu0 %v6403, 112
        %v7079 = vpop.permute.xlu0 %7078
        %7080 = vrot.lane.b32.xlu0 %v6406, 112
        %v7081 = vpop.permute.xlu0 %7080
        %7082 = vrot.lane.b32.xlu0 %v6408, 112
        %v7083 = vpop.permute.xlu0 %7082
        %7084 = vrot.lane.b32.xlu0 %v6411, 112
        %v7085 = vpop.permute.xlu0 %7084
        %7086 = vrot.lane.b32.xlu0 %v6413, 112
        %v7087 = vpop.permute.xlu0 %7086
        %7088 = vrot.lane.b32.xlu0 %v6416, 112
        %v7089 = vpop.permute.xlu0 %7088
        %7090 = vrot.lane.b32.xlu0 %v6418, 112
        %v7091 = vpop.permute.xlu0 %7090
        %7092 = vrot.lane.b32.xlu0 %v6421, 112
        %v7093 = vpop.permute.xlu0 %7092
        %7094 = vrot.lane.b32.xlu0 %v6423, 112
        %v7095 = vpop.permute.xlu0 %7094
        %7096 = vrot.lane.b32.xlu0 %v6426, 112
        %v7097 = vpop.permute.xlu0 %7096
        %7098 = vrot.lane.b32.xlu0 %v6428, 112
        %v7099 = vpop.permute.xlu0 %7098
        %7100 = vrot.lane.b32.xlu0 %v6431, 112
        %v7101 = vpop.permute.xlu0 %7100
        %7102 = vrot.lane.b32.xlu0 %v6433, 112
        %v7103 = vpop.permute.xlu0 %7102
        %7104 = vrot.lane.b32.xlu0 %v6436, 112
        %v7105 = vpop.permute.xlu0 %7104
        %7106 = vrot.lane.b32.xlu0 %v6438, 112
        %v7107 = vpop.permute.xlu0 %7106
        %7108 = vrot.lane.b32.xlu0 %v6441, 112
        %v7109 = vpop.permute.xlu0 %7108
        %7110 = vrot.lane.b32.xlu0 %v6443, 112
        %v7111 = vpop.permute.xlu0 %7110
        %7112 = vrot.lane.b32.xlu0 %v6446, 112
        %v7113 = vpop.permute.xlu0 %7112
        %7114 = vrot.lane.b32.xlu0 %v6448, 112
        %v7115 = vpop.permute.xlu0 %7114
        %7116 = vrot.lane.b32.xlu0 %v6451, 112
        %v7117 = vpop.permute.xlu0 %7116
        %7118 = vrot.lane.b32.xlu0 %v6453, 112
        %v7119 = vpop.permute.xlu0 %7118
        %7120 = vrot.lane.b32.xlu0 %v6456, 112
        %v7121 = vpop.permute.xlu0 %7120
        %7122 = vrot.lane.b32.xlu0 %v6458, 112
        %v7123 = vpop.permute.xlu0 %7122
        %7124 = vrot.lane.b32.xlu0 %v6461, 112
        %v7125 = vpop.permute.xlu0 %7124
        %7126 = vrot.lane.b32.xlu0 %v6463, 112
        %v7127 = vpop.permute.xlu0 %7126
        %7128 = vrot.lane.b32.xlu0 %v6466, 112
        %v7129 = vpop.permute.xlu0 %7128
        %7130 = vrot.lane.b32.xlu0 %v6468, 112
        %v7131 = vpop.permute.xlu0 %7130
        %7132 = vrot.lane.b32.xlu0 %v6471, 112
        %v7133 = vpop.permute.xlu0 %7132
        %7134 = vrot.lane.b32.xlu0 %v6473, 112
        %v7135 = vpop.permute.xlu0 %7134
        %7136 = vrot.lane.b32.xlu0 %v6476, 112
        %v7137 = vpop.permute.xlu0 %7136
        %7138 = vrot.lane.b32.xlu0 %v6478, 112
        %v7139 = vpop.permute.xlu0 %7138
        %7140 = vrot.lane.b32.xlu0 %v6481, 112
        %v7141 = vpop.permute.xlu0 %7140
        %7142 = vrot.lane.b32.xlu0 %v6483, 112
        %v7143 = vpop.permute.xlu0 %7142
        %7144 = vrot.lane.b32.xlu0 %v6486, 112
        %v7145 = vpop.permute.xlu0 %7144
        %7146 = vrot.lane.b32.xlu0 %v6488, 112
        %v7147 = vpop.permute.xlu0 %7146
        %7148 = vrot.lane.b32.xlu0 %v6491, 112
        %v7149 = vpop.permute.xlu0 %7148
        %7150 = vrot.lane.b32.xlu0 %v6493, 112
        %v7151 = vpop.permute.xlu0 %7150
        %7152 = vrot.lane.b32.xlu0 %v6496, 112
        %v7153 = vpop.permute.xlu0 %7152
        %7154 = vrot.lane.b32.xlu0 %v6498, 112
        %v7155 = vpop.permute.xlu0 %7154
        %7156 = vrot.lane.b32.xlu0 %v6501, 112
        %v7157 = vpop.permute.xlu0 %7156
        %7158 = vrot.lane.b32.xlu0 %v6503, 112
        %v7159 = vpop.permute.xlu0 %7158
        %7160 = vrot.lane.b32.xlu0 %v6506, 112
        %v7161 = vpop.permute.xlu0 %7160
        %7162 = vrot.lane.b32.xlu0 %v6508, 112
        %v7163 = vpop.permute.xlu0 %7162
        %7164 = vrot.lane.b32.xlu0 %v6511, 112
        %v7165 = vpop.permute.xlu0 %7164
        %7166 = vrot.lane.b32.xlu0 %v6513, 112
        %v7167 = vpop.permute.xlu0 %7166
        %7168 = vrot.lane.b32.xlu0 %v6516, 112
        %v7169 = vpop.permute.xlu0 %7168
        %7170 = vrot.lane.b32.xlu0 %v6518, 112
        %v7171 = vpop.permute.xlu0 %7170
        %7172 = vrot.lane.b32.xlu0 %v6521, 112
        %v7173 = vpop.permute.xlu0 %7172
        %7174 = vrot.lane.b32.xlu0 %v6523, 112
        %v7175 = vpop.permute.xlu0 %7174
        %7176 = vrot.lane.b32.xlu0 %v6526, 112
        %v7177 = vpop.permute.xlu0 %7176
        %7178 = vrot.lane.b32.xlu0 %v6528, 112
        %v7179 = vpop.permute.xlu0 %7178
        %7180 = vrot.lane.b32.xlu0 %v6531, 112
        %v7181 = vpop.permute.xlu0 %7180
        %7182 = vrot.lane.b32.xlu0 %v6533, 112
        %v7183 = vpop.permute.xlu0 %7182
        %7184 = vrot.lane.b32.xlu0 %v6536, 112
        %v7185 = vpop.permute.xlu0 %7184
        %7186 = vrot.lane.b32.xlu0 %v6538, 112
        %v7187 = vpop.permute.xlu0 %7186
        %v7252 = vadd.f32 %v6932, %v7061
        %v7253 = vadd.f32 %v6933, %v7063
        %v7254 = vadd.f32 %v6934, %v7065
        %v7255 = vadd.f32 %v6935, %v7067
        %v7256 = vadd.f32 %v6936, %v7069
        %v7257 = vadd.f32 %v6937, %v7071
        %v7258 = vadd.f32 %v6938, %v7073
        %v7259 = vadd.f32 %v6939, %v7075
        %v7260 = vadd.f32 %v6940, %v7077
        %v7261 = vadd.f32 %v6941, %v7079
        %v7262 = vadd.f32 %v6942, %v7081
        %v7263 = vadd.f32 %v6943, %v7083
        %v7264 = vadd.f32 %v6944, %v7085
        %v7265 = vadd.f32 %v6945, %v7087
        %v7266 = vadd.f32 %v6946, %v7089
        %v7267 = vadd.f32 %v6947, %v7091
        %v7268 = vadd.f32 %v6948, %v7093
        %v7269 = vadd.f32 %v6949, %v7095
        %v7270 = vadd.f32 %v6950, %v7097
        %v7271 = vadd.f32 %v6951, %v7099
        %v7272 = vadd.f32 %v6952, %v7101
        %v7273 = vadd.f32 %v6953, %v7103
        %v7274 = vadd.f32 %v6954, %v7105
        %v7275 = vadd.f32 %v6955, %v7107
        %v7276 = vadd.f32 %v6956, %v7109
        %v7277 = vadd.f32 %v6957, %v7111
        %v7278 = vadd.f32 %v6958, %v7113
        %v7279 = vadd.f32 %v6959, %v7115
        %v7280 = vadd.f32 %v6960, %v7117
        %v7281 = vadd.f32 %v6961, %v7119
        %v7282 = vadd.f32 %v6962, %v7121
        %v7283 = vadd.f32 %v6963, %v7123
        %v7284 = vadd.f32 %v6964, %v7125
        %v7285 = vadd.f32 %v6965, %v7127
        %v7286 = vadd.f32 %v6966, %v7129
        %v7287 = vadd.f32 %v6967, %v7131
        %v7288 = vadd.f32 %v6968, %v7133
        %v7289 = vadd.f32 %v6969, %v7135
        %v7290 = vadd.f32 %v6970, %v7137
        %v7291 = vadd.f32 %v6971, %v7139
        %v7292 = vadd.f32 %v6972, %v7141
        %v7293 = vadd.f32 %v6973, %v7143
        %v7294 = vadd.f32 %v6974, %v7145
        %v7295 = vadd.f32 %v6975, %v7147
        %v7296 = vadd.f32 %v6976, %v7149
        %v7297 = vadd.f32 %v6977, %v7151
        %v7298 = vadd.f32 %v6978, %v7153
        %v7299 = vadd.f32 %v6979, %v7155
        %v7300 = vadd.f32 %v6980, %v7157
        %v7301 = vadd.f32 %v6981, %v7159
        %v7302 = vadd.f32 %v6982, %v7161
        %v7303 = vadd.f32 %v6983, %v7163
        %v7304 = vadd.f32 %v6984, %v7165
        %v7305 = vadd.f32 %v6985, %v7167
        %v7306 = vadd.f32 %v6986, %v7169
        %v7307 = vadd.f32 %v6987, %v7171
        %v7308 = vadd.f32 %v6988, %v7173
        %v7309 = vadd.f32 %v6989, %v7175
        %v7310 = vadd.f32 %v6990, %v7177
        %v7311 = vadd.f32 %v6991, %v7179
        %v7312 = vadd.f32 %v6992, %v7181
        %v7313 = vadd.f32 %v6993, %v7183
        %v7314 = vadd.f32 %v6994, %v7185
        %v7315 = vadd.f32 %v6995, %v7187
        %7380 = vrot.lane.b32.xlu0 %v7252, 16
        %v7381 = vpop.permute.xlu0 %7380
        %7382 = vrot.lane.b32.xlu0 %v7253, 16
        %v7383 = vpop.permute.xlu0 %7382
        %7384 = vrot.lane.b32.xlu0 %v7254, 16
        %v7385 = vpop.permute.xlu0 %7384
        %7386 = vrot.lane.b32.xlu0 %v7255, 16
        %v7387 = vpop.permute.xlu0 %7386
        %7388 = vrot.lane.b32.xlu0 %v7256, 16
        %v7389 = vpop.permute.xlu0 %7388
        %7390 = vrot.lane.b32.xlu0 %v7257, 16
        %v7391 = vpop.permute.xlu0 %7390
        %7392 = vrot.lane.b32.xlu0 %v7258, 16
        %v7393 = vpop.permute.xlu0 %7392
        %7394 = vrot.lane.b32.xlu0 %v7259, 16
        %v7395 = vpop.permute.xlu0 %7394
        %7396 = vrot.lane.b32.xlu0 %v7260, 16
        %v7397 = vpop.permute.xlu0 %7396
        %7398 = vrot.lane.b32.xlu0 %v7261, 16
        %v7399 = vpop.permute.xlu0 %7398
        %7400 = vrot.lane.b32.xlu0 %v7262, 16
        %v7401 = vpop.permute.xlu0 %7400
        %7402 = vrot.lane.b32.xlu0 %v7263, 16
        %v7403 = vpop.permute.xlu0 %7402
        %7404 = vrot.lane.b32.xlu0 %v7264, 16
        %v7405 = vpop.permute.xlu0 %7404
        %7406 = vrot.lane.b32.xlu0 %v7265, 16
        %v7407 = vpop.permute.xlu0 %7406
        %7408 = vrot.lane.b32.xlu0 %v7266, 16
        %v7409 = vpop.permute.xlu0 %7408
        %7410 = vrot.lane.b32.xlu0 %v7267, 16
        %v7411 = vpop.permute.xlu0 %7410
        %7412 = vrot.lane.b32.xlu0 %v7268, 16
        %v7413 = vpop.permute.xlu0 %7412
        %7414 = vrot.lane.b32.xlu0 %v7269, 16
        %v7415 = vpop.permute.xlu0 %7414
        %7416 = vrot.lane.b32.xlu0 %v7270, 16
        %v7417 = vpop.permute.xlu0 %7416
        %7418 = vrot.lane.b32.xlu0 %v7271, 16
        %v7419 = vpop.permute.xlu0 %7418
        %7420 = vrot.lane.b32.xlu0 %v7272, 16
        %v7421 = vpop.permute.xlu0 %7420
        %7422 = vrot.lane.b32.xlu0 %v7273, 16
        %v7423 = vpop.permute.xlu0 %7422
        %7424 = vrot.lane.b32.xlu0 %v7274, 16
        %v7425 = vpop.permute.xlu0 %7424
        %7426 = vrot.lane.b32.xlu0 %v7275, 16
        %v7427 = vpop.permute.xlu0 %7426
        %7428 = vrot.lane.b32.xlu0 %v7276, 16
        %v7429 = vpop.permute.xlu0 %7428
        %7430 = vrot.lane.b32.xlu0 %v7277, 16
        %v7431 = vpop.permute.xlu0 %7430
        %7432 = vrot.lane.b32.xlu0 %v7278, 16
        %v7433 = vpop.permute.xlu0 %7432
        %7434 = vrot.lane.b32.xlu0 %v7279, 16
        %v7435 = vpop.permute.xlu0 %7434
        %7436 = vrot.lane.b32.xlu0 %v7280, 16
        %v7437 = vpop.permute.xlu0 %7436
        %7438 = vrot.lane.b32.xlu0 %v7281, 16
        %v7439 = vpop.permute.xlu0 %7438
        %7440 = vrot.lane.b32.xlu0 %v7282, 16
        %v7441 = vpop.permute.xlu0 %7440
        %7442 = vrot.lane.b32.xlu0 %v7283, 16
        %v7443 = vpop.permute.xlu0 %7442
        %7444 = vrot.lane.b32.xlu0 %v7284, 16
        %v7445 = vpop.permute.xlu0 %7444
        %7446 = vrot.lane.b32.xlu0 %v7285, 16
        %v7447 = vpop.permute.xlu0 %7446
        %7448 = vrot.lane.b32.xlu0 %v7286, 16
        %v7449 = vpop.permute.xlu0 %7448
        %7450 = vrot.lane.b32.xlu0 %v7287, 16
        %v7451 = vpop.permute.xlu0 %7450
        %7452 = vrot.lane.b32.xlu0 %v7288, 16
        %v7453 = vpop.permute.xlu0 %7452
        %7454 = vrot.lane.b32.xlu0 %v7289, 16
        %v7455 = vpop.permute.xlu0 %7454
        %7456 = vrot.lane.b32.xlu0 %v7290, 16
        %v7457 = vpop.permute.xlu0 %7456
        %7458 = vrot.lane.b32.xlu0 %v7291, 16
        %v7459 = vpop.permute.xlu0 %7458
        %7460 = vrot.lane.b32.xlu0 %v7292, 16
        %v7461 = vpop.permute.xlu0 %7460
        %7462 = vrot.lane.b32.xlu0 %v7293, 16
        %v7463 = vpop.permute.xlu0 %7462
        %7464 = vrot.lane.b32.xlu0 %v7294, 16
        %v7465 = vpop.permute.xlu0 %7464
        %7466 = vrot.lane.b32.xlu0 %v7295, 16
        %v7467 = vpop.permute.xlu0 %7466
        %7468 = vrot.lane.b32.xlu0 %v7296, 16
        %v7469 = vpop.permute.xlu0 %7468
        %7470 = vrot.lane.b32.xlu0 %v7297, 16
        %v7471 = vpop.permute.xlu0 %7470
        %7472 = vrot.lane.b32.xlu0 %v7298, 16
        %v7473 = vpop.permute.xlu0 %7472
        %7474 = vrot.lane.b32.xlu0 %v7299, 16
        %v7475 = vpop.permute.xlu0 %7474
        %7476 = vrot.lane.b32.xlu0 %v7300, 16
        %v7477 = vpop.permute.xlu0 %7476
        %7478 = vrot.lane.b32.xlu0 %v7301, 16
        %v7479 = vpop.permute.xlu0 %7478
        %7480 = vrot.lane.b32.xlu0 %v7302, 16
        %v7481 = vpop.permute.xlu0 %7480
        %7482 = vrot.lane.b32.xlu0 %v7303, 16
        %v7483 = vpop.permute.xlu0 %7482
        %7484 = vrot.lane.b32.xlu0 %v7304, 16
        %v7485 = vpop.permute.xlu0 %7484
        %7486 = vrot.lane.b32.xlu0 %v7305, 16
        %v7487 = vpop.permute.xlu0 %7486
        %7488 = vrot.lane.b32.xlu0 %v7306, 16
        %v7489 = vpop.permute.xlu0 %7488
        %7490 = vrot.lane.b32.xlu0 %v7307, 16
        %v7491 = vpop.permute.xlu0 %7490
        %7492 = vrot.lane.b32.xlu0 %v7308, 16
        %v7493 = vpop.permute.xlu0 %7492
        %7494 = vrot.lane.b32.xlu0 %v7309, 16
        %v7495 = vpop.permute.xlu0 %7494
        %7496 = vrot.lane.b32.xlu0 %v7310, 16
        %v7497 = vpop.permute.xlu0 %7496
        %7498 = vrot.lane.b32.xlu0 %v7311, 16
        %v7499 = vpop.permute.xlu0 %7498
        %7500 = vrot.lane.b32.xlu0 %v7312, 16
        %v7501 = vpop.permute.xlu0 %7500
        %7502 = vrot.lane.b32.xlu0 %v7313, 16
        %v7503 = vpop.permute.xlu0 %7502
        %7504 = vrot.lane.b32.xlu0 %v7314, 16
        %v7505 = vpop.permute.xlu0 %7504
        %7506 = vrot.lane.b32.xlu0 %v7315, 16
        %v7507 = vpop.permute.xlu0 %7506
        %v7572 = vsel %vm1145, %v6736, %v7381
        %v7573 = vsel %vm1145, %v6737, %v7383
        %v7574 = vsel %vm1145, %v6738, %v7385
        %v7575 = vsel %vm1145, %v6739, %v7387
        %v7576 = vsel %vm1145, %v6740, %v7389
        %v7577 = vsel %vm1145, %v6741, %v7391
        %v7578 = vsel %vm1145, %v6742, %v7393
        %v7579 = vsel %vm1145, %v6743, %v7395
        %v7580 = vsel %vm1145, %v6744, %v7397
        %v7581 = vsel %vm1145, %v6745, %v7399
        %v7582 = vsel %vm1145, %v6746, %v7401
        %v7583 = vsel %vm1145, %v6747, %v7403
        %v7584 = vsel %vm1145, %v6748, %v7405
        %v7585 = vsel %vm1145, %v6749, %v7407
        %v7586 = vsel %vm1145, %v6750, %v7409
        %v7587 = vsel %vm1145, %v6751, %v7411
        %v7588 = vsel %vm1145, %v6752, %v7413
        %v7589 = vsel %vm1145, %v6753, %v7415
        %v7590 = vsel %vm1145, %v6754, %v7417
        %v7591 = vsel %vm1145, %v6755, %v7419
        %v7592 = vsel %vm1145, %v6756, %v7421
        %v7593 = vsel %vm1145, %v6757, %v7423
        %v7594 = vsel %vm1145, %v6758, %v7425
        %v7595 = vsel %vm1145, %v6759, %v7427
        %v7596 = vsel %vm1145, %v6760, %v7429
        %v7597 = vsel %vm1145, %v6761, %v7431
        %v7598 = vsel %vm1145, %v6762, %v7433
        %v7599 = vsel %vm1145, %v6763, %v7435
        %v7600 = vsel %vm1145, %v6764, %v7437
        %v7601 = vsel %vm1145, %v6765, %v7439
        %v7602 = vsel %vm1145, %v6766, %v7441
        %v7603 = vsel %vm1145, %v6767, %v7443
        %v7604 = vsel %vm1145, %v6768, %v7445
        %v7605 = vsel %vm1145, %v6769, %v7447
        %v7606 = vsel %vm1145, %v6770, %v7449
        %v7607 = vsel %vm1145, %v6771, %v7451
        %v7608 = vsel %vm1145, %v6772, %v7453
        %v7609 = vsel %vm1145, %v6773, %v7455
        %v7610 = vsel %vm1145, %v6774, %v7457
        %v7611 = vsel %vm1145, %v6775, %v7459
        %v7612 = vsel %vm1145, %v6776, %v7461
        %v7613 = vsel %vm1145, %v6777, %v7463
        %v7614 = vsel %vm1145, %v6778, %v7465
        %v7615 = vsel %vm1145, %v6779, %v7467
        %v7616 = vsel %vm1145, %v6780, %v7469
        %v7617 = vsel %vm1145, %v6781, %v7471
        %v7618 = vsel %vm1145, %v6782, %v7473
        %v7619 = vsel %vm1145, %v6783, %v7475
        %v7620 = vsel %vm1145, %v6784, %v7477
        %v7621 = vsel %vm1145, %v6785, %v7479
        %v7622 = vsel %vm1145, %v6786, %v7481
        %v7623 = vsel %vm1145, %v6787, %v7483
        %v7624 = vsel %vm1145, %v6788, %v7485
        %v7625 = vsel %vm1145, %v6789, %v7487
        %v7626 = vsel %vm1145, %v6790, %v7489
        %v7627 = vsel %vm1145, %v6791, %v7491
        %v7628 = vsel %vm1145, %v6792, %v7493
        %v7629 = vsel %vm1145, %v6793, %v7495
        %v7630 = vsel %vm1145, %v6794, %v7497
        %v7631 = vsel %vm1145, %v6795, %v7499
        %v7632 = vsel %vm1145, %v6796, %v7501
        %v7633 = vsel %vm1145, %v6797, %v7503
        %v7634 = vsel %vm1145, %v6798, %v7505
        %v7635 = vsel %vm1145, %v6799, %v7507
        %v7636 = vld [vmem:[%s18] sm:$0xff]
        %v7637 = vld [vmem:[%s18 + $0x8] sm:$0xff]
        %v7638 = vld [vmem:[%s18 + $0x10] sm:$0xff]
        %v7639 = vld [vmem:[%s18 + $0x18] sm:$0xff]
        %v7640 = vld [vmem:[%s18 + $0x20] sm:$0xff]
        %v7641 = vld [vmem:[%s18 + $0x28] sm:$0xff]
        %v7642 = vld [vmem:[%s18 + $0x30] sm:$0xff]
        %v7643 = vld [vmem:[%s18 + $0x38] sm:$0xff]
        %v7644 = vpack.c.bf16 %v7572, %v7572
        %v7645 = vpack.c.bf16 %v7573, %v7573
        %v7646 = vpack.c.bf16 %v7574, %v7574
        %v7647 = vpack.c.bf16 %v7575, %v7575
        %v7648 = vpack.c.bf16 %v7576, %v7576
        %v7649 = vpack.c.bf16 %v7577, %v7577
        %v7650 = vpack.c.bf16 %v7578, %v7578
        %v7651 = vpack.c.bf16 %v7579, %v7579
        %v7652 = vpack.c.bf16 %v7580, %v7580
        %v7653 = vpack.c.bf16 %v7581, %v7581
        %v7654 = vpack.c.bf16 %v7582, %v7582
        %v7655 = vpack.c.bf16 %v7583, %v7583
        %v7656 = vpack.c.bf16 %v7584, %v7584
        %v7657 = vpack.c.bf16 %v7585, %v7585
        %v7658 = vpack.c.bf16 %v7586, %v7586
        %v7659 = vpack.c.bf16 %v7587, %v7587
        %v7660 = vpack.c.bf16 %v7588, %v7588
        %v7661 = vpack.c.bf16 %v7589, %v7589
        %v7662 = vpack.c.bf16 %v7590, %v7590
        %v7663 = vpack.c.bf16 %v7591, %v7591
        %v7664 = vpack.c.bf16 %v7592, %v7592
        %v7665 = vpack.c.bf16 %v7593, %v7593
        %v7666 = vpack.c.bf16 %v7594, %v7594
        %v7667 = vpack.c.bf16 %v7595, %v7595
        %v7668 = vpack.c.bf16 %v7596, %v7596
        %v7669 = vpack.c.bf16 %v7597, %v7597
        %v7670 = vpack.c.bf16 %v7598, %v7598
        %v7671 = vpack.c.bf16 %v7599, %v7599
        %v7672 = vpack.c.bf16 %v7600, %v7600
        %v7673 = vpack.c.bf16 %v7601, %v7601
        %v7674 = vpack.c.bf16 %v7602, %v7602
        %v7675 = vpack.c.bf16 %v7603, %v7603
        %v7676 = vpack.c.bf16 %v7604, %v7604
        %v7677 = vpack.c.bf16 %v7605, %v7605
        %v7678 = vpack.c.bf16 %v7606, %v7606
        %v7679 = vpack.c.bf16 %v7607, %v7607
        %v7680 = vpack.c.bf16 %v7608, %v7608
        %v7681 = vpack.c.bf16 %v7609, %v7609
        %v7682 = vpack.c.bf16 %v7610, %v7610
        %v7683 = vpack.c.bf16 %v7611, %v7611
        %v7684 = vpack.c.bf16 %v7612, %v7612
        %v7685 = vpack.c.bf16 %v7613, %v7613
        %v7686 = vpack.c.bf16 %v7614, %v7614
        %v7687 = vpack.c.bf16 %v7615, %v7615
        %v7688 = vpack.c.bf16 %v7616, %v7616
        %v7689 = vpack.c.bf16 %v7617, %v7617
        %v7690 = vpack.c.bf16 %v7618, %v7618
        %v7691 = vpack.c.bf16 %v7619, %v7619
        %v7692 = vpack.c.bf16 %v7620, %v7620
        %v7693 = vpack.c.bf16 %v7621, %v7621
        %v7694 = vpack.c.bf16 %v7622, %v7622
        %v7695 = vpack.c.bf16 %v7623, %v7623
        %v7696 = vpack.c.bf16 %v7624, %v7624
        %v7697 = vpack.c.bf16 %v7625, %v7625
        %v7698 = vpack.c.bf16 %v7626, %v7626
        %v7699 = vpack.c.bf16 %v7627, %v7627
        %v7700 = vpack.c.bf16 %v7628, %v7628
        %v7701 = vpack.c.bf16 %v7629, %v7629
        %v7702 = vpack.c.bf16 %v7630, %v7630
        %v7703 = vpack.c.bf16 %v7631, %v7631
        %v7704 = vpack.c.bf16 %v7632, %v7632
        %v7705 = vpack.c.bf16 %v7633, %v7633
        %v7706 = vpack.c.bf16 %v7634, %v7634
        %v7707 = vpack.c.bf16 %v7635, %v7635
        %v7716 = vunpack.c.l.b16 %v7636
        %v7717 = vunpack.c.h.b16 %v7636
        %v7718 = vunpack.c.l.b16 %v7637
        %v7719 = vunpack.c.h.b16 %v7637
        %v7720 = vunpack.c.l.b16 %v7638
        %v7721 = vunpack.c.h.b16 %v7638
        %v7722 = vunpack.c.l.b16 %v7639
        %v7723 = vunpack.c.h.b16 %v7639
        %v7724 = vunpack.c.l.b16 %v7640
        %v7725 = vunpack.c.h.b16 %v7640
        %v7726 = vunpack.c.l.b16 %v7641
        %v7727 = vunpack.c.h.b16 %v7641
        %v7728 = vunpack.c.l.b16 %v7642
        %v7729 = vunpack.c.h.b16 %v7642
        %v7730 = vunpack.c.l.b16 %v7643
        %v7731 = vunpack.c.h.b16 %v7643
        %v7732 = vpack.c.b16 %v7718, %v7716
        %v7733 = vpack.c.b16 %v7719, %v7717
        %v7734 = vpack.c.b16 %v7722, %v7720
        %v7735 = vpack.c.b16 %v7723, %v7721
        %v7736 = vpack.c.b16 %v7726, %v7724
        %v7737 = vpack.c.b16 %v7727, %v7725
        %v7738 = vpack.c.b16 %v7730, %v7728
        %v7739 = vpack.c.b16 %v7731, %v7729
        %v7780 = vunpack.c.l.b16 %v7644
        %v7781 = vunpack.c.l.b16 %v7645
        %v7782 = vunpack.c.l.b16 %v7646
        %v7783 = vunpack.c.l.b16 %v7647
        %v7784 = vunpack.c.l.b16 %v7648
        %v7785 = vunpack.c.l.b16 %v7649
        %v7786 = vunpack.c.l.b16 %v7650
        %v7787 = vunpack.c.l.b16 %v7651
        %v7788 = vunpack.c.l.b16 %v7652
        %v7789 = vunpack.c.l.b16 %v7653
        %v7790 = vunpack.c.l.b16 %v7654
        %v7791 = vunpack.c.l.b16 %v7655
        %v7792 = vunpack.c.l.b16 %v7656
        %v7793 = vunpack.c.l.b16 %v7657
        %v7794 = vunpack.c.l.b16 %v7658
        %v7795 = vunpack.c.l.b16 %v7659
        %v7796 = vunpack.c.l.b16 %v7660
        %v7797 = vunpack.c.l.b16 %v7661
        %v7798 = vunpack.c.l.b16 %v7662
        %v7799 = vunpack.c.l.b16 %v7663
        %v7800 = vunpack.c.l.b16 %v7664
        %v7801 = vunpack.c.l.b16 %v7665
        %v7802 = vunpack.c.l.b16 %v7666
        %v7803 = vunpack.c.l.b16 %v7667
        %v7804 = vunpack.c.l.b16 %v7668
        %v7805 = vunpack.c.l.b16 %v7669
        %v7806 = vunpack.c.l.b16 %v7670
        %v7807 = vunpack.c.l.b16 %v7671
        %v7808 = vunpack.c.l.b16 %v7672
        %v7809 = vunpack.c.l.b16 %v7673
        %v7810 = vunpack.c.l.b16 %v7674
        %v7811 = vunpack.c.l.b16 %v7675
        %v7812 = vpack.c.b16 %v7781, %v7780
        %v7813 = vpack.c.b16 %v7783, %v7782
        %v7814 = vpack.c.b16 %v7785, %v7784
        %v7815 = vpack.c.b16 %v7787, %v7786
        %v7816 = vpack.c.b16 %v7789, %v7788
        %v7817 = vpack.c.b16 %v7791, %v7790
        %v7818 = vpack.c.b16 %v7793, %v7792
        %v7819 = vpack.c.b16 %v7795, %v7794
        %v7820 = vpack.c.b16 %v7797, %v7796
        %v7821 = vpack.c.b16 %v7799, %v7798
        %v7822 = vpack.c.b16 %v7801, %v7800
        %v7823 = vpack.c.b16 %v7803, %v7802
        %v7824 = vpack.c.b16 %v7805, %v7804
        %v7825 = vpack.c.b16 %v7807, %v7806
        %v7826 = vpack.c.b16 %v7809, %v7808
        %v7827 = vpack.c.b16 %v7811, %v7810
        %7844 = vmatpush.bf16.msra.mxu0 %v7819
        %7845 = vmatpush.bf16.msra.mxu0 %v7818
        %7846 = vmatpush.bf16.msra.mxu0 %v7817
        %7847 = vmatpush.bf16.msra.mxu0 %v7816
        %7848 = vmatpush.bf16.msra.mxu0 %v7815
        %7849 = vmatpush.bf16.msra.mxu0 %v7814
        %7850 = vmatpush.bf16.msra.mxu0 %v7813
        %7851 = vmatpush.bf16.msra.mxu0 %v7812
        %7852 = vmatmul.bf16.gmra.mxu0 %v7732
        %v7853 = vpop.f32.mrf.mxu0
        %v7854 = vadd.f32 0.0, %v7853
        %v7855 = vpop.f32.mrf.mxu0
        %v7856 = vadd.f32 0.0, %v7855
        %7857 = vmatmul.bf16.gmra.mxu0 %v7734
        %v7858 = vpop.f32.mrf.mxu0
        %v7859 = vadd.f32 0.0, %v7858
        %v7860 = vpop.f32.mrf.mxu0
        %v7861 = vadd.f32 0.0, %v7860
        %7862 = vmatmul.bf16.gmra.mxu0 %v7736
        %v7863 = vpop.f32.mrf.mxu0
        %v7864 = vadd.f32 0.0, %v7863
        %v7865 = vpop.f32.mrf.mxu0
        %v7866 = vadd.f32 0.0, %v7865
        %7867 = vmatmul.bf16.gmra.mxu0 %v7738
        %v7868 = vpop.f32.mrf.mxu0
        %v7869 = vadd.f32 0.0, %v7868
        %v7870 = vpop.f32.mrf.mxu0
        %v7871 = vadd.f32 0.0, %v7870
        %7872 = vdwg.mxu0
        %7873 = vmatpush.bf16.msra.mxu0 %v7827
        %7874 = vmatpush.bf16.msra.mxu0 %v7826
        %7875 = vmatpush.bf16.msra.mxu0 %v7825
        %7876 = vmatpush.bf16.msra.mxu0 %v7824
        %7877 = vmatpush.bf16.msra.mxu0 %v7823
        %7878 = vmatpush.bf16.msra.mxu0 %v7822
        %7879 = vmatpush.bf16.msra.mxu0 %v7821
        %7880 = vmatpush.bf16.msra.mxu0 %v7820
        %7881 = vmatmul.bf16.gmra.mxu0 %v7733
        %v7882 = vpop.f32.mrf.mxu0
        %v7883 = vadd.f32 %v7854, %v7882
        %v7884 = vpop.f32.mrf.mxu0
        %v7885 = vadd.f32 %v7856, %v7884
        %7886 = vmatmul.bf16.gmra.mxu0 %v7735
        %v7887 = vpop.f32.mrf.mxu0
        %v7888 = vadd.f32 %v7859, %v7887
        %v7889 = vpop.f32.mrf.mxu0
        %v7890 = vadd.f32 %v7861, %v7889
        %7891 = vmatmul.bf16.gmra.mxu0 %v7737
        %v7892 = vpop.f32.mrf.mxu0
        %v7893 = vadd.f32 %v7864, %v7892
        %v7894 = vpop.f32.mrf.mxu0
        %v7895 = vadd.f32 %v7866, %v7894
        %7896 = vmatmul.bf16.gmra.mxu0 %v7739
        %v7897 = vpop.f32.mrf.mxu0
        %v7898 = vadd.f32 %v7869, %v7897
        %v7899 = vpop.f32.mrf.mxu0
        %v7900 = vadd.f32 %v7871, %v7899
        %7901 = vdwg.mxu0
        %v7934 = vunpack.c.l.b16 %v7676
        %v7935 = vunpack.c.l.b16 %v7677
        %v7936 = vunpack.c.l.b16 %v7678
        %v7937 = vunpack.c.l.b16 %v7679
        %v7938 = vunpack.c.l.b16 %v7680
        %v7939 = vunpack.c.l.b16 %v7681
        %v7940 = vunpack.c.l.b16 %v7682
        %v7941 = vunpack.c.l.b16 %v7683
        %v7942 = vunpack.c.l.b16 %v7684
        %v7943 = vunpack.c.l.b16 %v7685
        %v7944 = vunpack.c.l.b16 %v7686
        %v7945 = vunpack.c.l.b16 %v7687
        %v7946 = vunpack.c.l.b16 %v7688
        %v7947 = vunpack.c.l.b16 %v7689
        %v7948 = vunpack.c.l.b16 %v7690
        %v7949 = vunpack.c.l.b16 %v7691
        %v7950 = vunpack.c.l.b16 %v7692
        %v7951 = vunpack.c.l.b16 %v7693
        %v7952 = vunpack.c.l.b16 %v7694
        %v7953 = vunpack.c.l.b16 %v7695
        %v7954 = vunpack.c.l.b16 %v7696
        %v7955 = vunpack.c.l.b16 %v7697
        %v7956 = vunpack.c.l.b16 %v7698
        %v7957 = vunpack.c.l.b16 %v7699
        %v7958 = vunpack.c.l.b16 %v7700
        %v7959 = vunpack.c.l.b16 %v7701
        %v7960 = vunpack.c.l.b16 %v7702
        %v7961 = vunpack.c.l.b16 %v7703
        %v7962 = vunpack.c.l.b16 %v7704
        %v7963 = vunpack.c.l.b16 %v7705
        %v7964 = vunpack.c.l.b16 %v7706
        %v7965 = vunpack.c.l.b16 %v7707
        %v7966 = vpack.c.b16 %v7935, %v7934
        %v7967 = vpack.c.b16 %v7937, %v7936
        %v7968 = vpack.c.b16 %v7939, %v7938
        %v7969 = vpack.c.b16 %v7941, %v7940
        %v7970 = vpack.c.b16 %v7943, %v7942
        %v7971 = vpack.c.b16 %v7945, %v7944
        %v7972 = vpack.c.b16 %v7947, %v7946
        %v7973 = vpack.c.b16 %v7949, %v7948
        %v7974 = vpack.c.b16 %v7951, %v7950
        %v7975 = vpack.c.b16 %v7953, %v7952
        %v7976 = vpack.c.b16 %v7955, %v7954
        %v7977 = vpack.c.b16 %v7957, %v7956
        %v7978 = vpack.c.b16 %v7959, %v7958
        %v7979 = vpack.c.b16 %v7961, %v7960
        %v7980 = vpack.c.b16 %v7963, %v7962
        %v7981 = vpack.c.b16 %v7965, %v7964
        %7998 = vmatpush.bf16.msra.mxu0 %v7973
        %7999 = vmatpush.bf16.msra.mxu0 %v7972
        %8000 = vmatpush.bf16.msra.mxu0 %v7971
        %8001 = vmatpush.bf16.msra.mxu0 %v7970
        %8002 = vmatpush.bf16.msra.mxu0 %v7969
        %8003 = vmatpush.bf16.msra.mxu0 %v7968
        %8004 = vmatpush.bf16.msra.mxu0 %v7967
        %8005 = vmatpush.bf16.msra.mxu0 %v7966
        %8006 = vmatmul.bf16.gmra.mxu0 %v7732
        %v8007 = vpop.f32.mrf.mxu0
        %v8008 = vadd.f32 0.0, %v8007
        %v8009 = vpop.f32.mrf.mxu0
        %v8010 = vadd.f32 0.0, %v8009
        %8011 = vmatmul.bf16.gmra.mxu0 %v7734
        %v8012 = vpop.f32.mrf.mxu0
        %v8013 = vadd.f32 0.0, %v8012
        %v8014 = vpop.f32.mrf.mxu0
        %v8015 = vadd.f32 0.0, %v8014
        %8016 = vmatmul.bf16.gmra.mxu0 %v7736
        %v8017 = vpop.f32.mrf.mxu0
        %v8018 = vadd.f32 0.0, %v8017
        %v8019 = vpop.f32.mrf.mxu0
        %v8020 = vadd.f32 0.0, %v8019
        %8021 = vmatmul.bf16.gmra.mxu0 %v7738
        %v8022 = vpop.f32.mrf.mxu0
        %v8023 = vadd.f32 0.0, %v8022
        %v8024 = vpop.f32.mrf.mxu0
        %v8025 = vadd.f32 0.0, %v8024
        %8026 = vdwg.mxu0
        %8027 = vmatpush.bf16.msra.mxu0 %v7981
        %8028 = vmatpush.bf16.msra.mxu0 %v7980
        %8029 = vmatpush.bf16.msra.mxu0 %v7979
        %8030 = vmatpush.bf16.msra.mxu0 %v7978
        %8031 = vmatpush.bf16.msra.mxu0 %v7977
        %8032 = vmatpush.bf16.msra.mxu0 %v7976
        %8033 = vmatpush.bf16.msra.mxu0 %v7975
        %8034 = vmatpush.bf16.msra.mxu0 %v7974
        %8035 = vmatmul.bf16.gmra.mxu0 %v7733
        %v8036 = vpop.f32.mrf.mxu0
        %v8037 = vadd.f32 %v8008, %v8036
        %v8038 = vpop.f32.mrf.mxu0
        %v8039 = vadd.f32 %v8010, %v8038
        %8040 = vmatmul.bf16.gmra.mxu0 %v7735
        %v8041 = vpop.f32.mrf.mxu0
        %v8042 = vadd.f32 %v8013, %v8041
        %v8043 = vpop.f32.mrf.mxu0
        %v8044 = vadd.f32 %v8015, %v8043
        %8045 = vmatmul.bf16.gmra.mxu0 %v7737
        %v8046 = vpop.f32.mrf.mxu0
        %v8047 = vadd.f32 %v8018, %v8046
        %v8048 = vpop.f32.mrf.mxu0
        %v8049 = vadd.f32 %v8020, %v8048
        %8050 = vmatmul.bf16.gmra.mxu0 %v7739
        %v8051 = vpop.f32.mrf.mxu0
        %v8052 = vadd.f32 %v8023, %v8051
        %v8053 = vpop.f32.mrf.mxu0
        %v8054 = vadd.f32 %v8025, %v8053
        %8055 = vdwg.mxu0
        %v8056 = vld [vmem:[#allocation4] sm:$0xff]
        %v8057 = vld [vmem:[#allocation4 + $0x8] sm:$0xff]
        %v8058 = vld [vmem:[#allocation4 + $0x10] sm:$0xff]
        %v8059 = vld [vmem:[#allocation4 + $0x18] sm:$0xff]
        %v8060 = vld [vmem:[#allocation4 + $0x20] sm:$0xff]
        %v8061 = vld [vmem:[#allocation4 + $0x28] sm:$0xff]
        %v8062 = vld [vmem:[#allocation4 + $0x30] sm:$0xff]
        %v8063 = vld [vmem:[#allocation4 + $0x38] sm:$0xff]
        %v8064 = vld [vmem:[#allocation4 + $0x40] sm:$0xff]
        %v8065 = vld [vmem:[#allocation4 + $0x48] sm:$0xff]
        %v8066 = vld [vmem:[#allocation4 + $0x50] sm:$0xff]
        %v8067 = vld [vmem:[#allocation4 + $0x58] sm:$0xff]
        %v8068 = vld [vmem:[#allocation4 + $0x60] sm:$0xff]
        %v8069 = vld [vmem:[#allocation4 + $0x68] sm:$0xff]
        %v8070 = vld [vmem:[#allocation4 + $0x70] sm:$0xff]
        %v8071 = vld [vmem:[#allocation4 + $0x78] sm:$0xff]
        %v8072 = vadd.f32 %v8056, %v7883
        %v8073 = vadd.f32 %v8057, %v7885
        %v8074 = vadd.f32 %v8058, %v7888
        %v8075 = vadd.f32 %v8059, %v7890
        %v8076 = vadd.f32 %v8060, %v7893
        %v8077 = vadd.f32 %v8061, %v7895
        %v8078 = vadd.f32 %v8062, %v7898
        %v8079 = vadd.f32 %v8063, %v7900
        %v8080 = vadd.f32 %v8064, %v8037
        %v8081 = vadd.f32 %v8065, %v8039
        %v8082 = vadd.f32 %v8066, %v8042
        %v8083 = vadd.f32 %v8067, %v8044
        %v8084 = vadd.f32 %v8068, %v8047
        %v8085 = vadd.f32 %v8069, %v8049
        %v8086 = vadd.f32 %v8070, %v8052
        %v8087 = vadd.f32 %v8071, %v8054
        %8088 = vst.msk [vmem:[#allocation4] sm:$0xff] %vm1145, %v8072
        %8089 = vst.msk [vmem:[#allocation4 + $0x8] sm:$0xff] %vm1145, %v8073
        %8090 = vst.msk [vmem:[#allocation4 + $0x10] sm:$0xff] %vm1145, %v8074
        %8091 = vst.msk [vmem:[#allocation4 + $0x18] sm:$0xff] %vm1145, %v8075
        %8092 = vst.msk [vmem:[#allocation4 + $0x20] sm:$0xff] %vm1145, %v8076
        %8093 = vst.msk [vmem:[#allocation4 + $0x28] sm:$0xff] %vm1145, %v8077
        %8094 = vst.msk [vmem:[#allocation4 + $0x30] sm:$0xff] %vm1145, %v8078
        %8095 = vst.msk [vmem:[#allocation4 + $0x38] sm:$0xff] %vm1145, %v8079
        %8096 = vst.msk [vmem:[#allocation4 + $0x40] sm:$0xff] %vm1145, %v8080
        %8097 = vst.msk [vmem:[#allocation4 + $0x48] sm:$0xff] %vm1145, %v8081
        %8098 = vst.msk [vmem:[#allocation4 + $0x50] sm:$0xff] %vm1145, %v8082
        %8099 = vst.msk [vmem:[#allocation4 + $0x58] sm:$0xff] %vm1145, %v8083
        %8100 = vst.msk [vmem:[#allocation4 + $0x60] sm:$0xff] %vm1145, %v8084
        %8101 = vst.msk [vmem:[#allocation4 + $0x68] sm:$0xff] %vm1145, %v8085
        %8102 = vst.msk [vmem:[#allocation4 + $0x70] sm:$0xff] %vm1145, %v8086
        %8103 = vst.msk [vmem:[#allocation4 + $0x78] sm:$0xff] %vm1145, %v8087
        %8120 = vrot.lane.b32.xlu0 %v7883, 112
        %v8121 = vpop.permute.xlu0 %8120
        %8122 = vrot.lane.b32.xlu0 %v7885, 112
        %v8123 = vpop.permute.xlu0 %8122
        %8124 = vrot.lane.b32.xlu0 %v7888, 112
        %v8125 = vpop.permute.xlu0 %8124
        %8126 = vrot.lane.b32.xlu0 %v7890, 112
        %v8127 = vpop.permute.xlu0 %8126
        %8128 = vrot.lane.b32.xlu0 %v7893, 112
        %v8129 = vpop.permute.xlu0 %8128
        %8130 = vrot.lane.b32.xlu0 %v7895, 112
        %v8131 = vpop.permute.xlu0 %8130
        %8132 = vrot.lane.b32.xlu0 %v7898, 112
        %v8133 = vpop.permute.xlu0 %8132
        %8134 = vrot.lane.b32.xlu0 %v7900, 112
        %v8135 = vpop.permute.xlu0 %8134
        %8136 = vrot.lane.b32.xlu0 %v8037, 112
        %v8137 = vpop.permute.xlu0 %8136
        %8138 = vrot.lane.b32.xlu0 %v8039, 112
        %v8139 = vpop.permute.xlu0 %8138
        %8140 = vrot.lane.b32.xlu0 %v8042, 112
        %v8141 = vpop.permute.xlu0 %8140
        %8142 = vrot.lane.b32.xlu0 %v8044, 112
        %v8143 = vpop.permute.xlu0 %8142
        %8144 = vrot.lane.b32.xlu0 %v8047, 112
        %v8145 = vpop.permute.xlu0 %8144
        %8146 = vrot.lane.b32.xlu0 %v8049, 112
        %v8147 = vpop.permute.xlu0 %8146
        %8148 = vrot.lane.b32.xlu0 %v8052, 112
        %v8149 = vpop.permute.xlu0 %8148
        %8150 = vrot.lane.b32.xlu0 %v8054, 112
        %v8151 = vpop.permute.xlu0 %8150
        %8168 = vst.msk [vmem:[#allocation5] sm:$0xff] %vm1145, %v8121
        %8169 = vst.msk [vmem:[#allocation5 + $0x8] sm:$0xff] %vm1145, %v8123
        %8170 = vst.msk [vmem:[#allocation5 + $0x10] sm:$0xff] %vm1145, %v8125
        %8171 = vst.msk [vmem:[#allocation5 + $0x18] sm:$0xff] %vm1145, %v8127
        %8172 = vst.msk [vmem:[#allocation5 + $0x20] sm:$0xff] %vm1145, %v8129
        %8173 = vst.msk [vmem:[#allocation5 + $0x28] sm:$0xff] %vm1145, %v8131
        %8174 = vst.msk [vmem:[#allocation5 + $0x30] sm:$0xff] %vm1145, %v8133
        %8175 = vst.msk [vmem:[#allocation5 + $0x38] sm:$0xff] %vm1145, %v8135
        %8176 = vst.msk [vmem:[#allocation5 + $0x40] sm:$0xff] %vm1145, %v8137
        %8177 = vst.msk [vmem:[#allocation5 + $0x48] sm:$0xff] %vm1145, %v8139
        %8178 = vst.msk [vmem:[#allocation5 + $0x50] sm:$0xff] %vm1145, %v8141
        %8179 = vst.msk [vmem:[#allocation5 + $0x58] sm:$0xff] %vm1145, %v8143
        %8180 = vst.msk [vmem:[#allocation5 + $0x60] sm:$0xff] %vm1145, %v8145
        %8181 = vst.msk [vmem:[#allocation5 + $0x68] sm:$0xff] %vm1145, %v8147
        %8182 = vst.msk [vmem:[#allocation5 + $0x70] sm:$0xff] %vm1145, %v8149
        %8183 = vst.msk [vmem:[#allocation5 + $0x78] sm:$0xff] %vm1145, %v8151
        %s8184 = sld [smem:[#allocation8 + $0x21]]
        %s8185 = sld [smem:[#allocation8 + $0x23]]
        %v8186 = vstv %s8184
        %v8187 = vmul.f32 %v8186, %v5299
        %v8188 = vmul.f32 %v8186, %v5300
        %v8189 = vmul.f32 %v8186, %v5301
        %v8190 = vmul.f32 %v8186, %v5302
        %v8191 = vmul.f32 %v8186, %v5303
        %v8192 = vmul.f32 %v8186, %v5304
        %v8193 = vmul.f32 %v8186, %v5305
        %v8194 = vmul.f32 %v8186, %v5306
        %v8195 = vmul.f32 %v8186, %v5307
        %v8196 = vmul.f32 %v8186, %v5308
        %v8197 = vmul.f32 %v8186, %v5309
        %v8198 = vmul.f32 %v8186, %v5310
        %v8199 = vmul.f32 %v8186, %v5311
        %v8200 = vmul.f32 %v8186, %v5312
        %v8201 = vmul.f32 %v8186, %v5313
        %v8202 = vmul.f32 %v8186, %v5314
        %v8203 = vmul.f32 %v8186, %v5315
        %v8204 = vmul.f32 %v8186, %v5316
        %v8205 = vmul.f32 %v8186, %v5317
        %v8206 = vmul.f32 %v8186, %v5318
        %v8207 = vmul.f32 %v8186, %v5319
        %v8208 = vmul.f32 %v8186, %v5320
        %v8209 = vmul.f32 %v8186, %v5321
        %v8210 = vmul.f32 %v8186, %v5322
        %v8211 = vmul.f32 %v8186, %v5323
        %v8212 = vmul.f32 %v8186, %v5324
        %v8213 = vmul.f32 %v8186, %v5325
        %v8214 = vmul.f32 %v8186, %v5326
        %v8215 = vmul.f32 %v8186, %v5327
        %v8216 = vmul.f32 %v8186, %v5328
        %v8217 = vmul.f32 %v8186, %v5329
        %v8218 = vmul.f32 %v8186, %v5330
        %v8219 = vmul.f32 %v8186, %v5331
        %v8220 = vmul.f32 %v8186, %v5332
        %v8221 = vmul.f32 %v8186, %v5333
        %v8222 = vmul.f32 %v8186, %v5334
        %v8223 = vmul.f32 %v8186, %v5335
        %v8224 = vmul.f32 %v8186, %v5336
        %v8225 = vmul.f32 %v8186, %v5337
        %v8226 = vmul.f32 %v8186, %v5338
        %v8227 = vmul.f32 %v8186, %v5339
        %v8228 = vmul.f32 %v8186, %v5340
        %v8229 = vmul.f32 %v8186, %v5341
        %v8230 = vmul.f32 %v8186, %v5342
        %v8231 = vmul.f32 %v8186, %v5343
        %v8232 = vmul.f32 %v8186, %v5344
        %v8233 = vmul.f32 %v8186, %v5345
        %v8234 = vmul.f32 %v8186, %v5346
        %v8235 = vmul.f32 %v8186, %v5347
        %v8236 = vmul.f32 %v8186, %v5348
        %v8237 = vmul.f32 %v8186, %v5349
        %v8238 = vmul.f32 %v8186, %v5350
        %v8239 = vmul.f32 %v8186, %v5351
        %v8240 = vmul.f32 %v8186, %v5352
        %v8241 = vmul.f32 %v8186, %v5353
        %v8242 = vmul.f32 %v8186, %v5354
        %v8243 = vmul.f32 %v8186, %v5355
        %v8244 = vmul.f32 %v8186, %v5356
        %v8245 = vmul.f32 %v8186, %v5357
        %v8246 = vmul.f32 %v8186, %v5358
        %v8247 = vmul.f32 %v8186, %v5359
        %v8248 = vmul.f32 %v8186, %v5360
        %v8249 = vmul.f32 %v8186, %v5361
        %v8250 = vmul.f32 %v8186, %v5362
        %v8251 = vstv %s8185
        %v8252 = vmul.f32 %v8251, %v5814
        %v8253 = vmul.f32 %v8251, %v5816
        %v8254 = vmul.f32 %v8251, %v5819
        %v8255 = vmul.f32 %v8251, %v5821
        %v8256 = vmul.f32 %v8251, %v5824
        %v8257 = vmul.f32 %v8251, %v5826
        %v8258 = vmul.f32 %v8251, %v5829
        %v8259 = vmul.f32 %v8251, %v5831
        %v8260 = vmul.f32 %v8251, %v5834
        %v8261 = vmul.f32 %v8251, %v5836
        %v8262 = vmul.f32 %v8251, %v5839
        %v8263 = vmul.f32 %v8251, %v5841
        %v8264 = vmul.f32 %v8251, %v5844
        %v8265 = vmul.f32 %v8251, %v5846
        %v8266 = vmul.f32 %v8251, %v5849
        %v8267 = vmul.f32 %v8251, %v5851
        %v8268 = vmul.f32 %v8251, %v5854
        %v8269 = vmul.f32 %v8251, %v5856
        %v8270 = vmul.f32 %v8251, %v5859
        %v8271 = vmul.f32 %v8251, %v5861
        %v8272 = vmul.f32 %v8251, %v5864
        %v8273 = vmul.f32 %v8251, %v5866
        %v8274 = vmul.f32 %v8251, %v5869
        %v8275 = vmul.f32 %v8251, %v5871
        %v8276 = vmul.f32 %v8251, %v5874
        %v8277 = vmul.f32 %v8251, %v5876
        %v8278 = vmul.f32 %v8251, %v5879
        %v8279 = vmul.f32 %v8251, %v5881
        %v8280 = vmul.f32 %v8251, %v5884
        %v8281 = vmul.f32 %v8251, %v5886
        %v8282 = vmul.f32 %v8251, %v5889
        %v8283 = vmul.f32 %v8251, %v5891
        %v8284 = vmul.f32 %v8251, %v6088
        %v8285 = vmul.f32 %v8251, %v6090
        %v8286 = vmul.f32 %v8251, %v6093
        %v8287 = vmul.f32 %v8251, %v6095
        %v8288 = vmul.f32 %v8251, %v6098
        %v8289 = vmul.f32 %v8251, %v6100
        %v8290 = vmul.f32 %v8251, %v6103
        %v8291 = vmul.f32 %v8251, %v6105
        %v8292 = vmul.f32 %v8251, %v6108
        %v8293 = vmul.f32 %v8251, %v6110
        %v8294 = vmul.f32 %v8251, %v6113
        %v8295 = vmul.f32 %v8251, %v6115
        %v8296 = vmul.f32 %v8251, %v6118
        %v8297 = vmul.f32 %v8251, %v6120
        %v8298 = vmul.f32 %v8251, %v6123
        %v8299 = vmul.f32 %v8251, %v6125
        %v8300 = vmul.f32 %v8251, %v6128
        %v8301 = vmul.f32 %v8251, %v6130
        %v8302 = vmul.f32 %v8251, %v6133
        %v8303 = vmul.f32 %v8251, %v6135
        %v8304 = vmul.f32 %v8251, %v6138
        %v8305 = vmul.f32 %v8251, %v6140
        %v8306 = vmul.f32 %v8251, %v6143
        %v8307 = vmul.f32 %v8251, %v6145
        %v8308 = vmul.f32 %v8251, %v6148
        %v8309 = vmul.f32 %v8251, %v6150
        %v8310 = vmul.f32 %v8251, %v6153
        %v8311 = vmul.f32 %v8251, %v6155
        %v8312 = vmul.f32 %v8251, %v6158
        %v8313 = vmul.f32 %v8251, %v6160
        %v8314 = vmul.f32 %v8251, %v6163
        %v8315 = vmul.f32 %v8251, %v6165
        %v8316 = vadd.f32 %v8187, %v8252
        %v8317 = vadd.f32 %v8188, %v8253
        %v8318 = vadd.f32 %v8189, %v8254
        %v8319 = vadd.f32 %v8190, %v8255
        %v8320 = vadd.f32 %v8191, %v8256
        %v8321 = vadd.f32 %v8192, %v8257
        %v8322 = vadd.f32 %v8193, %v8258
        %v8323 = vadd.f32 %v8194, %v8259
        %v8324 = vadd.f32 %v8195, %v8260
        %v8325 = vadd.f32 %v8196, %v8261
        %v8326 = vadd.f32 %v8197, %v8262
        %v8327 = vadd.f32 %v8198, %v8263
        %v8328 = vadd.f32 %v8199, %v8264
        %v8329 = vadd.f32 %v8200, %v8265
        %v8330 = vadd.f32 %v8201, %v8266
        %v8331 = vadd.f32 %v8202, %v8267
        %v8332 = vadd.f32 %v8203, %v8268
        %v8333 = vadd.f32 %v8204, %v8269
        %v8334 = vadd.f32 %v8205, %v8270
        %v8335 = vadd.f32 %v8206, %v8271
        %v8336 = vadd.f32 %v8207, %v8272
        %v8337 = vadd.f32 %v8208, %v8273
        %v8338 = vadd.f32 %v8209, %v8274
        %v8339 = vadd.f32 %v8210, %v8275
        %v8340 = vadd.f32 %v8211, %v8276
        %v8341 = vadd.f32 %v8212, %v8277
        %v8342 = vadd.f32 %v8213, %v8278
        %v8343 = vadd.f32 %v8214, %v8279
        %v8344 = vadd.f32 %v8215, %v8280
        %v8345 = vadd.f32 %v8216, %v8281
        %v8346 = vadd.f32 %v8217, %v8282
        %v8347 = vadd.f32 %v8218, %v8283
        %v8348 = vadd.f32 %v8219, %v8284
        %v8349 = vadd.f32 %v8220, %v8285
        %v8350 = vadd.f32 %v8221, %v8286
        %v8351 = vadd.f32 %v8222, %v8287
        %v8352 = vadd.f32 %v8223, %v8288
        %v8353 = vadd.f32 %v8224, %v8289
        %v8354 = vadd.f32 %v8225, %v8290
        %v8355 = vadd.f32 %v8226, %v8291
        %v8356 = vadd.f32 %v8227, %v8292
        %v8357 = vadd.f32 %v8228, %v8293
        %v8358 = vadd.f32 %v8229, %v8294
        %v8359 = vadd.f32 %v8230, %v8295
        %v8360 = vadd.f32 %v8231, %v8296
        %v8361 = vadd.f32 %v8232, %v8297
        %v8362 = vadd.f32 %v8233, %v8298
        %v8363 = vadd.f32 %v8234, %v8299
        %v8364 = vadd.f32 %v8235, %v8300
        %v8365 = vadd.f32 %v8236, %v8301
        %v8366 = vadd.f32 %v8237, %v8302
        %v8367 = vadd.f32 %v8238, %v8303
        %v8368 = vadd.f32 %v8239, %v8304
        %v8369 = vadd.f32 %v8240, %v8305
        %v8370 = vadd.f32 %v8241, %v8306
        %v8371 = vadd.f32 %v8242, %v8307
        %v8372 = vadd.f32 %v8243, %v8308
        %v8373 = vadd.f32 %v8244, %v8309
        %v8374 = vadd.f32 %v8245, %v8310
        %v8375 = vadd.f32 %v8246, %v8311
        %v8376 = vadd.f32 %v8247, %v8312
        %v8377 = vadd.f32 %v8248, %v8313
        %v8378 = vadd.f32 %v8249, %v8314
        %v8379 = vadd.f32 %v8250, %v8315
        %8380 = vrot.lane.b32.xlu0 %v6381, 96
        %v8381 = vpop.permute.xlu0 %8380
        %8382 = vrot.lane.b32.xlu0 %v6383, 96
        %v8383 = vpop.permute.xlu0 %8382
        %8384 = vrot.lane.b32.xlu0 %v6386, 96
        %v8385 = vpop.permute.xlu0 %8384
        %8386 = vrot.lane.b32.xlu0 %v6388, 96
        %v8387 = vpop.permute.xlu0 %8386
        %8388 = vrot.lane.b32.xlu0 %v6391, 96
        %v8389 = vpop.permute.xlu0 %8388
        %8390 = vrot.lane.b32.xlu0 %v6393, 96
        %v8391 = vpop.permute.xlu0 %8390
        %8392 = vrot.lane.b32.xlu0 %v6396, 96
        %v8393 = vpop.permute.xlu0 %8392
        %8394 = vrot.lane.b32.xlu0 %v6398, 96
        %v8395 = vpop.permute.xlu0 %8394
        %8396 = vrot.lane.b32.xlu0 %v6401, 96
        %v8397 = vpop.permute.xlu0 %8396
        %8398 = vrot.lane.b32.xlu0 %v6403, 96
        %v8399 = vpop.permute.xlu0 %8398
        %8400 = vrot.lane.b32.xlu0 %v6406, 96
        %v8401 = vpop.permute.xlu0 %8400
        %8402 = vrot.lane.b32.xlu0 %v6408, 96
        %v8403 = vpop.permute.xlu0 %8402
        %8404 = vrot.lane.b32.xlu0 %v6411, 96
        %v8405 = vpop.permute.xlu0 %8404
        %8406 = vrot.lane.b32.xlu0 %v6413, 96
        %v8407 = vpop.permute.xlu0 %8406
        %8408 = vrot.lane.b32.xlu0 %v6416, 96
        %v8409 = vpop.permute.xlu0 %8408
        %8410 = vrot.lane.b32.xlu0 %v6418, 96
        %v8411 = vpop.permute.xlu0 %8410
        %8412 = vrot.lane.b32.xlu0 %v6421, 96
        %v8413 = vpop.permute.xlu0 %8412
        %8414 = vrot.lane.b32.xlu0 %v6423, 96
        %v8415 = vpop.permute.xlu0 %8414
        %8416 = vrot.lane.b32.xlu0 %v6426, 96
        %v8417 = vpop.permute.xlu0 %8416
        %8418 = vrot.lane.b32.xlu0 %v6428, 96
        %v8419 = vpop.permute.xlu0 %8418
        %8420 = vrot.lane.b32.xlu0 %v6431, 96
        %v8421 = vpop.permute.xlu0 %8420
        %8422 = vrot.lane.b32.xlu0 %v6433, 96
        %v8423 = vpop.permute.xlu0 %8422
        %8424 = vrot.lane.b32.xlu0 %v6436, 96
        %v8425 = vpop.permute.xlu0 %8424
        %8426 = vrot.lane.b32.xlu0 %v6438, 96
        %v8427 = vpop.permute.xlu0 %8426
        %8428 = vrot.lane.b32.xlu0 %v6441, 96
        %v8429 = vpop.permute.xlu0 %8428
        %8430 = vrot.lane.b32.xlu0 %v6443, 96
        %v8431 = vpop.permute.xlu0 %8430
        %8432 = vrot.lane.b32.xlu0 %v6446, 96
        %v8433 = vpop.permute.xlu0 %8432
        %8434 = vrot.lane.b32.xlu0 %v6448, 96
        %v8435 = vpop.permute.xlu0 %8434
        %8436 = vrot.lane.b32.xlu0 %v6451, 96
        %v8437 = vpop.permute.xlu0 %8436
        %8438 = vrot.lane.b32.xlu0 %v6453, 96
        %v8439 = vpop.permute.xlu0 %8438
        %8440 = vrot.lane.b32.xlu0 %v6456, 96
        %v8441 = vpop.permute.xlu0 %8440
        %8442 = vrot.lane.b32.xlu0 %v6458, 96
        %v8443 = vpop.permute.xlu0 %8442
        %8444 = vrot.lane.b32.xlu0 %v6461, 96
        %v8445 = vpop.permute.xlu0 %8444
        %8446 = vrot.lane.b32.xlu0 %v6463, 96
        %v8447 = vpop.permute.xlu0 %8446
        %8448 = vrot.lane.b32.xlu0 %v6466, 96
        %v8449 = vpop.permute.xlu0 %8448
        %8450 = vrot.lane.b32.xlu0 %v6468, 96
        %v8451 = vpop.permute.xlu0 %8450
        %8452 = vrot.lane.b32.xlu0 %v6471, 96
        %v8453 = vpop.permute.xlu0 %8452
        %8454 = vrot.lane.b32.xlu0 %v6473, 96
        %v8455 = vpop.permute.xlu0 %8454
        %8456 = vrot.lane.b32.xlu0 %v6476, 96
        %v8457 = vpop.permute.xlu0 %8456
        %8458 = vrot.lane.b32.xlu0 %v6478, 96
        %v8459 = vpop.permute.xlu0 %8458
        %8460 = vrot.lane.b32.xlu0 %v6481, 96
        %v8461 = vpop.permute.xlu0 %8460
        %8462 = vrot.lane.b32.xlu0 %v6483, 96
        %v8463 = vpop.permute.xlu0 %8462
        %8464 = vrot.lane.b32.xlu0 %v6486, 96
        %v8465 = vpop.permute.xlu0 %8464
        %8466 = vrot.lane.b32.xlu0 %v6488, 96
        %v8467 = vpop.permute.xlu0 %8466
        %8468 = vrot.lane.b32.xlu0 %v6491, 96
        %v8469 = vpop.permute.xlu0 %8468
        %8470 = vrot.lane.b32.xlu0 %v6493, 96
        %v8471 = vpop.permute.xlu0 %8470
        %8472 = vrot.lane.b32.xlu0 %v6496, 96
        %v8473 = vpop.permute.xlu0 %8472
        %8474 = vrot.lane.b32.xlu0 %v6498, 96
        %v8475 = vpop.permute.xlu0 %8474
        %8476 = vrot.lane.b32.xlu0 %v6501, 96
        %v8477 = vpop.permute.xlu0 %8476
        %8478 = vrot.lane.b32.xlu0 %v6503, 96
        %v8479 = vpop.permute.xlu0 %8478
        %8480 = vrot.lane.b32.xlu0 %v6506, 96
        %v8481 = vpop.permute.xlu0 %8480
        %8482 = vrot.lane.b32.xlu0 %v6508, 96
        %v8483 = vpop.permute.xlu0 %8482
        %8484 = vrot.lane.b32.xlu0 %v6511, 96
        %v8485 = vpop.permute.xlu0 %8484
        %8486 = vrot.lane.b32.xlu0 %v6513, 96
        %v8487 = vpop.permute.xlu0 %8486
        %8488 = vrot.lane.b32.xlu0 %v6516, 96
        %v8489 = vpop.permute.xlu0 %8488
        %8490 = vrot.lane.b32.xlu0 %v6518, 96
        %v8491 = vpop.permute.xlu0 %8490
        %8492 = vrot.lane.b32.xlu0 %v6521, 96
        %v8493 = vpop.permute.xlu0 %8492
        %8494 = vrot.lane.b32.xlu0 %v6523, 96
        %v8495 = vpop.permute.xlu0 %8494
        %8496 = vrot.lane.b32.xlu0 %v6526, 96
        %v8497 = vpop.permute.xlu0 %8496
        %8498 = vrot.lane.b32.xlu0 %v6528, 96
        %v8499 = vpop.permute.xlu0 %8498
        %8500 = vrot.lane.b32.xlu0 %v6531, 96
        %v8501 = vpop.permute.xlu0 %8500
        %8502 = vrot.lane.b32.xlu0 %v6533, 96
        %v8503 = vpop.permute.xlu0 %8502
        %8504 = vrot.lane.b32.xlu0 %v6536, 96
        %v8505 = vpop.permute.xlu0 %8504
        %8506 = vrot.lane.b32.xlu0 %v6538, 96
        %v8507 = vpop.permute.xlu0 %8506
        %v8572 = vadd.f32 %v8316, %v8381
        %v8573 = vadd.f32 %v8317, %v8383
        %v8574 = vadd.f32 %v8318, %v8385
        %v8575 = vadd.f32 %v8319, %v8387
        %v8576 = vadd.f32 %v8320, %v8389
        %v8577 = vadd.f32 %v8321, %v8391
        %v8578 = vadd.f32 %v8322, %v8393
        %v8579 = vadd.f32 %v8323, %v8395
        %v8580 = vadd.f32 %v8324, %v8397
        %v8581 = vadd.f32 %v8325, %v8399
        %v8582 = vadd.f32 %v8326, %v8401
        %v8583 = vadd.f32 %v8327, %v8403
        %v8584 = vadd.f32 %v8328, %v8405
        %v8585 = vadd.f32 %v8329, %v8407
        %v8586 = vadd.f32 %v8330, %v8409
        %v8587 = vadd.f32 %v8331, %v8411
        %v8588 = vadd.f32 %v8332, %v8413
        %v8589 = vadd.f32 %v8333, %v8415
        %v8590 = vadd.f32 %v8334, %v8417
        %v8591 = vadd.f32 %v8335, %v8419
        %v8592 = vadd.f32 %v8336, %v8421
        %v8593 = vadd.f32 %v8337, %v8423
        %v8594 = vadd.f32 %v8338, %v8425
        %v8595 = vadd.f32 %v8339, %v8427
        %v8596 = vadd.f32 %v8340, %v8429
        %v8597 = vadd.f32 %v8341, %v8431
        %v8598 = vadd.f32 %v8342, %v8433
        %v8599 = vadd.f32 %v8343, %v8435
        %v8600 = vadd.f32 %v8344, %v8437
        %v8601 = vadd.f32 %v8345, %v8439
        %v8602 = vadd.f32 %v8346, %v8441
        %v8603 = vadd.f32 %v8347, %v8443
        %v8604 = vadd.f32 %v8348, %v8445
        %v8605 = vadd.f32 %v8349, %v8447
        %v8606 = vadd.f32 %v8350, %v8449
        %v8607 = vadd.f32 %v8351, %v8451
        %v8608 = vadd.f32 %v8352, %v8453
        %v8609 = vadd.f32 %v8353, %v8455
        %v8610 = vadd.f32 %v8354, %v8457
        %v8611 = vadd.f32 %v8355, %v8459
        %v8612 = vadd.f32 %v8356, %v8461
        %v8613 = vadd.f32 %v8357, %v8463
        %v8614 = vadd.f32 %v8358, %v8465
        %v8615 = vadd.f32 %v8359, %v8467
        %v8616 = vadd.f32 %v8360, %v8469
        %v8617 = vadd.f32 %v8361, %v8471
        %v8618 = vadd.f32 %v8362, %v8473
        %v8619 = vadd.f32 %v8363, %v8475
        %v8620 = vadd.f32 %v8364, %v8477
        %v8621 = vadd.f32 %v8365, %v8479
        %v8622 = vadd.f32 %v8366, %v8481
        %v8623 = vadd.f32 %v8367, %v8483
        %v8624 = vadd.f32 %v8368, %v8485
        %v8625 = vadd.f32 %v8369, %v8487
        %v8626 = vadd.f32 %v8370, %v8489
        %v8627 = vadd.f32 %v8371, %v8491
        %v8628 = vadd.f32 %v8372, %v8493
        %v8629 = vadd.f32 %v8373, %v8495
        %v8630 = vadd.f32 %v8374, %v8497
        %v8631 = vadd.f32 %v8375, %v8499
        %v8632 = vadd.f32 %v8376, %v8501
        %v8633 = vadd.f32 %v8377, %v8503
        %v8634 = vadd.f32 %v8378, %v8505
        %v8635 = vadd.f32 %v8379, %v8507
        %v8636 = vld [vmem:[%s17] sm:$0xff]
        %v8637 = vld [vmem:[%s17 + $0x8] sm:$0xff]
        %v8638 = vpack.c.bf16 %v8572, %v8572
        %v8639 = vpack.c.bf16 %v8573, %v8573
        %v8640 = vpack.c.bf16 %v8574, %v8574
        %v8641 = vpack.c.bf16 %v8575, %v8575
        %v8642 = vpack.c.bf16 %v8576, %v8576
        %v8643 = vpack.c.bf16 %v8577, %v8577
        %v8644 = vpack.c.bf16 %v8578, %v8578
        %v8645 = vpack.c.bf16 %v8579, %v8579
        %v8646 = vpack.c.bf16 %v8580, %v8580
        %v8647 = vpack.c.bf16 %v8581, %v8581
        %v8648 = vpack.c.bf16 %v8582, %v8582
        %v8649 = vpack.c.bf16 %v8583, %v8583
        %v8650 = vpack.c.bf16 %v8584, %v8584
        %v8651 = vpack.c.bf16 %v8585, %v8585
        %v8652 = vpack.c.bf16 %v8586, %v8586
        %v8653 = vpack.c.bf16 %v8587, %v8587
        %v8654 = vpack.c.bf16 %v8588, %v8588
        %v8655 = vpack.c.bf16 %v8589, %v8589
        %v8656 = vpack.c.bf16 %v8590, %v8590
        %v8657 = vpack.c.bf16 %v8591, %v8591
        %v8658 = vpack.c.bf16 %v8592, %v8592
        %v8659 = vpack.c.bf16 %v8593, %v8593
        %v8660 = vpack.c.bf16 %v8594, %v8594
        %v8661 = vpack.c.bf16 %v8595, %v8595
        %v8662 = vpack.c.bf16 %v8596, %v8596
        %v8663 = vpack.c.bf16 %v8597, %v8597
        %v8664 = vpack.c.bf16 %v8598, %v8598
        %v8665 = vpack.c.bf16 %v8599, %v8599
        %v8666 = vpack.c.bf16 %v8600, %v8600
        %v8667 = vpack.c.bf16 %v8601, %v8601
        %v8668 = vpack.c.bf16 %v8602, %v8602
        %v8669 = vpack.c.bf16 %v8603, %v8603
        %v8670 = vpack.c.bf16 %v8604, %v8604
        %v8671 = vpack.c.bf16 %v8605, %v8605
        %v8672 = vpack.c.bf16 %v8606, %v8606
        %v8673 = vpack.c.bf16 %v8607, %v8607
        %v8674 = vpack.c.bf16 %v8608, %v8608
        %v8675 = vpack.c.bf16 %v8609, %v8609
        %v8676 = vpack.c.bf16 %v8610, %v8610
        %v8677 = vpack.c.bf16 %v8611, %v8611
        %v8678 = vpack.c.bf16 %v8612, %v8612
        %v8679 = vpack.c.bf16 %v8613, %v8613
        %v8680 = vpack.c.bf16 %v8614, %v8614
        %v8681 = vpack.c.bf16 %v8615, %v8615
        %v8682 = vpack.c.bf16 %v8616, %v8616
        %v8683 = vpack.c.bf16 %v8617, %v8617
        %v8684 = vpack.c.bf16 %v8618, %v8618
        %v8685 = vpack.c.bf16 %v8619, %v8619
        %v8686 = vpack.c.bf16 %v8620, %v8620
        %v8687 = vpack.c.bf16 %v8621, %v8621
        %v8688 = vpack.c.bf16 %v8622, %v8622
        %v8689 = vpack.c.bf16 %v8623, %v8623
        %v8690 = vpack.c.bf16 %v8624, %v8624
        %v8691 = vpack.c.bf16 %v8625, %v8625
        %v8692 = vpack.c.bf16 %v8626, %v8626
        %v8693 = vpack.c.bf16 %v8627, %v8627
        %v8694 = vpack.c.bf16 %v8628, %v8628
        %v8695 = vpack.c.bf16 %v8629, %v8629
        %v8696 = vpack.c.bf16 %v8630, %v8630
        %v8697 = vpack.c.bf16 %v8631, %v8631
        %v8698 = vpack.c.bf16 %v8632, %v8632
        %v8699 = vpack.c.bf16 %v8633, %v8633
        %v8700 = vpack.c.bf16 %v8634, %v8634
        %v8701 = vpack.c.bf16 %v8635, %v8635
        %v8704 = vunpack.c.l.b16 %v8636
        %v8705 = vunpack.c.h.b16 %v8636
        %v8706 = vunpack.c.l.b16 %v8637
        %v8707 = vunpack.c.h.b16 %v8637
        %v8708 = vpack.c.b16 %v8706, %v8704
        %v8709 = vpack.c.b16 %v8707, %v8705
        %v8744 = vunpack.c.l.b16 %v8638
        %v8745 = vunpack.c.l.b16 %v8639
        %v8746 = vunpack.c.l.b16 %v8640
        %v8747 = vunpack.c.l.b16 %v8641
        %v8748 = vunpack.c.l.b16 %v8642
        %v8749 = vunpack.c.l.b16 %v8643
        %v8750 = vunpack.c.l.b16 %v8644
        %v8751 = vunpack.c.l.b16 %v8645
        %v8752 = vunpack.c.l.b16 %v8646
        %v8753 = vunpack.c.l.b16 %v8647
        %v8754 = vunpack.c.l.b16 %v8648
        %v8755 = vunpack.c.l.b16 %v8649
        %v8756 = vunpack.c.l.b16 %v8650
        %v8757 = vunpack.c.l.b16 %v8651
        %v8758 = vunpack.c.l.b16 %v8652
        %v8759 = vunpack.c.l.b16 %v8653
        %v8760 = vunpack.c.l.b16 %v8654
        %v8761 = vunpack.c.l.b16 %v8655
        %v8762 = vunpack.c.l.b16 %v8656
        %v8763 = vunpack.c.l.b16 %v8657
        %v8764 = vunpack.c.l.b16 %v8658
        %v8765 = vunpack.c.l.b16 %v8659
        %v8766 = vunpack.c.l.b16 %v8660
        %v8767 = vunpack.c.l.b16 %v8661
        %v8768 = vunpack.c.l.b16 %v8662
        %v8769 = vunpack.c.l.b16 %v8663
        %v8770 = vunpack.c.l.b16 %v8664
        %v8771 = vunpack.c.l.b16 %v8665
        %v8772 = vunpack.c.l.b16 %v8666
        %v8773 = vunpack.c.l.b16 %v8667
        %v8774 = vunpack.c.l.b16 %v8668
        %v8775 = vunpack.c.l.b16 %v8669
        %v8776 = vpack.c.b16 %v8745, %v8744
        %v8777 = vpack.c.b16 %v8747, %v8746
        %v8778 = vpack.c.b16 %v8749, %v8748
        %v8779 = vpack.c.b16 %v8751, %v8750
        %v8780 = vpack.c.b16 %v8753, %v8752
        %v8781 = vpack.c.b16 %v8755, %v8754
        %v8782 = vpack.c.b16 %v8757, %v8756
        %v8783 = vpack.c.b16 %v8759, %v8758
        %v8784 = vpack.c.b16 %v8761, %v8760
        %v8785 = vpack.c.b16 %v8763, %v8762
        %v8786 = vpack.c.b16 %v8765, %v8764
        %v8787 = vpack.c.b16 %v8767, %v8766
        %v8788 = vpack.c.b16 %v8769, %v8768
        %v8789 = vpack.c.b16 %v8771, %v8770
        %v8790 = vpack.c.b16 %v8773, %v8772
        %v8791 = vpack.c.b16 %v8775, %v8774
        %8808 = vmatpush.bf16.msra.mxu0 %v8783
        %8809 = vmatpush.bf16.msra.mxu0 %v8782
        %8810 = vmatpush.bf16.msra.mxu0 %v8781
        %8811 = vmatpush.bf16.msra.mxu0 %v8780
        %8812 = vmatpush.bf16.msra.mxu0 %v8779
        %8813 = vmatpush.bf16.msra.mxu0 %v8778
        %8814 = vmatpush.bf16.msra.mxu0 %v8777
        %8815 = vmatpush.bf16.msra.mxu0 %v8776
        %8816 = vmatmul.bf16.gmra.mxu0 %v8708
        %v8817 = vpop.f32.mrf.mxu0
        %v8818 = vadd.f32 0.0, %v8817
        %v8819 = vpop.f32.mrf.mxu0
        %v8820 = vadd.f32 0.0, %v8819
        %8821 = vdwg.mxu0
        %8822 = vmatpush.bf16.msra.mxu0 %v8791
        %8823 = vmatpush.bf16.msra.mxu0 %v8790
        %8824 = vmatpush.bf16.msra.mxu0 %v8789
        %8825 = vmatpush.bf16.msra.mxu0 %v8788
        %8826 = vmatpush.bf16.msra.mxu0 %v8787
        %8827 = vmatpush.bf16.msra.mxu0 %v8786
        %8828 = vmatpush.bf16.msra.mxu0 %v8785
        %8829 = vmatpush.bf16.msra.mxu0 %v8784
        %8830 = vmatmul.bf16.gmra.mxu0 %v8709
        %v8831 = vpop.f32.mrf.mxu0
        %v8832 = vadd.f32 %v8818, %v8831
        %v8833 = vpop.f32.mrf.mxu0
        %v8834 = vadd.f32 %v8820, %v8833
        %8835 = vdwg.mxu0
        %v8868 = vunpack.c.l.b16 %v8670
        %v8869 = vunpack.c.l.b16 %v8671
        %v8870 = vunpack.c.l.b16 %v8672
        %v8871 = vunpack.c.l.b16 %v8673
        %v8872 = vunpack.c.l.b16 %v8674
        %v8873 = vunpack.c.l.b16 %v8675
        %v8874 = vunpack.c.l.b16 %v8676
        %v8875 = vunpack.c.l.b16 %v8677
        %v8876 = vunpack.c.l.b16 %v8678
        %v8877 = vunpack.c.l.b16 %v8679
        %v8878 = vunpack.c.l.b16 %v8680
        %v8879 = vunpack.c.l.b16 %v8681
        %v8880 = vunpack.c.l.b16 %v8682
        %v8881 = vunpack.c.l.b16 %v8683
        %v8882 = vunpack.c.l.b16 %v8684
        %v8883 = vunpack.c.l.b16 %v8685
        %v8884 = vunpack.c.l.b16 %v8686
        %v8885 = vunpack.c.l.b16 %v8687
        %v8886 = vunpack.c.l.b16 %v8688
        %v8887 = vunpack.c.l.b16 %v8689
        %v8888 = vunpack.c.l.b16 %v8690
        %v8889 = vunpack.c.l.b16 %v8691
        %v8890 = vunpack.c.l.b16 %v8692
        %v8891 = vunpack.c.l.b16 %v8693
        %v8892 = vunpack.c.l.b16 %v8694
        %v8893 = vunpack.c.l.b16 %v8695
        %v8894 = vunpack.c.l.b16 %v8696
        %v8895 = vunpack.c.l.b16 %v8697
        %v8896 = vunpack.c.l.b16 %v8698
        %v8897 = vunpack.c.l.b16 %v8699
        %v8898 = vunpack.c.l.b16 %v8700
        %v8899 = vunpack.c.l.b16 %v8701
        %v8900 = vpack.c.b16 %v8869, %v8868
        %v8901 = vpack.c.b16 %v8871, %v8870
        %v8902 = vpack.c.b16 %v8873, %v8872
        %v8903 = vpack.c.b16 %v8875, %v8874
        %v8904 = vpack.c.b16 %v8877, %v8876
        %v8905 = vpack.c.b16 %v8879, %v8878
        %v8906 = vpack.c.b16 %v8881, %v8880
        %v8907 = vpack.c.b16 %v8883, %v8882
        %v8908 = vpack.c.b16 %v8885, %v8884
        %v8909 = vpack.c.b16 %v8887, %v8886
        %v8910 = vpack.c.b16 %v8889, %v8888
        %v8911 = vpack.c.b16 %v8891, %v8890
        %v8912 = vpack.c.b16 %v8893, %v8892
        %v8913 = vpack.c.b16 %v8895, %v8894
        %v8914 = vpack.c.b16 %v8897, %v8896
        %v8915 = vpack.c.b16 %v8899, %v8898
        %8932 = vmatpush.bf16.msra.mxu0 %v8907
        %8933 = vmatpush.bf16.msra.mxu0 %v8906
        %8934 = vmatpush.bf16.msra.mxu0 %v8905
        %8935 = vmatpush.bf16.msra.mxu0 %v8904
        %8936 = vmatpush.bf16.msra.mxu0 %v8903
        %8937 = vmatpush.bf16.msra.mxu0 %v8902
        %8938 = vmatpush.bf16.msra.mxu0 %v8901
        %8939 = vmatpush.bf16.msra.mxu0 %v8900
        %8940 = vmatmul.bf16.gmra.mxu0 %v8708
        %v8941 = vpop.f32.mrf.mxu0
        %v8942 = vadd.f32 0.0, %v8941
        %v8943 = vpop.f32.mrf.mxu0
        %v8944 = vadd.f32 0.0, %v8943
        %8945 = vdwg.mxu0
        %8946 = vmatpush.bf16.msra.mxu0 %v8915
        %8947 = vmatpush.bf16.msra.mxu0 %v8914
        %8948 = vmatpush.bf16.msra.mxu0 %v8913
        %8949 = vmatpush.bf16.msra.mxu0 %v8912
        %8950 = vmatpush.bf16.msra.mxu0 %v8911
        %8951 = vmatpush.bf16.msra.mxu0 %v8910
        %8952 = vmatpush.bf16.msra.mxu0 %v8909
        %8953 = vmatpush.bf16.msra.mxu0 %v8908
        %8954 = vmatmul.bf16.gmra.mxu0 %v8709
        %v8955 = vpop.f32.mrf.mxu0
        %v8956 = vadd.f32 %v8942, %v8955
        %v8957 = vpop.f32.mrf.mxu0
        %v8958 = vadd.f32 %v8944, %v8957
        %8959 = vdwg.mxu0
        %v8960 = vld [vmem:[#allocation7] sm:$0xff]
        %v8961 = vld [vmem:[#allocation7 + $0x8] sm:$0xff]
        %v8962 = vld [vmem:[#allocation7 + $0x10] sm:$0xff]
        %v8963 = vld [vmem:[#allocation7 + $0x18] sm:$0xff]
        %v8964 = vadd.f32 %v8960, %v8832
        %v8965 = vadd.f32 %v8961, %v8834
        %v8966 = vadd.f32 %v8962, %v8956
        %v8967 = vadd.f32 %v8963, %v8958
        %8968 = vst.msk [vmem:[#allocation7] sm:$0xff] %vm1145, %v8964
        %8969 = vst.msk [vmem:[#allocation7 + $0x8] sm:$0xff] %vm1145, %v8965
        %8970 = vst.msk [vmem:[#allocation7 + $0x10] sm:$0xff] %vm1145, %v8966
        %8971 = vst.msk [vmem:[#allocation7 + $0x18] sm:$0xff] %vm1145, %v8967
        %v8972 = vld [vmem:[#allocation4] sm:$0xff]
        %v8973 = vld [vmem:[#allocation4 + $0x8] sm:$0xff]
        %v8974 = vld [vmem:[#allocation4 + $0x10] sm:$0xff]
        %v8975 = vld [vmem:[#allocation4 + $0x18] sm:$0xff]
        %v8976 = vld [vmem:[#allocation4 + $0x20] sm:$0xff]
        %v8977 = vld [vmem:[#allocation4 + $0x28] sm:$0xff]
        %v8978 = vld [vmem:[#allocation4 + $0x30] sm:$0xff]
        %v8979 = vld [vmem:[#allocation4 + $0x38] sm:$0xff]
        %v8980 = vld [vmem:[#allocation4 + $0x40] sm:$0xff]
        %v8981 = vld [vmem:[#allocation4 + $0x48] sm:$0xff]
        %v8982 = vld [vmem:[#allocation4 + $0x50] sm:$0xff]
        %v8983 = vld [vmem:[#allocation4 + $0x58] sm:$0xff]
        %v8984 = vld [vmem:[#allocation4 + $0x60] sm:$0xff]
        %v8985 = vld [vmem:[#allocation4 + $0x68] sm:$0xff]
        %v8986 = vld [vmem:[#allocation4 + $0x70] sm:$0xff]
        %v8987 = vld [vmem:[#allocation4 + $0x78] sm:$0xff]
        %v8988 = vld [vmem:[%s14] sm:$0xf]
        %v8989 = vld [vmem:[%s14 + $0x4] sm:$0xf]
        %v8990 = vld [vmem:[%s14 + $0x8] sm:$0xf]
        %v8991 = vld [vmem:[%s14 + $0xc] sm:$0xf]
        %v8992 = vld [vmem:[%s14 + $0x10] sm:$0xf]
        %v8993 = vld [vmem:[%s14 + $0x14] sm:$0xf]
        %v8994 = vld [vmem:[%s14 + $0x18] sm:$0xf]
        %v8995 = vld [vmem:[%s14 + $0x1c] sm:$0xf]
        %v8996 = vpack.c.bf16 %v8972, %v8972
        %v8997 = vpack.c.bf16 %v8973, %v8973
        %v8998 = vpack.c.bf16 %v8974, %v8974
        %v8999 = vpack.c.bf16 %v8975, %v8975
        %v9000 = vpack.c.bf16 %v8976, %v8976
        %v9001 = vpack.c.bf16 %v8977, %v8977
        %v9002 = vpack.c.bf16 %v8978, %v8978
        %v9003 = vpack.c.bf16 %v8979, %v8979
        %v9004 = vpack.c.bf16 %v8980, %v8980
        %v9005 = vpack.c.bf16 %v8981, %v8981
        %v9006 = vpack.c.bf16 %v8982, %v8982
        %v9007 = vpack.c.bf16 %v8983, %v8983
        %v9008 = vpack.c.bf16 %v8984, %v8984
        %v9009 = vpack.c.bf16 %v8985, %v8985
        %v9010 = vpack.c.bf16 %v8986, %v8986
        %v9011 = vpack.c.bf16 %v8987, %v8987
        %v9020 = vunpack.c.l.b16 %v8988
        %v9021 = vunpack.c.l.b16 %v8989
        %v9022 = vunpack.c.l.b16 %v8990
        %v9023 = vunpack.c.l.b16 %v8991
        %v9024 = vunpack.c.l.b16 %v8992
        %v9025 = vunpack.c.l.b16 %v8993
        %v9026 = vunpack.c.l.b16 %v8994
        %v9027 = vunpack.c.l.b16 %v8995
        %v9028 = vpack.c.b16 %v9021, %v9020
        %v9029 = vpack.c.b16 %v9023, %v9022
        %v9030 = vpack.c.b16 %v9025, %v9024
        %v9031 = vpack.c.b16 %v9027, %v9026
        %v9040 = vunpack.c.l.b16 %v8996
        %v9041 = vunpack.c.l.b16 %v8997
        %v9042 = vunpack.c.l.b16 %v8998
        %v9043 = vunpack.c.l.b16 %v8999
        %v9044 = vunpack.c.l.b16 %v9000
        %v9045 = vunpack.c.l.b16 %v9001
        %v9046 = vunpack.c.l.b16 %v9002
        %v9047 = vunpack.c.l.b16 %v9003
        %v9048 = vpack.c.b16 %v9041, %v9040
        %v9049 = vpack.c.b16 %v9043, %v9042
        %v9050 = vpack.c.b16 %v9045, %v9044
        %v9051 = vpack.c.b16 %v9047, %v9046
        %vm9056 = vcmask 523264
        %v9058 = vsel %vm9056, %v9028, 0
        %v9061 = vsel %vm9056, %v9029, 0
        %v9064 = vsel %vm9056, %v9030, 0
        %v9067 = vsel %vm9056, %v9031, 0
        %9069 = vmatpush.bf16.msra.mxu0 0
        %9070 = vmatpush.bf16.msra.mxu0 0
        %9071 = vmatpush.bf16.msra.mxu0 0
        %9072 = vmatpush.bf16.msra.mxu0 0
        %9073 = vmatpush.bf16.msra.mxu0 %v9051
        %9074 = vmatpush.bf16.msra.mxu0 %v9050
        %9075 = vmatpush.bf16.msra.mxu0 %v9049
        %9076 = vmatpush.bf16.msra.mxu0 %v9048
        %9077 = vmatmul.bf16.gmra.mxu0 %v9058
        %v9078 = vpop.f32.mrf.mxu0
        %v9079 = vadd.f32 0.0, %v9078
        %v9080 = vpop.f32.mrf.mxu0
        %v9081 = vadd.f32 0.0, %v9080
        %9082 = vmatmul.bf16.gmra.mxu0 %v9061
        %v9083 = vpop.f32.mrf.mxu0
        %v9084 = vadd.f32 0.0, %v9083
        %v9085 = vpop.f32.mrf.mxu0
        %v9086 = vadd.f32 0.0, %v9085
        %9087 = vmatmul.bf16.gmra.mxu0 %v9064
        %v9088 = vpop.f32.mrf.mxu0
        %v9089 = vadd.f32 0.0, %v9088
        %v9090 = vpop.f32.mrf.mxu0
        %v9091 = vadd.f32 0.0, %v9090
        %9092 = vmatmul.bf16.gmra.mxu0 %v9067
        %v9093 = vpop.f32.mrf.mxu0
        %v9094 = vadd.f32 0.0, %v9093
        %v9095 = vpop.f32.mrf.mxu0
        %v9096 = vadd.f32 0.0, %v9095
        %9097 = vdwg.mxu0
        %v9106 = vunpack.c.l.b16 %v9004
        %v9107 = vunpack.c.l.b16 %v9005
        %v9108 = vunpack.c.l.b16 %v9006
        %v9109 = vunpack.c.l.b16 %v9007
        %v9110 = vunpack.c.l.b16 %v9008
        %v9111 = vunpack.c.l.b16 %v9009
        %v9112 = vunpack.c.l.b16 %v9010
        %v9113 = vunpack.c.l.b16 %v9011
        %v9114 = vpack.c.b16 %v9107, %v9106
        %v9115 = vpack.c.b16 %v9109, %v9108
        %v9116 = vpack.c.b16 %v9111, %v9110
        %v9117 = vpack.c.b16 %v9113, %v9112
        %9122 = vmatpush.bf16.msra.mxu0 0
        %9123 = vmatpush.bf16.msra.mxu0 0
        %9124 = vmatpush.bf16.msra.mxu0 0
        %9125 = vmatpush.bf16.msra.mxu0 0
        %9126 = vmatpush.bf16.msra.mxu0 %v9117
        %9127 = vmatpush.bf16.msra.mxu0 %v9116
        %9128 = vmatpush.bf16.msra.mxu0 %v9115
        %9129 = vmatpush.bf16.msra.mxu0 %v9114
        %9130 = vmatmul.bf16.gmra.mxu0 %v9058
        %v9131 = vpop.f32.mrf.mxu0
        %v9132 = vadd.f32 0.0, %v9131
        %v9133 = vpop.f32.mrf.mxu0
        %v9134 = vadd.f32 0.0, %v9133
        %9135 = vmatmul.bf16.gmra.mxu0 %v9061
        %v9136 = vpop.f32.mrf.mxu0
        %v9137 = vadd.f32 0.0, %v9136
        %v9138 = vpop.f32.mrf.mxu0
        %v9139 = vadd.f32 0.0, %v9138
        %9140 = vmatmul.bf16.gmra.mxu0 %v9064
        %v9141 = vpop.f32.mrf.mxu0
        %v9142 = vadd.f32 0.0, %v9141
        %v9143 = vpop.f32.mrf.mxu0
        %v9144 = vadd.f32 0.0, %v9143
        %9145 = vmatmul.bf16.gmra.mxu0 %v9067
        %v9146 = vpop.f32.mrf.mxu0
        %v9147 = vadd.f32 0.0, %v9146
        %v9148 = vpop.f32.mrf.mxu0
        %v9149 = vadd.f32 0.0, %v9148
        %9150 = vdwg.mxu0
        %v9151 = vmax.f32 %v8972, 0.0
        %v9152 = vmax.f32 %v8973, 0.0
        %v9153 = vmax.f32 %v8974, 0.0
        %v9154 = vmax.f32 %v8975, 0.0
        %v9155 = vmax.f32 %v8976, 0.0
        %v9156 = vmax.f32 %v8977, 0.0
        %v9157 = vmax.f32 %v8978, 0.0
        %v9158 = vmax.f32 %v8979, 0.0
        %v9159 = vmax.f32 %v8980, 0.0
        %v9160 = vmax.f32 %v8981, 0.0
        %v9161 = vmax.f32 %v8982, 0.0
        %v9162 = vmax.f32 %v8983, 0.0
        %v9163 = vmax.f32 %v8984, 0.0
        %v9164 = vmax.f32 %v8985, 0.0
        %v9165 = vmax.f32 %v8986, 0.0
        %v9166 = vmax.f32 %v8987, 0.0
        %v9167 = vpack.c.bf16 %v9152, %v9151
        %v9168 = vpack.c.bf16 %v9154, %v9153
        %v9169 = vpack.c.bf16 %v9156, %v9155
        %v9170 = vpack.c.bf16 %v9158, %v9157
        %v9171 = vpack.c.bf16 %v9160, %v9159
        %v9172 = vpack.c.bf16 %v9162, %v9161
        %v9173 = vpack.c.bf16 %v9164, %v9163
        %v9174 = vpack.c.bf16 %v9166, %v9165
        %v9175 = vld [vmem:[%s7] sm:$0xf]
        %v9176 = vld [vmem:[%s7 + $0x4] sm:$0xf]
        %v9177 = vld [vmem:[%s8] sm:$0x1]
        %v9179 = vperm.slane %v9177, 0
        %v9183 = vunpack.c.l.b16 %v9175
        %v9184 = vunpack.c.l.b16 %v9176
        %v9185 = vpack.c.b16 %v9184, %v9183
        %v9188 = vsel %vm1145, %v9167, 0
        %v9191 = vsel %vm1145, %v9168, 0
        %v9194 = vsel %vm1145, %v9169, 0
        %v9197 = vsel %vm1145, %v9170, 0
        %v9200 = vsel %vm1145, %v9171, 0
        %v9203 = vsel %vm1145, %v9172, 0
        %v9206 = vsel %vm1145, %v9173, 0
        %v9209 = vsel %vm1145, %v9174, 0
        %9211 = vmatpush.bf16.msra.mxu0 0
        %9212 = vmatpush.bf16.msra.mxu0 0
        %9213 = vmatpush.bf16.msra.mxu0 0
        %9214 = vmatpush.bf16.msra.mxu0 0
        %9215 = vmatpush.bf16.msra.mxu0 0
        %9216 = vmatpush.bf16.msra.mxu0 0
        %9217 = vmatpush.bf16.msra.mxu0 0
        %9218 = vmatpush.bf16.msra.mxu0 %v9185
        %9219 = vmatmul.bf16.gmra.mxu0 %v9188
        %v9220 = vpop.f32.mrf.mxu0
        %v9221 = vadd.f32 %v9179, %v9220
        %v9222 = vpop.f32.mrf.mxu0
        %v9223 = vadd.f32 %v9179, %v9222
        %9224 = vmatmul.bf16.gmra.mxu0 %v9191
        %v9225 = vpop.f32.mrf.mxu0
        %v9226 = vadd.f32 %v9179, %v9225
        %v9227 = vpop.f32.mrf.mxu0
        %v9228 = vadd.f32 %v9179, %v9227
        %9229 = vmatmul.bf16.gmra.mxu0 %v9194
        %v9230 = vpop.f32.mrf.mxu0
        %v9231 = vadd.f32 %v9179, %v9230
        %v9232 = vpop.f32.mrf.mxu0
        %v9233 = vadd.f32 %v9179, %v9232
        %9234 = vmatmul.bf16.gmra.mxu0 %v9197
        %v9235 = vpop.f32.mrf.mxu0
        %v9236 = vadd.f32 %v9179, %v9235
        %v9237 = vpop.f32.mrf.mxu0
        %v9238 = vadd.f32 %v9179, %v9237
        %9239 = vmatmul.bf16.gmra.mxu0 %v9200
        %v9240 = vpop.f32.mrf.mxu0
        %v9241 = vadd.f32 %v9179, %v9240
        %v9242 = vpop.f32.mrf.mxu0
        %v9243 = vadd.f32 %v9179, %v9242
        %9244 = vmatmul.bf16.gmra.mxu0 %v9203
        %v9245 = vpop.f32.mrf.mxu0
        %v9246 = vadd.f32 %v9179, %v9245
        %v9247 = vpop.f32.mrf.mxu0
        %v9248 = vadd.f32 %v9179, %v9247
        %9249 = vmatmul.bf16.gmra.mxu0 %v9206
        %v9250 = vpop.f32.mrf.mxu0
        %v9251 = vadd.f32 %v9179, %v9250
        %v9252 = vpop.f32.mrf.mxu0
        %v9253 = vadd.f32 %v9179, %v9252
        %9254 = vmatmul.bf16.gmra.mxu0 %v9209
        %v9255 = vpop.f32.mrf.mxu0
        %v9256 = vadd.f32 %v9179, %v9255
        %v9257 = vpop.f32.mrf.mxu0
        %v9258 = vadd.f32 %v9179, %v9257
        %9259 = vdwg.mxu0
        %s9260 = sld [smem:[#allocation8 + $0xf]]
        %s9261 = sld [smem:[#allocation8 + $0x11]]
        %v9262 = vstv %s9260
        %v9263 = vmul.f32 %v9262, %v8972
        %v9264 = vmul.f32 %v9262, %v8973
        %v9265 = vmul.f32 %v9262, %v8974
        %v9266 = vmul.f32 %v9262, %v8975
        %v9267 = vmul.f32 %v9262, %v8976
        %v9268 = vmul.f32 %v9262, %v8977
        %v9269 = vmul.f32 %v9262, %v8978
        %v9270 = vmul.f32 %v9262, %v8979
        %v9271 = vmul.f32 %v9262, %v8980
        %v9272 = vmul.f32 %v9262, %v8981
        %v9273 = vmul.f32 %v9262, %v8982
        %v9274 = vmul.f32 %v9262, %v8983
        %v9275 = vmul.f32 %v9262, %v8984
        %v9276 = vmul.f32 %v9262, %v8985
        %v9277 = vmul.f32 %v9262, %v8986
        %v9278 = vmul.f32 %v9262, %v8987
        %v9279 = vstv %s9261
        %v9280 = vmul.f32 %v9279, %v9079
        %v9281 = vmul.f32 %v9279, %v9081
        %v9282 = vmul.f32 %v9279, %v9084
        %v9283 = vmul.f32 %v9279, %v9086
        %v9284 = vmul.f32 %v9279, %v9089
        %v9285 = vmul.f32 %v9279, %v9091
        %v9286 = vmul.f32 %v9279, %v9094
        %v9287 = vmul.f32 %v9279, %v9096
        %v9288 = vmul.f32 %v9279, %v9132
        %v9289 = vmul.f32 %v9279, %v9134
        %v9290 = vmul.f32 %v9279, %v9137
        %v9291 = vmul.f32 %v9279, %v9139
        %v9292 = vmul.f32 %v9279, %v9142
        %v9293 = vmul.f32 %v9279, %v9144
        %v9294 = vmul.f32 %v9279, %v9147
        %v9295 = vmul.f32 %v9279, %v9149
        %v9296 = vadd.f32 %v9263, %v9280
        %v9297 = vadd.f32 %v9264, %v9281
        %v9298 = vadd.f32 %v9265, %v9282
        %v9299 = vadd.f32 %v9266, %v9283
        %v9300 = vadd.f32 %v9267, %v9284
        %v9301 = vadd.f32 %v9268, %v9285
        %v9302 = vadd.f32 %v9269, %v9286
        %v9303 = vadd.f32 %v9270, %v9287
        %v9304 = vadd.f32 %v9271, %v9288
        %v9305 = vadd.f32 %v9272, %v9289
        %v9306 = vadd.f32 %v9273, %v9290
        %v9307 = vadd.f32 %v9274, %v9291
        %v9308 = vadd.f32 %v9275, %v9292
        %v9309 = vadd.f32 %v9276, %v9293
        %v9310 = vadd.f32 %v9277, %v9294
        %v9311 = vadd.f32 %v9278, %v9295
        %v9312 = vadd.f32 %v9296, %v9221
        %v9313 = vadd.f32 %v9297, %v9223
        %v9314 = vadd.f32 %v9298, %v9226
        %v9315 = vadd.f32 %v9299, %v9228
        %v9316 = vadd.f32 %v9300, %v9231
        %v9317 = vadd.f32 %v9301, %v9233
        %v9318 = vadd.f32 %v9302, %v9236
        %v9319 = vadd.f32 %v9303, %v9238
        %v9320 = vadd.f32 %v9304, %v9241
        %v9321 = vadd.f32 %v9305, %v9243
        %v9322 = vadd.f32 %v9306, %v9246
        %v9323 = vadd.f32 %v9307, %v9248
        %v9324 = vadd.f32 %v9308, %v9251
        %v9325 = vadd.f32 %v9309, %v9253
        %v9326 = vadd.f32 %v9310, %v9256
        %v9327 = vadd.f32 %v9311, %v9258
        %v9328 = vld [vmem:[#allocation5] sm:$0xff]
        %v9329 = vld [vmem:[#allocation5 + $0x8] sm:$0xff]
        %v9330 = vld [vmem:[#allocation5 + $0x10] sm:$0xff]
        %v9331 = vld [vmem:[#allocation5 + $0x18] sm:$0xff]
        %v9332 = vld [vmem:[#allocation5 + $0x20] sm:$0xff]
        %v9333 = vld [vmem:[#allocation5 + $0x28] sm:$0xff]
        %v9334 = vld [vmem:[#allocation5 + $0x30] sm:$0xff]
        %v9335 = vld [vmem:[#allocation5 + $0x38] sm:$0xff]
        %v9336 = vld [vmem:[#allocation5 + $0x40] sm:$0xff]
        %v9337 = vld [vmem:[#allocation5 + $0x48] sm:$0xff]
        %v9338 = vld [vmem:[#allocation5 + $0x50] sm:$0xff]
        %v9339 = vld [vmem:[#allocation5 + $0x58] sm:$0xff]
        %v9340 = vld [vmem:[#allocation5 + $0x60] sm:$0xff]
        %v9341 = vld [vmem:[#allocation5 + $0x68] sm:$0xff]
        %v9342 = vld [vmem:[#allocation5 + $0x70] sm:$0xff]
        %v9343 = vld [vmem:[#allocation5 + $0x78] sm:$0xff]
        %v9344 = vadd.f32 %v9328, %v9312
        %v9345 = vadd.f32 %v9329, %v9313
        %v9346 = vadd.f32 %v9330, %v9314
        %v9347 = vadd.f32 %v9331, %v9315
        %v9348 = vadd.f32 %v9332, %v9316
        %v9349 = vadd.f32 %v9333, %v9317
        %v9350 = vadd.f32 %v9334, %v9318
        %v9351 = vadd.f32 %v9335, %v9319
        %v9352 = vadd.f32 %v9336, %v9320
        %v9353 = vadd.f32 %v9337, %v9321
        %v9354 = vadd.f32 %v9338, %v9322
        %v9355 = vadd.f32 %v9339, %v9323
        %v9356 = vadd.f32 %v9340, %v9324
        %v9357 = vadd.f32 %v9341, %v9325
        %v9358 = vadd.f32 %v9342, %v9326
        %v9359 = vadd.f32 %v9343, %v9327
        %9360 = vst.msk [vmem:[#allocation5] sm:$0xff] %vm1145, %v9344
        %9361 = vst.msk [vmem:[#allocation5 + $0x8] sm:$0xff] %vm1145, %v9345
        %9362 = vst.msk [vmem:[#allocation5 + $0x10] sm:$0xff] %vm1145, %v9346
        %9363 = vst.msk [vmem:[#allocation5 + $0x18] sm:$0xff] %vm1145, %v9347
        %9364 = vst.msk [vmem:[#allocation5 + $0x20] sm:$0xff] %vm1145, %v9348
        %9365 = vst.msk [vmem:[#allocation5 + $0x28] sm:$0xff] %vm1145, %v9349
        %9366 = vst.msk [vmem:[#allocation5 + $0x30] sm:$0xff] %vm1145, %v9350
        %9367 = vst.msk [vmem:[#allocation5 + $0x38] sm:$0xff] %vm1145, %v9351
        %9368 = vst.msk [vmem:[#allocation5 + $0x40] sm:$0xff] %vm1145, %v9352
        %9369 = vst.msk [vmem:[#allocation5 + $0x48] sm:$0xff] %vm1145, %v9353
        %9370 = vst.msk [vmem:[#allocation5 + $0x50] sm:$0xff] %vm1145, %v9354
        %9371 = vst.msk [vmem:[#allocation5 + $0x58] sm:$0xff] %vm1145, %v9355
        %9372 = vst.msk [vmem:[#allocation5 + $0x60] sm:$0xff] %vm1145, %v9356
        %9373 = vst.msk [vmem:[#allocation5 + $0x68] sm:$0xff] %vm1145, %v9357
        %9374 = vst.msk [vmem:[#allocation5 + $0x70] sm:$0xff] %vm1145, %v9358
        %9375 = vst.msk [vmem:[#allocation5 + $0x78] sm:$0xff] %vm1145, %v9359
        %s9376 = sld [smem:[#allocation8 + $0x18]]
        %s9377 = sld [smem:[#allocation8 + $0x1a]]
        %v9378 = vstv %s9376
        %v9379 = vmul.f32 %v9378, %v8972
        %v9380 = vmul.f32 %v9378, %v8973
        %v9381 = vmul.f32 %v9378, %v8974
        %v9382 = vmul.f32 %v9378, %v8975
        %v9383 = vmul.f32 %v9378, %v8976
        %v9384 = vmul.f32 %v9378, %v8977
        %v9385 = vmul.f32 %v9378, %v8978
        %v9386 = vmul.f32 %v9378, %v8979
        %v9387 = vmul.f32 %v9378, %v8980
        %v9388 = vmul.f32 %v9378, %v8981
        %v9389 = vmul.f32 %v9378, %v8982
        %v9390 = vmul.f32 %v9378, %v8983
        %v9391 = vmul.f32 %v9378, %v8984
        %v9392 = vmul.f32 %v9378, %v8985
        %v9393 = vmul.f32 %v9378, %v8986
        %v9394 = vmul.f32 %v9378, %v8987
        %v9395 = vstv %s9377
        %v9396 = vmul.f32 %v9395, %v9079
        %v9397 = vmul.f32 %v9395, %v9081
        %v9398 = vmul.f32 %v9395, %v9084
        %v9399 = vmul.f32 %v9395, %v9086
        %v9400 = vmul.f32 %v9395, %v9089
        %v9401 = vmul.f32 %v9395, %v9091
        %v9402 = vmul.f32 %v9395, %v9094
        %v9403 = vmul.f32 %v9395, %v9096
        %v9404 = vmul.f32 %v9395, %v9132
        %v9405 = vmul.f32 %v9395, %v9134
        %v9406 = vmul.f32 %v9395, %v9137
        %v9407 = vmul.f32 %v9395, %v9139
        %v9408 = vmul.f32 %v9395, %v9142
        %v9409 = vmul.f32 %v9395, %v9144
        %v9410 = vmul.f32 %v9395, %v9147
        %v9411 = vmul.f32 %v9395, %v9149
        %v9412 = vadd.f32 %v9379, %v9396
        %v9413 = vadd.f32 %v9380, %v9397
        %v9414 = vadd.f32 %v9381, %v9398
        %v9415 = vadd.f32 %v9382, %v9399
        %v9416 = vadd.f32 %v9383, %v9400
        %v9417 = vadd.f32 %v9384, %v9401
        %v9418 = vadd.f32 %v9385, %v9402
        %v9419 = vadd.f32 %v9386, %v9403
        %v9420 = vadd.f32 %v9387, %v9404
        %v9421 = vadd.f32 %v9388, %v9405
        %v9422 = vadd.f32 %v9389, %v9406
        %v9423 = vadd.f32 %v9390, %v9407
        %v9424 = vadd.f32 %v9391, %v9408
        %v9425 = vadd.f32 %v9392, %v9409
        %v9426 = vadd.f32 %v9393, %v9410
        %v9427 = vadd.f32 %v9394, %v9411
        %9444 = vrot.lane.b32.xlu0 %v9221, 112
        %v9445 = vpop.permute.xlu0 %9444
        %9446 = vrot.lane.b32.xlu0 %v9223, 112
        %v9447 = vpop.permute.xlu0 %9446
        %9448 = vrot.lane.b32.xlu0 %v9226, 112
        %v9449 = vpop.permute.xlu0 %9448
        %9450 = vrot.lane.b32.xlu0 %v9228, 112
        %v9451 = vpop.permute.xlu0 %9450
        %9452 = vrot.lane.b32.xlu0 %v9231, 112
        %v9453 = vpop.permute.xlu0 %9452
        %9454 = vrot.lane.b32.xlu0 %v9233, 112
        %v9455 = vpop.permute.xlu0 %9454
        %9456 = vrot.lane.b32.xlu0 %v9236, 112
        %v9457 = vpop.permute.xlu0 %9456
        %9458 = vrot.lane.b32.xlu0 %v9238, 112
        %v9459 = vpop.permute.xlu0 %9458
        %9460 = vrot.lane.b32.xlu0 %v9241, 112
        %v9461 = vpop.permute.xlu0 %9460
        %9462 = vrot.lane.b32.xlu0 %v9243, 112
        %v9463 = vpop.permute.xlu0 %9462
        %9464 = vrot.lane.b32.xlu0 %v9246, 112
        %v9465 = vpop.permute.xlu0 %9464
        %9466 = vrot.lane.b32.xlu0 %v9248, 112
        %v9467 = vpop.permute.xlu0 %9466
        %9468 = vrot.lane.b32.xlu0 %v9251, 112
        %v9469 = vpop.permute.xlu0 %9468
        %9470 = vrot.lane.b32.xlu0 %v9253, 112
        %v9471 = vpop.permute.xlu0 %9470
        %9472 = vrot.lane.b32.xlu0 %v9256, 112
        %v9473 = vpop.permute.xlu0 %9472
        %9474 = vrot.lane.b32.xlu0 %v9258, 112
        %v9475 = vpop.permute.xlu0 %9474
        %v9492 = vadd.f32 %v9412, %v9445
        %v9493 = vadd.f32 %v9413, %v9447
        %v9494 = vadd.f32 %v9414, %v9449
        %v9495 = vadd.f32 %v9415, %v9451
        %v9496 = vadd.f32 %v9416, %v9453
        %v9497 = vadd.f32 %v9417, %v9455
        %v9498 = vadd.f32 %v9418, %v9457
        %v9499 = vadd.f32 %v9419, %v9459
        %v9500 = vadd.f32 %v9420, %v9461
        %v9501 = vadd.f32 %v9421, %v9463
        %v9502 = vadd.f32 %v9422, %v9465
        %v9503 = vadd.f32 %v9423, %v9467
        %v9504 = vadd.f32 %v9424, %v9469
        %v9505 = vadd.f32 %v9425, %v9471
        %v9506 = vadd.f32 %v9426, %v9473
        %v9507 = vadd.f32 %v9427, %v9475
        %v9508 = vld [vmem:[%s16] sm:$0xf]
        %v9509 = vld [vmem:[%s16 + $0x4] sm:$0xf]
        %v9510 = vpack.c.bf16 %v9492, %v9492
        %v9511 = vpack.c.bf16 %v9493, %v9493
        %v9512 = vpack.c.bf16 %v9494, %v9494
        %v9513 = vpack.c.bf16 %v9495, %v9495
        %v9514 = vpack.c.bf16 %v9496, %v9496
        %v9515 = vpack.c.bf16 %v9497, %v9497
        %v9516 = vpack.c.bf16 %v9498, %v9498
        %v9517 = vpack.c.bf16 %v9499, %v9499
        %v9518 = vpack.c.bf16 %v9500, %v9500
        %v9519 = vpack.c.bf16 %v9501, %v9501
        %v9520 = vpack.c.bf16 %v9502, %v9502
        %v9521 = vpack.c.bf16 %v9503, %v9503
        %v9522 = vpack.c.bf16 %v9504, %v9504
        %v9523 = vpack.c.bf16 %v9505, %v9505
        %v9524 = vpack.c.bf16 %v9506, %v9506
        %v9525 = vpack.c.bf16 %v9507, %v9507
        %v9528 = vunpack.c.l.b16 %v9508
        %v9529 = vunpack.c.l.b16 %v9509
        %v9530 = vpack.c.b16 %v9529, %v9528
        %v9539 = vunpack.c.l.b16 %v9510
        %v9540 = vunpack.c.l.b16 %v9511
        %v9541 = vunpack.c.l.b16 %v9512
        %v9542 = vunpack.c.l.b16 %v9513
        %v9543 = vunpack.c.l.b16 %v9514
        %v9544 = vunpack.c.l.b16 %v9515
        %v9545 = vunpack.c.l.b16 %v9516
        %v9546 = vunpack.c.l.b16 %v9517
        %v9547 = vpack.c.b16 %v9540, %v9539
        %v9548 = vpack.c.b16 %v9542, %v9541
        %v9549 = vpack.c.b16 %v9544, %v9543
        %v9550 = vpack.c.b16 %v9546, %v9545
        %v9556 = vsel %vm9056, %v9530, 0
        %9558 = vmatpush.bf16.msra.mxu0 0
        %9559 = vmatpush.bf16.msra.mxu0 0
        %9560 = vmatpush.bf16.msra.mxu0 0
        %9561 = vmatpush.bf16.msra.mxu0 0
        %9562 = vmatpush.bf16.msra.mxu0 %v9550
        %9563 = vmatpush.bf16.msra.mxu0 %v9549
        %9564 = vmatpush.bf16.msra.mxu0 %v9548
        %9565 = vmatpush.bf16.msra.mxu0 %v9547
        %9566 = vmatmul.bf16.gmra.mxu0 %v9556
        %v9567 = vpop.f32.mrf.mxu0
        %v9568 = vadd.f32 0.0, %v9567
        %v9569 = vpop.f32.mrf.mxu0
        %v9570 = vadd.f32 0.0, %v9569
        %9571 = vdwg.mxu0
        %v9580 = vunpack.c.l.b16 %v9518
        %v9581 = vunpack.c.l.b16 %v9519
        %v9582 = vunpack.c.l.b16 %v9520
        %v9583 = vunpack.c.l.b16 %v9521
        %v9584 = vunpack.c.l.b16 %v9522
        %v9585 = vunpack.c.l.b16 %v9523
        %v9586 = vunpack.c.l.b16 %v9524
        %v9587 = vunpack.c.l.b16 %v9525
        %v9588 = vpack.c.b16 %v9581, %v9580
        %v9589 = vpack.c.b16 %v9583, %v9582
        %v9590 = vpack.c.b16 %v9585, %v9584
        %v9591 = vpack.c.b16 %v9587, %v9586
        %9596 = vmatpush.bf16.msra.mxu0 0
        %9597 = vmatpush.bf16.msra.mxu0 0
        %9598 = vmatpush.bf16.msra.mxu0 0
        %9599 = vmatpush.bf16.msra.mxu0 0
        %9600 = vmatpush.bf16.msra.mxu0 %v9591
        %9601 = vmatpush.bf16.msra.mxu0 %v9590
        %9602 = vmatpush.bf16.msra.mxu0 %v9589
        %9603 = vmatpush.bf16.msra.mxu0 %v9588
        %9604 = vmatmul.bf16.gmra.mxu0 %v9556
        %v9605 = vpop.f32.mrf.mxu0
        %v9606 = vadd.f32 0.0, %v9605
        %v9607 = vpop.f32.mrf.mxu0
        %v9608 = vadd.f32 0.0, %v9607
        %9609 = vdwg.mxu0
        %v9610 = vld [vmem:[#allocation6] sm:$0xff]
        %v9611 = vld [vmem:[#allocation6 + $0x8] sm:$0xff]
        %v9612 = vld [vmem:[#allocation6 + $0x10] sm:$0xff]
        %v9613 = vld [vmem:[#allocation6 + $0x18] sm:$0xff]
        %v9614 = vadd.f32 %v9610, %v9568
        %v9615 = vadd.f32 %v9611, %v9570
        %v9616 = vadd.f32 %v9612, %v9606
        %v9617 = vadd.f32 %v9613, %v9608
        %9618 = vst.msk [vmem:[#allocation6] sm:$0xff] %vm1145, %v9614
        %9619 = vst.msk [vmem:[#allocation6 + $0x8] sm:$0xff] %vm1145, %v9615
        %9620 = vst.msk [vmem:[#allocation6 + $0x10] sm:$0xff] %vm1145, %v9616
        %9621 = vst.msk [vmem:[#allocation6 + $0x18] sm:$0xff] %vm1145, %v9617
        %v9622 = vld [vmem:[#allocation5] sm:$0xff]
        %v9623 = vld [vmem:[#allocation5 + $0x8] sm:$0xff]
        %v9624 = vld [vmem:[#allocation5 + $0x10] sm:$0xff]
        %v9625 = vld [vmem:[#allocation5 + $0x18] sm:$0xff]
        %v9626 = vld [vmem:[#allocation5 + $0x20] sm:$0xff]
        %v9627 = vld [vmem:[#allocation5 + $0x28] sm:$0xff]
        %v9628 = vld [vmem:[#allocation5 + $0x30] sm:$0xff]
        %v9629 = vld [vmem:[#allocation5 + $0x38] sm:$0xff]
        %v9630 = vld [vmem:[#allocation5 + $0x40] sm:$0xff]
        %v9631 = vld [vmem:[#allocation5 + $0x48] sm:$0xff]
        %v9632 = vld [vmem:[#allocation5 + $0x50] sm:$0xff]
        %v9633 = vld [vmem:[#allocation5 + $0x58] sm:$0xff]
        %v9634 = vld [vmem:[#allocation5 + $0x60] sm:$0xff]
        %v9635 = vld [vmem:[#allocation5 + $0x68] sm:$0xff]
        %v9636 = vld [vmem:[#allocation5 + $0x70] sm:$0xff]
        %v9637 = vld [vmem:[#allocation5 + $0x78] sm:$0xff]
        %v9638 = vld [vmem:[%s14] sm:$0xf]
        %v9639 = vld [vmem:[%s14 + $0x4] sm:$0xf]
        %v9640 = vld [vmem:[%s14 + $0x8] sm:$0xf]
        %v9641 = vld [vmem:[%s14 + $0xc] sm:$0xf]
        %v9642 = vld [vmem:[%s14 + $0x10] sm:$0xf]
        %v9643 = vld [vmem:[%s14 + $0x14] sm:$0xf]
        %v9644 = vld [vmem:[%s14 + $0x18] sm:$0xf]
        %v9645 = vld [vmem:[%s14 + $0x1c] sm:$0xf]
        %v9646 = vpack.c.bf16 %v9622, %v9622
        %v9647 = vpack.c.bf16 %v9623, %v9623
        %v9648 = vpack.c.bf16 %v9624, %v9624
        %v9649 = vpack.c.bf16 %v9625, %v9625
        %v9650 = vpack.c.bf16 %v9626, %v9626
        %v9651 = vpack.c.bf16 %v9627, %v9627
        %v9652 = vpack.c.bf16 %v9628, %v9628
        %v9653 = vpack.c.bf16 %v9629, %v9629
        %v9654 = vpack.c.bf16 %v9630, %v9630
        %v9655 = vpack.c.bf16 %v9631, %v9631
        %v9656 = vpack.c.bf16 %v9632, %v9632
        %v9657 = vpack.c.bf16 %v9633, %v9633
        %v9658 = vpack.c.bf16 %v9634, %v9634
        %v9659 = vpack.c.bf16 %v9635, %v9635
        %v9660 = vpack.c.bf16 %v9636, %v9636
        %v9661 = vpack.c.bf16 %v9637, %v9637
        %v9670 = vunpack.c.l.b16 %v9638
        %v9671 = vunpack.c.l.b16 %v9639
        %v9672 = vunpack.c.l.b16 %v9640
        %v9673 = vunpack.c.l.b16 %v9641
        %v9674 = vunpack.c.l.b16 %v9642
        %v9675 = vunpack.c.l.b16 %v9643
        %v9676 = vunpack.c.l.b16 %v9644
        %v9677 = vunpack.c.l.b16 %v9645
        %v9678 = vpack.c.b16 %v9671, %v9670
        %v9679 = vpack.c.b16 %v9673, %v9672
        %v9680 = vpack.c.b16 %v9675, %v9674
        %v9681 = vpack.c.b16 %v9677, %v9676
        %v9690 = vunpack.c.l.b16 %v9646
        %v9691 = vunpack.c.l.b16 %v9647
        %v9692 = vunpack.c.l.b16 %v9648
        %v9693 = vunpack.c.l.b16 %v9649
        %v9694 = vunpack.c.l.b16 %v9650
        %v9695 = vunpack.c.l.b16 %v9651
        %v9696 = vunpack.c.l.b16 %v9652
        %v9697 = vunpack.c.l.b16 %v9653
        %v9698 = vpack.c.b16 %v9691, %v9690
        %v9699 = vpack.c.b16 %v9693, %v9692
        %v9700 = vpack.c.b16 %v9695, %v9694
        %v9701 = vpack.c.b16 %v9697, %v9696
        %v9707 = vsel %vm9056, %v9678, 0
        %v9710 = vsel %vm9056, %v9679, 0
        %v9713 = vsel %vm9056, %v9680, 0
        %v9716 = vsel %vm9056, %v9681, 0
        %9718 = vmatpush.bf16.msra.mxu0 0
        %9719 = vmatpush.bf16.msra.mxu0 0
        %9720 = vmatpush.bf16.msra.mxu0 0
        %9721 = vmatpush.bf16.msra.mxu0 0
        %9722 = vmatpush.bf16.msra.mxu0 %v9701
        %9723 = vmatpush.bf16.msra.mxu0 %v9700
        %9724 = vmatpush.bf16.msra.mxu0 %v9699
        %9725 = vmatpush.bf16.msra.mxu0 %v9698
        %9726 = vmatmul.bf16.gmra.mxu0 %v9707
        %v9727 = vpop.f32.mrf.mxu0
        %v9728 = vadd.f32 0.0, %v9727
        %v9729 = vpop.f32.mrf.mxu0
        %v9730 = vadd.f32 0.0, %v9729
        %9731 = vmatmul.bf16.gmra.mxu0 %v9710
        %v9732 = vpop.f32.mrf.mxu0
        %v9733 = vadd.f32 0.0, %v9732
        %v9734 = vpop.f32.mrf.mxu0
        %v9735 = vadd.f32 0.0, %v9734
        %9736 = vmatmul.bf16.gmra.mxu0 %v9713
        %v9737 = vpop.f32.mrf.mxu0
        %v9738 = vadd.f32 0.0, %v9737
        %v9739 = vpop.f32.mrf.mxu0
        %v9740 = vadd.f32 0.0, %v9739
        %9741 = vmatmul.bf16.gmra.mxu0 %v9716
        %v9742 = vpop.f32.mrf.mxu0
        %v9743 = vadd.f32 0.0, %v9742
        %v9744 = vpop.f32.mrf.mxu0
        %v9745 = vadd.f32 0.0, %v9744
        %9746 = vdwg.mxu0
        %v9755 = vunpack.c.l.b16 %v9654
        %v9756 = vunpack.c.l.b16 %v9655
        %v9757 = vunpack.c.l.b16 %v9656
        %v9758 = vunpack.c.l.b16 %v9657
        %v9759 = vunpack.c.l.b16 %v9658
        %v9760 = vunpack.c.l.b16 %v9659
        %v9761 = vunpack.c.l.b16 %v9660
        %v9762 = vunpack.c.l.b16 %v9661
        %v9763 = vpack.c.b16 %v9756, %v9755
        %v9764 = vpack.c.b16 %v9758, %v9757
        %v9765 = vpack.c.b16 %v9760, %v9759
        %v9766 = vpack.c.b16 %v9762, %v9761
        %9771 = vmatpush.bf16.msra.mxu0 0
        %9772 = vmatpush.bf16.msra.mxu0 0
        %9773 = vmatpush.bf16.msra.mxu0 0
        %9774 = vmatpush.bf16.msra.mxu0 0
        %9775 = vmatpush.bf16.msra.mxu0 %v9766
        %9776 = vmatpush.bf16.msra.mxu0 %v9765
        %9777 = vmatpush.bf16.msra.mxu0 %v9764
        %9778 = vmatpush.bf16.msra.mxu0 %v9763
        %9779 = vmatmul.bf16.gmra.mxu0 %v9707
        %v9780 = vpop.f32.mrf.mxu0
        %v9781 = vadd.f32 0.0, %v9780
        %v9782 = vpop.f32.mrf.mxu0
        %v9783 = vadd.f32 0.0, %v9782
        %9784 = vmatmul.bf16.gmra.mxu0 %v9710
        %v9785 = vpop.f32.mrf.mxu0
        %v9786 = vadd.f32 0.0, %v9785
        %v9787 = vpop.f32.mrf.mxu0
        %v9788 = vadd.f32 0.0, %v9787
        %9789 = vmatmul.bf16.gmra.mxu0 %v9713
        %v9790 = vpop.f32.mrf.mxu0
        %v9791 = vadd.f32 0.0, %v9790
        %v9792 = vpop.f32.mrf.mxu0
        %v9793 = vadd.f32 0.0, %v9792
        %9794 = vmatmul.bf16.gmra.mxu0 %v9716
        %v9795 = vpop.f32.mrf.mxu0
        %v9796 = vadd.f32 0.0, %v9795
        %v9797 = vpop.f32.mrf.mxu0
        %v9798 = vadd.f32 0.0, %v9797
        %9799 = vdwg.mxu0
        %v9800 = vmax.f32 %v9622, 0.0
        %v9801 = vmax.f32 %v9623, 0.0
        %v9802 = vmax.f32 %v9624, 0.0
        %v9803 = vmax.f32 %v9625, 0.0
        %v9804 = vmax.f32 %v9626, 0.0
        %v9805 = vmax.f32 %v9627, 0.0
        %v9806 = vmax.f32 %v9628, 0.0
        %v9807 = vmax.f32 %v9629, 0.0
        %v9808 = vmax.f32 %v9630, 0.0
        %v9809 = vmax.f32 %v9631, 0.0
        %v9810 = vmax.f32 %v9632, 0.0
        %v9811 = vmax.f32 %v9633, 0.0
        %v9812 = vmax.f32 %v9634, 0.0
        %v9813 = vmax.f32 %v9635, 0.0
        %v9814 = vmax.f32 %v9636, 0.0
        %v9815 = vmax.f32 %v9637, 0.0
        %v9816 = vpack.c.bf16 %v9801, %v9800
        %v9817 = vpack.c.bf16 %v9803, %v9802
        %v9818 = vpack.c.bf16 %v9805, %v9804
        %v9819 = vpack.c.bf16 %v9807, %v9806
        %v9820 = vpack.c.bf16 %v9809, %v9808
        %v9821 = vpack.c.bf16 %v9811, %v9810
        %v9822 = vpack.c.bf16 %v9813, %v9812
        %v9823 = vpack.c.bf16 %v9815, %v9814
        %v9824 = vld [vmem:[%s9] sm:$0xf]
        %v9825 = vld [vmem:[%s9 + $0x4] sm:$0xf]
        %v9826 = vld [vmem:[%s10] sm:$0x1]
        %v9828 = vperm.slane %v9826, 0
        %v9832 = vunpack.c.l.b16 %v9824
        %v9833 = vunpack.c.l.b16 %v9825
        %v9834 = vpack.c.b16 %v9833, %v9832
        %v9837 = vsel %vm1145, %v9816, 0
        %v9840 = vsel %vm1145, %v9817, 0
        %v9843 = vsel %vm1145, %v9818, 0
        %v9846 = vsel %vm1145, %v9819, 0
        %v9849 = vsel %vm1145, %v9820, 0
        %v9852 = vsel %vm1145, %v9821, 0
        %v9855 = vsel %vm1145, %v9822, 0
        %v9858 = vsel %vm1145, %v9823, 0
        %9860 = vmatpush.bf16.msra.mxu0 0
        %9861 = vmatpush.bf16.msra.mxu0 0
        %9862 = vmatpush.bf16.msra.mxu0 0
        %9863 = vmatpush.bf16.msra.mxu0 0
        %9864 = vmatpush.bf16.msra.mxu0 0
        %9865 = vmatpush.bf16.msra.mxu0 0
        %9866 = vmatpush.bf16.msra.mxu0 0
        %9867 = vmatpush.bf16.msra.mxu0 %v9834
        %9868 = vmatmul.bf16.gmra.mxu0 %v9837
        %v9869 = vpop.f32.mrf.mxu0
        %v9870 = vadd.f32 %v9828, %v9869
        %v9871 = vpop.f32.mrf.mxu0
        %v9872 = vadd.f32 %v9828, %v9871
        %9873 = vmatmul.bf16.gmra.mxu0 %v9840
        %v9874 = vpop.f32.mrf.mxu0
        %v9875 = vadd.f32 %v9828, %v9874
        %v9876 = vpop.f32.mrf.mxu0
        %v9877 = vadd.f32 %v9828, %v9876
        %9878 = vmatmul.bf16.gmra.mxu0 %v9843
        %v9879 = vpop.f32.mrf.mxu0
        %v9880 = vadd.f32 %v9828, %v9879
        %v9881 = vpop.f32.mrf.mxu0
        %v9882 = vadd.f32 %v9828, %v9881
        %9883 = vmatmul.bf16.gmra.mxu0 %v9846
        %v9884 = vpop.f32.mrf.mxu0
        %v9885 = vadd.f32 %v9828, %v9884
        %v9886 = vpop.f32.mrf.mxu0
        %v9887 = vadd.f32 %v9828, %v9886
        %9888 = vmatmul.bf16.gmra.mxu0 %v9849
        %v9889 = vpop.f32.mrf.mxu0
        %v9890 = vadd.f32 %v9828, %v9889
        %v9891 = vpop.f32.mrf.mxu0
        %v9892 = vadd.f32 %v9828, %v9891
        %9893 = vmatmul.bf16.gmra.mxu0 %v9852
        %v9894 = vpop.f32.mrf.mxu0
        %v9895 = vadd.f32 %v9828, %v9894
        %v9896 = vpop.f32.mrf.mxu0
        %v9897 = vadd.f32 %v9828, %v9896
        %9898 = vmatmul.bf16.gmra.mxu0 %v9855
        %v9899 = vpop.f32.mrf.mxu0
        %v9900 = vadd.f32 %v9828, %v9899
        %v9901 = vpop.f32.mrf.mxu0
        %v9902 = vadd.f32 %v9828, %v9901
        %9903 = vmatmul.bf16.gmra.mxu0 %v9858
        %v9904 = vpop.f32.mrf.mxu0
        %v9905 = vadd.f32 %v9828, %v9904
        %v9906 = vpop.f32.mrf.mxu0
        %v9907 = vadd.f32 %v9828, %v9906
        %9908 = vdwg.mxu0
        %s9909 = sld [smem:[#allocation8 + $0x1b]]
        %s9910 = sld [smem:[#allocation8 + $0x1d]]
        %v9911 = vstv %s9909
        %v9912 = vmul.f32 %v9911, %v9622
        %v9913 = vmul.f32 %v9911, %v9623
        %v9914 = vmul.f32 %v9911, %v9624
        %v9915 = vmul.f32 %v9911, %v9625
        %v9916 = vmul.f32 %v9911, %v9626
        %v9917 = vmul.f32 %v9911, %v9627
        %v9918 = vmul.f32 %v9911, %v9628
        %v9919 = vmul.f32 %v9911, %v9629
        %v9920 = vmul.f32 %v9911, %v9630
        %v9921 = vmul.f32 %v9911, %v9631
        %v9922 = vmul.f32 %v9911, %v9632
        %v9923 = vmul.f32 %v9911, %v9633
        %v9924 = vmul.f32 %v9911, %v9634
        %v9925 = vmul.f32 %v9911, %v9635
        %v9926 = vmul.f32 %v9911, %v9636
        %v9927 = vmul.f32 %v9911, %v9637
        %v9928 = vstv %s9910
        %v9929 = vmul.f32 %v9928, %v9728
        %v9930 = vmul.f32 %v9928, %v9730
        %v9931 = vmul.f32 %v9928, %v9733
        %v9932 = vmul.f32 %v9928, %v9735
        %v9933 = vmul.f32 %v9928, %v9738
        %v9934 = vmul.f32 %v9928, %v9740
        %v9935 = vmul.f32 %v9928, %v9743
        %v9936 = vmul.f32 %v9928, %v9745
        %v9937 = vmul.f32 %v9928, %v9781
        %v9938 = vmul.f32 %v9928, %v9783
        %v9939 = vmul.f32 %v9928, %v9786
        %v9940 = vmul.f32 %v9928, %v9788
        %v9941 = vmul.f32 %v9928, %v9791
        %v9942 = vmul.f32 %v9928, %v9793
        %v9943 = vmul.f32 %v9928, %v9796
        %v9944 = vmul.f32 %v9928, %v9798
        %v9945 = vadd.f32 %v9912, %v9929
        %v9946 = vadd.f32 %v9913, %v9930
        %v9947 = vadd.f32 %v9914, %v9931
        %v9948 = vadd.f32 %v9915, %v9932
        %v9949 = vadd.f32 %v9916, %v9933
        %v9950 = vadd.f32 %v9917, %v9934
        %v9951 = vadd.f32 %v9918, %v9935
        %v9952 = vadd.f32 %v9919, %v9936
        %v9953 = vadd.f32 %v9920, %v9937
        %v9954 = vadd.f32 %v9921, %v9938
        %v9955 = vadd.f32 %v9922, %v9939
        %v9956 = vadd.f32 %v9923, %v9940
        %v9957 = vadd.f32 %v9924, %v9941
        %v9958 = vadd.f32 %v9925, %v9942
        %v9959 = vadd.f32 %v9926, %v9943
        %v9960 = vadd.f32 %v9927, %v9944
        %v9961 = vadd.f32 %v9945, %v9870
        %v9962 = vadd.f32 %v9946, %v9872
        %v9963 = vadd.f32 %v9947, %v9875
        %v9964 = vadd.f32 %v9948, %v9877
        %v9965 = vadd.f32 %v9949, %v9880
        %v9966 = vadd.f32 %v9950, %v9882
        %v9967 = vadd.f32 %v9951, %v9885
        %v9968 = vadd.f32 %v9952, %v9887
        %v9969 = vadd.f32 %v9953, %v9890
        %v9970 = vadd.f32 %v9954, %v9892
        %v9971 = vadd.f32 %v9955, %v9895
        %v9972 = vadd.f32 %v9956, %v9897
        %v9973 = vadd.f32 %v9957, %v9900
        %v9974 = vadd.f32 %v9958, %v9902
        %v9975 = vadd.f32 %v9959, %v9905
        %v9976 = vadd.f32 %v9960, %v9907
        %s9977 = sld [smem:[#allocation8 + $0x27]]
        %s9978 = sld [smem:[#allocation8 + $0x29]]
        %v9979 = vstv %s9977
        %v9980 = vmul.f32 %v9979, %v9622
        %v9981 = vmul.f32 %v9979, %v9623
        %v9982 = vmul.f32 %v9979, %v9624
        %v9983 = vmul.f32 %v9979, %v9625
        %v9984 = vmul.f32 %v9979, %v9626
        %v9985 = vmul.f32 %v9979, %v9627
        %v9986 = vmul.f32 %v9979, %v9628
        %v9987 = vmul.f32 %v9979, %v9629
        %v9988 = vmul.f32 %v9979, %v9630
        %v9989 = vmul.f32 %v9979, %v9631
        %v9990 = vmul.f32 %v9979, %v9632
        %v9991 = vmul.f32 %v9979, %v9633
        %v9992 = vmul.f32 %v9979, %v9634
        %v9993 = vmul.f32 %v9979, %v9635
        %v9994 = vmul.f32 %v9979, %v9636
        %v9995 = vmul.f32 %v9979, %v9637
        %v9996 = vstv %s9978
        %v9997 = vmul.f32 %v9996, %v9728
        %v9998 = vmul.f32 %v9996, %v9730
        %v9999 = vmul.f32 %v9996, %v9733
        %v10000 = vmul.f32 %v9996, %v9735
        %v10001 = vmul.f32 %v9996, %v9738
        %v10002 = vmul.f32 %v9996, %v9740
        %v10003 = vmul.f32 %v9996, %v9743
        %v10004 = vmul.f32 %v9996, %v9745
        %v10005 = vmul.f32 %v9996, %v9781
        %v10006 = vmul.f32 %v9996, %v9783
        %v10007 = vmul.f32 %v9996, %v9786
        %v10008 = vmul.f32 %v9996, %v9788
        %v10009 = vmul.f32 %v9996, %v9791
        %v10010 = vmul.f32 %v9996, %v9793
        %v10011 = vmul.f32 %v9996, %v9796
        %v10012 = vmul.f32 %v9996, %v9798
        %v10013 = vadd.f32 %v9980, %v9997
        %v10014 = vadd.f32 %v9981, %v9998
        %v10015 = vadd.f32 %v9982, %v9999
        %v10016 = vadd.f32 %v9983, %v10000
        %v10017 = vadd.f32 %v9984, %v10001
        %v10018 = vadd.f32 %v9985, %v10002
        %v10019 = vadd.f32 %v9986, %v10003
        %v10020 = vadd.f32 %v9987, %v10004
        %v10021 = vadd.f32 %v9988, %v10005
        %v10022 = vadd.f32 %v9989, %v10006
        %v10023 = vadd.f32 %v9990, %v10007
        %v10024 = vadd.f32 %v9991, %v10008
        %v10025 = vadd.f32 %v9992, %v10009
        %v10026 = vadd.f32 %v9993, %v10010
        %v10027 = vadd.f32 %v9994, %v10011
        %v10028 = vadd.f32 %v9995, %v10012
        %10045 = vrot.lane.b32.xlu0 %v9870, 112
        %v10046 = vpop.permute.xlu0 %10045
        %10047 = vrot.lane.b32.xlu0 %v9872, 112
        %v10048 = vpop.permute.xlu0 %10047
        %10049 = vrot.lane.b32.xlu0 %v9875, 112
        %v10050 = vpop.permute.xlu0 %10049
        %10051 = vrot.lane.b32.xlu0 %v9877, 112
        %v10052 = vpop.permute.xlu0 %10051
        %10053 = vrot.lane.b32.xlu0 %v9880, 112
        %v10054 = vpop.permute.xlu0 %10053
        %10055 = vrot.lane.b32.xlu0 %v9882, 112
        %v10056 = vpop.permute.xlu0 %10055
        %10057 = vrot.lane.b32.xlu0 %v9885, 112
        %v10058 = vpop.permute.xlu0 %10057
        %10059 = vrot.lane.b32.xlu0 %v9887, 112
        %v10060 = vpop.permute.xlu0 %10059
        %10061 = vrot.lane.b32.xlu0 %v9890, 112
        %v10062 = vpop.permute.xlu0 %10061
        %10063 = vrot.lane.b32.xlu0 %v9892, 112
        %v10064 = vpop.permute.xlu0 %10063
        %10065 = vrot.lane.b32.xlu0 %v9895, 112
        %v10066 = vpop.permute.xlu0 %10065
        %10067 = vrot.lane.b32.xlu0 %v9897, 112
        %v10068 = vpop.permute.xlu0 %10067
        %10069 = vrot.lane.b32.xlu0 %v9900, 112
        %v10070 = vpop.permute.xlu0 %10069
        %10071 = vrot.lane.b32.xlu0 %v9902, 112
        %v10072 = vpop.permute.xlu0 %10071
        %10073 = vrot.lane.b32.xlu0 %v9905, 112
        %v10074 = vpop.permute.xlu0 %10073
        %10075 = vrot.lane.b32.xlu0 %v9907, 112
        %v10076 = vpop.permute.xlu0 %10075
        %v10093 = vadd.f32 %v10013, %v10046
        %v10094 = vadd.f32 %v10014, %v10048
        %v10095 = vadd.f32 %v10015, %v10050
        %v10096 = vadd.f32 %v10016, %v10052
        %v10097 = vadd.f32 %v10017, %v10054
        %v10098 = vadd.f32 %v10018, %v10056
        %v10099 = vadd.f32 %v10019, %v10058
        %v10100 = vadd.f32 %v10020, %v10060
        %v10101 = vadd.f32 %v10021, %v10062
        %v10102 = vadd.f32 %v10022, %v10064
        %v10103 = vadd.f32 %v10023, %v10066
        %v10104 = vadd.f32 %v10024, %v10068
        %v10105 = vadd.f32 %v10025, %v10070
        %v10106 = vadd.f32 %v10026, %v10072
        %v10107 = vadd.f32 %v10027, %v10074
        %v10108 = vadd.f32 %v10028, %v10076
        %10125 = vrot.lane.b32.xlu0 %v10093, 16
        %v10126 = vpop.permute.xlu0 %10125
        %10127 = vrot.lane.b32.xlu0 %v10094, 16
        %v10128 = vpop.permute.xlu0 %10127
        %10129 = vrot.lane.b32.xlu0 %v10095, 16
        %v10130 = vpop.permute.xlu0 %10129
        %10131 = vrot.lane.b32.xlu0 %v10096, 16
        %v10132 = vpop.permute.xlu0 %10131
        %10133 = vrot.lane.b32.xlu0 %v10097, 16
        %v10134 = vpop.permute.xlu0 %10133
        %10135 = vrot.lane.b32.xlu0 %v10098, 16
        %v10136 = vpop.permute.xlu0 %10135
        %10137 = vrot.lane.b32.xlu0 %v10099, 16
        %v10138 = vpop.permute.xlu0 %10137
        %10139 = vrot.lane.b32.xlu0 %v10100, 16
        %v10140 = vpop.permute.xlu0 %10139
        %10141 = vrot.lane.b32.xlu0 %v10101, 16
        %v10142 = vpop.permute.xlu0 %10141
        %10143 = vrot.lane.b32.xlu0 %v10102, 16
        %v10144 = vpop.permute.xlu0 %10143
        %10145 = vrot.lane.b32.xlu0 %v10103, 16
        %v10146 = vpop.permute.xlu0 %10145
        %10147 = vrot.lane.b32.xlu0 %v10104, 16
        %v10148 = vpop.permute.xlu0 %10147
        %10149 = vrot.lane.b32.xlu0 %v10105, 16
        %v10150 = vpop.permute.xlu0 %10149
        %10151 = vrot.lane.b32.xlu0 %v10106, 16
        %v10152 = vpop.permute.xlu0 %10151
        %10153 = vrot.lane.b32.xlu0 %v10107, 16
        %v10154 = vpop.permute.xlu0 %10153
        %10155 = vrot.lane.b32.xlu0 %v10108, 16
        %v10156 = vpop.permute.xlu0 %10155
        %v10173 = vsel %vm1145, %v9961, %v10126
        %v10174 = vsel %vm1145, %v9962, %v10128
        %v10175 = vsel %vm1145, %v9963, %v10130
        %v10176 = vsel %vm1145, %v9964, %v10132
        %v10177 = vsel %vm1145, %v9965, %v10134
        %v10178 = vsel %vm1145, %v9966, %v10136
        %v10179 = vsel %vm1145, %v9967, %v10138
        %v10180 = vsel %vm1145, %v9968, %v10140
        %v10181 = vsel %vm1145, %v9969, %v10142
        %v10182 = vsel %vm1145, %v9970, %v10144
        %v10183 = vsel %vm1145, %v9971, %v10146
        %v10184 = vsel %vm1145, %v9972, %v10148
        %v10185 = vsel %vm1145, %v9973, %v10150
        %v10186 = vsel %vm1145, %v9974, %v10152
        %v10187 = vsel %vm1145, %v9975, %v10154
        %v10188 = vsel %vm1145, %v9976, %v10156
        %v10189 = vld [vmem:[%s16] sm:$0xf]
        %v10190 = vld [vmem:[%s16 + $0x4] sm:$0xf]
        %v10191 = vpack.c.bf16 %v10173, %v10173
        %v10192 = vpack.c.bf16 %v10174, %v10174
        %v10193 = vpack.c.bf16 %v10175, %v10175
        %v10194 = vpack.c.bf16 %v10176, %v10176
        %v10195 = vpack.c.bf16 %v10177, %v10177
        %v10196 = vpack.c.bf16 %v10178, %v10178
        %v10197 = vpack.c.bf16 %v10179, %v10179
        %v10198 = vpack.c.bf16 %v10180, %v10180
        %v10199 = vpack.c.bf16 %v10181, %v10181
        %v10200 = vpack.c.bf16 %v10182, %v10182
        %v10201 = vpack.c.bf16 %v10183, %v10183
        %v10202 = vpack.c.bf16 %v10184, %v10184
        %v10203 = vpack.c.bf16 %v10185, %v10185
        %v10204 = vpack.c.bf16 %v10186, %v10186
        %v10205 = vpack.c.bf16 %v10187, %v10187
        %v10206 = vpack.c.bf16 %v10188, %v10188
        %v10209 = vunpack.c.l.b16 %v10189
        %v10210 = vunpack.c.l.b16 %v10190
        %v10211 = vpack.c.b16 %v10210, %v10209
        %v10220 = vunpack.c.l.b16 %v10191
        %v10221 = vunpack.c.l.b16 %v10192
        %v10222 = vunpack.c.l.b16 %v10193
        %v10223 = vunpack.c.l.b16 %v10194
        %v10224 = vunpack.c.l.b16 %v10195
        %v10225 = vunpack.c.l.b16 %v10196
        %v10226 = vunpack.c.l.b16 %v10197
        %v10227 = vunpack.c.l.b16 %v10198
        %v10228 = vpack.c.b16 %v10221, %v10220
        %v10229 = vpack.c.b16 %v10223, %v10222
        %v10230 = vpack.c.b16 %v10225, %v10224
        %v10231 = vpack.c.b16 %v10227, %v10226
        %v10237 = vsel %vm9056, %v10211, 0
        %10239 = vmatpush.bf16.msra.mxu0 0
        %10240 = vmatpush.bf16.msra.mxu0 0
        %10241 = vmatpush.bf16.msra.mxu0 0
        %10242 = vmatpush.bf16.msra.mxu0 0
        %10243 = vmatpush.bf16.msra.mxu0 %v10231
        %10244 = vmatpush.bf16.msra.mxu0 %v10230
        %10245 = vmatpush.bf16.msra.mxu0 %v10229
        %10246 = vmatpush.bf16.msra.mxu0 %v10228
        %10247 = vmatmul.bf16.gmra.mxu0 %v10237
        %v10248 = vpop.f32.mrf.mxu0
        %v10249 = vadd.f32 0.0, %v10248
        %v10250 = vpop.f32.mrf.mxu0
        %v10251 = vadd.f32 0.0, %v10250
        %10252 = vdwg.mxu0
        %v10261 = vunpack.c.l.b16 %v10199
        %v10262 = vunpack.c.l.b16 %v10200
        %v10263 = vunpack.c.l.b16 %v10201
        %v10264 = vunpack.c.l.b16 %v10202
        %v10265 = vunpack.c.l.b16 %v10203
        %v10266 = vunpack.c.l.b16 %v10204
        %v10267 = vunpack.c.l.b16 %v10205
        %v10268 = vunpack.c.l.b16 %v10206
        %v10269 = vpack.c.b16 %v10262, %v10261
        %v10270 = vpack.c.b16 %v10264, %v10263
        %v10271 = vpack.c.b16 %v10266, %v10265
        %v10272 = vpack.c.b16 %v10268, %v10267
        %10277 = vmatpush.bf16.msra.mxu0 0
        %10278 = vmatpush.bf16.msra.mxu0 0
        %10279 = vmatpush.bf16.msra.mxu0 0
        %10280 = vmatpush.bf16.msra.mxu0 0
        %10281 = vmatpush.bf16.msra.mxu0 %v10272
        %10282 = vmatpush.bf16.msra.mxu0 %v10271
        %10283 = vmatpush.bf16.msra.mxu0 %v10270
        %10284 = vmatpush.bf16.msra.mxu0 %v10269
        %10285 = vmatmul.bf16.gmra.mxu0 %v10237
        %v10286 = vpop.f32.mrf.mxu0
        %v10287 = vadd.f32 0.0, %v10286
        %v10288 = vpop.f32.mrf.mxu0
        %v10289 = vadd.f32 0.0, %v10288
        %10290 = vdwg.mxu0
        %v10291 = vld [vmem:[#allocation6] sm:$0xff]
        %v10292 = vld [vmem:[#allocation6 + $0x8] sm:$0xff]
        %v10293 = vld [vmem:[#allocation6 + $0x10] sm:$0xff]
        %v10294 = vld [vmem:[#allocation6 + $0x18] sm:$0xff]
        %v10295 = vadd.f32 %v10291, %v10249
        %v10296 = vadd.f32 %v10292, %v10251
        %v10297 = vadd.f32 %v10293, %v10287
        %v10298 = vadd.f32 %v10294, %v10289
        %10299 = vst.msk [vmem:[#allocation6] sm:$0xff] %vm1145, %v10295
        %10300 = vst.msk [vmem:[#allocation6 + $0x8] sm:$0xff] %vm1145, %v10296
        %10301 = vst.msk [vmem:[#allocation6 + $0x10] sm:$0xff] %vm1145, %v10297
        %10302 = vst.msk [vmem:[#allocation6 + $0x18] sm:$0xff] %vm1145, %v10298
        %v10303 = vld [vmem:[#allocation7] sm:$0xff]
        %v10304 = vld [vmem:[#allocation7 + $0x8] sm:$0xff]
        %v10305 = vld [vmem:[#allocation7 + $0x10] sm:$0xff]
        %v10306 = vld [vmem:[#allocation7 + $0x18] sm:$0xff]
        %10311 = vrot.lane.b32.xlu0 %v10249, 112
        %v10312 = vpop.permute.xlu0 %10311
        %10313 = vrot.lane.b32.xlu0 %v10251, 112
        %v10314 = vpop.permute.xlu0 %10313
        %10315 = vrot.lane.b32.xlu0 %v10287, 112
        %v10316 = vpop.permute.xlu0 %10315
        %10317 = vrot.lane.b32.xlu0 %v10289, 112
        %v10318 = vpop.permute.xlu0 %10317
        %v10323 = vadd.f32 %v10303, %v10312
        %v10324 = vadd.f32 %v10304, %v10314
        %v10325 = vadd.f32 %v10305, %v10316
        %v10326 = vadd.f32 %v10306, %v10318
        %10327 = vst.msk [vmem:[#allocation7] sm:$0xff] %vm1145, %v10323
        %10328 = vst.msk [vmem:[#allocation7 + $0x8] sm:$0xff] %vm1145, %v10324
        %10329 = vst.msk [vmem:[#allocation7 + $0x10] sm:$0xff] %vm1145, %v10325
        %10330 = vst.msk [vmem:[#allocation7 + $0x18] sm:$0xff] %vm1145, %v10326
        %v10331 = vld [vmem:[#allocation6] sm:$0xff]
        %v10332 = vld [vmem:[#allocation6 + $0x8] sm:$0xff]
        %v10333 = vld [vmem:[#allocation6 + $0x10] sm:$0xff]
        %v10334 = vld [vmem:[#allocation6 + $0x18] sm:$0xff]
        %v10335 = vld [vmem:[%s15] sm:$0xf]
        %v10336 = vld [vmem:[%s15 + $0x4] sm:$0xf]
        %v10337 = vpack.c.bf16 %v10331, %v10331
        %v10338 = vpack.c.bf16 %v10332, %v10332
        %v10339 = vpack.c.bf16 %v10333, %v10333
        %v10340 = vpack.c.bf16 %v10334, %v10334
        %v10343 = vunpack.c.l.b16 %v10335
        %v10344 = vunpack.c.l.b16 %v10336
        %v10345 = vpack.c.b16 %v10344, %v10343
        %v10348 = vunpack.c.l.b16 %v10337
        %v10349 = vunpack.c.l.b16 %v10338
        %v10350 = vpack.c.b16 %v10349, %v10348
        %v10353 = vsel %vm1145, %v10345, 0
        %10355 = vmatpush.bf16.msra.mxu0 0
        %10356 = vmatpush.bf16.msra.mxu0 0
        %10357 = vmatpush.bf16.msra.mxu0 0
        %10358 = vmatpush.bf16.msra.mxu0 0
        %10359 = vmatpush.bf16.msra.mxu0 0
        %10360 = vmatpush.bf16.msra.mxu0 0
        %10361 = vmatpush.bf16.msra.mxu0 0
        %10362 = vmatpush.bf16.msra.mxu0 %v10350
        %10363 = vmatmul.bf16.gmra.mxu0 %v10353
        %v10364 = vpop.f32.mrf.mxu0
        %v10365 = vadd.f32 0.0, %v10364
        %v10366 = vpop.f32.mrf.mxu0
        %v10367 = vadd.f32 0.0, %v10366
        %10368 = vdwg.mxu0
        %v10371 = vunpack.c.l.b16 %v10339
        %v10372 = vunpack.c.l.b16 %v10340
        %v10373 = vpack.c.b16 %v10372, %v10371
        %10375 = vmatpush.bf16.msra.mxu0 0
        %10376 = vmatpush.bf16.msra.mxu0 0
        %10377 = vmatpush.bf16.msra.mxu0 0
        %10378 = vmatpush.bf16.msra.mxu0 0
        %10379 = vmatpush.bf16.msra.mxu0 0
        %10380 = vmatpush.bf16.msra.mxu0 0
        %10381 = vmatpush.bf16.msra.mxu0 0
        %10382 = vmatpush.bf16.msra.mxu0 %v10373
        %10383 = vmatmul.bf16.gmra.mxu0 %v10353
        %v10384 = vpop.f32.mrf.mxu0
        %v10385 = vadd.f32 0.0, %v10384
        %v10386 = vpop.f32.mrf.mxu0
        %v10387 = vadd.f32 0.0, %v10386
        %10388 = vdwg.mxu0
        %v10389 = vmax.f32 %v10331, 0.0
        %v10390 = vmax.f32 %v10332, 0.0
        %v10391 = vmax.f32 %v10333, 0.0
        %v10392 = vmax.f32 %v10334, 0.0
        %v10393 = vpack.c.bf16 %v10390, %v10389
        %v10394 = vpack.c.bf16 %v10392, %v10391
        %v10395 = vld [vmem:[%s11] sm:$0xf]
        %v10396 = vld [vmem:[%s11 + $0x4] sm:$0xf]
        %v10397 = vld [vmem:[%s12] sm:$0x1]
        %v10399 = vperm.slane %v10397, 0
        %v10403 = vunpack.c.l.b16 %v10395
        %v10404 = vunpack.c.l.b16 %v10396
        %v10405 = vpack.c.b16 %v10404, %v10403
        %v10408 = vsel %vm1145, %v10393, 0
        %v10411 = vsel %vm1145, %v10394, 0
        %10413 = vmatpush.bf16.msra.mxu0 0
        %10414 = vmatpush.bf16.msra.mxu0 0
        %10415 = vmatpush.bf16.msra.mxu0 0
        %10416 = vmatpush.bf16.msra.mxu0 0
        %10417 = vmatpush.bf16.msra.mxu0 0
        %10418 = vmatpush.bf16.msra.mxu0 0
        %10419 = vmatpush.bf16.msra.mxu0 0
        %10420 = vmatpush.bf16.msra.mxu0 %v10405
        %10421 = vmatmul.bf16.gmra.mxu0 %v10408
        %v10422 = vpop.f32.mrf.mxu0
        %v10423 = vadd.f32 %v10399, %v10422
        %v10424 = vpop.f32.mrf.mxu0
        %v10425 = vadd.f32 %v10399, %v10424
        %10426 = vmatmul.bf16.gmra.mxu0 %v10411
        %v10427 = vpop.f32.mrf.mxu0
        %v10428 = vadd.f32 %v10399, %v10427
        %v10429 = vpop.f32.mrf.mxu0
        %v10430 = vadd.f32 %v10399, %v10429
        %10431 = vdwg.mxu0
        %s10432 = sld [smem:[#allocation8 + $0x2a]]
        %s10433 = sld [smem:[#allocation8 + $0x2c]]
        %v10434 = vstv %s10432
        %v10435 = vmul.f32 %v10434, %v10331
        %v10436 = vmul.f32 %v10434, %v10332
        %v10437 = vmul.f32 %v10434, %v10333
        %v10438 = vmul.f32 %v10434, %v10334
        %v10439 = vstv %s10433
        %v10440 = vmul.f32 %v10439, %v10365
        %v10441 = vmul.f32 %v10439, %v10367
        %v10442 = vmul.f32 %v10439, %v10385
        %v10443 = vmul.f32 %v10439, %v10387
        %v10444 = vadd.f32 %v10435, %v10440
        %v10445 = vadd.f32 %v10436, %v10441
        %v10446 = vadd.f32 %v10437, %v10442
        %v10447 = vadd.f32 %v10438, %v10443
        %v10448 = vadd.f32 %v10444, %v10423
        %v10449 = vadd.f32 %v10445, %v10425
        %v10450 = vadd.f32 %v10446, %v10428
        %v10451 = vadd.f32 %v10447, %v10430
        %v10452 = vld [vmem:[#allocation7] sm:$0xff]
        %v10453 = vld [vmem:[#allocation7 + $0x8] sm:$0xff]
        %v10454 = vld [vmem:[#allocation7 + $0x10] sm:$0xff]
        %v10455 = vld [vmem:[#allocation7 + $0x18] sm:$0xff]
        %v10456 = vadd.f32 %v10452, %v10448
        %v10457 = vadd.f32 %v10453, %v10449
        %v10458 = vadd.f32 %v10454, %v10450
        %v10459 = vadd.f32 %v10455, %v10451
        %10460 = vst.msk [vmem:[#allocation7] sm:$0xff] %vm1145, %v10456
        %10461 = vst.msk [vmem:[#allocation7 + $0x8] sm:$0xff] %vm1145, %v10457
        %10462 = vst.msk [vmem:[#allocation7 + $0x10] sm:$0xff] %vm1145, %v10458
        %10463 = vst.msk [vmem:[#allocation7 + $0x18] sm:$0xff] %vm1145, %v10459
        %v10464 = vld [vmem:[#allocation7] sm:$0xff]
        %v10465 = vld [vmem:[#allocation7 + $0x8] sm:$0xff]
        %v10466 = vld [vmem:[#allocation7 + $0x10] sm:$0xff]
        %v10467 = vld [vmem:[#allocation7 + $0x18] sm:$0xff]
        %10468 = vst.msk [vmem:[%s637] sm:$0xff] %vm1145, %v10464
        %10469 = vst.msk [vmem:[%s637 + $0x8] sm:$0xff] %vm1145, %v10465
        %10470 = vst.msk [vmem:[%s637 + $0x10] sm:$0xff] %vm1145, %v10466
        %10471 = vst.msk [vmem:[%s637 + $0x18] sm:$0xff] %vm1145, %v10467
        %s10472 = sand.u32 %s468, 1
        %s10473 = scalar_lea.sflag [#allocation9], %s10472
        %s10474 = sand.u32 %s468, 1
        %s10475 = smul.addr %s10474, 32
        %s10476 = scalar_lea.vmem [#allocation11], %s10475
        // Predicated region
        $region105: #{forward.1} parent=99 // pred_check
          %p10477 = pneg %p478
        $region106: #{forward.1} parent=99 // pred_check_branch
          %10479 = sbr.rel (%p10477) target = $region108
        $region107: #{forward.1} parent=99 // pred_region
          %s10480 = smul.u32 4, %s35
          %10482 = vsyncadd %s10473, 0
          %s10483 = smul.addr %s10480, 8
          %s10484 = scalar_lea.hbm %s20, %s10483
          %s10485 = sshll.u32 %s10476, 4
          %s10486 = int_to_ptr.vmem [resolvable:$true] %s10485
          %s10487 = sshll.u32 %s10484, 4
          %s10488 = int_to_ptr.hbm [resolvable:$true] %s10487
          %10493 = dma.vmem_to_hbm [thread:$0]  %s10486, 512, %s10488, %s10473, 128, 128, 8
        $region108: #{forward.1} parent=99 // pred_fallthru
          _
      $region100: #{forward.1} parent=5 // pred_fallthru
        _
      %p10494 = scmp.le.s32.totalorder 2, %s30
      // Predicated region
      $region109: #{forward.1} parent=5 // pred_check
        %p10495 = pneg %p10494
      $region110: #{forward.1} parent=5 // pred_check_branch
        %10497 = sbr.rel (%p10495) target = $region112
      $region111: #{forward.1} parent=5 // pred_region
        %s10498 = ssub.s32 %s30, 2
        // Predicated region
        $region113: #{forward.1} parent=111 // pred_check
          %p10499 = pneg %p484
        $region114: #{forward.1} parent=111 // pred_check_branch
          %10501 = sbr.rel (%p10499) target = $region116
        $region115: #{forward.1} parent=111 // pred_region
          %s10502 = sand.u32 %s469, 1
          %s10503 = scalar_lea.sflag [#allocation9], %s10502
          %s10504 = sand.u32 %s469, 1
          %s10505 = smul.addr %s10504, 32
          %s10506 = scalar_lea.vmem [#allocation11], %s10505
          %10508 = dma.done %s10503, 512
        $region116: #{forward.1} parent=111 // pred_fallthru
          _
      $region112: #{forward.1} parent=5 // pred_fallthru
        _
    $region6: #{forward.1} parent=1 // loop_footer
      %s34 = sadd.s32 1, %s30
    $region7: #{forward.1} parent=1 // loop_footer_branch
      %29 = sbr.rel target = $region3
    $region8: #{forward.1} parent=1 // loop_exit
      _
    %10509 = vsyncpa [#allocation9], 1
    %s10510 = scalar_lea.sflag [#allocation9], 1
    %10511 = vsyncpa %s10510, 1
    %10512 = vsyncpa [#allocation10], 1
    %s10513 = scalar_lea.sflag [#allocation10], 1
    %10514 = vsyncpa %s10513, 1

</llo_original>
